<compile_context>
chip_gen: v7x
topology: tpu7x:2x2x1
jax: 0.10.0
libtpu: 0.0.40
codegen_flags: <defaults>
</compile_context>

<pallas_src>
import math

import jax
import jax.numpy as jnp
from jax.experimental import pallas as pl
from jax.experimental.pallas import tpu as pltpu

# ----------------------- small hyper-parameters (consistent with the module) -----------------
B = 2              # batch
N_MELS = 16        # frequency bins  (torch default 80)
T_IN = 80          # input time steps -> after two 2x2 pools T' = 20
C1 = 8             # first MultiScaleCNNBlock out channels (torch: 32)
C2 = 16            # second block out channels == cnn_channels (torch: 64)
D_MODEL = 32       # transformer d_model (torch: 256)
NHEAD = 4          # (torch: 8)
HD = D_MODEL // NHEAD
DFF = 64           # transformer feed-forward dim (torch default: 2048)
N_LAYERS = 2       # (torch: 4)
MAX_SPEAKERS = 4
NUM_ELEMENTS = 10
LN_EPS = 1e-5

OUT_FREQ = N_MELS // 4            # 4
T_PRIME = T_IN // 4               # 20  (sequence length after the CNN)
FEAT = C2 * OUT_FREQ              # 64  (input_proj input features)
SEG = T_PRIME // NUM_ELEMENTS     # 2

# megacore split of the fused encoder+head kernel (v7x: 2 TensorCores)
N_SPLIT = 2
T_HALF = T_PRIME // N_SPLIT       # 10 time positions per half
S_HALF = T_HALF * B               # 20 token rows per half, rows ordered t*B + b
NEH = NUM_ELEMENTS // N_SPLIT     # 5 pooled elements per half
assert NEH * SEG == T_HALF and NUM_ELEMENTS % N_SPLIT == 0


# ===================================== Pallas kernels =========================================

def _ms_block_kernel(cols_ref, wbd_ref, bbd_ref, wf_ref, bf_ref, out_ref):
    """MultiScaleCNNBlock hot path, one batch element per grid step.

    cols: (1, 27*Cin, H*W) bf16   im2col columns for all three dilations stacked on K
    wbd : (3*Cout, 27*Cin) bf16   block-diagonal packing of the three branch weights
    bbd : (3*Cout, 1)      f32    branch biases
    wf  : (Cout, 3*Cout)   bf16   1x1 fuse conv
    bf  : (Cout, 1)        f32
    out : (1, Cout, H*W)   f32    pre-maxpool output (lane-dense: H*W on lanes)
    """
    cols = cols_ref[0]                                                    # (27*Cin, HW)
    y = jnp.dot(wbd_ref[...], cols, preferred_element_type=jnp.float32) + bbd_ref[...]
    y = jnp.maximum(y, 0.0)                                               # ReLU, (3*Cout, HW)
    out_ref[0] = (jnp.dot(wf_ref[...], y.astype(jnp.bfloat16),
                          preferred_element_type=jnp.float32) + bf_ref[...])


def _encoder_head_kernel(x_ref, pe_ref, mask_ref, pmat_ref,
                         pw_ref, pb_ref,
                         wqkv_ref, bqkv_ref, wo_ref, bo_ref,
                         w1_ref, b1_ref, w2_ref, b2_ref,
                         g1_ref, e1_ref, g2_ref, e2_ref,
                         gw_ref, gb_ref, fcw_ref, fcb_ref,
                         out_ref):
    """input_proj + PE + N_LAYERS post-norm encoder layers + gate + pool + fc + sigmoid.

    One grid step processes one half of T' (S_HALF = T_HALF*B token rows, ordered t*B+b).
    Attention runs over the original batch axis B (the module's permute/batch_first quirk),
    implemented as a full S_HALF x S_HALF softmax with a block-diagonal additive mask.
    """
    f32 = jnp.float32
    bf16 = jnp.bfloat16
    scale = 1.0 / math.sqrt(HD)

    def layer_norm(z, g, e):
        mu = jnp.mean(z, axis=-1, keepdims=True)
        var = jnp.mean((z - mu) ** 2, axis=-1, keepdims=True)
        return (z - mu) * jax.lax.rsqrt(var + LN_EPS) * g + e

    # ---- input_proj (FEAT -> D) + positional encoding ----
    x = (jnp.dot(x_ref[0].astype(bf16), pw_ref[...], preferred_element_type=f32)
         + pb_ref[...] + pe_ref[0])                                       # (S_HALF, D) f32

    mask = mask_ref[...]                                                  # (S_HALF, S_HALF)

    # ---- transformer encoder layers (post-norm, relu FF, eval dropout = identity) ----
    for l in range(N_LAYERS):
        # fused QKV projection: (S, D) @ (D, 3D)
        qkv = (jnp.dot(x.astype(bf16), wqkv_ref[l], preferred_element_type=f32)
               + bqkv_ref[l])                                             # (S, 3D)
        heads = []
        for h in range(NHEAD):
            qh = qkv[:, h * HD:(h + 1) * HD]
            kh = qkv[:, D_MODEL + h * HD:D_MODEL + (h + 1) * HD]
            vh = qkv[:, 2 * D_MODEL + h * HD:2 * D_MODEL + (h + 1) * HD]
            s = jax.lax.dot_general(qh, kh, (((1,), (1,)), ((), ())),
                                    preferred_element_type=f32) * scale + mask
            s = s - jnp.max(s, axis=-1, keepdims=True)
            p = jnp.exp(s)
            p = p * pl.reciprocal(jnp.sum(p, axis=-1, keepdims=True), approx=True)
            heads.append(jnp.dot(p, vh, preferred_element_type=f32))      # (S, HD)
        attn = (jnp.dot(jnp.concatenate(heads, axis=-1).astype(bf16), wo_ref[l],
                        preferred_element_type=f32) + bo_ref[l])          # (S, D)
        x = layer_norm(x + attn, g1_ref[l], e1_ref[l])                    # norm1(x + sa(x))
        h1 = jnp.maximum(jnp.dot(x.astype(bf16), w1_ref[l],
                                 preferred_element_type=f32) + b1_ref[l], 0.0)
        h2 = jnp.dot(h1.astype(bf16), w2_ref[l],
                     preferred_element_type=f32) + b2_ref[l]
        x = layer_norm(x + h2, g2_ref[l], e2_ref[l])                      # norm2(x + ff(x))

    # ---- AdaptiveAttention gate (sigmoid), dropout = identity ----
    gate_logits = (jnp.dot(x.astype(bf16), gw_ref[...], preferred_element_type=f32)
                   + gb_ref[...])
    x = x * pl.reciprocal(1.0 + jnp.exp(-gate_logits), approx=True)

    # ---- segment mean (as a pooling matmul) + fc + sigmoid ----
    pooled = jnp.dot(pmat_ref[...], x, preferred_element_type=f32)        # (NEH*B, D)
    logits = (jnp.dot(pooled.astype(bf16), fcw_ref[...], preferred_element_type=f32)
              + fcb_ref[...])                                             # (NEH*B, MS)
    out_ref[0] = 1.0 / (1.0 + jnp.exp(-logits))                           # exact sigmoid


# ===================================== wrappers ===============================================

def _full_spec(shape):
    return pl.BlockSpec(shape, lambda i: (0,) * len(shape))


def _im2col_cat(x_nchw):
    """All-dilation im2col: (B, Cin, H, W) -> (B, 27*Cin, H*W).

    Row order: dilation (1,2,3) major, then tap (ky*3+kx), then cin.
    """
    b, cin, h, w = x_nchw.shape
    xp = jnp.pad(x_nchw, ((0, 0), (0, 0), (3, 3), (3, 3)))   # single pad = max dilation
    taps = []
    for d in (1, 2, 3):
        for ky in range(3):
            for kx in range(3):
                dy = 3 - d + ky * d
                dx = 3 - d + kx * d
                taps.append(xp[:, :, dy:dy + h, dx:dx + w])
    cols = jnp.stack(taps, axis=1)                            # (B, 27, Cin, H, W)
    return cols.reshape(b, 27 * cin, h * w)


def _pack_branch_weights(p, cin, cout):
    """Pack the three dilation-branch weights into one block-diagonal (3*Cout, 27*Cin)."""
    k = 9 * cin
    wbd = jnp.zeros((3 * cout, 27 * cin), jnp.float32)
    wbd = wbd.at[0:cout, 0:k].set(p['w1'])
    wbd = wbd.at[cout:2 * cout, k:2 * k].set(p['w2'])
    wbd = wbd.at[2 * cout:, 2 * k:].set(p['w3'])
    bbd = jnp.concatenate([p['b1'], p['b2'], p['b3']], axis=0)            # (3*Cout, 1)
    return wbd.astype(jnp.bfloat16), bbd


def ms_block(x_nchw, p, cout):
    """MultiScaleCNNBlock: merged dilated convs + relu + 1x1 fuse in Pallas; pool in glue."""
    b, cin, h, w = x_nchw.shape
    hw = h * w
    # TODO(synk): im2col + MaxPool2d(2,2) stay in plain-JAX glue (pure data rearrangement of
    # <1 MB tensors); the conv / fuse matmul hot path runs in the Pallas kernel.
    cols = _im2col_cat(x_nchw).astype(jnp.bfloat16)                       # (B, 27*Cin, HW)
    wbd, bbd = _pack_branch_weights(p, cin, cout)

    out = pl.pallas_call(
        _ms_block_kernel,
        out_shape=jax.ShapeDtypeStruct((b, cout, hw), jnp.float32),
        grid=(b,),
        in_specs=[pl.BlockSpec((1, 27 * cin, hw), lambda i: (i, 0, 0)),
                  pl.BlockSpec((3 * cout, 27 * cin), lambda i: (0, 0)),
                  pl.BlockSpec((3 * cout, 1), lambda i: (0, 0)),
                  pl.BlockSpec((cout, 3 * cout), lambda i: (0, 0)),
                  pl.BlockSpec((cout, 1), lambda i: (0, 0))],
        out_specs=pl.BlockSpec((1, cout, hw), lambda i: (i, 0, 0)),
        compiler_params=pltpu.CompilerParams(dimension_semantics=("parallel",)),
    )(cols, wbd, bbd, p['wf'].astype(jnp.bfloat16), p['bf'])

    y = out.reshape(b, cout, h, w)
    return y.reshape(b, cout, h // 2, 2, w // 2, 2).max(axis=(3, 5))      # MaxPool2d(2,2)


def encoder_head(feats_tb, pe_rep, mask, pmat, p):
    """Fused input_proj + PE + transformer encoder + gate + pool + fc + sigmoid."""
    bf = lambda a: a.astype(jnp.bfloat16)

    def half3(d2):
        return pl.BlockSpec((1, S_HALF, d2), lambda i: (i, 0, 0))

    out = pl.pallas_call(
        _encoder_head_kernel,
        out_shape=jax.ShapeDtypeStruct((N_SPLIT, NEH * B, MAX_SPEAKERS), jnp.float32),
        grid=(N_SPLIT,),
        in_specs=[half3(FEAT), half3(D_MODEL),
                  _full_spec((S_HALF, S_HALF)), _full_spec((NEH * B, S_HALF)),
                  _full_spec((FEAT, D_MODEL)), _full_spec((1, D_MODEL)),
                  _full_spec((N_LAYERS, D_MODEL, 3 * D_MODEL)),
                  _full_spec((N_LAYERS, 1, 3 * D_MODEL)),
                  _full_spec((N_LAYERS, D_MODEL, D_MODEL)),
                  _full_spec((N_LAYERS, 1, D_MODEL)),
                  _full_spec((N_LAYERS, D_MODEL, DFF)),
                  _full_spec((N_LAYERS, 1, DFF)),
                  _full_spec((N_LAYERS, DFF, D_MODEL)),
                  _full_spec((N_LAYERS, 1, D_MODEL)),
                  _full_spec((N_LAYERS, 1, D_MODEL)), _full_spec((N_LAYERS, 1, D_MODEL)),
                  _full_spec((N_LAYERS, 1, D_MODEL)), _full_spec((N_LAYERS, 1, D_MODEL)),
                  _full_spec((D_MODEL, D_MODEL)), _full_spec((1, D_MODEL)),
                  _full_spec((D_MODEL, MAX_SPEAKERS)), _full_spec((1, MAX_SPEAKERS))],
        out_specs=pl.BlockSpec((1, NEH * B, MAX_SPEAKERS), lambda i: (i, 0, 0)),
        compiler_params=pltpu.CompilerParams(dimension_semantics=("parallel",)),
    )(feats_tb, pe_rep, mask, pmat,
      bf(p['proj_w']), p['proj_b'],
      bf(p['wqkv']), p['bqkv'], bf(p['wo']), p['bo'],
      bf(p['w1']), p['b1'], bf(p['w2']), p['b2'],
      p['g1'], p['e1'], p['g2'], p['e2'],
      bf(p['gate_w']), p['gate_b'], bf(p['fc_w']), p['fc_b'])
    return out


# ===================================== model glue =============================================

def _positional_encoding(length, d):
    pos = jnp.arange(length, dtype=jnp.float32)[:, None]
    div = jnp.exp(jnp.arange(0, d, 2, dtype=jnp.float32) * (-math.log(10000.0) / d))
    pe = jnp.zeros((length, d), jnp.float32)
    pe = pe.at[:, 0::2].set(jnp.sin(pos * div))
    pe = pe.at[:, 1::2].set(jnp.cos(pos * div))
    return pe


def _init_params(key):
    keys = iter(jax.random.split(key, 48))

    def w(shape, scale=0.05):
        return scale * jax.random.normal(next(keys), shape, dtype=jnp.float32)

    def cnn_block(cin, cout):
        k = 9 * cin   # conv weight laid out as (Cout, 9*Cin): col = (ky*3+kx)*Cin + cin
        return dict(w1=w((cout, k)), b1=w((cout, 1)),
                    w2=w((cout, k)), b2=w((cout, 1)),
                    w3=w((cout, k)), b3=w((cout, 1)),
                    wf=w((cout, 3 * cout)), bf=w((cout, 1)))

    params = {'cnn1': cnn_block(1, C1), 'cnn2': cnn_block(C1, C2),
              'proj_w': w((FEAT, D_MODEL)), 'proj_b': w((1, D_MODEL))}
    # transformer layers stacked on a leading layer axis; QKV fused as (D, 3D)
    params.update(
        wqkv=w((N_LAYERS, D_MODEL, 3 * D_MODEL)), bqkv=w((N_LAYERS, 1, 3 * D_MODEL)),
        wo=w((N_LAYERS, D_MODEL, D_MODEL)), bo=w((N_LAYERS, 1, D_MODEL)),
        w1=w((N_LAYERS, D_MODEL, DFF)), b1=w((N_LAYERS, 1, DFF)),
        w2=w((N_LAYERS, DFF, D_MODEL)), b2=w((N_LAYERS, 1, D_MODEL)),
        g1=jnp.ones((N_LAYERS, 1, D_MODEL), jnp.float32),
        e1=jnp.zeros((N_LAYERS, 1, D_MODEL), jnp.float32),
        g2=jnp.ones((N_LAYERS, 1, D_MODEL), jnp.float32),
        e2=jnp.zeros((N_LAYERS, 1, D_MODEL), jnp.float32),
        gate_w=w((D_MODEL, D_MODEL)), gate_b=w((1, D_MODEL)),
        fc_w=w((D_MODEL, MAX_SPEAKERS)), fc_b=w((1, MAX_SPEAKERS)))
    return params


def audio_diarization_forward(x_nchw, params):
    assert x_nchw.shape == (B, 1, N_MELS, T_IN)
    x = x_nchw.astype(jnp.float32)                                    # NCHW, matches torch
    y1 = ms_block(x, params['cnn1'], C1)                              # (B, C1, H/2,  W/2)
    y2 = ms_block(y1, params['cnn2'], C2)                             # (B, C2, F,    T')

    # torch: permute(0,3,1,2).view(B, T', C*F) -> feature index = c*OUT_FREQ + f
    feats = jnp.transpose(y2, (0, 3, 1, 2)).reshape(B, T_PRIME, FEAT)
    # torch permutes tokens to (T', B, D) while the encoder layer is batch_first=True,
    # so attention runs over the original batch axis B: order rows as (t, b).
    feats_tb = jnp.transpose(feats, (1, 0, 2)).reshape(N_SPLIT, S_HALF, FEAT)

    pe = _positional_encoding(T_PRIME, D_MODEL)
    pe_rep = jnp.repeat(pe, B, axis=0).reshape(N_SPLIT, S_HALF, D_MODEL)

    # block-diagonal additive attention mask (rows with the same t attend to each other)
    grp = jnp.arange(S_HALF) // B
    mask = jnp.where(grp[:, None] == grp[None, :], 0.0, -1e30).astype(jnp.float32)

    # segment-mean pooling matrix: pooled[e*B + b] = mean over t in segment e of token (t, b)
    r = jnp.arange(NEH * B)
    c = jnp.arange(S_HALF)
    pmat = ((((r[:, None] % B) == (c[None, :] % B))
             & ((c[None, :] // B) // SEG == (r[:, None] // B)))
            .astype(jnp.float32) / float(SEG))

    out = encoder_head(feats_tb, pe_rep, mask, pmat, params)          # (N_SPLIT, NEH*B, MS)
    out = out.reshape(NUM_ELEMENTS, B, MAX_SPEAKERS)                  # rows ordered (e, b)
    return jnp.transpose(out, (1, 0, 2))                              # (B, num_elements, max_speakers)


# ===================================== main ===================================================

if __name__ == "__main__":
    key = jax.random.PRNGKey(0)
    pkey, xkey = jax.random.split(key)
    params = _init_params(pkey)
    x = jax.random.normal(xkey, (B, 1, N_MELS, T_IN), dtype=jnp.float32)

    out = jax.jit(audio_diarization_forward)(x, params)
    out = jax.block_until_ready(out)

    assert out.shape == (B, NUM_ELEMENTS, MAX_SPEAKERS), out.shape
    assert bool(jnp.all(jnp.isfinite(out)))
    assert bool(jnp.all((out >= 0.0) & (out <= 1.0)))   # sigmoid output
    print("KERNEL_OK")
</pallas_src>

<mosaic_0001>
module attributes {stable_mosaic.version = 11 : i64} {
  func.func @_ms_block_kernel(%arg0: i32, %arg1: memref<1x27x1280xbf16, #tpu.memory_space<vmem>>, %arg2: memref<24x27xbf16, #tpu.memory_space<vmem>>, %arg3: memref<24x1xf32, #tpu.memory_space<vmem>>, %arg4: memref<8x24xbf16, #tpu.memory_space<vmem>>, %arg5: memref<8x1xf32, #tpu.memory_space<vmem>>, %arg6: memref<1x8x1280xf32, #tpu.memory_space<vmem>>) attributes {dimension_semantics = [#tpu.dimension_semantics<parallel>], iteration_bounds = array<i64: 2>, scalar_prefetch = 0 : i64, scratch_operands = 0 : i64, tpu.core_type = #tpu.core_type<tc>, window_params = [{transform_indices = @transform_0, window_bounds = array<i64: 1, 27, 1280>}, {pipeline_mode = #tpu.pipeline_mode<synchronous>, transform_indices = @transform_1, window_bounds = array<i64: 24, 27>}, {pipeline_mode = #tpu.pipeline_mode<synchronous>, transform_indices = @transform_2, window_bounds = array<i64: 24, 1>}, {pipeline_mode = #tpu.pipeline_mode<synchronous>, transform_indices = @transform_3, window_bounds = array<i64: 8, 24>}, {pipeline_mode = #tpu.pipeline_mode<synchronous>, transform_indices = @transform_4, window_bounds = array<i64: 8, 1>}, {transform_indices = @transform_5, window_bounds = array<i64: 1, 8, 1280>}]} {
    %c0 = arith.constant 0 : index
    %c0_0 = arith.constant 0 : index
    %c0_1 = arith.constant 0 : index
    %0 = vector.load %arg1[%c0, %c0_0, %c0_1] : memref<1x27x1280xbf16, #tpu.memory_space<vmem>>, vector<1x27x1280xbf16>
    %1 = vector.shape_cast %0 : vector<1x27x1280xbf16> to vector<27x1280xbf16>
    %c0_2 = arith.constant 0 : index
    %c0_3 = arith.constant 0 : index
    %2 = vector.load %arg2[%c0_2, %c0_3] : memref<24x27xbf16, #tpu.memory_space<vmem>>, vector<24x27xbf16>
    %cst = arith.constant dense<0.000000e+00> : vector<24x1280xf32>
    %3 = tpu.matmul %2, %1, %cst {dimension_numbers = #tpu.dot_dimension_numbers<[1], [0], [0], [1], [0, 0, 1, 1], [], []>} : vector<24x27xbf16>, vector<27x1280xbf16>, vector<24x1280xf32> -> vector<24x1280xf32>
    %c0_4 = arith.constant 0 : index
    %c0_5 = arith.constant 0 : index
    %4 = vector.load %arg3[%c0_4, %c0_5] : memref<24x1xf32, #tpu.memory_space<vmem>>, vector<24x1xf32>
    %5 = vector.broadcast %4 : vector<24x1xf32> to vector<24x1280xf32>
    %6 = arith.addf %3, %5 : vector<24x1280xf32>
    %cst_6 = arith.constant 0.000000e+00 : f32
    %7 = vector.broadcast %cst_6 : f32 to vector<24x1280xf32>
    %8 = arith.maximumf %6, %7 : vector<24x1280xf32>
    %c0_7 = arith.constant 0 : index
    %c0_8 = arith.constant 0 : index
    %9 = vector.load %arg4[%c0_7, %c0_8] : memref<8x24xbf16, #tpu.memory_space<vmem>>, vector<8x24xbf16>
    %10 = arith.truncf %8 : vector<24x1280xf32> to vector<24x1280xbf16>
    %cst_9 = arith.constant dense<0.000000e+00> : vector<8x1280xf32>
    %11 = tpu.matmul %9, %10, %cst_9 {dimension_numbers = #tpu.dot_dimension_numbers<[1], [0], [0], [1], [0, 0, 1, 1], [], []>} : vector<8x24xbf16>, vector<24x1280xbf16>, vector<8x1280xf32> -> vector<8x1280xf32>
    %c0_10 = arith.constant 0 : index
    %c0_11 = arith.constant 0 : index
    %12 = vector.load %arg5[%c0_10, %c0_11] : memref<8x1xf32, #tpu.memory_space<vmem>>, vector<8x1xf32>
    %13 = vector.broadcast %12 : vector<8x1xf32> to vector<8x1280xf32>
    %14 = arith.addf %11, %13 : vector<8x1280xf32>
    %c0_12 = arith.constant 0 : index
    %c0_13 = arith.constant 0 : index
    %c0_14 = arith.constant 0 : index
    %15 = vector.load %arg6[%c0_12, %c0_13, %c0_14] : memref<1x8x1280xf32, #tpu.memory_space<vmem>>, vector<1x8x1280xf32>
    %16 = vector.shape_cast %15 : vector<1x8x1280xf32> to vector<8x1280xf32>
    %17 = vector.shape_cast %14 : vector<8x1280xf32> to vector<1x8x1280xf32>
    tpu.vector_store %arg6[%c0_12, %c0_13, %c0_14], %17 {strides = array<i32>} : memref<1x8x1280xf32, #tpu.memory_space<vmem>>, vector<1x8x1280xf32>,
    return
  }
  func.func @transform_0(%arg0: i32) -> (i32, i32, i32) {
    %c0_i32 = arith.constant 0 : i32
    %c0_i32_0 = arith.constant 0 : i32
    %c0_i32_1 = arith.constant 0 : i32
    return %arg0, %c0_i32, %c0_i32_0 : i32, i32, i32
  }
  func.func @transform_1(%arg0: i32) -> (i32, i32) {
    %c0_i32 = arith.constant 0 : i32
    %c0_i32_0 = arith.constant 0 : i32
    %c0_i32_1 = arith.constant 0 : i32
    return %c0_i32, %c0_i32_0 : i32, i32
  }
  func.func @transform_2(%arg0: i32) -> (i32, i32) {
    %c0_i32 = arith.constant 0 : i32
    %c0_i32_0 = arith.constant 0 : i32
    %c0_i32_1 = arith.constant 0 : i32
    return %c0_i32, %c0_i32_0 : i32, i32
  }
  func.func @transform_3(%arg0: i32) -> (i32, i32) {
    %c0_i32 = arith.constant 0 : i32
    %c0_i32_0 = arith.constant 0 : i32
    %c0_i32_1 = arith.constant 0 : i32
    return %c0_i32, %c0_i32_0 : i32, i32
  }
  func.func @transform_4(%arg0: i32) -> (i32, i32) {
    %c0_i32 = arith.constant 0 : i32
    %c0_i32_0 = arith.constant 0 : i32
    %c0_i32_1 = arith.constant 0 : i32
    return %c0_i32, %c0_i32_0 : i32, i32
  }
  func.func @transform_5(%arg0: i32) -> (i32, i32, i32) {
    %c0_i32 = arith.constant 0 : i32
    %c0_i32_0 = arith.constant 0 : i32
    %c0_i32_1 = arith.constant 0 : i32
    return %arg0, %c0_i32, %c0_i32_0 : i32, i32, i32
  }
}

module attributes {stable_mosaic.version = 11 : i64} {
  func.func @_ms_block_kernel(%arg0: i32, %arg1: memref<1x216x320xbf16, #tpu.memory_space<vmem>>, %arg2: memref<48x216xbf16, #tpu.memory_space<vmem>>, %arg3: memref<48x1xf32, #tpu.memory_space<vmem>>, %arg4: memref<16x48xbf16, #tpu.memory_space<vmem>>, %arg5: memref<16x1xf32, #tpu.memory_space<vmem>>, %arg6: memref<1x16x320xf32, #tpu.memory_space<vmem>>) attributes {dimension_semantics = [#tpu.dimension_semantics<parallel>], iteration_bounds = array<i64: 2>, scalar_prefetch = 0 : i64, scratch_operands = 0 : i64, tpu.core_type = #tpu.core_type<tc>, window_params = [{transform_indices = @transform_0, window_bounds = array<i64: 1, 216, 320>}, {pipeline_mode = #tpu.pipeline_mode<synchronous>, transform_indices = @transform_1, window_bounds = array<i64: 48, 216>}, {pipeline_mode = #tpu.pipeline_mode<synchronous>, transform_indices = @transform_2, window_bounds = array<i64: 48, 1>}, {pipeline_mode = #tpu.pipeline_mode<synchronous>, transform_indices = @transform_3, window_bounds = array<i64: 16, 48>}, {pipeline_mode = #tpu.pipeline_mode<synchronous>, transform_indices = @transform_4, window_bounds = array<i64: 16, 1>}, {transform_indices = @transform_5, window_bounds = array<i64: 1, 16, 320>}]} {
    %c0 = arith.constant 0 : index
    %c0_0 = arith.constant 0 : index
    %c0_1 = arith.constant 0 : index
    %0 = vector.load %arg1[%c0, %c0_0, %c0_1] : memref<1x216x320xbf16, #tpu.memory_space<vmem>>, vector<1x216x320xbf16>
    %1 = vector.shape_cast %0 : vector<1x216x320xbf16> to vector<216x320xbf16>
    %c0_2 = arith.constant 0 : index
    %c0_3 = arith.constant 0 : index
    %2 = vector.load %arg2[%c0_2, %c0_3] : memref<48x216xbf16, #tpu.memory_space<vmem>>, vector<48x216xbf16>
    %cst = arith.constant dense<0.000000e+00> : vector<48x320xf32>
    %3 = tpu.matmul %2, %1, %cst {dimension_numbers = #tpu.dot_dimension_numbers<[1], [0], [0], [1], [0, 0, 1, 1], [], []>} : vector<48x216xbf16>, vector<216x320xbf16>, vector<48x320xf32> -> vector<48x320xf32>
    %c0_4 = arith.constant 0 : index
    %c0_5 = arith.constant 0 : index
    %4 = vector.load %arg3[%c0_4, %c0_5] : memref<48x1xf32, #tpu.memory_space<vmem>>, vector<48x1xf32>
    %5 = vector.broadcast %4 : vector<48x1xf32> to vector<48x320xf32>
    %6 = arith.addf %3, %5 : vector<48x320xf32>
    %cst_6 = arith.constant 0.000000e+00 : f32
    %7 = vector.broadcast %cst_6 : f32 to vector<48x320xf32>
    %8 = arith.maximumf %6, %7 : vector<48x320xf32>
    %c0_7 = arith.constant 0 : index
    %c0_8 = arith.constant 0 : index
    %9 = vector.load %arg4[%c0_7, %c0_8] : memref<16x48xbf16, #tpu.memory_space<vmem>>, vector<16x48xbf16>
    %10 = arith.truncf %8 : vector<48x320xf32> to vector<48x320xbf16>
    %cst_9 = arith.constant dense<0.000000e+00> : vector<16x320xf32>
    %11 = tpu.matmul %9, %10, %cst_9 {dimension_numbers = #tpu.dot_dimension_numbers<[1], [0], [0], [1], [0, 0, 1, 1], [], []>} : vector<16x48xbf16>, vector<48x320xbf16>, vector<16x320xf32> -> vector<16x320xf32>
    %c0_10 = arith.constant 0 : index
    %c0_11 = arith.constant 0 : index
    %12 = vector.load %arg5[%c0_10, %c0_11] : memref<16x1xf32, #tpu.memory_space<vmem>>, vector<16x1xf32>
    %13 = vector.broadcast %12 : vector<16x1xf32> to vector<16x320xf32>
    %14 = arith.addf %11, %13 : vector<16x320xf32>
    %c0_12 = arith.constant 0 : index
    %c0_13 = arith.constant 0 : index
    %c0_14 = arith.constant 0 : index
    %15 = vector.load %arg6[%c0_12, %c0_13, %c0_14] : memref<1x16x320xf32, #tpu.memory_space<vmem>>, vector<1x16x320xf32>
    %16 = vector.shape_cast %15 : vector<1x16x320xf32> to vector<16x320xf32>
    %17 = vector.shape_cast %14 : vector<16x320xf32> to vector<1x16x320xf32>
    tpu.vector_store %arg6[%c0_12, %c0_13, %c0_14], %17 {strides = array<i32>} : memref<1x16x320xf32, #tpu.memory_space<vmem>>, vector<1x16x320xf32>,
    return
  }
  func.func @transform_0(%arg0: i32) -> (i32, i32, i32) {
    %c0_i32 = arith.constant 0 : i32
    %c0_i32_0 = arith.constant 0 : i32
    %c0_i32_1 = arith.constant 0 : i32
    return %arg0, %c0_i32, %c0_i32_0 : i32, i32, i32
  }
  func.func @transform_1(%arg0: i32) -> (i32, i32) {
    %c0_i32 = arith.constant 0 : i32
    %c0_i32_0 = arith.constant 0 : i32
    %c0_i32_1 = arith.constant 0 : i32
    return %c0_i32, %c0_i32_0 : i32, i32
  }
  func.func @transform_2(%arg0: i32) -> (i32, i32) {
    %c0_i32 = arith.constant 0 : i32
    %c0_i32_0 = arith.constant 0 : i32
    %c0_i32_1 = arith.constant 0 : i32
    return %c0_i32, %c0_i32_0 : i32, i32
  }
  func.func @transform_3(%arg0: i32) -> (i32, i32) {
    %c0_i32 = arith.constant 0 : i32
    %c0_i32_0 = arith.constant 0 : i32
    %c0_i32_1 = arith.constant 0 : i32
    return %c0_i32, %c0_i32_0 : i32, i32
  }
  func.func @transform_4(%arg0: i32) -> (i32, i32) {
    %c0_i32 = arith.constant 0 : i32
    %c0_i32_0 = arith.constant 0 : i32
    %c0_i32_1 = arith.constant 0 : i32
    return %c0_i32, %c0_i32_0 : i32, i32
  }
  func.func @transform_5(%arg0: i32) -> (i32, i32, i32) {
    %c0_i32 = arith.constant 0 : i32
    %c0_i32_0 = arith.constant 0 : i32
    %c0_i32_1 = arith.constant 0 : i32
    return %arg0, %c0_i32, %c0_i32_0 : i32, i32, i32
  }
}

module attributes {stable_mosaic.version = 11 : i64} {
  func.func @_encoder_head_kernel(%arg0: i32, %arg1: memref<1x20x64xf32, #tpu.memory_space<vmem>>, %arg2: memref<1x20x32xf32, #tpu.memory_space<vmem>>, %arg3: memref<20x20xf32, #tpu.memory_space<vmem>>, %arg4: memref<10x20xf32, #tpu.memory_space<vmem>>, %arg5: memref<64x32xbf16, #tpu.memory_space<vmem>>, %arg6: memref<1x32xf32, #tpu.memory_space<vmem>>, %arg7: memref<2x32x96xbf16, #tpu.memory_space<vmem>>, %arg8: memref<2x1x96xf32, #tpu.memory_space<vmem>>, %arg9: memref<2x32x32xbf16, #tpu.memory_space<vmem>>, %arg10: memref<2x1x32xf32, #tpu.memory_space<vmem>>, %arg11: memref<2x32x64xbf16, #tpu.memory_space<vmem>>, %arg12: memref<2x1x64xf32, #tpu.memory_space<vmem>>, %arg13: memref<2x64x32xbf16, #tpu.memory_space<vmem>>, %arg14: memref<2x1x32xf32, #tpu.memory_space<vmem>>, %arg15: memref<2x1x32xf32, #tpu.memory_space<vmem>>, %arg16: memref<2x1x32xf32, #tpu.memory_space<vmem>>, %arg17: memref<2x1x32xf32, #tpu.memory_space<vmem>>, %arg18: memref<2x1x32xf32, #tpu.memory_space<vmem>>, %arg19: memref<32x32xbf16, #tpu.memory_space<vmem>>, %arg20: memref<1x32xf32, #tpu.memory_space<vmem>>, %arg21: memref<32x4xbf16, #tpu.memory_space<vmem>>, %arg22: memref<1x4xf32, #tpu.memory_space<vmem>>, %arg23: memref<1x10x4xf32, #tpu.memory_space<vmem>>) attributes {dimension_semantics = [#tpu.dimension_semantics<parallel>], iteration_bounds = array<i64: 2>, scalar_prefetch = 0 : i64, scratch_operands = 0 : i64, tpu.core_type = #tpu.core_type<tc>, window_params = [{transform_indices = @transform_0, window_bounds = array<i64: 1, 20, 64>}, {transform_indices = @transform_1, window_bounds = array<i64: 1, 20, 32>}, {pipeline_mode = #tpu.pipeline_mode<synchronous>, transform_indices = @transform_2, window_bounds = array<i64: 20, 20>}, {pipeline_mode = #tpu.pipeline_mode<synchronous>, transform_indices = @transform_3, window_bounds = array<i64: 10, 20>}, {pipeline_mode = #tpu.pipeline_mode<synchronous>, transform_indices = @transform_4, window_bounds = array<i64: 64, 32>}, {pipeline_mode = #tpu.pipeline_mode<synchronous>, transform_indices = @transform_5, window_bounds = array<i64: 1, 32>}, {pipeline_mode = #tpu.pipeline_mode<synchronous>, transform_indices = @transform_6, window_bounds = array<i64: 2, 32, 96>}, {pipeline_mode = #tpu.pipeline_mode<synchronous>, transform_indices = @transform_7, window_bounds = array<i64: 2, 1, 96>}, {pipeline_mode = #tpu.pipeline_mode<synchronous>, transform_indices = @transform_8, window_bounds = array<i64: 2, 32, 32>}, {pipeline_mode = #tpu.pipeline_mode<synchronous>, transform_indices = @transform_9, window_bounds = array<i64: 2, 1, 32>}, {pipeline_mode = #tpu.pipeline_mode<synchronous>, transform_indices = @transform_10, window_bounds = array<i64: 2, 32, 64>}, {pipeline_mode = #tpu.pipeline_mode<synchronous>, transform_indices = @transform_11, window_bounds = array<i64: 2, 1, 64>}, {pipeline_mode = #tpu.pipeline_mode<synchronous>, transform_indices = @transform_12, window_bounds = array<i64: 2, 64, 32>}, {pipeline_mode = #tpu.pipeline_mode<synchronous>, transform_indices = @transform_13, window_bounds = array<i64: 2, 1, 32>}, {pipeline_mode = #tpu.pipeline_mode<synchronous>, transform_indices = @transform_14, window_bounds = array<i64: 2, 1, 32>}, {pipeline_mode = #tpu.pipeline_mode<synchronous>, transform_indices = @transform_15, window_bounds = array<i64: 2, 1, 32>}, {pipeline_mode = #tpu.pipeline_mode<synchronous>, transform_indices = @transform_16, window_bounds = array<i64: 2, 1, 32>}, {pipeline_mode = #tpu.pipeline_mode<synchronous>, transform_indices = @transform_17, window_bounds = array<i64: 2, 1, 32>}, {pipeline_mode = #tpu.pipeline_mode<synchronous>, transform_indices = @transform_18, window_bounds = array<i64: 32, 32>}, {pipeline_mode = #tpu.pipeline_mode<synchronous>, transform_indices = @transform_19, window_bounds = array<i64: 1, 32>}, {pipeline_mode = #tpu.pipeline_mode<synchronous>, transform_indices = @transform_20, window_bounds = array<i64: 32, 4>}, {pipeline_mode = #tpu.pipeline_mode<synchronous>, transform_indices = @transform_21, window_bounds = array<i64: 1, 4>}, {transform_indices = @transform_22, window_bounds = array<i64: 1, 10, 4>}]} {
    %c0 = arith.constant 0 : index
    %c0_0 = arith.constant 0 : index
    %c0_1 = arith.constant 0 : index
    %0 = vector.load %arg1[%c0, %c0_0, %c0_1] : memref<1x20x64xf32, #tpu.memory_space<vmem>>, vector<1x20x64xf32>
    %1 = vector.shape_cast %0 : vector<1x20x64xf32> to vector<20x64xf32>
    %2 = arith.truncf %1 : vector<20x64xf32> to vector<20x64xbf16>
    %c0_2 = arith.constant 0 : index
    %c0_3 = arith.constant 0 : index
    %3 = vector.load %arg5[%c0_2, %c0_3] : memref<64x32xbf16, #tpu.memory_space<vmem>>, vector<64x32xbf16>
    %cst = arith.constant dense<0.000000e+00> : vector<20x32xf32>
    %4 = tpu.matmul %2, %3, %cst {dimension_numbers = #tpu.dot_dimension_numbers<[1], [0], [0], [1], [0, 0, 1, 1], [], []>} : vector<20x64xbf16>, vector<64x32xbf16>, vector<20x32xf32> -> vector<20x32xf32>
    %c0_4 = arith.constant 0 : index
    %c0_5 = arith.constant 0 : index
    %5 = vector.load %arg6[%c0_4, %c0_5] : memref<1x32xf32, #tpu.memory_space<vmem>>, vector<1x32xf32>
    %6 = vector.broadcast %5 : vector<1x32xf32> to vector<20x32xf32>
    %7 = arith.addf %4, %6 : vector<20x32xf32>
    %c0_6 = arith.constant 0 : index
    %c0_7 = arith.constant 0 : index
    %c0_8 = arith.constant 0 : index
    %8 = vector.load %arg2[%c0_6, %c0_7, %c0_8] : memref<1x20x32xf32, #tpu.memory_space<vmem>>, vector<1x20x32xf32>
    %9 = vector.shape_cast %8 : vector<1x20x32xf32> to vector<20x32xf32>
    %10 = arith.addf %7, %9 : vector<20x32xf32>
    %c0_9 = arith.constant 0 : index
    %c0_10 = arith.constant 0 : index
    %11 = vector.load %arg3[%c0_9, %c0_10] : memref<20x20xf32, #tpu.memory_space<vmem>>, vector<20x20xf32>
    %12 = arith.truncf %10 : vector<20x32xf32> to vector<20x32xbf16>
    %c0_11 = arith.constant 0 : index
    %c0_12 = arith.constant 0 : index
    %c0_13 = arith.constant 0 : index
    %13 = vector.load %arg7[%c0_11, %c0_12, %c0_13] : memref<2x32x96xbf16, #tpu.memory_space<vmem>>, vector<1x32x96xbf16>
    %14 = vector.shape_cast %13 : vector<1x32x96xbf16> to vector<32x96xbf16>
    %cst_14 = arith.constant dense<0.000000e+00> : vector<20x96xf32>
    %15 = tpu.matmul %12, %14, %cst_14 {dimension_numbers = #tpu.dot_dimension_numbers<[1], [0], [0], [1], [0, 0, 1, 1], [], []>} : vector<20x32xbf16>, vector<32x96xbf16>, vector<20x96xf32> -> vector<20x96xf32>
    %c0_15 = arith.constant 0 : index
    %c0_16 = arith.constant 0 : index
    %c0_17 = arith.constant 0 : index
    %16 = vector.load %arg8[%c0_15, %c0_16, %c0_17] : memref<2x1x96xf32, #tpu.memory_space<vmem>>, vector<1x1x96xf32>
    %17 = vector.shape_cast %16 : vector<1x1x96xf32> to vector<1x96xf32>
    %18 = vector.broadcast %17 : vector<1x96xf32> to vector<20x96xf32>
    %19 = arith.addf %15, %18 : vector<20x96xf32>
    %20 = vector.extract_strided_slice %19 {offsets = [0, 0], sizes = [20, 8], strides = [1, 1]} : vector<20x96xf32> to vector<20x8xf32>
    %21 = vector.extract_strided_slice %19 {offsets = [0, 32], sizes = [20, 8], strides = [1, 1]} : vector<20x96xf32> to vector<20x8xf32>
    %22 = vector.extract_strided_slice %19 {offsets = [0, 64], sizes = [20, 8], strides = [1, 1]} : vector<20x96xf32> to vector<20x8xf32>
    %cst_18 = arith.constant dense<0.000000e+00> : vector<20x20xf32>
    %23 = tpu.matmul %20, %21, %cst_18 {dimension_numbers = #tpu.dot_dimension_numbers<[1], [1], [0], [0], [0, 0, 1, 0], [], []>} : vector<20x8xf32>, vector<20x8xf32>, vector<20x20xf32> -> vector<20x20xf32>
    %cst_19 = arith.constant 0.353553385 : f32
    %24 = vector.broadcast %cst_19 : f32 to vector<20x20xf32>
    %25 = arith.mulf %23, %24 : vector<20x20xf32>
    %26 = arith.addf %25, %11 : vector<20x20xf32>
    %cst_20 = arith.constant dense<0xFF800000> : vector<20xf32>
    %27 = vector.multi_reduction <maximumf>, %26, %cst_20 [1] : vector<20x20xf32> to vector<20xf32>
    %28 = vector.shape_cast %27 : vector<20xf32> to vector<20x1xf32>
    %29 = vector.broadcast %28 : vector<20x1xf32> to vector<20x20xf32>
    %30 = arith.subf %26, %29 : vector<20x20xf32>
    %31 = math.exp %30 : vector<20x20xf32>
    %cst_21 = arith.constant dense<0.000000e+00> : vector<20xf32>
    %32 = vector.multi_reduction <add>, %31, %cst_21 [1] : vector<20x20xf32> to vector<20xf32>
    %33 = vector.shape_cast %32 : vector<20xf32> to vector<20x1xf32>
    %34 = tpu.reciprocal %33 {approx = true} : vector<20x1xf32> -> vector<20x1xf32>
    %35 = vector.broadcast %34 : vector<20x1xf32> to vector<20x20xf32>
    %36 = arith.mulf %31, %35 : vector<20x20xf32>
    %cst_22 = arith.constant dense<0.000000e+00> : vector<20x8xf32>
    %37 = tpu.matmul %36, %22, %cst_22 {dimension_numbers = #tpu.dot_dimension_numbers<[1], [0], [0], [1], [0, 0, 1, 1], [], []>} : vector<20x20xf32>, vector<20x8xf32>, vector<20x8xf32> -> vector<20x8xf32>
    %38 = vector.extract_strided_slice %19 {offsets = [0, 8], sizes = [20, 8], strides = [1, 1]} : vector<20x96xf32> to vector<20x8xf32>
    %39 = vector.extract_strided_slice %19 {offsets = [0, 40], sizes = [20, 8], strides = [1, 1]} : vector<20x96xf32> to vector<20x8xf32>
    %40 = vector.extract_strided_slice %19 {offsets = [0, 72], sizes = [20, 8], strides = [1, 1]} : vector<20x96xf32> to vector<20x8xf32>
    %cst_23 = arith.constant dense<0.000000e+00> : vector<20x20xf32>
    %41 = tpu.matmul %38, %39, %cst_23 {dimension_numbers = #tpu.dot_dimension_numbers<[1], [1], [0], [0], [0, 0, 1, 0], [], []>} : vector<20x8xf32>, vector<20x8xf32>, vector<20x20xf32> -> vector<20x20xf32>
    %cst_24 = arith.constant 0.353553385 : f32
    %42 = vector.broadcast %cst_24 : f32 to vector<20x20xf32>
    %43 = arith.mulf %41, %42 : vector<20x20xf32>
    %44 = arith.addf %43, %11 : vector<20x20xf32>
    %cst_25 = arith.constant dense<0xFF800000> : vector<20xf32>
    %45 = vector.multi_reduction <maximumf>, %44, %cst_25 [1] : vector<20x20xf32> to vector<20xf32>
    %46 = vector.shape_cast %45 : vector<20xf32> to vector<20x1xf32>
    %47 = vector.broadcast %46 : vector<20x1xf32> to vector<20x20xf32>
    %48 = arith.subf %44, %47 : vector<20x20xf32>
    %49 = math.exp %48 : vector<20x20xf32>
    %cst_26 = arith.constant dense<0.000000e+00> : vector<20xf32>
    %50 = vector.multi_reduction <add>, %49, %cst_26 [1] : vector<20x20xf32> to vector<20xf32>
    %51 = vector.shape_cast %50 : vector<20xf32> to vector<20x1xf32>
    %52 = tpu.reciprocal %51 {approx = true} : vector<20x1xf32> -> vector<20x1xf32>
    %53 = vector.broadcast %52 : vector<20x1xf32> to vector<20x20xf32>
    %54 = arith.mulf %49, %53 : vector<20x20xf32>
    %cst_27 = arith.constant dense<0.000000e+00> : vector<20x8xf32>
    %55 = tpu.matmul %54, %40, %cst_27 {dimension_numbers = #tpu.dot_dimension_numbers<[1], [0], [0], [1], [0, 0, 1, 1], [], []>} : vector<20x20xf32>, vector<20x8xf32>, vector<20x8xf32> -> vector<20x8xf32>
    %56 = vector.extract_strided_slice %19 {offsets = [0, 16], sizes = [20, 8], strides = [1, 1]} : vector<20x96xf32> to vector<20x8xf32>
    %57 = vector.extract_strided_slice %19 {offsets = [0, 48], sizes = [20, 8], strides = [1, 1]} : vector<20x96xf32> to vector<20x8xf32>
    %58 = vector.extract_strided_slice %19 {offsets = [0, 80], sizes = [20, 8], strides = [1, 1]} : vector<20x96xf32> to vector<20x8xf32>
    %cst_28 = arith.constant dense<0.000000e+00> : vector<20x20xf32>
    %59 = tpu.matmul %56, %57, %cst_28 {dimension_numbers = #tpu.dot_dimension_numbers<[1], [1], [0], [0], [0, 0, 1, 0], [], []>} : vector<20x8xf32>, vector<20x8xf32>, vector<20x20xf32> -> vector<20x20xf32>
    %cst_29 = arith.constant 0.353553385 : f32
    %60 = vector.broadcast %cst_29 : f32 to vector<20x20xf32>
    %61 = arith.mulf %59, %60 : vector<20x20xf32>
    %62 = arith.addf %61, %11 : vector<20x20xf32>
    %cst_30 = arith.constant dense<0xFF800000> : vector<20xf32>
    %63 = vector.multi_reduction <maximumf>, %62, %cst_30 [1] : vector<20x20xf32> to vector<20xf32>
    %64 = vector.shape_cast %63 : vector<20xf32> to vector<20x1xf32>
    %65 = vector.broadcast %64 : vector<20x1xf32> to vector<20x20xf32>
    %66 = arith.subf %62, %65 : vector<20x20xf32>
    %67 = math.exp %66 : vector<20x20xf32>
    %cst_31 = arith.constant dense<0.000000e+00> : vector<20xf32>
    %68 = vector.multi_reduction <add>, %67, %cst_31 [1] : vector<20x20xf32> to vector<20xf32>
    %69 = vector.shape_cast %68 : vector<20xf32> to vector<20x1xf32>
    %70 = tpu.reciprocal %69 {approx = true} : vector<20x1xf32> -> vector<20x1xf32>
    %71 = vector.broadcast %70 : vector<20x1xf32> to vector<20x20xf32>
    %72 = arith.mulf %67, %71 : vector<20x20xf32>
    %cst_32 = arith.constant dense<0.000000e+00> : vector<20x8xf32>
    %73 = tpu.matmul %72, %58, %cst_32 {dimension_numbers = #tpu.dot_dimension_numbers<[1], [0], [0], [1], [0, 0, 1, 1], [], []>} : vector<20x20xf32>, vector<20x8xf32>, vector<20x8xf32> -> vector<20x8xf32>
    %74 = vector.extract_strided_slice %19 {offsets = [0, 24], sizes = [20, 8], strides = [1, 1]} : vector<20x96xf32> to vector<20x8xf32>
    %75 = vector.extract_strided_slice %19 {offsets = [0, 56], sizes = [20, 8], strides = [1, 1]} : vector<20x96xf32> to vector<20x8xf32>
    %76 = vector.extract_strided_slice %19 {offsets = [0, 88], sizes = [20, 8], strides = [1, 1]} : vector<20x96xf32> to vector<20x8xf32>
    %cst_33 = arith.constant dense<0.000000e+00> : vector<20x20xf32>
    %77 = tpu.matmul %74, %75, %cst_33 {dimension_numbers = #tpu.dot_dimension_numbers<[1], [1], [0], [0], [0, 0, 1, 0], [], []>} : vector<20x8xf32>, vector<20x8xf32>, vector<20x20xf32> -> vector<20x20xf32>
    %cst_34 = arith.constant 0.353553385 : f32
    %78 = vector.broadcast %cst_34 : f32 to vector<20x20xf32>
    %79 = arith.mulf %77, %78 : vector<20x20xf32>
    %80 = arith.addf %79, %11 : vector<20x20xf32>
    %cst_35 = arith.constant dense<0xFF800000> : vector<20xf32>
    %81 = vector.multi_reduction <maximumf>, %80, %cst_35 [1] : vector<20x20xf32> to vector<20xf32>
    %82 = vector.shape_cast %81 : vector<20xf32> to vector<20x1xf32>
    %83 = vector.broadcast %82 : vector<20x1xf32> to vector<20x20xf32>
    %84 = arith.subf %80, %83 : vector<20x20xf32>
    %85 = math.exp %84 : vector<20x20xf32>
    %cst_36 = arith.constant dense<0.000000e+00> : vector<20xf32>
    %86 = vector.multi_reduction <add>, %85, %cst_36 [1] : vector<20x20xf32> to vector<20xf32>
    %87 = vector.shape_cast %86 : vector<20xf32> to vector<20x1xf32>
    %88 = tpu.reciprocal %87 {approx = true} : vector<20x1xf32> -> vector<20x1xf32>
    %89 = vector.broadcast %88 : vector<20x1xf32> to vector<20x20xf32>
    %90 = arith.mulf %85, %89 : vector<20x20xf32>
    %cst_37 = arith.constant dense<0.000000e+00> : vector<20x8xf32>
    %91 = tpu.matmul %90, %76, %cst_37 {dimension_numbers = #tpu.dot_dimension_numbers<[1], [0], [0], [1], [0, 0, 1, 1], [], []>} : vector<20x20xf32>, vector<20x8xf32>, vector<20x8xf32> -> vector<20x8xf32>
    %92 = tpu.concatenate %37, %55, %73, %91 in 1 : vector<20x8xf32>, vector<20x8xf32>, vector<20x8xf32>, vector<20x8xf32> -> vector<20x32xf32>
    %93 = arith.truncf %92 : vector<20x32xf32> to vector<20x32xbf16>
    %c0_38 = arith.constant 0 : index
    %c0_39 = arith.constant 0 : index
    %c0_40 = arith.constant 0 : index
    %94 = vector.load %arg9[%c0_38, %c0_39, %c0_40] : memref<2x32x32xbf16, #tpu.memory_space<vmem>>, vector<1x32x32xbf16>
    %95 = vector.shape_cast %94 : vector<1x32x32xbf16> to vector<32x32xbf16>
    %cst_41 = arith.constant dense<0.000000e+00> : vector<20x32xf32>
    %96 = tpu.matmul %93, %95, %cst_41 {dimension_numbers = #tpu.dot_dimension_numbers<[1], [0], [0], [1], [0, 0, 1, 1], [], []>} : vector<20x32xbf16>, vector<32x32xbf16>, vector<20x32xf32> -> vector<20x32xf32>
    %c0_42 = arith.constant 0 : index
    %c0_43 = arith.constant 0 : index
    %c0_44 = arith.constant 0 : index
    %97 = vector.load %arg10[%c0_42, %c0_43, %c0_44] : memref<2x1x32xf32, #tpu.memory_space<vmem>>, vector<1x1x32xf32>
    %98 = vector.shape_cast %97 : vector<1x1x32xf32> to vector<1x32xf32>
    %99 = vector.broadcast %98 : vector<1x32xf32> to vector<20x32xf32>
    %100 = arith.addf %96, %99 : vector<20x32xf32>
    %101 = arith.addf %10, %100 : vector<20x32xf32>
    %c0_45 = arith.constant 0 : index
    %c0_46 = arith.constant 0 : index
    %c0_47 = arith.constant 0 : index
    %102 = vector.load %arg15[%c0_45, %c0_46, %c0_47] : memref<2x1x32xf32, #tpu.memory_space<vmem>>, vector<1x1x32xf32>
    %103 = vector.shape_cast %102 : vector<1x1x32xf32> to vector<1x32xf32>
    %c0_48 = arith.constant 0 : index
    %c0_49 = arith.constant 0 : index
    %c0_50 = arith.constant 0 : index
    %104 = vector.load %arg16[%c0_48, %c0_49, %c0_50] : memref<2x1x32xf32, #tpu.memory_space<vmem>>, vector<1x1x32xf32>
    %105 = vector.shape_cast %104 : vector<1x1x32xf32> to vector<1x32xf32>
    %cst_51 = arith.constant dense<0.000000e+00> : vector<20xf32>
    %106 = vector.multi_reduction <add>, %101, %cst_51 [1] : vector<20x32xf32> to vector<20xf32>
    %107 = vector.shape_cast %106 : vector<20xf32> to vector<20x1xf32>
    %cst_52 = arith.constant 3.200000e+01 : f32
    %108 = vector.broadcast %cst_52 : f32 to vector<20x1xf32>
    %109 = arith.divf %107, %108 : vector<20x1xf32>
    %110 = vector.broadcast %109 : vector<20x1xf32> to vector<20x32xf32>
    %111 = arith.subf %101, %110 : vector<20x32xf32>
    %112 = arith.mulf %111, %111 : vector<20x32xf32>
    %cst_53 = arith.constant dense<0.000000e+00> : vector<20xf32>
    %113 = vector.multi_reduction <add>, %112, %cst_53 [1] : vector<20x32xf32> to vector<20xf32>
    %114 = vector.shape_cast %113 : vector<20xf32> to vector<20x1xf32>
    %cst_54 = arith.constant 3.200000e+01 : f32
    %115 = vector.broadcast %cst_54 : f32 to vector<20x1xf32>
    %116 = arith.divf %114, %115 : vector<20x1xf32>
    %117 = vector.broadcast %109 : vector<20x1xf32> to vector<20x32xf32>
    %118 = arith.subf %101, %117 : vector<20x32xf32>
    %cst_55 = arith.constant 9.99999974E-6 : f32
    %119 = vector.broadcast %cst_55 : f32 to vector<20x1xf32>
    %120 = arith.addf %116, %119 : vector<20x1xf32>
    %121 = math.rsqrt %120 : vector<20x1xf32>
    %122 = vector.broadcast %121 : vector<20x1xf32> to vector<20x32xf32>
    %123 = arith.mulf %118, %122 : vector<20x32xf32>
    %124 = vector.broadcast %103 : vector<1x32xf32> to vector<20x32xf32>
    %125 = arith.mulf %123, %124 : vector<20x32xf32>
    %126 = vector.broadcast %105 : vector<1x32xf32> to vector<20x32xf32>
    %127 = arith.addf %125, %126 : vector<20x32xf32>
    %128 = arith.truncf %127 : vector<20x32xf32> to vector<20x32xbf16>
    %c0_56 = arith.constant 0 : index
    %c0_57 = arith.constant 0 : index
    %c0_58 = arith.constant 0 : index
    %129 = vector.load %arg11[%c0_56, %c0_57, %c0_58] : memref<2x32x64xbf16, #tpu.memory_space<vmem>>, vector<1x32x64xbf16>
    %130 = vector.shape_cast %129 : vector<1x32x64xbf16> to vector<32x64xbf16>
    %cst_59 = arith.constant dense<0.000000e+00> : vector<20x64xf32>
    %131 = tpu.matmul %128, %130, %cst_59 {dimension_numbers = #tpu.dot_dimension_numbers<[1], [0], [0], [1], [0, 0, 1, 1], [], []>} : vector<20x32xbf16>, vector<32x64xbf16>, vector<20x64xf32> -> vector<20x64xf32>
    %c0_60 = arith.constant 0 : index
    %c0_61 = arith.constant 0 : index
    %c0_62 = arith.constant 0 : index
    %132 = vector.load %arg12[%c0_60, %c0_61, %c0_62] : memref<2x1x64xf32, #tpu.memory_space<vmem>>, vector<1x1x64xf32>
    %133 = vector.shape_cast %132 : vector<1x1x64xf32> to vector<1x64xf32>
    %134 = vector.broadcast %133 : vector<1x64xf32> to vector<20x64xf32>
    %135 = arith.addf %131, %134 : vector<20x64xf32>
    %cst_63 = arith.constant 0.000000e+00 : f32
    %136 = vector.broadcast %cst_63 : f32 to vector<20x64xf32>
    %137 = arith.maximumf %135, %136 : vector<20x64xf32>
    %138 = arith.truncf %137 : vector<20x64xf32> to vector<20x64xbf16>
    %c0_64 = arith.constant 0 : index
    %c0_65 = arith.constant 0 : index
    %c0_66 = arith.constant 0 : index
    %139 = vector.load %arg13[%c0_64, %c0_65, %c0_66] : memref<2x64x32xbf16, #tpu.memory_space<vmem>>, vector<1x64x32xbf16>
    %140 = vector.shape_cast %139 : vector<1x64x32xbf16> to vector<64x32xbf16>
    %cst_67 = arith.constant dense<0.000000e+00> : vector<20x32xf32>
    %141 = tpu.matmul %138, %140, %cst_67 {dimension_numbers = #tpu.dot_dimension_numbers<[1], [0], [0], [1], [0, 0, 1, 1], [], []>} : vector<20x64xbf16>, vector<64x32xbf16>, vector<20x32xf32> -> vector<20x32xf32>
    %c0_68 = arith.constant 0 : index
    %c0_69 = arith.constant 0 : index
    %c0_70 = arith.constant 0 : index
    %142 = vector.load %arg14[%c0_68, %c0_69, %c0_70] : memref<2x1x32xf32, #tpu.memory_space<vmem>>, vector<1x1x32xf32>
    %143 = vector.shape_cast %142 : vector<1x1x32xf32> to vector<1x32xf32>
    %144 = vector.broadcast %143 : vector<1x32xf32> to vector<20x32xf32>
    %145 = arith.addf %141, %144 : vector<20x32xf32>
    %146 = arith.addf %127, %145 : vector<20x32xf32>
    %c0_71 = arith.constant 0 : index
    %c0_72 = arith.constant 0 : index
    %c0_73 = arith.constant 0 : index
    %147 = vector.load %arg17[%c0_71, %c0_72, %c0_73] : memref<2x1x32xf32, #tpu.memory_space<vmem>>, vector<1x1x32xf32>
    %148 = vector.shape_cast %147 : vector<1x1x32xf32> to vector<1x32xf32>
    %c0_74 = arith.constant 0 : index
    %c0_75 = arith.constant 0 : index
    %c0_76 = arith.constant 0 : index
    %149 = vector.load %arg18[%c0_74, %c0_75, %c0_76] : memref<2x1x32xf32, #tpu.memory_space<vmem>>, vector<1x1x32xf32>
    %150 = vector.shape_cast %149 : vector<1x1x32xf32> to vector<1x32xf32>
    %cst_77 = arith.constant dense<0.000000e+00> : vector<20xf32>
    %151 = vector.multi_reduction <add>, %146, %cst_77 [1] : vector<20x32xf32> to vector<20xf32>
    %152 = vector.shape_cast %151 : vector<20xf32> to vector<20x1xf32>
    %cst_78 = arith.constant 3.200000e+01 : f32
    %153 = vector.broadcast %cst_78 : f32 to vector<20x1xf32>
    %154 = arith.divf %152, %153 : vector<20x1xf32>
    %155 = vector.broadcast %154 : vector<20x1xf32> to vector<20x32xf32>
    %156 = arith.subf %146, %155 : vector<20x32xf32>
    %157 = arith.mulf %156, %156 : vector<20x32xf32>
    %cst_79 = arith.constant dense<0.000000e+00> : vector<20xf32>
    %158 = vector.multi_reduction <add>, %157, %cst_79 [1] : vector<20x32xf32> to vector<20xf32>
    %159 = vector.shape_cast %158 : vector<20xf32> to vector<20x1xf32>
    %cst_80 = arith.constant 3.200000e+01 : f32
    %160 = vector.broadcast %cst_80 : f32 to vector<20x1xf32>
    %161 = arith.divf %159, %160 : vector<20x1xf32>
    %162 = vector.broadcast %154 : vector<20x1xf32> to vector<20x32xf32>
    %163 = arith.subf %146, %162 : vector<20x32xf32>
    %cst_81 = arith.constant 9.99999974E-6 : f32
    %164 = vector.broadcast %cst_81 : f32 to vector<20x1xf32>
    %165 = arith.addf %161, %164 : vector<20x1xf32>
    %166 = math.rsqrt %165 : vector<20x1xf32>
    %167 = vector.broadcast %166 : vector<20x1xf32> to vector<20x32xf32>
    %168 = arith.mulf %163, %167 : vector<20x32xf32>
    %169 = vector.broadcast %148 : vector<1x32xf32> to vector<20x32xf32>
    %170 = arith.mulf %168, %169 : vector<20x32xf32>
    %171 = vector.broadcast %150 : vector<1x32xf32> to vector<20x32xf32>
    %172 = arith.addf %170, %171 : vector<20x32xf32>
    %173 = arith.truncf %172 : vector<20x32xf32> to vector<20x32xbf16>
    %c1 = arith.constant 1 : index
    %c0_82 = arith.constant 0 : index
    %c0_83 = arith.constant 0 : index
    %174 = vector.load %arg7[%c1, %c0_82, %c0_83] : memref<2x32x96xbf16, #tpu.memory_space<vmem>>, vector<1x32x96xbf16>
    %175 = vector.shape_cast %174 : vector<1x32x96xbf16> to vector<32x96xbf16>
    %cst_84 = arith.constant dense<0.000000e+00> : vector<20x96xf32>
    %176 = tpu.matmul %173, %175, %cst_84 {dimension_numbers = #tpu.dot_dimension_numbers<[1], [0], [0], [1], [0, 0, 1, 1], [], []>} : vector<20x32xbf16>, vector<32x96xbf16>, vector<20x96xf32> -> vector<20x96xf32>
    %c1_85 = arith.constant 1 : index
    %c0_86 = arith.constant 0 : index
    %c0_87 = arith.constant 0 : index
    %177 = vector.load %arg8[%c1_85, %c0_86, %c0_87] : memref<2x1x96xf32, #tpu.memory_space<vmem>>, vector<1x1x96xf32>
    %178 = vector.shape_cast %177 : vector<1x1x96xf32> to vector<1x96xf32>
    %179 = vector.broadcast %178 : vector<1x96xf32> to vector<20x96xf32>
    %180 = arith.addf %176, %179 : vector<20x96xf32>
    %181 = vector.extract_strided_slice %180 {offsets = [0, 0], sizes = [20, 8], strides = [1, 1]} : vector<20x96xf32> to vector<20x8xf32>
    %182 = vector.extract_strided_slice %180 {offsets = [0, 32], sizes = [20, 8], strides = [1, 1]} : vector<20x96xf32> to vector<20x8xf32>
    %183 = vector.extract_strided_slice %180 {offsets = [0, 64], sizes = [20, 8], strides = [1, 1]} : vector<20x96xf32> to vector<20x8xf32>
    %cst_88 = arith.constant dense<0.000000e+00> : vector<20x20xf32>
    %184 = tpu.matmul %181, %182, %cst_88 {dimension_numbers = #tpu.dot_dimension_numbers<[1], [1], [0], [0], [0, 0, 1, 0], [], []>} : vector<20x8xf32>, vector<20x8xf32>, vector<20x20xf32> -> vector<20x20xf32>
    %cst_89 = arith.constant 0.353553385 : f32
    %185 = vector.broadcast %cst_89 : f32 to vector<20x20xf32>
    %186 = arith.mulf %184, %185 : vector<20x20xf32>
    %187 = arith.addf %186, %11 : vector<20x20xf32>
    %cst_90 = arith.constant dense<0xFF800000> : vector<20xf32>
    %188 = vector.multi_reduction <maximumf>, %187, %cst_90 [1] : vector<20x20xf32> to vector<20xf32>
    %189 = vector.shape_cast %188 : vector<20xf32> to vector<20x1xf32>
    %190 = vector.broadcast %189 : vector<20x1xf32> to vector<20x20xf32>
    %191 = arith.subf %187, %190 : vector<20x20xf32>
    %192 = math.exp %191 : vector<20x20xf32>
    %cst_91 = arith.constant dense<0.000000e+00> : vector<20xf32>
    %193 = vector.multi_reduction <add>, %192, %cst_91 [1] : vector<20x20xf32> to vector<20xf32>
    %194 = vector.shape_cast %193 : vector<20xf32> to vector<20x1xf32>
    %195 = tpu.reciprocal %194 {approx = true} : vector<20x1xf32> -> vector<20x1xf32>
    %196 = vector.broadcast %195 : vector<20x1xf32> to vector<20x20xf32>
    %197 = arith.mulf %192, %196 : vector<20x20xf32>
    %cst_92 = arith.constant dense<0.000000e+00> : vector<20x8xf32>
    %198 = tpu.matmul %197, %183, %cst_92 {dimension_numbers = #tpu.dot_dimension_numbers<[1], [0], [0], [1], [0, 0, 1, 1], [], []>} : vector<20x20xf32>, vector<20x8xf32>, vector<20x8xf32> -> vector<20x8xf32>
    %199 = vector.extract_strided_slice %180 {offsets = [0, 8], sizes = [20, 8], strides = [1, 1]} : vector<20x96xf32> to vector<20x8xf32>
    %200 = vector.extract_strided_slice %180 {offsets = [0, 40], sizes = [20, 8], strides = [1, 1]} : vector<20x96xf32> to vector<20x8xf32>
    %201 = vector.extract_strided_slice %180 {offsets = [0, 72], sizes = [20, 8], strides = [1, 1]} : vector<20x96xf32> to vector<20x8xf32>
    %cst_93 = arith.constant dense<0.000000e+00> : vector<20x20xf32>
    %202 = tpu.matmul %199, %200, %cst_93 {dimension_numbers = #tpu.dot_dimension_numbers<[1], [1], [0], [0], [0, 0, 1, 0], [], []>} : vector<20x8xf32>, vector<20x8xf32>, vector<20x20xf32> -> vector<20x20xf32>
    %cst_94 = arith.constant 0.353553385 : f32
    %203 = vector.broadcast %cst_94 : f32 to vector<20x20xf32>
    %204 = arith.mulf %202, %203 : vector<20x20xf32>
    %205 = arith.addf %204, %11 : vector<20x20xf32>
    %cst_95 = arith.constant dense<0xFF800000> : vector<20xf32>
    %206 = vector.multi_reduction <maximumf>, %205, %cst_95 [1] : vector<20x20xf32> to vector<20xf32>
    %207 = vector.shape_cast %206 : vector<20xf32> to vector<20x1xf32>
    %208 = vector.broadcast %207 : vector<20x1xf32> to vector<20x20xf32>
    %209 = arith.subf %205, %208 : vector<20x20xf32>
    %210 = math.exp %209 : vector<20x20xf32>
    %cst_96 = arith.constant dense<0.000000e+00> : vector<20xf32>
    %211 = vector.multi_reduction <add>, %210, %cst_96 [1] : vector<20x20xf32> to vector<20xf32>
    %212 = vector.shape_cast %211 : vector<20xf32> to vector<20x1xf32>
    %213 = tpu.reciprocal %212 {approx = true} : vector<20x1xf32> -> vector<20x1xf32>
    %214 = vector.broadcast %213 : vector<20x1xf32> to vector<20x20xf32>
    %215 = arith.mulf %210, %214 : vector<20x20xf32>
    %cst_97 = arith.constant dense<0.000000e+00> : vector<20x8xf32>
    %216 = tpu.matmul %215, %201, %cst_97 {dimension_numbers = #tpu.dot_dimension_numbers<[1], [0], [0], [1], [0, 0, 1, 1], [], []>} : vector<20x20xf32>, vector<20x8xf32>, vector<20x8xf32> -> vector<20x8xf32>
    %217 = vector.extract_strided_slice %180 {offsets = [0, 16], sizes = [20, 8], strides = [1, 1]} : vector<20x96xf32> to vector<20x8xf32>
    %218 = vector.extract_strided_slice %180 {offsets = [0, 48], sizes = [20, 8], strides = [1, 1]} : vector<20x96xf32> to vector<20x8xf32>
    %219 = vector.extract_strided_slice %180 {offsets = [0, 80], sizes = [20, 8], strides = [1, 1]} : vector<20x96xf32> to vector<20x8xf32>
    %cst_98 = arith.constant dense<0.000000e+00> : vector<20x20xf32>
    %220 = tpu.matmul %217, %218, %cst_98 {dimension_numbers = #tpu.dot_dimension_numbers<[1], [1], [0], [0], [0, 0, 1, 0], [], []>} : vector<20x8xf32>, vector<20x8xf32>, vector<20x20xf32> -> vector<20x20xf32>
    %cst_99 = arith.constant 0.353553385 : f32
    %221 = vector.broadcast %cst_99 : f32 to vector<20x20xf32>
    %222 = arith.mulf %220, %221 : vector<20x20xf32>
    %223 = arith.addf %222, %11 : vector<20x20xf32>
    %cst_100 = arith.constant dense<0xFF800000> : vector<20xf32>
    %224 = vector.multi_reduction <maximumf>, %223, %cst_100 [1] : vector<20x20xf32> to vector<20xf32>
    %225 = vector.shape_cast %224 : vector<20xf32> to vector<20x1xf32>
    %226 = vector.broadcast %225 : vector<20x1xf32> to vector<20x20xf32>
    %227 = arith.subf %223, %226 : vector<20x20xf32>
    %228 = math.exp %227 : vector<20x20xf32>
    %cst_101 = arith.constant dense<0.000000e+00> : vector<20xf32>
    %229 = vector.multi_reduction <add>, %228, %cst_101 [1] : vector<20x20xf32> to vector<20xf32>
    %230 = vector.shape_cast %229 : vector<20xf32> to vector<20x1xf32>
    %231 = tpu.reciprocal %230 {approx = true} : vector<20x1xf32> -> vector<20x1xf32>
    %232 = vector.broadcast %231 : vector<20x1xf32> to vector<20x20xf32>
    %233 = arith.mulf %228, %232 : vector<20x20xf32>
    %cst_102 = arith.constant dense<0.000000e+00> : vector<20x8xf32>
    %234 = tpu.matmul %233, %219, %cst_102 {dimension_numbers = #tpu.dot_dimension_numbers<[1], [0], [0], [1], [0, 0, 1, 1], [], []>} : vector<20x20xf32>, vector<20x8xf32>, vector<20x8xf32> -> vector<20x8xf32>
    %235 = vector.extract_strided_slice %180 {offsets = [0, 24], sizes = [20, 8], strides = [1, 1]} : vector<20x96xf32> to vector<20x8xf32>
    %236 = vector.extract_strided_slice %180 {offsets = [0, 56], sizes = [20, 8], strides = [1, 1]} : vector<20x96xf32> to vector<20x8xf32>
    %237 = vector.extract_strided_slice %180 {offsets = [0, 88], sizes = [20, 8], strides = [1, 1]} : vector<20x96xf32> to vector<20x8xf32>
    %cst_103 = arith.constant dense<0.000000e+00> : vector<20x20xf32>
    %238 = tpu.matmul %235, %236, %cst_103 {dimension_numbers = #tpu.dot_dimension_numbers<[1], [1], [0], [0], [0, 0, 1, 0], [], []>} : vector<20x8xf32>, vector<20x8xf32>, vector<20x20xf32> -> vector<20x20xf32>
    %cst_104 = arith.constant 0.353553385 : f32
    %239 = vector.broadcast %cst_104 : f32 to vector<20x20xf32>
    %240 = arith.mulf %238, %239 : vector<20x20xf32>
    %241 = arith.addf %240, %11 : vector<20x20xf32>
    %cst_105 = arith.constant dense<0xFF800000> : vector<20xf32>
    %242 = vector.multi_reduction <maximumf>, %241, %cst_105 [1] : vector<20x20xf32> to vector<20xf32>
    %243 = vector.shape_cast %242 : vector<20xf32> to vector<20x1xf32>
    %244 = vector.broadcast %243 : vector<20x1xf32> to vector<20x20xf32>
    %245 = arith.subf %241, %244 : vector<20x20xf32>
    %246 = math.exp %245 : vector<20x20xf32>
    %cst_106 = arith.constant dense<0.000000e+00> : vector<20xf32>
    %247 = vector.multi_reduction <add>, %246, %cst_106 [1] : vector<20x20xf32> to vector<20xf32>
    %248 = vector.shape_cast %247 : vector<20xf32> to vector<20x1xf32>
    %249 = tpu.reciprocal %248 {approx = true} : vector<20x1xf32> -> vector<20x1xf32>
    %250 = vector.broadcast %249 : vector<20x1xf32> to vector<20x20xf32>
    %251 = arith.mulf %246, %250 : vector<20x20xf32>
    %cst_107 = arith.constant dense<0.000000e+00> : vector<20x8xf32>
    %252 = tpu.matmul %251, %237, %cst_107 {dimension_numbers = #tpu.dot_dimension_numbers<[1], [0], [0], [1], [0, 0, 1, 1], [], []>} : vector<20x20xf32>, vector<20x8xf32>, vector<20x8xf32> -> vector<20x8xf32>
    %253 = tpu.concatenate %198, %216, %234, %252 in 1 : vector<20x8xf32>, vector<20x8xf32>, vector<20x8xf32>, vector<20x8xf32> -> vector<20x32xf32>
    %254 = arith.truncf %253 : vector<20x32xf32> to vector<20x32xbf16>
    %c1_108 = arith.constant 1 : index
    %c0_109 = arith.constant 0 : index
    %c0_110 = arith.constant 0 : index
    %255 = vector.load %arg9[%c1_108, %c0_109, %c0_110] : memref<2x32x32xbf16, #tpu.memory_space<vmem>>, vector<1x32x32xbf16>
    %256 = vector.shape_cast %255 : vector<1x32x32xbf16> to vector<32x32xbf16>
    %cst_111 = arith.constant dense<0.000000e+00> : vector<20x32xf32>
    %257 = tpu.matmul %254, %256, %cst_111 {dimension_numbers = #tpu.dot_dimension_numbers<[1], [0], [0], [1], [0, 0, 1, 1], [], []>} : vector<20x32xbf16>, vector<32x32xbf16>, vector<20x32xf32> -> vector<20x32xf32>
    %c1_112 = arith.constant 1 : index
    %c0_113 = arith.constant 0 : index
    %c0_114 = arith.constant 0 : index
    %258 = vector.load %arg10[%c1_112, %c0_113, %c0_114] : memref<2x1x32xf32, #tpu.memory_space<vmem>>, vector<1x1x32xf32>
    %259 = vector.shape_cast %258 : vector<1x1x32xf32> to vector<1x32xf32>
    %260 = vector.broadcast %259 : vector<1x32xf32> to vector<20x32xf32>
    %261 = arith.addf %257, %260 : vector<20x32xf32>
    %262 = arith.addf %172, %261 : vector<20x32xf32>
    %c1_115 = arith.constant 1 : index
    %c0_116 = arith.constant 0 : index
    %c0_117 = arith.constant 0 : index
    %263 = vector.load %arg15[%c1_115, %c0_116, %c0_117] : memref<2x1x32xf32, #tpu.memory_space<vmem>>, vector<1x1x32xf32>
    %264 = vector.shape_cast %263 : vector<1x1x32xf32> to vector<1x32xf32>
    %c1_118 = arith.constant 1 : index
    %c0_119 = arith.constant 0 : index
    %c0_120 = arith.constant 0 : index
    %265 = vector.load %arg16[%c1_118, %c0_119, %c0_120] : memref<2x1x32xf32, #tpu.memory_space<vmem>>, vector<1x1x32xf32>
    %266 = vector.shape_cast %265 : vector<1x1x32xf32> to vector<1x32xf32>
    %cst_121 = arith.constant dense<0.000000e+00> : vector<20xf32>
    %267 = vector.multi_reduction <add>, %262, %cst_121 [1] : vector<20x32xf32> to vector<20xf32>
    %268 = vector.shape_cast %267 : vector<20xf32> to vector<20x1xf32>
    %cst_122 = arith.constant 3.200000e+01 : f32
    %269 = vector.broadcast %cst_122 : f32 to vector<20x1xf32>
    %270 = arith.divf %268, %269 : vector<20x1xf32>
    %271 = vector.broadcast %270 : vector<20x1xf32> to vector<20x32xf32>
    %272 = arith.subf %262, %271 : vector<20x32xf32>
    %273 = arith.mulf %272, %272 : vector<20x32xf32>
    %cst_123 = arith.constant dense<0.000000e+00> : vector<20xf32>
    %274 = vector.multi_reduction <add>, %273, %cst_123 [1] : vector<20x32xf32> to vector<20xf32>
    %275 = vector.shape_cast %274 : vector<20xf32> to vector<20x1xf32>
    %cst_124 = arith.constant 3.200000e+01 : f32
    %276 = vector.broadcast %cst_124 : f32 to vector<20x1xf32>
    %277 = arith.divf %275, %276 : vector<20x1xf32>
    %278 = vector.broadcast %270 : vector<20x1xf32> to vector<20x32xf32>
    %279 = arith.subf %262, %278 : vector<20x32xf32>
    %cst_125 = arith.constant 9.99999974E-6 : f32
    %280 = vector.broadcast %cst_125 : f32 to vector<20x1xf32>
    %281 = arith.addf %277, %280 : vector<20x1xf32>
    %282 = math.rsqrt %281 : vector<20x1xf32>
    %283 = vector.broadcast %282 : vector<20x1xf32> to vector<20x32xf32>
    %284 = arith.mulf %279, %283 : vector<20x32xf32>
    %285 = vector.broadcast %264 : vector<1x32xf32> to vector<20x32xf32>
    %286 = arith.mulf %284, %285 : vector<20x32xf32>
    %287 = vector.broadcast %266 : vector<1x32xf32> to vector<20x32xf32>
    %288 = arith.addf %286, %287 : vector<20x32xf32>
    %289 = arith.truncf %288 : vector<20x32xf32> to vector<20x32xbf16>
    %c1_126 = arith.constant 1 : index
    %c0_127 = arith.constant 0 : index
    %c0_128 = arith.constant 0 : index
    %290 = vector.load %arg11[%c1_126, %c0_127, %c0_128] : memref<2x32x64xbf16, #tpu.memory_space<vmem>>, vector<1x32x64xbf16>
    %291 = vector.shape_cast %290 : vector<1x32x64xbf16> to vector<32x64xbf16>
    %cst_129 = arith.constant dense<0.000000e+00> : vector<20x64xf32>
    %292 = tpu.matmul %289, %291, %cst_129 {dimension_numbers = #tpu.dot_dimension_numbers<[1], [0], [0], [1], [0, 0, 1, 1], [], []>} : vector<20x32xbf16>, vector<32x64xbf16>, vector<20x64xf32> -> vector<20x64xf32>
    %c1_130 = arith.constant 1 : index
    %c0_131 = arith.constant 0 : index
    %c0_132 = arith.constant 0 : index
    %293 = vector.load %arg12[%c1_130, %c0_131, %c0_132] : memref<2x1x64xf32, #tpu.memory_space<vmem>>, vector<1x1x64xf32>
    %294 = vector.shape_cast %293 : vector<1x1x64xf32> to vector<1x64xf32>
    %295 = vector.broadcast %294 : vector<1x64xf32> to vector<20x64xf32>
    %296 = arith.addf %292, %295 : vector<20x64xf32>
    %cst_133 = arith.constant 0.000000e+00 : f32
    %297 = vector.broadcast %cst_133 : f32 to vector<20x64xf32>
    %298 = arith.maximumf %296, %297 : vector<20x64xf32>
    %299 = arith.truncf %298 : vector<20x64xf32> to vector<20x64xbf16>
    %c1_134 = arith.constant 1 : index
    %c0_135 = arith.constant 0 : index
    %c0_136 = arith.constant 0 : index
    %300 = vector.load %arg13[%c1_134, %c0_135, %c0_136] : memref<2x64x32xbf16, #tpu.memory_space<vmem>>, vector<1x64x32xbf16>
    %301 = vector.shape_cast %300 : vector<1x64x32xbf16> to vector<64x32xbf16>
    %cst_137 = arith.constant dense<0.000000e+00> : vector<20x32xf32>
    %302 = tpu.matmul %299, %301, %cst_137 {dimension_numbers = #tpu.dot_dimension_numbers<[1], [0], [0], [1], [0, 0, 1, 1], [], []>} : vector<20x64xbf16>, vector<64x32xbf16>, vector<20x32xf32> -> vector<20x32xf32>
    %c1_138 = arith.constant 1 : index
    %c0_139 = arith.constant 0 : index
    %c0_140 = arith.constant 0 : index
    %303 = vector.load %arg14[%c1_138, %c0_139, %c0_140] : memref<2x1x32xf32, #tpu.memory_space<vmem>>, vector<1x1x32xf32>
    %304 = vector.shape_cast %303 : vector<1x1x32xf32> to vector<1x32xf32>
    %305 = vector.broadcast %304 : vector<1x32xf32> to vector<20x32xf32>
    %306 = arith.addf %302, %305 : vector<20x32xf32>
    %307 = arith.addf %288, %306 : vector<20x32xf32>
    %c1_141 = arith.constant 1 : index
    %c0_142 = arith.constant 0 : index
    %c0_143 = arith.constant 0 : index
    %308 = vector.load %arg17[%c1_141, %c0_142, %c0_143] : memref<2x1x32xf32, #tpu.memory_space<vmem>>, vector<1x1x32xf32>
    %309 = vector.shape_cast %308 : vector<1x1x32xf32> to vector<1x32xf32>
    %c1_144 = arith.constant 1 : index
    %c0_145 = arith.constant 0 : index
    %c0_146 = arith.constant 0 : index
    %310 = vector.load %arg18[%c1_144, %c0_145, %c0_146] : memref<2x1x32xf32, #tpu.memory_space<vmem>>, vector<1x1x32xf32>
    %311 = vector.shape_cast %310 : vector<1x1x32xf32> to vector<1x32xf32>
    %cst_147 = arith.constant dense<0.000000e+00> : vector<20xf32>
    %312 = vector.multi_reduction <add>, %307, %cst_147 [1] : vector<20x32xf32> to vector<20xf32>
    %313 = vector.shape_cast %312 : vector<20xf32> to vector<20x1xf32>
    %cst_148 = arith.constant 3.200000e+01 : f32
    %314 = vector.broadcast %cst_148 : f32 to vector<20x1xf32>
    %315 = arith.divf %313, %314 : vector<20x1xf32>
    %316 = vector.broadcast %315 : vector<20x1xf32> to vector<20x32xf32>
    %317 = arith.subf %307, %316 : vector<20x32xf32>
    %318 = arith.mulf %317, %317 : vector<20x32xf32>
    %cst_149 = arith.constant dense<0.000000e+00> : vector<20xf32>
    %319 = vector.multi_reduction <add>, %318, %cst_149 [1] : vector<20x32xf32> to vector<20xf32>
    %320 = vector.shape_cast %319 : vector<20xf32> to vector<20x1xf32>
    %cst_150 = arith.constant 3.200000e+01 : f32
    %321 = vector.broadcast %cst_150 : f32 to vector<20x1xf32>
    %322 = arith.divf %320, %321 : vector<20x1xf32>
    %323 = vector.broadcast %315 : vector<20x1xf32> to vector<20x32xf32>
    %324 = arith.subf %307, %323 : vector<20x32xf32>
    %cst_151 = arith.constant 9.99999974E-6 : f32
    %325 = vector.broadcast %cst_151 : f32 to vector<20x1xf32>
    %326 = arith.addf %322, %325 : vector<20x1xf32>
    %327 = math.rsqrt %326 : vector<20x1xf32>
    %328 = vector.broadcast %327 : vector<20x1xf32> to vector<20x32xf32>
    %329 = arith.mulf %324, %328 : vector<20x32xf32>
    %330 = vector.broadcast %309 : vector<1x32xf32> to vector<20x32xf32>
    %331 = arith.mulf %329, %330 : vector<20x32xf32>
    %332 = vector.broadcast %311 : vector<1x32xf32> to vector<20x32xf32>
    %333 = arith.addf %331, %332 : vector<20x32xf32>
    %334 = arith.truncf %333 : vector<20x32xf32> to vector<20x32xbf16>
    %c0_152 = arith.constant 0 : index
    %c0_153 = arith.constant 0 : index
    %335 = vector.load %arg19[%c0_152, %c0_153] : memref<32x32xbf16, #tpu.memory_space<vmem>>, vector<32x32xbf16>
    %cst_154 = arith.constant dense<0.000000e+00> : vector<20x32xf32>
    %336 = tpu.matmul %334, %335, %cst_154 {dimension_numbers = #tpu.dot_dimension_numbers<[1], [0], [0], [1], [0, 0, 1, 1], [], []>} : vector<20x32xbf16>, vector<32x32xbf16>, vector<20x32xf32> -> vector<20x32xf32>
    %c0_155 = arith.constant 0 : index
    %c0_156 = arith.constant 0 : index
    %337 = vector.load %arg20[%c0_155, %c0_156] : memref<1x32xf32, #tpu.memory_space<vmem>>, vector<1x32xf32>
    %338 = vector.broadcast %337 : vector<1x32xf32> to vector<20x32xf32>
    %339 = arith.addf %336, %338 : vector<20x32xf32>
    %cst_157 = arith.constant 0.000000e+00 : f32
    %340 = vector.broadcast %cst_157 : f32 to vector<20x32xf32>
    %341 = arith.subf %340, %339 : vector<20x32xf32>
    %342 = math.exp %341 : vector<20x32xf32>
    %cst_158 = arith.constant 1.000000e+00 : f32
    %343 = vector.broadcast %cst_158 : f32 to vector<20x32xf32>
    %344 = arith.addf %343, %342 : vector<20x32xf32>
    %345 = tpu.reciprocal %344 {approx = true} : vector<20x32xf32> -> vector<20x32xf32>
    %346 = arith.mulf %333, %345 : vector<20x32xf32>
    %c0_159 = arith.constant 0 : index
    %c0_160 = arith.constant 0 : index
    %347 = vector.load %arg4[%c0_159, %c0_160] : memref<10x20xf32, #tpu.memory_space<vmem>>, vector<10x20xf32>
    %cst_161 = arith.constant dense<0.000000e+00> : vector<10x32xf32>
    %348 = tpu.matmul %347, %346, %cst_161 {dimension_numbers = #tpu.dot_dimension_numbers<[1], [0], [0], [1], [0, 0, 1, 1], [], []>} : vector<10x20xf32>, vector<20x32xf32>, vector<10x32xf32> -> vector<10x32xf32>
    %349 = arith.truncf %348 : vector<10x32xf32> to vector<10x32xbf16>
    %c0_162 = arith.constant 0 : index
    %c0_163 = arith.constant 0 : index
    %350 = vector.load %arg21[%c0_162, %c0_163] : memref<32x4xbf16, #tpu.memory_space<vmem>>, vector<32x4xbf16>
    %cst_164 = arith.constant dense<0.000000e+00> : vector<10x4xf32>
    %351 = tpu.matmul %349, %350, %cst_164 {dimension_numbers = #tpu.dot_dimension_numbers<[1], [0], [0], [1], [0, 0, 1, 1], [], []>} : vector<10x32xbf16>, vector<32x4xbf16>, vector<10x4xf32> -> vector<10x4xf32>
    %c0_165 = arith.constant 0 : index
    %c0_166 = arith.constant 0 : index
    %352 = vector.load %arg22[%c0_165, %c0_166] : memref<1x4xf32, #tpu.memory_space<vmem>>, vector<1x4xf32>
    %353 = vector.broadcast %352 : vector<1x4xf32> to vector<10x4xf32>
    %354 = arith.addf %351, %353 : vector<10x4xf32>
    %cst_167 = arith.constant 0.000000e+00 : f32
    %355 = vector.broadcast %cst_167 : f32 to vector<10x4xf32>
    %356 = arith.subf %355, %354 : vector<10x4xf32>
    %357 = math.exp %356 : vector<10x4xf32>
    %cst_168 = arith.constant 1.000000e+00 : f32
    %358 = vector.broadcast %cst_168 : f32 to vector<10x4xf32>
    %359 = arith.addf %358, %357 : vector<10x4xf32>
    %cst_169 = arith.constant 1.000000e+00 : f32
    %360 = vector.broadcast %cst_169 : f32 to vector<10x4xf32>
    %361 = arith.divf %360, %359 : vector<10x4xf32>
    %c0_170 = arith.constant 0 : index
    %c0_171 = arith.constant 0 : index
    %c0_172 = arith.constant 0 : index
    %362 = vector.load %arg23[%c0_170, %c0_171, %c0_172] : memref<1x10x4xf32, #tpu.memory_space<vmem>>, vector<1x10x4xf32>
    %363 = vector.shape_cast %362 : vector<1x10x4xf32> to vector<10x4xf32>
    %364 = vector.shape_cast %361 : vector<10x4xf32> to vector<1x10x4xf32>
    tpu.vector_store %arg23[%c0_170, %c0_171, %c0_172], %364 {strides = array<i32>} : memref<1x10x4xf32, #tpu.memory_space<vmem>>, vector<1x10x4xf32>,
    return
  }
  func.func @transform_0(%arg0: i32) -> (i32, i32, i32) {
    %c0_i32 = arith.constant 0 : i32
    %c0_i32_0 = arith.constant 0 : i32
    %c0_i32_1 = arith.constant 0 : i32
    return %arg0, %c0_i32, %c0_i32_0 : i32, i32, i32
  }
  func.func @transform_1(%arg0: i32) -> (i32, i32, i32) {
    %c0_i32 = arith.constant 0 : i32
    %c0_i32_0 = arith.constant 0 : i32
    %c0_i32_1 = arith.constant 0 : i32
    return %arg0, %c0_i32, %c0_i32_0 : i32, i32, i32
  }
  func.func @transform_2(%arg0: i32) -> (i32, i32) {
    %c0_i32 = arith.constant 0 : i32
    %c0_i32_0 = arith.constant 0 : i32
    %c0_i32_1 = arith.constant 0 : i32
    return %c0_i32, %c0_i32_0 : i32, i32
  }
  func.func @transform_3(%arg0: i32) -> (i32, i32) {
    %c0_i32 = arith.constant 0 : i32
    %c0_i32_0 = arith.constant 0 : i32
    %c0_i32_1 = arith.constant 0 : i32
    return %c0_i32, %c0_i32_0 : i32, i32
  }
  func.func @transform_4(%arg0: i32) -> (i32, i32) {
    %c0_i32 = arith.constant 0 : i32
    %c0_i32_0 = arith.constant 0 : i32
    %c0_i32_1 = arith.constant 0 : i32
    return %c0_i32, %c0_i32_0 : i32, i32
  }
  func.func @transform_5(%arg0: i32) -> (i32, i32) {
    %c0_i32 = arith.constant 0 : i32
    %c0_i32_0 = arith.constant 0 : i32
    %c0_i32_1 = arith.constant 0 : i32
    return %c0_i32, %c0_i32_0 : i32, i32
  }
  func.func @transform_6(%arg0: i32) -> (i32, i32, i32) {
    %c0_i32 = arith.constant 0 : i32
    %c0_i32_0 = arith.constant 0 : i32
    %c0_i32_1 = arith.constant 0 : i32
    %c0_i32_2 = arith.constant 0 : i32
    return %c0_i32, %c0_i32_0, %c0_i32_1 : i32, i32, i32
  }
  func.func @transform_7(%arg0: i32) -> (i32, i32, i32) {
    %c0_i32 = arith.constant 0 : i32
    %c0_i32_0 = arith.constant 0 : i32
    %c0_i32_1 = arith.constant 0 : i32
    %c0_i32_2 = arith.constant 0 : i32
    return %c0_i32, %c0_i32_0, %c0_i32_1 : i32, i32, i32
  }
  func.func @transform_8(%arg0: i32) -> (i32, i32, i32) {
    %c0_i32 = arith.constant 0 : i32
    %c0_i32_0 = arith.constant 0 : i32
    %c0_i32_1 = arith.constant 0 : i32
    %c0_i32_2 = arith.constant 0 : i32
    return %c0_i32, %c0_i32_0, %c0_i32_1 : i32, i32, i32
  }
  func.func @transform_9(%arg0: i32) -> (i32, i32, i32) {
    %c0_i32 = arith.constant 0 : i32
    %c0_i32_0 = arith.constant 0 : i32
    %c0_i32_1 = arith.constant 0 : i32
    %c0_i32_2 = arith.constant 0 : i32
    return %c0_i32, %c0_i32_0, %c0_i32_1 : i32, i32, i32
  }
  func.func @transform_10(%arg0: i32) -> (i32, i32, i32) {
    %c0_i32 = arith.constant 0 : i32
    %c0_i32_0 = arith.constant 0 : i32
    %c0_i32_1 = arith.constant 0 : i32
    %c0_i32_2 = arith.constant 0 : i32
    return %c0_i32, %c0_i32_0, %c0_i32_1 : i32, i32, i32
  }
  func.func @transform_11(%arg0: i32) -> (i32, i32, i32) {
    %c0_i32 = arith.constant 0 : i32
    %c0_i32_0 = arith.constant 0 : i32
    %c0_i32_1 = arith.constant 0 : i32
    %c0_i32_2 = arith.constant 0 : i32
    return %c0_i32, %c0_i32_0, %c0_i32_1 : i32, i32, i32
  }
  func.func @transform_12(%arg0: i32) -> (i32, i32, i32) {
    %c0_i32 = arith.constant 0 : i32
    %c0_i32_0 = arith.constant 0 : i32
    %c0_i32_1 = arith.constant 0 : i32
    %c0_i32_2 = arith.constant 0 : i32
    return %c0_i32, %c0_i32_0, %c0_i32_1 : i32, i32, i32
  }
  func.func @transform_13(%arg0: i32) -> (i32, i32, i32) {
    %c0_i32 = arith.constant 0 : i32
    %c0_i32_0 = arith.constant 0 : i32
    %c0_i32_1 = arith.constant 0 : i32
    %c0_i32_2 = arith.constant 0 : i32
    return %c0_i32, %c0_i32_0, %c0_i32_1 : i32, i32, i32
  }
  func.func @transform_14(%arg0: i32) -> (i32, i32, i32) {
    %c0_i32 = arith.constant 0 : i32
    %c0_i32_0 = arith.constant 0 : i32
    %c0_i32_1 = arith.constant 0 : i32
    %c0_i32_2 = arith.constant 0 : i32
    return %c0_i32, %c0_i32_0, %c0_i32_1 : i32, i32, i32
  }
  func.func @transform_15(%arg0: i32) -> (i32, i32, i32) {
    %c0_i32 = arith.constant 0 : i32
    %c0_i32_0 = arith.constant 0 : i32
    %c0_i32_1 = arith.constant 0 : i32
    %c0_i32_2 = arith.constant 0 : i32
    return %c0_i32, %c0_i32_0, %c0_i32_1 : i32, i32, i32
  }
  func.func @transform_16(%arg0: i32) -> (i32, i32, i32) {
    %c0_i32 = arith.constant 0 : i32
    %c0_i32_0 = arith.constant 0 : i32
    %c0_i32_1 = arith.constant 0 : i32
    %c0_i32_2 = arith.constant 0 : i32
    return %c0_i32, %c0_i32_0, %c0_i32_1 : i32, i32, i32
  }
  func.func @transform_17(%arg0: i32) -> (i32, i32, i32) {
    %c0_i32 = arith.constant 0 : i32
    %c0_i32_0 = arith.constant 0 : i32
    %c0_i32_1 = arith.constant 0 : i32
    %c0_i32_2 = arith.constant 0 : i32
    return %c0_i32, %c0_i32_0, %c0_i32_1 : i32, i32, i32
  }
  func.func @transform_18(%arg0: i32) -> (i32, i32) {
    %c0_i32 = arith.constant 0 : i32
    %c0_i32_0 = arith.constant 0 : i32
    %c0_i32_1 = arith.constant 0 : i32
    return %c0_i32, %c0_i32_0 : i32, i32
  }
  func.func @transform_19(%arg0: i32) -> (i32, i32) {
    %c0_i32 = arith.constant 0 : i32
    %c0_i32_0 = arith.constant 0 : i32
    %c0_i32_1 = arith.constant 0 : i32
    return %c0_i32, %c0_i32_0 : i32, i32
  }
  func.func @transform_20(%arg0: i32) -> (i32, i32) {
    %c0_i32 = arith.constant 0 : i32
    %c0_i32_0 = arith.constant 0 : i32
    %c0_i32_1 = arith.constant 0 : i32
    return %c0_i32, %c0_i32_0 : i32, i32
  }
  func.func @transform_21(%arg0: i32) -> (i32, i32) {
    %c0_i32 = arith.constant 0 : i32
    %c0_i32_0 = arith.constant 0 : i32
    %c0_i32_1 = arith.constant 0 : i32
    return %c0_i32, %c0_i32_0 : i32, i32
  }
  func.func @transform_22(%arg0: i32) -> (i32, i32, i32) {
    %c0_i32 = arith.constant 0 : i32
    %c0_i32_0 = arith.constant 0 : i32
    %c0_i32_1 = arith.constant 0 : i32
    return %arg0, %c0_i32, %c0_i32_0 : i32, i32, i32
  }
}

</mosaic_0001>

<llo_original>
// kernel: audio_diarization_forward.3
$region0: #{audio_diarization_forward.3}
  #allocation0 [shape = 'u32[]', space=smem, size = 0x4, offset = 0x4, fixed_abs, tag = 'smem constant byte address 0x4 - core index']
  #allocation1 [shape = 'u32[144,128]{1,0:T(1,128)}', space=vmem, size = 0x12000, scoped, tag = 'internal scratch']
  %s0 = inlined_call_operand.vmem [shape: bf16[2,27,1280], index: 0, kind: input, shape index: {}]
  %s1 = inlined_call_operand.vmem [shape: bf16[24,27], index: 1, kind: input, shape index: {}]
  %s2 = inlined_call_operand.vmem [shape: f32[24,1], index: 2, kind: input, shape index: {}]
  %s3 = inlined_call_operand.vmem [shape: bf16[8,24], index: 3, kind: input, shape index: {}]
  %s4 = inlined_call_operand.vmem [shape: f32[8,1], index: 4, kind: input, shape index: {}]
  %s5 = inlined_call_operand.vmem [shape: f32[2,8,1280], index: 5, kind: output, shape index: {}]
  %s6 = sld [smem:[#allocation0]]
  $region53: #{audio_diarization_forward.3} parent=0
    _
  %s8 = ssub.s32 1, %s6
  %s9 = scalar_select 0, %s8, %s6
  loop: start=0, step=1, limit=4
  $region2: #{audio_diarization_forward.3} parent=0 // loop_pre_header
    _
  $region3: #{audio_diarization_forward.3} parent=0 // loop_header
    %s11 = sphi 0, %s15
    %p12 = scmp.ge.s32.totalorder %s11, 4
    %s21 = sphi 0, %s23
    %s24 = sphi 0, %s21
    %s25 = sphi 0, %s24
    %s41 = sphi 0, %s25
    %s45 = sphi 0, %s45
    %s47 = sphi 0, %s45
    %s48 = sphi 0, %s47
    %s62 = sphi 0, %s48
    %s66 = sphi 0, %s66
    %s68 = sphi 0, %s66
    %s69 = sphi 0, %s68
    %s83 = sphi 0, %s69
    %s87 = sphi 0, %s87
    %s89 = sphi 0, %s87
    %s90 = sphi 0, %s89
    %s104 = sphi 0, %s90
    %s108 = sphi 0, %s108
    %s110 = sphi 0, %s108
    %s111 = sphi 0, %s110
    %s125 = sphi 0, %s111
    %s131 = sphi 0, %s133
    %s134 = sphi 0, %s131
    %s135 = sphi 0, %s134
    %s151 = sphi 0, %s135
  $region4: #{audio_diarization_forward.3} parent=0 // loop_header_branch
    %14 = sbr.rel (%p12) target = $region8
  $region5: #{audio_diarization_forward.3} parent=0 // loop_body
    %s16 = ssub.s32 %s11, 1
    %s17 = ssub.s32 %s11, 2
    %s18 = sadd.s32 %s11, 1
    %s19 = ssub.s32 %s11, %s18
    %p20 = scmp.eq.s32.totalorder %s19, 0
    %s22 = sadd.s32 %s21, 1
    %s23 = scalar_select %p20, %s21, %s22
    %p26 = pneg %p20
    %p27 = scmp.eq.s32.totalorder %s11, 1
    %p28 = por %p26, %p27
    %p29 = scmp.ne.s32.totalorder %s21, %s24
    %p30 = scmp.eq.s32.totalorder %s11, 0
    %p31 = por %p29, %p30
    %p32 = scmp.ne.s32.totalorder %s21, %s24
    %p33 = scmp.eq.s32.totalorder %s16, 1
    %p34 = por %p32, %p33
    %p35 = scmp.ne.s32.totalorder %s24, %s25
    %p36 = scmp.eq.s32.totalorder %s16, 0
    %p37 = por %p35, %p36
    %p38 = scmp.ne.s32.totalorder %s24, %s25
    %p39 = scmp.eq.s32.totalorder %s17, 1
    %p40 = por %p38, %p39
    %p42 = scmp.ne.s32.totalorder %s25, %s41
    %p43 = scmp.eq.s32.totalorder %s17, 0
    %p44 = por %p42, %p43
    %s46 = sadd.s32 %s45, 1
    %p49 = scmp.eq.s32.totalorder %s11, 1
    %p50 = scmp.ne.s32.totalorder %s45, %s47
    %p51 = scmp.eq.s32.totalorder %s11, 0
    %p52 = por %p50, %p51
    %p53 = scmp.ne.s32.totalorder %s45, %s47
    %p54 = scmp.eq.s32.totalorder %s16, 1
    %p55 = por %p53, %p54
    %p56 = scmp.ne.s32.totalorder %s47, %s48
    %p57 = scmp.eq.s32.totalorder %s16, 0
    %p58 = por %p56, %p57
    %p59 = scmp.ne.s32.totalorder %s47, %s48
    %p60 = scmp.eq.s32.totalorder %s17, 1
    %p61 = por %p59, %p60
    %p63 = scmp.ne.s32.totalorder %s48, %s62
    %p64 = scmp.eq.s32.totalorder %s17, 0
    %p65 = por %p63, %p64
    %s67 = sadd.s32 %s66, 1
    %p70 = scmp.eq.s32.totalorder %s11, 1
    %p71 = scmp.ne.s32.totalorder %s66, %s68
    %p72 = scmp.eq.s32.totalorder %s11, 0
    %p73 = por %p71, %p72
    %p74 = scmp.ne.s32.totalorder %s66, %s68
    %p75 = scmp.eq.s32.totalorder %s16, 1
    %p76 = por %p74, %p75
    %p77 = scmp.ne.s32.totalorder %s68, %s69
    %p78 = scmp.eq.s32.totalorder %s16, 0
    %p79 = por %p77, %p78
    %p80 = scmp.ne.s32.totalorder %s68, %s69
    %p81 = scmp.eq.s32.totalorder %s17, 1
    %p82 = por %p80, %p81
    %p84 = scmp.ne.s32.totalorder %s69, %s83
    %p85 = scmp.eq.s32.totalorder %s17, 0
    %p86 = por %p84, %p85
    %s88 = sadd.s32 %s87, 1
    %p91 = scmp.eq.s32.totalorder %s11, 1
    %p92 = scmp.ne.s32.totalorder %s87, %s89
    %p93 = scmp.eq.s32.totalorder %s11, 0
    %p94 = por %p92, %p93
    %p95 = scmp.ne.s32.totalorder %s87, %s89
    %p96 = scmp.eq.s32.totalorder %s16, 1
    %p97 = por %p95, %p96
    %p98 = scmp.ne.s32.totalorder %s89, %s90
    %p99 = scmp.eq.s32.totalorder %s16, 0
    %p100 = por %p98, %p99
    %p101 = scmp.ne.s32.totalorder %s89, %s90
    %p102 = scmp.eq.s32.totalorder %s17, 1
    %p103 = por %p101, %p102
    %p105 = scmp.ne.s32.totalorder %s90, %s104
    %p106 = scmp.eq.s32.totalorder %s17, 0
    %p107 = por %p105, %p106
    %s109 = sadd.s32 %s108, 1
    %p112 = scmp.eq.s32.totalorder %s11, 1
    %p113 = scmp.ne.s32.totalorder %s108, %s110
    %p114 = scmp.eq.s32.totalorder %s11, 0
    %p115 = por %p113, %p114
    %p116 = scmp.ne.s32.totalorder %s108, %s110
    %p117 = scmp.eq.s32.totalorder %s16, 1
    %p118 = por %p116, %p117
    %p119 = scmp.ne.s32.totalorder %s110, %s111
    %p120 = scmp.eq.s32.totalorder %s16, 0
    %p121 = por %p119, %p120
    %p122 = scmp.ne.s32.totalorder %s110, %s111
    %p123 = scmp.eq.s32.totalorder %s17, 1
    %p124 = por %p122, %p123
    %p126 = scmp.ne.s32.totalorder %s111, %s125
    %p127 = scmp.eq.s32.totalorder %s17, 0
    %p128 = por %p126, %p127
    %s129 = ssub.s32 %s11, %s18
    %p130 = scmp.eq.s32.totalorder %s129, 0
    %s132 = sadd.s32 %s131, 1
    %s133 = scalar_select %p130, %s131, %s132
    %p136 = pneg %p130
    %p137 = scmp.eq.s32.totalorder %s11, 1
    %p138 = por %p136, %p137
    %p139 = scmp.ne.s32.totalorder %s131, %s134
    %p140 = scmp.eq.s32.totalorder %s11, 0
    %p141 = por %p139, %p140
    %p142 = scmp.ne.s32.totalorder %s131, %s134
    %p143 = scmp.eq.s32.totalorder %s16, 1
    %p144 = por %p142, %p143
    %p145 = scmp.ne.s32.totalorder %s134, %s135
    %p146 = scmp.eq.s32.totalorder %s16, 0
    %p147 = por %p145, %p146
    %p148 = scmp.ne.s32.totalorder %s134, %s135
    %p149 = scmp.eq.s32.totalorder %s17, 1
    %p150 = por %p148, %p149
    %p152 = scmp.ne.s32.totalorder %s135, %s151
    %p153 = scmp.eq.s32.totalorder %s17, 0
    %p154 = por %p152, %p153
    %p155 = scmp.le.s32.totalorder 1, %s11
    %p156 = scmp.lt.s32.totalorder %s11, 3
    %p157 = pnand %p155, %p156
    %p158 = pneg %p157
    // Predicated region
    $region9: #{audio_diarization_forward.3} parent=5 // pred_check
      _
    $region10: #{audio_diarization_forward.3} parent=5 // pred_check_branch
      %160 = sbr.rel (%p157) target = $region12
    $region11: #{audio_diarization_forward.3} parent=5 // pred_region
      %s161 = ssub.s32 %s11, 1
      // Predicated region
      $region13: #{audio_diarization_forward.3} parent=11 // pred_check
        %p162 = pneg %p58
      $region14: #{audio_diarization_forward.3} parent=11 // pred_check_branch
        %164 = sbr.rel (%p162) target = $region16
      $region15: #{audio_diarization_forward.3} parent=11 // pred_region
        _
      $region16: #{audio_diarization_forward.3} parent=11 // pred_fallthru
        _
      // Predicated region
      $region17: #{audio_diarization_forward.3} parent=11 // pred_check
        %p165 = pneg %p79
      $region18: #{audio_diarization_forward.3} parent=11 // pred_check_branch
        %167 = sbr.rel (%p165) target = $region20
      $region19: #{audio_diarization_forward.3} parent=11 // pred_region
        _
      $region20: #{audio_diarization_forward.3} parent=11 // pred_fallthru
        _
      // Predicated region
      $region21: #{audio_diarization_forward.3} parent=11 // pred_check
        %p168 = pneg %p100
      $region22: #{audio_diarization_forward.3} parent=11 // pred_check_branch
        %170 = sbr.rel (%p168) target = $region24
      $region23: #{audio_diarization_forward.3} parent=11 // pred_region
        _
      $region24: #{audio_diarization_forward.3} parent=11 // pred_fallthru
        _
      // Predicated region
      $region25: #{audio_diarization_forward.3} parent=11 // pred_check
        %p171 = pneg %p121
      $region26: #{audio_diarization_forward.3} parent=11 // pred_check_branch
        %173 = sbr.rel (%p171) target = $region28
      $region27: #{audio_diarization_forward.3} parent=11 // pred_region
        _
      $region28: #{audio_diarization_forward.3} parent=11 // pred_fallthru
        _
    $region12: #{audio_diarization_forward.3} parent=5 // pred_fallthru
      _
    %p174 = scmp.lt.s32.totalorder %s11, 2
    // Predicated region
    $region29: #{audio_diarization_forward.3} parent=5 // pred_check
      %p175 = pneg %p174
    $region30: #{audio_diarization_forward.3} parent=5 // pred_check_branch
      %177 = sbr.rel (%p175) target = $region32
    $region31: #{audio_diarization_forward.3} parent=5 // pred_region
      // Predicated region
      $region33: #{audio_diarization_forward.3} parent=31 // pred_check
        %p178 = pneg %p31
      $region34: #{audio_diarization_forward.3} parent=31 // pred_check_branch
        %180 = sbr.rel (%p178) target = $region36
      $region35: #{audio_diarization_forward.3} parent=31 // pred_region
        %p181 = scmp.lt.s32.totalorder %s11, 1
        %s182 = scalar_select %p181, %s11, 1
        %s183 = smul.addr %s182, 40
        %s184 = smul.addr %s183, 4
        %s185 = scalar_lea.vmem %s0, %s184
      $region36: #{audio_diarization_forward.3} parent=31 // pred_fallthru
        _
    $region32: #{audio_diarization_forward.3} parent=5 // pred_fallthru
      _
    %p186 = scmp.le.s32.totalorder 1, %s11
    %p187 = scmp.lt.s32.totalorder %s11, 3
    %p188 = pnand %p186, %p187
    %p189 = pneg %p188
    // Predicated region
    $region37: #{audio_diarization_forward.3} parent=5 // pred_check
      _
    $region38: #{audio_diarization_forward.3} parent=5 // pred_check_branch
      %191 = sbr.rel (%p188) target = $region40
    $region39: #{audio_diarization_forward.3} parent=5 // pred_region
      %s192 = ssub.s32 %s11, 1
      %p193 = scmp.lt.s32.totalorder %s16, 1
      %s194 = scalar_select %p193, %s16, 1
      %s195 = smul.addr %s194, 40
      %s196 = smul.addr %s195, 4
      %s197 = scalar_lea.vmem %s0, %s196
      %p198 = pneg %p37
      %p199 = pneg %p34
      %p200 = pneg %p58
      %p201 = pneg %p55
      %p202 = pneg %p79
      %p203 = pneg %p76
      %p204 = pneg %p100
      %p205 = pneg %p97
      %p206 = pneg %p121
      %p207 = pneg %p118
      %p208 = pneg %p147
      %p209 = pneg %p144
      %p210 = scmp.lt.s32.totalorder %s16, 1
      %s211 = scalar_select %p210, %s16, 1
      %s212 = smul.addr %s211, 10
      %s213 = smul.addr %s212, 8
      %s214 = scalar_lea.vmem %s5, %s213
      %p215 = scmp.lt.s32.totalorder %s16, 1
      %s216 = scalar_select %p215, %s16, 1
      %s217 = smul.addr %s216, 40
      %s218 = smul.addr %s217, 4
      %s219 = scalar_lea.vmem %s0, %s218
      %p220 = scmp.lt.s32.totalorder %s16, 1
      %s221 = scalar_select %p220, %s16, 1
      %s222 = smul.addr %s221, 10
      %s223 = smul.addr %s222, 8
      %s224 = scalar_lea.vmem %s5, %s223
      %v226 = vld [vmem:[%s219] sm:$0xff]
      %v227 = vld [vmem:[%s219 + $0x8] sm:$0xff]
      %v228 = vld [vmem:[%s219 + $0x10] sm:$0xff]
      %v229 = vld [vmem:[%s219 + $0x18] sm:$0xff]
      %v230 = vld [vmem:[%s219 + $0x20] sm:$0xff]
      %v231 = vld [vmem:[%s219 + $0x28] sm:$0xff]
      %v232 = vld [vmem:[%s219 + $0x30] sm:$0xff]
      %v233 = vld [vmem:[%s219 + $0x38] sm:$0xff]
      %v234 = vld [vmem:[%s219 + $0x40] sm:$0xff]
      %v235 = vld [vmem:[%s219 + $0x48] sm:$0xff]
      %v236 = vld [vmem:[%s219 + $0x50] sm:$0xff]
      %v237 = vld [vmem:[%s219 + $0x58] sm:$0xff]
      %v238 = vld [vmem:[%s219 + $0x60] sm:$0xff]
      %v239 = vld [vmem:[%s219 + $0x68] sm:$0xff]
      %v240 = vld [vmem:[%s219 + $0x70] sm:$0xff]
      %v241 = vld [vmem:[%s219 + $0x78] sm:$0x33]
      %v242 = vld [vmem:[%s219 + $0x80] sm:$0x33]
      %v243 = vld [vmem:[%s219 + $0x88] sm:$0x33]
      %v244 = vld [vmem:[%s219 + $0x90] sm:$0x33]
      %v245 = vld [vmem:[%s219 + $0x98] sm:$0x33]
      %v246 = vld [vmem:[%s1] sm:$0xf]
      %v247 = vld [vmem:[%s1 + $0x4] sm:$0xf]
      %v248 = vld [vmem:[%s1 + $0x8] sm:$0xf]
      %v249 = vld [vmem:[%s2] sm:$0xff]
      %v250 = vld [vmem:[%s2 + $0x8] sm:$0xff]
      %v251 = vld [vmem:[%s2 + $0x10] sm:$0xff]
      %253 = vset.pattern.permute.xlu0 0
      %254 = vperm.xlu0 %253, %v249
      %v255 = vpop.permute.xlu0 %254
      %258 = vset.pattern.permute.xlu0 0
      %259 = vperm.xlu0 %258, %v250
      %v260 = vpop.permute.xlu0 %259
      %263 = vset.pattern.permute.xlu0 0
      %264 = vperm.xlu0 %263, %v251
      %v265 = vpop.permute.xlu0 %264
      %v270 = vunpack.c.l.b16 %v246
      %v271 = vunpack.c.l.b16 %v247
      %v272 = vunpack.c.l.b16 %v248
      %v273 = vpack.c.b16 %v271, %v270
      %v274 = vpack.c.b16 %v272, %v272
      %v295 = vunpack.c.l.b16 %v226
      %v296 = vunpack.c.h.b16 %v226
      %v297 = vunpack.c.l.b16 %v227
      %v298 = vunpack.c.h.b16 %v227
      %v299 = vunpack.c.l.b16 %v228
      %v300 = vunpack.c.h.b16 %v228
      %v301 = vunpack.c.l.b16 %v229
      %v302 = vunpack.c.h.b16 %v229
      %v303 = vunpack.c.l.b16 %v230
      %v304 = vunpack.c.h.b16 %v230
      %v305 = vunpack.c.l.b16 %v231
      %v306 = vunpack.c.h.b16 %v231
      %v307 = vunpack.c.l.b16 %v232
      %v308 = vunpack.c.h.b16 %v232
      %v309 = vunpack.c.l.b16 %v233
      %v310 = vunpack.c.h.b16 %v233
      %v311 = vunpack.c.l.b16 %v234
      %v312 = vunpack.c.h.b16 %v234
      %v313 = vunpack.c.l.b16 %v235
      %v314 = vunpack.c.h.b16 %v235
      %v315 = vunpack.c.l.b16 %v236
      %v316 = vunpack.c.h.b16 %v236
      %v317 = vunpack.c.l.b16 %v237
      %v318 = vunpack.c.h.b16 %v237
      %v319 = vunpack.c.l.b16 %v238
      %v320 = vunpack.c.h.b16 %v238
      %v321 = vunpack.c.l.b16 %v239
      %v322 = vunpack.c.h.b16 %v239
      %v323 = vunpack.c.l.b16 %v240
      %v324 = vunpack.c.h.b16 %v240
      %v325 = vunpack.c.l.b16 %v241
      %v326 = vunpack.c.h.b16 %v241
      %v327 = vunpack.c.l.b16 %v242
      %v328 = vunpack.c.h.b16 %v242
      %v329 = vunpack.c.l.b16 %v243
      %v330 = vunpack.c.h.b16 %v243
      %v331 = vunpack.c.l.b16 %v244
      %v332 = vunpack.c.h.b16 %v244
      %v333 = vunpack.c.l.b16 %v245
      %v334 = vunpack.c.h.b16 %v245
      %v335 = vpack.c.b16 %v305, %v295
      %v336 = vpack.c.b16 %v306, %v296
      %v337 = vpack.c.b16 %v307, %v297
      %v338 = vpack.c.b16 %v308, %v298
      %v339 = vpack.c.b16 %v309, %v299
      %v340 = vpack.c.b16 %v310, %v300
      %v341 = vpack.c.b16 %v311, %v301
      %v342 = vpack.c.b16 %v312, %v302
      %v343 = vpack.c.b16 %v313, %v303
      %v344 = vpack.c.b16 %v314, %v304
      %v345 = vpack.c.b16 %v325, %v315
      %v346 = vpack.c.b16 %v326, %v316
      %v347 = vpack.c.b16 %v327, %v317
      %v348 = vpack.c.b16 %v328, %v318
      %v349 = vpack.c.b16 %v329, %v319
      %v350 = vpack.c.b16 %v330, %v320
      %v351 = vpack.c.b16 %v331, %v321
      %v352 = vpack.c.b16 %v332, %v322
      %v353 = vpack.c.b16 %v333, %v323
      %v354 = vpack.c.b16 %v334, %v324
      %vm365 = vcmask 220160
      %v367 = vsel %vm365, %v273, 0
      %v370 = vsel %vm365, %v274, 0
      %vm372 = vcmask 1044480
      %vm373 = vcmask 1045504
      %v374 = vsel %vm372, 4294967295, 65535
      %v375 = vsel %vm373, %v374, 0
      %v377 = vand.u32 %v345, %v375
      %v380 = vand.u32 %v346, %v375
      %v383 = vand.u32 %v347, %v375
      %v386 = vand.u32 %v348, %v375
      %v389 = vand.u32 %v349, %v375
      %v392 = vand.u32 %v350, %v375
      %v395 = vand.u32 %v351, %v375
      %v398 = vand.u32 %v352, %v375
      %v401 = vand.u32 %v353, %v375
      %v404 = vand.u32 %v354, %v375
      %406 = vmatprep.subr.bf16.mxu0 %v336
      %407 = vmatpush1.bf16.msra.mxu0 %v335
      %408 = vmatprep.subr.bf16.mxu0 %v380
      %409 = vmatpush1.bf16.msra.mxu0 %v377
      %410 = vmatprep.subr.bf16.mxu0 0
      %411 = vmatpush1.bf16.msra.mxu0 0
      %412 = vmatprep.subr.bf16.mxu0 0
      %413 = vmatpush1.bf16.msra.mxu0 0
      %414 = vmatprep.subr.bf16.mxu0 0
      %415 = vmatpush1.bf16.msra.mxu0 0
      %416 = vmatprep.subr.bf16.mxu0 0
      %417 = vmatpush1.bf16.msra.mxu0 0
      %418 = vmatprep.subr.bf16.mxu0 0
      %419 = vmatpush1.bf16.msra.mxu0 0
      %420 = vmatprep.subr.bf16.mxu0 0
      %421 = vmatpush1.bf16.msra.mxu0 0
      %422 = vmatprep.subr.bf16.mxu0 0
      %423 = vmatpush1.bf16.msra.mxu0 0
      %424 = vmatprep.subr.bf16.mxu0 0
      %425 = vmatpush1.bf16.msra.mxu0 0
      %426 = vmatprep.subr.bf16.mxu0 0
      %427 = vmatpush1.bf16.msra.mxu0 0
      %428 = vmatprep.subr.bf16.mxu0 0
      %429 = vmatpush1.bf16.msra.mxu0 0
      %430 = vmatprep.subr.bf16.mxu0 0
      %431 = vmatpush1.bf16.msra.mxu0 0
      %432 = vmatprep.subr.bf16.mxu0 0
      %433 = vmatpush1.bf16.msra.mxu0 0
      %434 = vmatprep.subr.bf16.mxu0 0
      %435 = vmatpush1.bf16.msra.mxu0 0
      %436 = vmatprep.subr.bf16.mxu0 0
      %437 = vmatpush1.bf16.msra.mxu0 0
      %438 = vmatprep.mubr.bf16.mxu0 0
      %439 = vmatmul.mubr.bf16.gmra.mrb[0].mxu0 %v367
      %v440 = vpop.f32.mrb[0].mxu0
      %v441 = vadd.f32 %v255, %v440
      %v442 = vpop.f32.mrb[0].mxu0
      %v443 = vadd.f32 %v255, %v442
      %v444 = vpop.f32.mrb[0].mxu0
      %v445 = vadd.f32 %v260, %v444
      %v446 = vpop.f32.mrb[0].mxu0
      %v447 = vadd.f32 %v260, %v446
      %448 = vmatprep.mubr.bf16.mxu0 0
      %449 = vmatmul.mubr.bf16.gmra.mrb[0].mxu0 %v370
      %v450 = vpop.f32.mrb[0].mxu0
      %v451 = vadd.f32 %v265, %v450
      %v452 = vpop.f32.mrb[0].mxu0
      %v453 = vadd.f32 %v265, %v452
      %v454 = vpop.f32.mrb[0].mxu0
      %v455 = vpop.f32.mrb[0].mxu0
      %456 = vdwg.mxu0
      %457 = vmatprep.subr.bf16.mxu0 %v338
      %458 = vmatpush1.bf16.msra.mxu0 %v337
      %459 = vmatprep.subr.bf16.mxu0 %v386
      %460 = vmatpush1.bf16.msra.mxu0 %v383
      %461 = vmatprep.subr.bf16.mxu0 0
      %462 = vmatpush1.bf16.msra.mxu0 0
      %463 = vmatprep.subr.bf16.mxu0 0
      %464 = vmatpush1.bf16.msra.mxu0 0
      %465 = vmatprep.subr.bf16.mxu0 0
      %466 = vmatpush1.bf16.msra.mxu0 0
      %467 = vmatprep.subr.bf16.mxu0 0
      %468 = vmatpush1.bf16.msra.mxu0 0
      %469 = vmatprep.subr.bf16.mxu0 0
      %470 = vmatpush1.bf16.msra.mxu0 0
      %471 = vmatprep.subr.bf16.mxu0 0
      %472 = vmatpush1.bf16.msra.mxu0 0
      %473 = vmatprep.subr.bf16.mxu0 0
      %474 = vmatpush1.bf16.msra.mxu0 0
      %475 = vmatprep.subr.bf16.mxu0 0
      %476 = vmatpush1.bf16.msra.mxu0 0
      %477 = vmatprep.subr.bf16.mxu0 0
      %478 = vmatpush1.bf16.msra.mxu0 0
      %479 = vmatprep.subr.bf16.mxu0 0
      %480 = vmatpush1.bf16.msra.mxu0 0
      %481 = vmatprep.subr.bf16.mxu0 0
      %482 = vmatpush1.bf16.msra.mxu0 0
      %483 = vmatprep.subr.bf16.mxu0 0
      %484 = vmatpush1.bf16.msra.mxu0 0
      %485 = vmatprep.subr.bf16.mxu0 0
      %486 = vmatpush1.bf16.msra.mxu0 0
      %487 = vmatprep.subr.bf16.mxu0 0
      %488 = vmatpush1.bf16.msra.mxu0 0
      %489 = vmatprep.mubr.bf16.mxu0 0
      %490 = vmatmul.mubr.bf16.gmra.mrb[0].mxu0 %v367
      %v491 = vpop.f32.mrb[0].mxu0
      %v492 = vadd.f32 %v255, %v491
      %v493 = vpop.f32.mrb[0].mxu0
      %v494 = vadd.f32 %v255, %v493
      %v495 = vpop.f32.mrb[0].mxu0
      %v496 = vadd.f32 %v260, %v495
      %v497 = vpop.f32.mrb[0].mxu0
      %v498 = vadd.f32 %v260, %v497
      %499 = vmatprep.mubr.bf16.mxu0 0
      %500 = vmatmul.mubr.bf16.gmra.mrb[0].mxu0 %v370
      %v501 = vpop.f32.mrb[0].mxu0
      %v502 = vadd.f32 %v265, %v501
      %v503 = vpop.f32.mrb[0].mxu0
      %v504 = vadd.f32 %v265, %v503
      %v505 = vpop.f32.mrb[0].mxu0
      %v506 = vpop.f32.mrb[0].mxu0
      %507 = vdwg.mxu0
      %508 = vmatprep.subr.bf16.mxu0 %v340
      %509 = vmatpush1.bf16.msra.mxu0 %v339
      %510 = vmatprep.subr.bf16.mxu0 %v392
      %511 = vmatpush1.bf16.msra.mxu0 %v389
      %512 = vmatprep.subr.bf16.mxu0 0
      %513 = vmatpush1.bf16.msra.mxu0 0
      %514 = vmatprep.subr.bf16.mxu0 0
      %515 = vmatpush1.bf16.msra.mxu0 0
      %516 = vmatprep.subr.bf16.mxu0 0
      %517 = vmatpush1.bf16.msra.mxu0 0
      %518 = vmatprep.subr.bf16.mxu0 0
      %519 = vmatpush1.bf16.msra.mxu0 0
      %520 = vmatprep.subr.bf16.mxu0 0
      %521 = vmatpush1.bf16.msra.mxu0 0
      %522 = vmatprep.subr.bf16.mxu0 0
      %523 = vmatpush1.bf16.msra.mxu0 0
      %524 = vmatprep.subr.bf16.mxu0 0
      %525 = vmatpush1.bf16.msra.mxu0 0
      %526 = vmatprep.subr.bf16.mxu0 0
      %527 = vmatpush1.bf16.msra.mxu0 0
      %528 = vmatprep.subr.bf16.mxu0 0
      %529 = vmatpush1.bf16.msra.mxu0 0
      %530 = vmatprep.subr.bf16.mxu0 0
      %531 = vmatpush1.bf16.msra.mxu0 0
      %532 = vmatprep.subr.bf16.mxu0 0
      %533 = vmatpush1.bf16.msra.mxu0 0
      %534 = vmatprep.subr.bf16.mxu0 0
      %535 = vmatpush1.bf16.msra.mxu0 0
      %536 = vmatprep.subr.bf16.mxu0 0
      %537 = vmatpush1.bf16.msra.mxu0 0
      %538 = vmatprep.subr.bf16.mxu0 0
      %539 = vmatpush1.bf16.msra.mxu0 0
      %540 = vmatprep.mubr.bf16.mxu0 0
      %541 = vmatmul.mubr.bf16.gmra.mrb[0].mxu0 %v367
      %v542 = vpop.f32.mrb[0].mxu0
      %v543 = vadd.f32 %v255, %v542
      %v544 = vpop.f32.mrb[0].mxu0
      %v545 = vadd.f32 %v255, %v544
      %v546 = vpop.f32.mrb[0].mxu0
      %v547 = vadd.f32 %v260, %v546
      %v548 = vpop.f32.mrb[0].mxu0
      %v549 = vadd.f32 %v260, %v548
      %550 = vmatprep.mubr.bf16.mxu0 0
      %551 = vmatmul.mubr.bf16.gmra.mrb[0].mxu0 %v370
      %v552 = vpop.f32.mrb[0].mxu0
      %v553 = vadd.f32 %v265, %v552
      %v554 = vpop.f32.mrb[0].mxu0
      %v555 = vadd.f32 %v265, %v554
      %v556 = vpop.f32.mrb[0].mxu0
      %v557 = vpop.f32.mrb[0].mxu0
      %558 = vdwg.mxu0
      %559 = vmatprep.subr.bf16.mxu0 %v342
      %560 = vmatpush1.bf16.msra.mxu0 %v341
      %561 = vmatprep.subr.bf16.mxu0 %v398
      %562 = vmatpush1.bf16.msra.mxu0 %v395
      %563 = vmatprep.subr.bf16.mxu0 0
      %564 = vmatpush1.bf16.msra.mxu0 0
      %565 = vmatprep.subr.bf16.mxu0 0
      %566 = vmatpush1.bf16.msra.mxu0 0
      %567 = vmatprep.subr.bf16.mxu0 0
      %568 = vmatpush1.bf16.msra.mxu0 0
      %569 = vmatprep.subr.bf16.mxu0 0
      %570 = vmatpush1.bf16.msra.mxu0 0
      %571 = vmatprep.subr.bf16.mxu0 0
      %572 = vmatpush1.bf16.msra.mxu0 0
      %573 = vmatprep.subr.bf16.mxu0 0
      %574 = vmatpush1.bf16.msra.mxu0 0
      %575 = vmatprep.subr.bf16.mxu0 0
      %576 = vmatpush1.bf16.msra.mxu0 0
      %577 = vmatprep.subr.bf16.mxu0 0
      %578 = vmatpush1.bf16.msra.mxu0 0
      %579 = vmatprep.subr.bf16.mxu0 0
      %580 = vmatpush1.bf16.msra.mxu0 0
      %581 = vmatprep.subr.bf16.mxu0 0
      %582 = vmatpush1.bf16.msra.mxu0 0
      %583 = vmatprep.subr.bf16.mxu0 0
      %584 = vmatpush1.bf16.msra.mxu0 0
      %585 = vmatprep.subr.bf16.mxu0 0
      %586 = vmatpush1.bf16.msra.mxu0 0
      %587 = vmatprep.subr.bf16.mxu0 0
      %588 = vmatpush1.bf16.msra.mxu0 0
      %589 = vmatprep.subr.bf16.mxu0 0
      %590 = vmatpush1.bf16.msra.mxu0 0
      %591 = vmatprep.mubr.bf16.mxu0 0
      %592 = vmatmul.mubr.bf16.gmra.mrb[0].mxu0 %v367
      %v593 = vpop.f32.mrb[0].mxu0
      %v594 = vadd.f32 %v255, %v593
      %v595 = vpop.f32.mrb[0].mxu0
      %v596 = vadd.f32 %v255, %v595
      %v597 = vpop.f32.mrb[0].mxu0
      %v598 = vadd.f32 %v260, %v597
      %v599 = vpop.f32.mrb[0].mxu0
      %v600 = vadd.f32 %v260, %v599
      %601 = vmatprep.mubr.bf16.mxu0 0
      %602 = vmatmul.mubr.bf16.gmra.mrb[0].mxu0 %v370
      %v603 = vpop.f32.mrb[0].mxu0
      %v604 = vadd.f32 %v265, %v603
      %v605 = vpop.f32.mrb[0].mxu0
      %v606 = vadd.f32 %v265, %v605
      %v607 = vpop.f32.mrb[0].mxu0
      %v608 = vpop.f32.mrb[0].mxu0
      %609 = vdwg.mxu0
      %610 = vmatprep.subr.bf16.mxu0 %v344
      %611 = vmatpush1.bf16.msra.mxu0 %v343
      %612 = vmatprep.subr.bf16.mxu0 %v404
      %613 = vmatpush1.bf16.msra.mxu0 %v401
      %614 = vmatprep.subr.bf16.mxu0 0
      %615 = vmatpush1.bf16.msra.mxu0 0
      %616 = vmatprep.subr.bf16.mxu0 0
      %617 = vmatpush1.bf16.msra.mxu0 0
      %618 = vmatprep.subr.bf16.mxu0 0
      %619 = vmatpush1.bf16.msra.mxu0 0
      %620 = vmatprep.subr.bf16.mxu0 0
      %621 = vmatpush1.bf16.msra.mxu0 0
      %622 = vmatprep.subr.bf16.mxu0 0
      %623 = vmatpush1.bf16.msra.mxu0 0
      %624 = vmatprep.subr.bf16.mxu0 0
      %625 = vmatpush1.bf16.msra.mxu0 0
      %626 = vmatprep.subr.bf16.mxu0 0
      %627 = vmatpush1.bf16.msra.mxu0 0
      %628 = vmatprep.subr.bf16.mxu0 0
      %629 = vmatpush1.bf16.msra.mxu0 0
      %630 = vmatprep.subr.bf16.mxu0 0
      %631 = vmatpush1.bf16.msra.mxu0 0
      %632 = vmatprep.subr.bf16.mxu0 0
      %633 = vmatpush1.bf16.msra.mxu0 0
      %634 = vmatprep.subr.bf16.mxu0 0
      %635 = vmatpush1.bf16.msra.mxu0 0
      %636 = vmatprep.subr.bf16.mxu0 0
      %637 = vmatpush1.bf16.msra.mxu0 0
      %638 = vmatprep.subr.bf16.mxu0 0
      %639 = vmatpush1.bf16.msra.mxu0 0
      %640 = vmatprep.subr.bf16.mxu0 0
      %641 = vmatpush1.bf16.msra.mxu0 0
      %642 = vmatprep.mubr.bf16.mxu0 0
      %643 = vmatmul.mubr.bf16.gmra.mrb[0].mxu0 %v367
      %v644 = vpop.f32.mrb[0].mxu0
      %v645 = vadd.f32 %v255, %v644
      %v646 = vpop.f32.mrb[0].mxu0
      %v647 = vadd.f32 %v255, %v646
      %v648 = vpop.f32.mrb[0].mxu0
      %v649 = vadd.f32 %v260, %v648
      %v650 = vpop.f32.mrb[0].mxu0
      %v651 = vadd.f32 %v260, %v650
      %652 = vmatprep.mubr.bf16.mxu0 0
      %653 = vmatmul.mubr.bf16.gmra.mrb[0].mxu0 %v370
      %v654 = vpop.f32.mrb[0].mxu0
      %v655 = vadd.f32 %v265, %v654
      %v656 = vpop.f32.mrb[0].mxu0
      %v657 = vadd.f32 %v265, %v656
      %v658 = vpop.f32.mrb[0].mxu0
      %v659 = vpop.f32.mrb[0].mxu0
      %660 = vdwg.mxu0
      %v661 = vmax.f32 %v441, 0.0
      %v662 = vmax.f32 %v443, 0.0
      %v663 = vmax.f32 %v492, 0.0
      %v664 = vmax.f32 %v494, 0.0
      %v665 = vmax.f32 %v543, 0.0
      %v666 = vmax.f32 %v545, 0.0
      %v667 = vmax.f32 %v594, 0.0
      %v668 = vmax.f32 %v596, 0.0
      %v669 = vmax.f32 %v645, 0.0
      %v670 = vmax.f32 %v647, 0.0
      %v671 = vmax.f32 %v445, 0.0
      %v672 = vmax.f32 %v447, 0.0
      %v673 = vmax.f32 %v496, 0.0
      %v674 = vmax.f32 %v498, 0.0
      %v675 = vmax.f32 %v547, 0.0
      %v676 = vmax.f32 %v549, 0.0
      %v677 = vmax.f32 %v598, 0.0
      %v678 = vmax.f32 %v600, 0.0
      %v679 = vmax.f32 %v649, 0.0
      %v680 = vmax.f32 %v651, 0.0
      %v681 = vmax.f32 %v451, 0.0
      %v682 = vmax.f32 %v453, 0.0
      %v683 = vmax.f32 %v502, 0.0
      %v684 = vmax.f32 %v504, 0.0
      %v685 = vmax.f32 %v553, 0.0
      %v686 = vmax.f32 %v555, 0.0
      %v687 = vmax.f32 %v604, 0.0
      %v688 = vmax.f32 %v606, 0.0
      %v689 = vmax.f32 %v655, 0.0
      %v690 = vmax.f32 %v657, 0.0
      %v691 = vld [vmem:[%s3] sm:$0xf]
      %v692 = vpack.c.bf16 %v671, %v661
      %v693 = vpack.c.bf16 %v672, %v662
      %v694 = vpack.c.bf16 %v673, %v663
      %v695 = vpack.c.bf16 %v674, %v664
      %v696 = vpack.c.bf16 %v675, %v665
      %v697 = vpack.c.bf16 %v676, %v666
      %v698 = vpack.c.bf16 %v677, %v667
      %v699 = vpack.c.bf16 %v678, %v668
      %v700 = vpack.c.bf16 %v679, %v669
      %v701 = vpack.c.bf16 %v680, %v670
      %v702 = vpack.c.bf16 %v681, %v681
      %v703 = vpack.c.bf16 %v682, %v682
      %v704 = vpack.c.bf16 %v683, %v683
      %v705 = vpack.c.bf16 %v684, %v684
      %v706 = vpack.c.bf16 %v685, %v685
      %v707 = vpack.c.bf16 %v686, %v686
      %v708 = vpack.c.bf16 %v687, %v687
      %v709 = vpack.c.bf16 %v688, %v688
      %v710 = vpack.c.bf16 %v689, %v689
      %v711 = vpack.c.bf16 %v690, %v690
      %v712 = vld [vmem:[%s4] sm:$0xff]
      %714 = vset.pattern.permute.xlu0 0
      %715 = vperm.xlu0 %714, %v712
      %v716 = vpop.permute.xlu0 %715
      %vm718 = vcmask 195584
      %v720 = vsel %vm718, %v691, 0
      %vm722 = vcmask 1043456
      %v724 = vsel %vm722, %v702, 0
      %v727 = vsel %vm722, %v703, 0
      %v730 = vsel %vm722, %v704, 0
      %v733 = vsel %vm722, %v705, 0
      %v736 = vsel %vm722, %v706, 0
      %v739 = vsel %vm722, %v707, 0
      %v742 = vsel %vm722, %v708, 0
      %v745 = vsel %vm722, %v709, 0
      %v748 = vsel %vm722, %v710, 0
      %v751 = vsel %vm722, %v711, 0
      %753 = vmatprep.subr.bf16.mxu0 %v693
      %754 = vmatpush1.bf16.msra.mxu0 %v692
      %755 = vmatprep.subr.bf16.mxu0 %v727
      %756 = vmatpush1.bf16.msra.mxu0 %v724
      %757 = vmatprep.subr.bf16.mxu0 0
      %758 = vmatpush1.bf16.msra.mxu0 0
      %759 = vmatprep.subr.bf16.mxu0 0
      %760 = vmatpush1.bf16.msra.mxu0 0
      %761 = vmatprep.subr.bf16.mxu0 0
      %762 = vmatpush1.bf16.msra.mxu0 0
      %763 = vmatprep.subr.bf16.mxu0 0
      %764 = vmatpush1.bf16.msra.mxu0 0
      %765 = vmatprep.subr.bf16.mxu0 0
      %766 = vmatpush1.bf16.msra.mxu0 0
      %767 = vmatprep.subr.bf16.mxu0 0
      %768 = vmatpush1.bf16.msra.mxu0 0
      %769 = vmatprep.subr.bf16.mxu0 0
      %770 = vmatpush1.bf16.msra.mxu0 0
      %771 = vmatprep.subr.bf16.mxu0 0
      %772 = vmatpush1.bf16.msra.mxu0 0
      %773 = vmatprep.subr.bf16.mxu0 0
      %774 = vmatpush1.bf16.msra.mxu0 0
      %775 = vmatprep.subr.bf16.mxu0 0
      %776 = vmatpush1.bf16.msra.mxu0 0
      %777 = vmatprep.subr.bf16.mxu0 0
      %778 = vmatpush1.bf16.msra.mxu0 0
      %779 = vmatprep.subr.bf16.mxu0 0
      %780 = vmatpush1.bf16.msra.mxu0 0
      %781 = vmatprep.subr.bf16.mxu0 0
      %782 = vmatpush1.bf16.msra.mxu0 0
      %783 = vmatprep.subr.bf16.mxu0 0
      %784 = vmatpush1.bf16.msra.mxu0 0
      %785 = vmatprep.mubr.bf16.mxu0 0
      %786 = vmatmul.mubr.bf16.gmra.mrb[0].mxu0 %v720
      %v787 = vpop.f32.mrb[0].mxu0
      %v788 = vadd.f32 %v716, %v787
      %v789 = vpop.f32.mrb[0].mxu0
      %v790 = vadd.f32 %v716, %v789
      %v791 = vpop.f32.mrb[0].mxu0
      %v792 = vpop.f32.mrb[0].mxu0
      %793 = vdwg.mxu0
      %794 = vmatprep.subr.bf16.mxu0 %v695
      %795 = vmatpush1.bf16.msra.mxu0 %v694
      %796 = vmatprep.subr.bf16.mxu0 %v733
      %797 = vmatpush1.bf16.msra.mxu0 %v730
      %798 = vmatprep.subr.bf16.mxu0 0
      %799 = vmatpush1.bf16.msra.mxu0 0
      %800 = vmatprep.subr.bf16.mxu0 0
      %801 = vmatpush1.bf16.msra.mxu0 0
      %802 = vmatprep.subr.bf16.mxu0 0
      %803 = vmatpush1.bf16.msra.mxu0 0
      %804 = vmatprep.subr.bf16.mxu0 0
      %805 = vmatpush1.bf16.msra.mxu0 0
      %806 = vmatprep.subr.bf16.mxu0 0
      %807 = vmatpush1.bf16.msra.mxu0 0
      %808 = vmatprep.subr.bf16.mxu0 0
      %809 = vmatpush1.bf16.msra.mxu0 0
      %810 = vmatprep.subr.bf16.mxu0 0
      %811 = vmatpush1.bf16.msra.mxu0 0
      %812 = vmatprep.subr.bf16.mxu0 0
      %813 = vmatpush1.bf16.msra.mxu0 0
      %814 = vmatprep.subr.bf16.mxu0 0
      %815 = vmatpush1.bf16.msra.mxu0 0
      %816 = vmatprep.subr.bf16.mxu0 0
      %817 = vmatpush1.bf16.msra.mxu0 0
      %818 = vmatprep.subr.bf16.mxu0 0
      %819 = vmatpush1.bf16.msra.mxu0 0
      %820 = vmatprep.subr.bf16.mxu0 0
      %821 = vmatpush1.bf16.msra.mxu0 0
      %822 = vmatprep.subr.bf16.mxu0 0
      %823 = vmatpush1.bf16.msra.mxu0 0
      %824 = vmatprep.subr.bf16.mxu0 0
      %825 = vmatpush1.bf16.msra.mxu0 0
      %826 = vmatprep.mubr.bf16.mxu0 0
      %827 = vmatmul.mubr.bf16.gmra.mrb[0].mxu0 %v720
      %v828 = vpop.f32.mrb[0].mxu0
      %v829 = vadd.f32 %v716, %v828
      %v830 = vpop.f32.mrb[0].mxu0
      %v831 = vadd.f32 %v716, %v830
      %v832 = vpop.f32.mrb[0].mxu0
      %v833 = vpop.f32.mrb[0].mxu0
      %834 = vdwg.mxu0
      %835 = vmatprep.subr.bf16.mxu0 %v697
      %836 = vmatpush1.bf16.msra.mxu0 %v696
      %837 = vmatprep.subr.bf16.mxu0 %v739
      %838 = vmatpush1.bf16.msra.mxu0 %v736
      %839 = vmatprep.subr.bf16.mxu0 0
      %840 = vmatpush1.bf16.msra.mxu0 0
      %841 = vmatprep.subr.bf16.mxu0 0
      %842 = vmatpush1.bf16.msra.mxu0 0
      %843 = vmatprep.subr.bf16.mxu0 0
      %844 = vmatpush1.bf16.msra.mxu0 0
      %845 = vmatprep.subr.bf16.mxu0 0
      %846 = vmatpush1.bf16.msra.mxu0 0
      %847 = vmatprep.subr.bf16.mxu0 0
      %848 = vmatpush1.bf16.msra.mxu0 0
      %849 = vmatprep.subr.bf16.mxu0 0
      %850 = vmatpush1.bf16.msra.mxu0 0
      %851 = vmatprep.subr.bf16.mxu0 0
      %852 = vmatpush1.bf16.msra.mxu0 0
      %853 = vmatprep.subr.bf16.mxu0 0
      %854 = vmatpush1.bf16.msra.mxu0 0
      %855 = vmatprep.subr.bf16.mxu0 0
      %856 = vmatpush1.bf16.msra.mxu0 0
      %857 = vmatprep.subr.bf16.mxu0 0
      %858 = vmatpush1.bf16.msra.mxu0 0
      %859 = vmatprep.subr.bf16.mxu0 0
      %860 = vmatpush1.bf16.msra.mxu0 0
      %861 = vmatprep.subr.bf16.mxu0 0
      %862 = vmatpush1.bf16.msra.mxu0 0
      %863 = vmatprep.subr.bf16.mxu0 0
      %864 = vmatpush1.bf16.msra.mxu0 0
      %865 = vmatprep.subr.bf16.mxu0 0
      %866 = vmatpush1.bf16.msra.mxu0 0
      %867 = vmatprep.mubr.bf16.mxu0 0
      %868 = vmatmul.mubr.bf16.gmra.mrb[0].mxu0 %v720
      %v869 = vpop.f32.mrb[0].mxu0
      %v870 = vadd.f32 %v716, %v869
      %v871 = vpop.f32.mrb[0].mxu0
      %v872 = vadd.f32 %v716, %v871
      %v873 = vpop.f32.mrb[0].mxu0
      %v874 = vpop.f32.mrb[0].mxu0
      %875 = vdwg.mxu0
      %876 = vmatprep.subr.bf16.mxu0 %v699
      %877 = vmatpush1.bf16.msra.mxu0 %v698
      %878 = vmatprep.subr.bf16.mxu0 %v745
      %879 = vmatpush1.bf16.msra.mxu0 %v742
      %880 = vmatprep.subr.bf16.mxu0 0
      %881 = vmatpush1.bf16.msra.mxu0 0
      %882 = vmatprep.subr.bf16.mxu0 0
      %883 = vmatpush1.bf16.msra.mxu0 0
      %884 = vmatprep.subr.bf16.mxu0 0
      %885 = vmatpush1.bf16.msra.mxu0 0
      %886 = vmatprep.subr.bf16.mxu0 0
      %887 = vmatpush1.bf16.msra.mxu0 0
      %888 = vmatprep.subr.bf16.mxu0 0
      %889 = vmatpush1.bf16.msra.mxu0 0
      %890 = vmatprep.subr.bf16.mxu0 0
      %891 = vmatpush1.bf16.msra.mxu0 0
      %892 = vmatprep.subr.bf16.mxu0 0
      %893 = vmatpush1.bf16.msra.mxu0 0
      %894 = vmatprep.subr.bf16.mxu0 0
      %895 = vmatpush1.bf16.msra.mxu0 0
      %896 = vmatprep.subr.bf16.mxu0 0
      %897 = vmatpush1.bf16.msra.mxu0 0
      %898 = vmatprep.subr.bf16.mxu0 0
      %899 = vmatpush1.bf16.msra.mxu0 0
      %900 = vmatprep.subr.bf16.mxu0 0
      %901 = vmatpush1.bf16.msra.mxu0 0
      %902 = vmatprep.subr.bf16.mxu0 0
      %903 = vmatpush1.bf16.msra.mxu0 0
      %904 = vmatprep.subr.bf16.mxu0 0
      %905 = vmatpush1.bf16.msra.mxu0 0
      %906 = vmatprep.subr.bf16.mxu0 0
      %907 = vmatpush1.bf16.msra.mxu0 0
      %908 = vmatprep.mubr.bf16.mxu0 0
      %909 = vmatmul.mubr.bf16.gmra.mrb[0].mxu0 %v720
      %v910 = vpop.f32.mrb[0].mxu0
      %v911 = vadd.f32 %v716, %v910
      %v912 = vpop.f32.mrb[0].mxu0
      %v913 = vadd.f32 %v716, %v912
      %v914 = vpop.f32.mrb[0].mxu0
      %v915 = vpop.f32.mrb[0].mxu0
      %916 = vdwg.mxu0
      %917 = vmatprep.subr.bf16.mxu0 %v701
      %918 = vmatpush1.bf16.msra.mxu0 %v700
      %919 = vmatprep.subr.bf16.mxu0 %v751
      %920 = vmatpush1.bf16.msra.mxu0 %v748
      %921 = vmatprep.subr.bf16.mxu0 0
      %922 = vmatpush1.bf16.msra.mxu0 0
      %923 = vmatprep.subr.bf16.mxu0 0
      %924 = vmatpush1.bf16.msra.mxu0 0
      %925 = vmatprep.subr.bf16.mxu0 0
      %926 = vmatpush1.bf16.msra.mxu0 0
      %927 = vmatprep.subr.bf16.mxu0 0
      %928 = vmatpush1.bf16.msra.mxu0 0
      %929 = vmatprep.subr.bf16.mxu0 0
      %930 = vmatpush1.bf16.msra.mxu0 0
      %931 = vmatprep.subr.bf16.mxu0 0
      %932 = vmatpush1.bf16.msra.mxu0 0
      %933 = vmatprep.subr.bf16.mxu0 0
      %934 = vmatpush1.bf16.msra.mxu0 0
      %935 = vmatprep.subr.bf16.mxu0 0
      %936 = vmatpush1.bf16.msra.mxu0 0
      %937 = vmatprep.subr.bf16.mxu0 0
      %938 = vmatpush1.bf16.msra.mxu0 0
      %939 = vmatprep.subr.bf16.mxu0 0
      %940 = vmatpush1.bf16.msra.mxu0 0
      %941 = vmatprep.subr.bf16.mxu0 0
      %942 = vmatpush1.bf16.msra.mxu0 0
      %943 = vmatprep.subr.bf16.mxu0 0
      %944 = vmatpush1.bf16.msra.mxu0 0
      %945 = vmatprep.subr.bf16.mxu0 0
      %946 = vmatpush1.bf16.msra.mxu0 0
      %947 = vmatprep.subr.bf16.mxu0 0
      %948 = vmatpush1.bf16.msra.mxu0 0
      %949 = vmatprep.mubr.bf16.mxu0 0
      %950 = vmatmul.mubr.bf16.gmra.mrb[0].mxu0 %v720
      %v951 = vpop.f32.mrb[0].mxu0
      %v952 = vadd.f32 %v716, %v951
      %v953 = vpop.f32.mrb[0].mxu0
      %v954 = vadd.f32 %v716, %v953
      %v955 = vpop.f32.mrb[0].mxu0
      %v956 = vpop.f32.mrb[0].mxu0
      %957 = vdwg.mxu0
      %958 = vst [vmem:[%s224] sm:$0xff] %v788
      %959 = vst [vmem:[%s224 + $0x8] sm:$0xff] %v790
      %960 = vst [vmem:[%s224 + $0x10] sm:$0xff] %v829
      %961 = vst [vmem:[%s224 + $0x18] sm:$0xff] %v831
      %962 = vst [vmem:[%s224 + $0x20] sm:$0xff] %v870
      %963 = vst [vmem:[%s224 + $0x28] sm:$0xff] %v872
      %964 = vst [vmem:[%s224 + $0x30] sm:$0xff] %v911
      %965 = vst [vmem:[%s224 + $0x38] sm:$0xff] %v913
      %966 = vst [vmem:[%s224 + $0x40] sm:$0xff] %v952
      %967 = vst [vmem:[%s224 + $0x48] sm:$0xff] %v954
      %p968 = scmp.lt.s32.totalorder %s16, 1
      %s969 = scalar_select %p968, %s16, 1
      %s970 = smul.addr %s969, 10
      %s971 = smul.addr %s970, 8
      %s972 = scalar_lea.vmem %s5, %s971
      // Predicated region
      $region41: #{audio_diarization_forward.3} parent=39 // pred_check
        %p973 = pneg %p144
      $region42: #{audio_diarization_forward.3} parent=39 // pred_check_branch
        %975 = sbr.rel (%p973) target = $region44
      $region43: #{audio_diarization_forward.3} parent=39 // pred_region
        _
      $region44: #{audio_diarization_forward.3} parent=39 // pred_fallthru
        _
    $region40: #{audio_diarization_forward.3} parent=5 // pred_fallthru
      _
    %p976 = scmp.le.s32.totalorder 2, %s11
    // Predicated region
    $region45: #{audio_diarization_forward.3} parent=5 // pred_check
      %p977 = pneg %p976
    $region46: #{audio_diarization_forward.3} parent=5 // pred_check_branch
      %979 = sbr.rel (%p977) target = $region48
    $region47: #{audio_diarization_forward.3} parent=5 // pred_region
      %s980 = ssub.s32 %s11, 2
      // Predicated region
      $region49: #{audio_diarization_forward.3} parent=47 // pred_check
        %p981 = pneg %p150
      $region50: #{audio_diarization_forward.3} parent=47 // pred_check_branch
        %983 = sbr.rel (%p981) target = $region52
      $region51: #{audio_diarization_forward.3} parent=47 // pred_region
        %p984 = scmp.lt.s32.totalorder %s17, 1
        %s985 = scalar_select %p984, %s17, 1
        %s986 = smul.addr %s985, 10
        %s987 = smul.addr %s986, 8
        %s988 = scalar_lea.vmem %s5, %s987
      $region52: #{audio_diarization_forward.3} parent=47 // pred_fallthru
        _
    $region48: #{audio_diarization_forward.3} parent=5 // pred_fallthru
      _
  $region6: #{audio_diarization_forward.3} parent=0 // loop_footer
    %s15 = sadd.s32 1, %s11
  $region7: #{audio_diarization_forward.3} parent=0 // loop_footer_branch
    %10 = sbr.rel target = $region3
  $region8: #{audio_diarization_forward.3} parent=0 // loop_exit
    _

// kernel: audio_diarization_forward.4
$region0: #{audio_diarization_forward.4}
  #allocation0 [shape = 'u32[]', space=smem, size = 0x4, offset = 0x4, fixed_abs, tag = 'smem constant byte address 0x4 - core index']
  #allocation1 [shape = 'u32[144,128]{1,0:T(1,128)}', space=vmem, size = 0x12000, scoped, tag = 'internal scratch']
  %s0 = inlined_call_operand.vmem [shape: bf16[2,216,320], index: 0, kind: input, shape index: {}]
  %s1 = inlined_call_operand.vmem [shape: bf16[48,216], index: 1, kind: input, shape index: {}]
  %s2 = inlined_call_operand.vmem [shape: f32[48,1], index: 2, kind: input, shape index: {}]
  %s3 = inlined_call_operand.vmem [shape: bf16[16,48], index: 3, kind: input, shape index: {}]
  %s4 = inlined_call_operand.vmem [shape: f32[16,1], index: 4, kind: input, shape index: {}]
  %s5 = inlined_call_operand.vmem [shape: f32[2,16,320], index: 5, kind: output, shape index: {}]
  %s6 = sld [smem:[#allocation0]]
  $region53: #{audio_diarization_forward.4} parent=0
    _
  %s8 = ssub.s32 1, %s6
  %s9 = scalar_select 0, %s8, %s6
  loop: start=0, step=1, limit=4
  $region2: #{audio_diarization_forward.4} parent=0 // loop_pre_header
    _
  $region3: #{audio_diarization_forward.4} parent=0 // loop_header
    %s11 = sphi 0, %s15
    %p12 = scmp.ge.s32.totalorder %s11, 4
    %s21 = sphi 0, %s23
    %s24 = sphi 0, %s21
    %s25 = sphi 0, %s24
    %s41 = sphi 0, %s25
    %s45 = sphi 0, %s45
    %s47 = sphi 0, %s45
    %s48 = sphi 0, %s47
    %s62 = sphi 0, %s48
    %s66 = sphi 0, %s66
    %s68 = sphi 0, %s66
    %s69 = sphi 0, %s68
    %s83 = sphi 0, %s69
    %s87 = sphi 0, %s87
    %s89 = sphi 0, %s87
    %s90 = sphi 0, %s89
    %s104 = sphi 0, %s90
    %s108 = sphi 0, %s108
    %s110 = sphi 0, %s108
    %s111 = sphi 0, %s110
    %s125 = sphi 0, %s111
    %s131 = sphi 0, %s133
    %s134 = sphi 0, %s131
    %s135 = sphi 0, %s134
    %s151 = sphi 0, %s135
  $region4: #{audio_diarization_forward.4} parent=0 // loop_header_branch
    %14 = sbr.rel (%p12) target = $region8
  $region5: #{audio_diarization_forward.4} parent=0 // loop_body
    %s16 = ssub.s32 %s11, 1
    %s17 = ssub.s32 %s11, 2
    %s18 = sadd.s32 %s11, 1
    %s19 = ssub.s32 %s11, %s18
    %p20 = scmp.eq.s32.totalorder %s19, 0
    %s22 = sadd.s32 %s21, 1
    %s23 = scalar_select %p20, %s21, %s22
    %p26 = pneg %p20
    %p27 = scmp.eq.s32.totalorder %s11, 1
    %p28 = por %p26, %p27
    %p29 = scmp.ne.s32.totalorder %s21, %s24
    %p30 = scmp.eq.s32.totalorder %s11, 0
    %p31 = por %p29, %p30
    %p32 = scmp.ne.s32.totalorder %s21, %s24
    %p33 = scmp.eq.s32.totalorder %s16, 1
    %p34 = por %p32, %p33
    %p35 = scmp.ne.s32.totalorder %s24, %s25
    %p36 = scmp.eq.s32.totalorder %s16, 0
    %p37 = por %p35, %p36
    %p38 = scmp.ne.s32.totalorder %s24, %s25
    %p39 = scmp.eq.s32.totalorder %s17, 1
    %p40 = por %p38, %p39
    %p42 = scmp.ne.s32.totalorder %s25, %s41
    %p43 = scmp.eq.s32.totalorder %s17, 0
    %p44 = por %p42, %p43
    %s46 = sadd.s32 %s45, 1
    %p49 = scmp.eq.s32.totalorder %s11, 1
    %p50 = scmp.ne.s32.totalorder %s45, %s47
    %p51 = scmp.eq.s32.totalorder %s11, 0
    %p52 = por %p50, %p51
    %p53 = scmp.ne.s32.totalorder %s45, %s47
    %p54 = scmp.eq.s32.totalorder %s16, 1
    %p55 = por %p53, %p54
    %p56 = scmp.ne.s32.totalorder %s47, %s48
    %p57 = scmp.eq.s32.totalorder %s16, 0
    %p58 = por %p56, %p57
    %p59 = scmp.ne.s32.totalorder %s47, %s48
    %p60 = scmp.eq.s32.totalorder %s17, 1
    %p61 = por %p59, %p60
    %p63 = scmp.ne.s32.totalorder %s48, %s62
    %p64 = scmp.eq.s32.totalorder %s17, 0
    %p65 = por %p63, %p64
    %s67 = sadd.s32 %s66, 1
    %p70 = scmp.eq.s32.totalorder %s11, 1
    %p71 = scmp.ne.s32.totalorder %s66, %s68
    %p72 = scmp.eq.s32.totalorder %s11, 0
    %p73 = por %p71, %p72
    %p74 = scmp.ne.s32.totalorder %s66, %s68
    %p75 = scmp.eq.s32.totalorder %s16, 1
    %p76 = por %p74, %p75
    %p77 = scmp.ne.s32.totalorder %s68, %s69
    %p78 = scmp.eq.s32.totalorder %s16, 0
    %p79 = por %p77, %p78
    %p80 = scmp.ne.s32.totalorder %s68, %s69
    %p81 = scmp.eq.s32.totalorder %s17, 1
    %p82 = por %p80, %p81
    %p84 = scmp.ne.s32.totalorder %s69, %s83
    %p85 = scmp.eq.s32.totalorder %s17, 0
    %p86 = por %p84, %p85
    %s88 = sadd.s32 %s87, 1
    %p91 = scmp.eq.s32.totalorder %s11, 1
    %p92 = scmp.ne.s32.totalorder %s87, %s89
    %p93 = scmp.eq.s32.totalorder %s11, 0
    %p94 = por %p92, %p93
    %p95 = scmp.ne.s32.totalorder %s87, %s89
    %p96 = scmp.eq.s32.totalorder %s16, 1
    %p97 = por %p95, %p96
    %p98 = scmp.ne.s32.totalorder %s89, %s90
    %p99 = scmp.eq.s32.totalorder %s16, 0
    %p100 = por %p98, %p99
    %p101 = scmp.ne.s32.totalorder %s89, %s90
    %p102 = scmp.eq.s32.totalorder %s17, 1
    %p103 = por %p101, %p102
    %p105 = scmp.ne.s32.totalorder %s90, %s104
    %p106 = scmp.eq.s32.totalorder %s17, 0
    %p107 = por %p105, %p106
    %s109 = sadd.s32 %s108, 1
    %p112 = scmp.eq.s32.totalorder %s11, 1
    %p113 = scmp.ne.s32.totalorder %s108, %s110
    %p114 = scmp.eq.s32.totalorder %s11, 0
    %p115 = por %p113, %p114
    %p116 = scmp.ne.s32.totalorder %s108, %s110
    %p117 = scmp.eq.s32.totalorder %s16, 1
    %p118 = por %p116, %p117
    %p119 = scmp.ne.s32.totalorder %s110, %s111
    %p120 = scmp.eq.s32.totalorder %s16, 0
    %p121 = por %p119, %p120
    %p122 = scmp.ne.s32.totalorder %s110, %s111
    %p123 = scmp.eq.s32.totalorder %s17, 1
    %p124 = por %p122, %p123
    %p126 = scmp.ne.s32.totalorder %s111, %s125
    %p127 = scmp.eq.s32.totalorder %s17, 0
    %p128 = por %p126, %p127
    %s129 = ssub.s32 %s11, %s18
    %p130 = scmp.eq.s32.totalorder %s129, 0
    %s132 = sadd.s32 %s131, 1
    %s133 = scalar_select %p130, %s131, %s132
    %p136 = pneg %p130
    %p137 = scmp.eq.s32.totalorder %s11, 1
    %p138 = por %p136, %p137
    %p139 = scmp.ne.s32.totalorder %s131, %s134
    %p140 = scmp.eq.s32.totalorder %s11, 0
    %p141 = por %p139, %p140
    %p142 = scmp.ne.s32.totalorder %s131, %s134
    %p143 = scmp.eq.s32.totalorder %s16, 1
    %p144 = por %p142, %p143
    %p145 = scmp.ne.s32.totalorder %s134, %s135
    %p146 = scmp.eq.s32.totalorder %s16, 0
    %p147 = por %p145, %p146
    %p148 = scmp.ne.s32.totalorder %s134, %s135
    %p149 = scmp.eq.s32.totalorder %s17, 1
    %p150 = por %p148, %p149
    %p152 = scmp.ne.s32.totalorder %s135, %s151
    %p153 = scmp.eq.s32.totalorder %s17, 0
    %p154 = por %p152, %p153
    %p155 = scmp.le.s32.totalorder 1, %s11
    %p156 = scmp.lt.s32.totalorder %s11, 3
    %p157 = pnand %p155, %p156
    %p158 = pneg %p157
    // Predicated region
    $region9: #{audio_diarization_forward.4} parent=5 // pred_check
      _
    $region10: #{audio_diarization_forward.4} parent=5 // pred_check_branch
      %160 = sbr.rel (%p157) target = $region12
    $region11: #{audio_diarization_forward.4} parent=5 // pred_region
      %s161 = ssub.s32 %s11, 1
      // Predicated region
      $region13: #{audio_diarization_forward.4} parent=11 // pred_check
        %p162 = pneg %p58
      $region14: #{audio_diarization_forward.4} parent=11 // pred_check_branch
        %164 = sbr.rel (%p162) target = $region16
      $region15: #{audio_diarization_forward.4} parent=11 // pred_region
        _
      $region16: #{audio_diarization_forward.4} parent=11 // pred_fallthru
        _
      // Predicated region
      $region17: #{audio_diarization_forward.4} parent=11 // pred_check
        %p165 = pneg %p79
      $region18: #{audio_diarization_forward.4} parent=11 // pred_check_branch
        %167 = sbr.rel (%p165) target = $region20
      $region19: #{audio_diarization_forward.4} parent=11 // pred_region
        _
      $region20: #{audio_diarization_forward.4} parent=11 // pred_fallthru
        _
      // Predicated region
      $region21: #{audio_diarization_forward.4} parent=11 // pred_check
        %p168 = pneg %p100
      $region22: #{audio_diarization_forward.4} parent=11 // pred_check_branch
        %170 = sbr.rel (%p168) target = $region24
      $region23: #{audio_diarization_forward.4} parent=11 // pred_region
        _
      $region24: #{audio_diarization_forward.4} parent=11 // pred_fallthru
        _
      // Predicated region
      $region25: #{audio_diarization_forward.4} parent=11 // pred_check
        %p171 = pneg %p121
      $region26: #{audio_diarization_forward.4} parent=11 // pred_check_branch
        %173 = sbr.rel (%p171) target = $region28
      $region27: #{audio_diarization_forward.4} parent=11 // pred_region
        _
      $region28: #{audio_diarization_forward.4} parent=11 // pred_fallthru
        _
    $region12: #{audio_diarization_forward.4} parent=5 // pred_fallthru
      _
    %p174 = scmp.lt.s32.totalorder %s11, 2
    // Predicated region
    $region29: #{audio_diarization_forward.4} parent=5 // pred_check
      %p175 = pneg %p174
    $region30: #{audio_diarization_forward.4} parent=5 // pred_check_branch
      %177 = sbr.rel (%p175) target = $region32
    $region31: #{audio_diarization_forward.4} parent=5 // pred_region
      // Predicated region
      $region33: #{audio_diarization_forward.4} parent=31 // pred_check
        %p178 = pneg %p31
      $region34: #{audio_diarization_forward.4} parent=31 // pred_check_branch
        %180 = sbr.rel (%p178) target = $region36
      $region35: #{audio_diarization_forward.4} parent=31 // pred_region
        %p181 = scmp.lt.s32.totalorder %s11, 1
        %s182 = scalar_select %p181, %s11, 1
        %s183 = smul.addr %s182, 81
        %s184 = smul.addr %s183, 4
        %s185 = scalar_lea.vmem %s0, %s184
      $region36: #{audio_diarization_forward.4} parent=31 // pred_fallthru
        _
    $region32: #{audio_diarization_forward.4} parent=5 // pred_fallthru
      _
    %p186 = scmp.le.s32.totalorder 1, %s11
    %p187 = scmp.lt.s32.totalorder %s11, 3
    %p188 = pnand %p186, %p187
    %p189 = pneg %p188
    // Predicated region
    $region37: #{audio_diarization_forward.4} parent=5 // pred_check
      _
    $region38: #{audio_diarization_forward.4} parent=5 // pred_check_branch
      %191 = sbr.rel (%p188) target = $region40
    $region39: #{audio_diarization_forward.4} parent=5 // pred_region
      %s192 = ssub.s32 %s11, 1
      %p193 = scmp.lt.s32.totalorder %s16, 1
      %s194 = scalar_select %p193, %s16, 1
      %s195 = smul.addr %s194, 81
      %s196 = smul.addr %s195, 4
      %s197 = scalar_lea.vmem %s0, %s196
      %p198 = pneg %p37
      %p199 = pneg %p34
      %p200 = pneg %p58
      %p201 = pneg %p55
      %p202 = pneg %p79
      %p203 = pneg %p76
      %p204 = pneg %p100
      %p205 = pneg %p97
      %p206 = pneg %p121
      %p207 = pneg %p118
      %p208 = pneg %p147
      %p209 = pneg %p144
      %p210 = scmp.lt.s32.totalorder %s16, 1
      %s211 = scalar_select %p210, %s16, 1
      %s212 = smul.addr %s211, 6
      %s213 = smul.addr %s212, 8
      %s214 = scalar_lea.vmem %s5, %s213
      %p215 = scmp.lt.s32.totalorder %s16, 1
      %s216 = scalar_select %p215, %s16, 1
      %s217 = smul.addr %s216, 81
      %s218 = smul.addr %s217, 4
      %s219 = scalar_lea.vmem %s0, %s218
      %p220 = scmp.lt.s32.totalorder %s16, 1
      %s221 = scalar_select %p220, %s16, 1
      %s222 = smul.addr %s221, 6
      %s223 = smul.addr %s222, 8
      %s224 = scalar_lea.vmem %s5, %s223
      %v226 = vld [vmem:[%s219] sm:$0xff]
      %v227 = vld [vmem:[%s219 + $0x8] sm:$0xf]
      %v228 = vld [vmem:[%s219 + $0xc] sm:$0xff]
      %v229 = vld [vmem:[%s219 + $0x14] sm:$0xf]
      %v230 = vld [vmem:[%s219 + $0x18] sm:$0xff]
      %v231 = vld [vmem:[%s219 + $0x20] sm:$0xf]
      %v232 = vld [vmem:[%s219 + $0x24] sm:$0xff]
      %v233 = vld [vmem:[%s219 + $0x2c] sm:$0xf]
      %v234 = vld [vmem:[%s219 + $0x30] sm:$0xff]
      %v235 = vld [vmem:[%s219 + $0x38] sm:$0xf]
      %v236 = vld [vmem:[%s219 + $0x3c] sm:$0xff]
      %v237 = vld [vmem:[%s219 + $0x44] sm:$0xf]
      %v238 = vld [vmem:[%s219 + $0x48] sm:$0xff]
      %v239 = vld [vmem:[%s219 + $0x50] sm:$0xf]
      %v240 = vld [vmem:[%s219 + $0x54] sm:$0xff]
      %v241 = vld [vmem:[%s219 + $0x5c] sm:$0xf]
      %v242 = vld [vmem:[%s219 + $0x60] sm:$0xff]
      %v243 = vld [vmem:[%s219 + $0x68] sm:$0xf]
      %v244 = vld [vmem:[%s219 + $0x6c] sm:$0xff]
      %v245 = vld [vmem:[%s219 + $0x74] sm:$0xf]
      %v246 = vld [vmem:[%s219 + $0x78] sm:$0xff]
      %v247 = vld [vmem:[%s219 + $0x80] sm:$0xf]
      %v248 = vld [vmem:[%s219 + $0x84] sm:$0xff]
      %v249 = vld [vmem:[%s219 + $0x8c] sm:$0xf]
      %v250 = vld [vmem:[%s219 + $0x90] sm:$0xff]
      %v251 = vld [vmem:[%s219 + $0x98] sm:$0xf]
      %v252 = vld [vmem:[%s219 + $0x9c] sm:$0xff]
      %v253 = vld [vmem:[%s219 + $0xa4] sm:$0xf]
      %v254 = vld [vmem:[%s219 + $0xa8] sm:$0xff]
      %v255 = vld [vmem:[%s219 + $0xb0] sm:$0xf]
      %v256 = vld [vmem:[%s219 + $0xb4] sm:$0xff]
      %v257 = vld [vmem:[%s219 + $0xbc] sm:$0xf]
      %v258 = vld [vmem:[%s219 + $0xc0] sm:$0xff]
      %v259 = vld [vmem:[%s219 + $0xc8] sm:$0xf]
      %v260 = vld [vmem:[%s219 + $0xcc] sm:$0xff]
      %v261 = vld [vmem:[%s219 + $0xd4] sm:$0xf]
      %v262 = vld [vmem:[%s219 + $0xd8] sm:$0xff]
      %v263 = vld [vmem:[%s219 + $0xe0] sm:$0xf]
      %v264 = vld [vmem:[%s219 + $0xe4] sm:$0xff]
      %v265 = vld [vmem:[%s219 + $0xec] sm:$0xf]
      %v266 = vld [vmem:[%s219 + $0xf0] sm:$0xff]
      %v267 = vld [vmem:[%s219 + $0xf8] sm:$0xf]
      %v268 = vld [vmem:[%s219 + $0xfc] sm:$0xff]
      %v269 = vld [vmem:[%s219 + $0x104] sm:$0xf]
      %v270 = vld [vmem:[%s219 + $0x108] sm:$0xff]
      %v271 = vld [vmem:[%s219 + $0x110] sm:$0xf]
      %v272 = vld [vmem:[%s219 + $0x114] sm:$0xff]
      %v273 = vld [vmem:[%s219 + $0x11c] sm:$0xf]
      %v274 = vld [vmem:[%s219 + $0x120] sm:$0xff]
      %v275 = vld [vmem:[%s219 + $0x128] sm:$0xf]
      %v276 = vld [vmem:[%s219 + $0x12c] sm:$0xff]
      %v277 = vld [vmem:[%s219 + $0x134] sm:$0xf]
      %v278 = vld [vmem:[%s219 + $0x138] sm:$0xff]
      %v279 = vld [vmem:[%s219 + $0x140] sm:$0xf]
      %v280 = vld [vmem:[%s1] sm:$0xff]
      %v281 = vld [vmem:[%s1 + $0x8] sm:$0xff]
      %v282 = vld [vmem:[%s1 + $0x10] sm:$0xff]
      %v283 = vld [vmem:[%s1 + $0x18] sm:$0xff]
      %v284 = vld [vmem:[%s1 + $0x20] sm:$0xff]
      %v285 = vld [vmem:[%s1 + $0x28] sm:$0xff]
      %v286 = vld [vmem:[%s2] sm:$0xff]
      %v287 = vld [vmem:[%s2 + $0x8] sm:$0xff]
      %v288 = vld [vmem:[%s2 + $0x10] sm:$0xff]
      %v289 = vld [vmem:[%s2 + $0x18] sm:$0xff]
      %v290 = vld [vmem:[%s2 + $0x20] sm:$0xff]
      %v291 = vld [vmem:[%s2 + $0x28] sm:$0xff]
      %293 = vset.pattern.permute.xlu0 0
      %294 = vperm.xlu0 %293, %v286
      %v295 = vpop.permute.xlu0 %294
      %298 = vset.pattern.permute.xlu0 0
      %299 = vperm.xlu0 %298, %v287
      %v300 = vpop.permute.xlu0 %299
      %303 = vset.pattern.permute.xlu0 0
      %304 = vperm.xlu0 %303, %v288
      %v305 = vpop.permute.xlu0 %304
      %308 = vset.pattern.permute.xlu0 0
      %309 = vperm.xlu0 %308, %v289
      %v310 = vpop.permute.xlu0 %309
      %313 = vset.pattern.permute.xlu0 0
      %314 = vperm.xlu0 %313, %v290
      %v315 = vpop.permute.xlu0 %314
      %318 = vset.pattern.permute.xlu0 0
      %319 = vperm.xlu0 %318, %v291
      %v320 = vpop.permute.xlu0 %319
      %v328 = vunpack.c.l.b16 %v280
      %v329 = vunpack.c.h.b16 %v280
      %v330 = vunpack.c.l.b16 %v281
      %v331 = vunpack.c.h.b16 %v281
      %v332 = vunpack.c.l.b16 %v282
      %v333 = vunpack.c.h.b16 %v282
      %v334 = vunpack.c.l.b16 %v283
      %v335 = vunpack.c.h.b16 %v283
      %v336 = vunpack.c.l.b16 %v284
      %v337 = vunpack.c.h.b16 %v284
      %v338 = vunpack.c.l.b16 %v285
      %v339 = vunpack.c.h.b16 %v285
      %v340 = vpack.c.b16 %v330, %v328
      %v341 = vpack.c.b16 %v331, %v329
      %v342 = vpack.c.b16 %v334, %v332
      %v343 = vpack.c.b16 %v335, %v333
      %v344 = vpack.c.b16 %v338, %v336
      %v345 = vpack.c.b16 %v339, %v337
      %v403 = vunpack.c.l.b16 %v226
      %v404 = vunpack.c.h.b16 %v226
      %v405 = vunpack.c.l.b16 %v227
      %v406 = vunpack.c.l.b16 %v228
      %v407 = vunpack.c.h.b16 %v228
      %v408 = vunpack.c.l.b16 %v229
      %v409 = vunpack.c.l.b16 %v230
      %v410 = vunpack.c.h.b16 %v230
      %v411 = vunpack.c.l.b16 %v231
      %v412 = vunpack.c.l.b16 %v232
      %v413 = vunpack.c.h.b16 %v232
      %v414 = vunpack.c.l.b16 %v233
      %v415 = vunpack.c.l.b16 %v234
      %v416 = vunpack.c.h.b16 %v234
      %v417 = vunpack.c.l.b16 %v235
      %v418 = vunpack.c.l.b16 %v236
      %v419 = vunpack.c.h.b16 %v236
      %v420 = vunpack.c.l.b16 %v237
      %v421 = vunpack.c.l.b16 %v238
      %v422 = vunpack.c.h.b16 %v238
      %v423 = vunpack.c.l.b16 %v239
      %v424 = vunpack.c.l.b16 %v240
      %v425 = vunpack.c.h.b16 %v240
      %v426 = vunpack.c.l.b16 %v241
      %v427 = vunpack.c.l.b16 %v242
      %v428 = vunpack.c.h.b16 %v242
      %v429 = vunpack.c.l.b16 %v243
      %v430 = vunpack.c.l.b16 %v244
      %v431 = vunpack.c.h.b16 %v244
      %v432 = vunpack.c.l.b16 %v245
      %v433 = vunpack.c.l.b16 %v246
      %v434 = vunpack.c.h.b16 %v246
      %v435 = vunpack.c.l.b16 %v247
      %v436 = vunpack.c.l.b16 %v248
      %v437 = vunpack.c.h.b16 %v248
      %v438 = vunpack.c.l.b16 %v249
      %v439 = vunpack.c.l.b16 %v250
      %v440 = vunpack.c.h.b16 %v250
      %v441 = vunpack.c.l.b16 %v251
      %v442 = vunpack.c.l.b16 %v252
      %v443 = vunpack.c.h.b16 %v252
      %v444 = vunpack.c.l.b16 %v253
      %v445 = vunpack.c.l.b16 %v254
      %v446 = vunpack.c.h.b16 %v254
      %v447 = vunpack.c.l.b16 %v255
      %v448 = vunpack.c.l.b16 %v256
      %v449 = vunpack.c.h.b16 %v256
      %v450 = vunpack.c.l.b16 %v257
      %v451 = vunpack.c.l.b16 %v258
      %v452 = vunpack.c.h.b16 %v258
      %v453 = vunpack.c.l.b16 %v259
      %v454 = vunpack.c.l.b16 %v260
      %v455 = vunpack.c.h.b16 %v260
      %v456 = vunpack.c.l.b16 %v261
      %v457 = vunpack.c.l.b16 %v262
      %v458 = vunpack.c.h.b16 %v262
      %v459 = vunpack.c.l.b16 %v263
      %v460 = vunpack.c.l.b16 %v264
      %v461 = vunpack.c.h.b16 %v264
      %v462 = vunpack.c.l.b16 %v265
      %v463 = vunpack.c.l.b16 %v266
      %v464 = vunpack.c.h.b16 %v266
      %v465 = vunpack.c.l.b16 %v267
      %v466 = vunpack.c.l.b16 %v268
      %v467 = vunpack.c.h.b16 %v268
      %v468 = vunpack.c.l.b16 %v269
      %v469 = vunpack.c.l.b16 %v270
      %v470 = vunpack.c.h.b16 %v270
      %v471 = vunpack.c.l.b16 %v271
      %v472 = vunpack.c.l.b16 %v272
      %v473 = vunpack.c.h.b16 %v272
      %v474 = vunpack.c.l.b16 %v273
      %v475 = vunpack.c.l.b16 %v274
      %v476 = vunpack.c.h.b16 %v274
      %v477 = vunpack.c.l.b16 %v275
      %v478 = vunpack.c.l.b16 %v276
      %v479 = vunpack.c.h.b16 %v276
      %v480 = vunpack.c.l.b16 %v277
      %v481 = vunpack.c.l.b16 %v278
      %v482 = vunpack.c.h.b16 %v278
      %v483 = vunpack.c.l.b16 %v279
      %v484 = vpack.c.b16 %v406, %v403
      %v485 = vpack.c.b16 %v407, %v404
      %v486 = vpack.c.b16 %v408, %v405
      %v487 = vpack.c.b16 %v412, %v409
      %v488 = vpack.c.b16 %v413, %v410
      %v489 = vpack.c.b16 %v414, %v411
      %v490 = vpack.c.b16 %v418, %v415
      %v491 = vpack.c.b16 %v419, %v416
      %v492 = vpack.c.b16 %v420, %v417
      %v493 = vpack.c.b16 %v424, %v421
      %v494 = vpack.c.b16 %v425, %v422
      %v495 = vpack.c.b16 %v426, %v423
      %v496 = vpack.c.b16 %v430, %v427
      %v497 = vpack.c.b16 %v431, %v428
      %v498 = vpack.c.b16 %v432, %v429
      %v499 = vpack.c.b16 %v436, %v433
      %v500 = vpack.c.b16 %v437, %v434
      %v501 = vpack.c.b16 %v438, %v435
      %v502 = vpack.c.b16 %v442, %v439
      %v503 = vpack.c.b16 %v443, %v440
      %v504 = vpack.c.b16 %v444, %v441
      %v505 = vpack.c.b16 %v448, %v445
      %v506 = vpack.c.b16 %v449, %v446
      %v507 = vpack.c.b16 %v450, %v447
      %v508 = vpack.c.b16 %v454, %v451
      %v509 = vpack.c.b16 %v455, %v452
      %v510 = vpack.c.b16 %v456, %v453
      %v511 = vpack.c.b16 %v460, %v457
      %v512 = vpack.c.b16 %v461, %v458
      %v513 = vpack.c.b16 %v462, %v459
      %v514 = vpack.c.b16 %v466, %v463
      %v515 = vpack.c.b16 %v467, %v464
      %v516 = vpack.c.b16 %v468, %v465
      %v517 = vpack.c.b16 %v472, %v469
      %v518 = vpack.c.b16 %v473, %v470
      %v519 = vpack.c.b16 %v474, %v471
      %v520 = vpack.c.b16 %v478, %v475
      %v521 = vpack.c.b16 %v479, %v476
      %v522 = vpack.c.b16 %v480, %v477
      %v523 = vpack.c.b16 %v481, %v481
      %v524 = vpack.c.b16 %v482, %v482
      %v525 = vpack.c.b16 %v483, %v483
      %vm565 = vcmask 719872
      %v567 = vsel %vm565, %v341, 0
      %v570 = vsel %vm565, %v343, 0
      %v573 = vsel %vm565, %v345, 0
      %vm575 = vcmask 1043456
      %v577 = vsel %vm575, %v523, 0
      %v580 = vsel %vm575, %v524, 0
      %v583 = vsel %vm575, %v525, 0
      %585 = vmatprep.subr.bf16.mxu0 %v485
      %586 = vmatpush1.bf16.msra.mxu0 %v484
      %587 = vmatprep.subr.bf16.mxu0 %v488
      %588 = vmatpush1.bf16.msra.mxu0 %v487
      %589 = vmatprep.subr.bf16.mxu0 %v491
      %590 = vmatpush1.bf16.msra.mxu0 %v490
      %591 = vmatprep.subr.bf16.mxu0 %v494
      %592 = vmatpush1.bf16.msra.mxu0 %v493
      %593 = vmatprep.subr.bf16.mxu0 %v497
      %594 = vmatpush1.bf16.msra.mxu0 %v496
      %595 = vmatprep.subr.bf16.mxu0 %v500
      %596 = vmatpush1.bf16.msra.mxu0 %v499
      %597 = vmatprep.subr.bf16.mxu0 %v503
      %598 = vmatpush1.bf16.msra.mxu0 %v502
      %599 = vmatprep.subr.bf16.mxu0 %v506
      %600 = vmatpush1.bf16.msra.mxu0 %v505
      %601 = vmatprep.subr.bf16.mxu0 %v509
      %602 = vmatpush1.bf16.msra.mxu0 %v508
      %603 = vmatprep.subr.bf16.mxu0 %v512
      %604 = vmatpush1.bf16.msra.mxu0 %v511
      %605 = vmatprep.subr.bf16.mxu0 %v515
      %606 = vmatpush1.bf16.msra.mxu0 %v514
      %607 = vmatprep.subr.bf16.mxu0 %v518
      %608 = vmatpush1.bf16.msra.mxu0 %v517
      %609 = vmatprep.subr.bf16.mxu0 %v521
      %610 = vmatpush1.bf16.msra.mxu0 %v520
      %611 = vmatprep.subr.bf16.mxu0 %v580
      %612 = vmatpush1.bf16.msra.mxu0 %v577
      %613 = vmatprep.subr.bf16.mxu0 0
      %614 = vmatpush1.bf16.msra.mxu0 0
      %615 = vmatprep.subr.bf16.mxu0 0
      %616 = vmatpush1.bf16.msra.mxu0 0
      %617 = vmatprep.mubr.bf16.mxu0 %v567
      %618 = vmatmul.mubr.bf16.gmra.mrb[0].mxu0 %v340
      %v619 = vpop.f32.mrb[0].mxu0
      %v620 = vadd.f32 %v295, %v619
      %v621 = vpop.f32.mrb[0].mxu0
      %v622 = vadd.f32 %v295, %v621
      %v623 = vpop.f32.mrb[0].mxu0
      %v624 = vadd.f32 %v300, %v623
      %v625 = vpop.f32.mrb[0].mxu0
      %v626 = vadd.f32 %v300, %v625
      %627 = vmatprep.mubr.bf16.mxu0 %v570
      %628 = vmatmul.mubr.bf16.gmra.mrb[0].mxu0 %v342
      %v629 = vpop.f32.mrb[0].mxu0
      %v630 = vadd.f32 %v305, %v629
      %v631 = vpop.f32.mrb[0].mxu0
      %v632 = vadd.f32 %v305, %v631
      %v633 = vpop.f32.mrb[0].mxu0
      %v634 = vadd.f32 %v310, %v633
      %v635 = vpop.f32.mrb[0].mxu0
      %v636 = vadd.f32 %v310, %v635
      %637 = vmatprep.mubr.bf16.mxu0 %v573
      %638 = vmatmul.mubr.bf16.gmra.mrb[0].mxu0 %v344
      %v639 = vpop.f32.mrb[0].mxu0
      %v640 = vadd.f32 %v315, %v639
      %v641 = vpop.f32.mrb[0].mxu0
      %v642 = vadd.f32 %v315, %v641
      %v643 = vpop.f32.mrb[0].mxu0
      %v644 = vadd.f32 %v320, %v643
      %v645 = vpop.f32.mrb[0].mxu0
      %v646 = vadd.f32 %v320, %v645
      %647 = vdwg.mxu0
      %648 = vmatprep.subr.bf16.mxu0 0
      %649 = vmatpush1.bf16.msra.mxu0 %v486
      %650 = vmatprep.subr.bf16.mxu0 0
      %651 = vmatpush1.bf16.msra.mxu0 %v489
      %652 = vmatprep.subr.bf16.mxu0 0
      %653 = vmatpush1.bf16.msra.mxu0 %v492
      %654 = vmatprep.subr.bf16.mxu0 0
      %655 = vmatpush1.bf16.msra.mxu0 %v495
      %656 = vmatprep.subr.bf16.mxu0 0
      %657 = vmatpush1.bf16.msra.mxu0 %v498
      %658 = vmatprep.subr.bf16.mxu0 0
      %659 = vmatpush1.bf16.msra.mxu0 %v501
      %660 = vmatprep.subr.bf16.mxu0 0
      %661 = vmatpush1.bf16.msra.mxu0 %v504
      %662 = vmatprep.subr.bf16.mxu0 0
      %663 = vmatpush1.bf16.msra.mxu0 %v507
      %664 = vmatprep.subr.bf16.mxu0 0
      %665 = vmatpush1.bf16.msra.mxu0 %v510
      %666 = vmatprep.subr.bf16.mxu0 0
      %667 = vmatpush1.bf16.msra.mxu0 %v513
      %668 = vmatprep.subr.bf16.mxu0 0
      %669 = vmatpush1.bf16.msra.mxu0 %v516
      %670 = vmatprep.subr.bf16.mxu0 0
      %671 = vmatpush1.bf16.msra.mxu0 %v519
      %672 = vmatprep.subr.bf16.mxu0 0
      %673 = vmatpush1.bf16.msra.mxu0 %v522
      %674 = vmatprep.subr.bf16.mxu0 0
      %675 = vmatpush1.bf16.msra.mxu0 %v583
      %676 = vmatprep.subr.bf16.mxu0 0
      %677 = vmatpush1.bf16.msra.mxu0 0
      %678 = vmatprep.subr.bf16.mxu0 0
      %679 = vmatpush1.bf16.msra.mxu0 0
      %680 = vmatprep.mubr.bf16.mxu0 %v567
      %681 = vmatmul.mubr.bf16.gmra.mrb[0].mxu0 %v340
      %v682 = vpop.f32.mrb[0].mxu0
      %v683 = vadd.f32 %v295, %v682
      %v684 = vpop.f32.mrb[0].mxu0
      %v685 = vpop.f32.mrb[0].mxu0
      %v686 = vadd.f32 %v300, %v685
      %v687 = vpop.f32.mrb[0].mxu0
      %688 = vmatprep.mubr.bf16.mxu0 %v570
      %689 = vmatmul.mubr.bf16.gmra.mrb[0].mxu0 %v342
      %v690 = vpop.f32.mrb[0].mxu0
      %v691 = vadd.f32 %v305, %v690
      %v692 = vpop.f32.mrb[0].mxu0
      %v693 = vpop.f32.mrb[0].mxu0
      %v694 = vadd.f32 %v310, %v693
      %v695 = vpop.f32.mrb[0].mxu0
      %696 = vmatprep.mubr.bf16.mxu0 %v573
      %697 = vmatmul.mubr.bf16.gmra.mrb[0].mxu0 %v344
      %v698 = vpop.f32.mrb[0].mxu0
      %v699 = vadd.f32 %v315, %v698
      %v700 = vpop.f32.mrb[0].mxu0
      %v701 = vpop.f32.mrb[0].mxu0
      %v702 = vadd.f32 %v320, %v701
      %v703 = vpop.f32.mrb[0].mxu0
      %704 = vdwg.mxu0
      %v705 = vmax.f32 %v620, 0.0
      %v706 = vmax.f32 %v622, 0.0
      %v707 = vmax.f32 %v683, 0.0
      %v708 = vmax.f32 %v624, 0.0
      %v709 = vmax.f32 %v626, 0.0
      %v710 = vmax.f32 %v686, 0.0
      %v711 = vmax.f32 %v630, 0.0
      %v712 = vmax.f32 %v632, 0.0
      %v713 = vmax.f32 %v691, 0.0
      %v714 = vmax.f32 %v634, 0.0
      %v715 = vmax.f32 %v636, 0.0
      %v716 = vmax.f32 %v694, 0.0
      %v717 = vmax.f32 %v640, 0.0
      %v718 = vmax.f32 %v642, 0.0
      %v719 = vmax.f32 %v699, 0.0
      %v720 = vmax.f32 %v644, 0.0
      %v721 = vmax.f32 %v646, 0.0
      %v722 = vmax.f32 %v702, 0.0
      %v723 = vld [vmem:[%s3] sm:$0xf]
      %v724 = vld [vmem:[%s3 + $0x4] sm:$0xf]
      %v725 = vpack.c.bf16 %v708, %v705
      %v726 = vpack.c.bf16 %v709, %v706
      %v727 = vpack.c.bf16 %v710, %v707
      %v728 = vpack.c.bf16 %v714, %v711
      %v729 = vpack.c.bf16 %v715, %v712
      %v730 = vpack.c.bf16 %v716, %v713
      %v731 = vpack.c.bf16 %v720, %v717
      %v732 = vpack.c.bf16 %v721, %v718
      %v733 = vpack.c.bf16 %v722, %v719
      %v734 = vld [vmem:[%s4] sm:$0xff]
      %v735 = vld [vmem:[%s4 + $0x8] sm:$0xff]
      %737 = vset.pattern.permute.xlu0 0
      %738 = vperm.xlu0 %737, %v734
      %v739 = vpop.permute.xlu0 %738
      %742 = vset.pattern.permute.xlu0 0
      %743 = vperm.xlu0 %742, %v735
      %v744 = vpop.permute.xlu0 %743
      %v748 = vunpack.c.l.b16 %v723
      %v749 = vunpack.c.l.b16 %v724
      %v750 = vpack.c.b16 %v749, %v748
      %vm751 = vcmask 392192
      %v753 = vsel %vm751, %v750, 0
      %755 = vmatprep.subr.bf16.mxu0 %v726
      %756 = vmatpush1.bf16.msra.mxu0 %v725
      %757 = vmatprep.subr.bf16.mxu0 %v729
      %758 = vmatpush1.bf16.msra.mxu0 %v728
      %759 = vmatprep.subr.bf16.mxu0 %v732
      %760 = vmatpush1.bf16.msra.mxu0 %v731
      %761 = vmatprep.subr.bf16.mxu0 0
      %762 = vmatpush1.bf16.msra.mxu0 0
      %763 = vmatprep.subr.bf16.mxu0 0
      %764 = vmatpush1.bf16.msra.mxu0 0
      %765 = vmatprep.subr.bf16.mxu0 0
      %766 = vmatpush1.bf16.msra.mxu0 0
      %767 = vmatprep.subr.bf16.mxu0 0
      %768 = vmatpush1.bf16.msra.mxu0 0
      %769 = vmatprep.subr.bf16.mxu0 0
      %770 = vmatpush1.bf16.msra.mxu0 0
      %771 = vmatprep.subr.bf16.mxu0 0
      %772 = vmatpush1.bf16.msra.mxu0 0
      %773 = vmatprep.subr.bf16.mxu0 0
      %774 = vmatpush1.bf16.msra.mxu0 0
      %775 = vmatprep.subr.bf16.mxu0 0
      %776 = vmatpush1.bf16.msra.mxu0 0
      %777 = vmatprep.subr.bf16.mxu0 0
      %778 = vmatpush1.bf16.msra.mxu0 0
      %779 = vmatprep.subr.bf16.mxu0 0
      %780 = vmatpush1.bf16.msra.mxu0 0
      %781 = vmatprep.subr.bf16.mxu0 0
      %782 = vmatpush1.bf16.msra.mxu0 0
      %783 = vmatprep.subr.bf16.mxu0 0
      %784 = vmatpush1.bf16.msra.mxu0 0
      %785 = vmatprep.subr.bf16.mxu0 0
      %786 = vmatpush1.bf16.msra.mxu0 0
      %787 = vmatprep.mubr.bf16.mxu0 0
      %788 = vmatmul.mubr.bf16.gmra.mrb[0].mxu0 %v753
      %v789 = vpop.f32.mrb[0].mxu0
      %v790 = vadd.f32 %v739, %v789
      %v791 = vpop.f32.mrb[0].mxu0
      %v792 = vadd.f32 %v739, %v791
      %v793 = vpop.f32.mrb[0].mxu0
      %v794 = vadd.f32 %v744, %v793
      %v795 = vpop.f32.mrb[0].mxu0
      %v796 = vadd.f32 %v744, %v795
      %797 = vdwg.mxu0
      %798 = vmatprep.subr.bf16.mxu0 0
      %799 = vmatpush1.bf16.msra.mxu0 %v727
      %800 = vmatprep.subr.bf16.mxu0 0
      %801 = vmatpush1.bf16.msra.mxu0 %v730
      %802 = vmatprep.subr.bf16.mxu0 0
      %803 = vmatpush1.bf16.msra.mxu0 %v733
      %804 = vmatprep.subr.bf16.mxu0 0
      %805 = vmatpush1.bf16.msra.mxu0 0
      %806 = vmatprep.subr.bf16.mxu0 0
      %807 = vmatpush1.bf16.msra.mxu0 0
      %808 = vmatprep.subr.bf16.mxu0 0
      %809 = vmatpush1.bf16.msra.mxu0 0
      %810 = vmatprep.subr.bf16.mxu0 0
      %811 = vmatpush1.bf16.msra.mxu0 0
      %812 = vmatprep.subr.bf16.mxu0 0
      %813 = vmatpush1.bf16.msra.mxu0 0
      %814 = vmatprep.subr.bf16.mxu0 0
      %815 = vmatpush1.bf16.msra.mxu0 0
      %816 = vmatprep.subr.bf16.mxu0 0
      %817 = vmatpush1.bf16.msra.mxu0 0
      %818 = vmatprep.subr.bf16.mxu0 0
      %819 = vmatpush1.bf16.msra.mxu0 0
      %820 = vmatprep.subr.bf16.mxu0 0
      %821 = vmatpush1.bf16.msra.mxu0 0
      %822 = vmatprep.subr.bf16.mxu0 0
      %823 = vmatpush1.bf16.msra.mxu0 0
      %824 = vmatprep.subr.bf16.mxu0 0
      %825 = vmatpush1.bf16.msra.mxu0 0
      %826 = vmatprep.subr.bf16.mxu0 0
      %827 = vmatpush1.bf16.msra.mxu0 0
      %828 = vmatprep.subr.bf16.mxu0 0
      %829 = vmatpush1.bf16.msra.mxu0 0
      %830 = vmatprep.mubr.bf16.mxu0 0
      %831 = vmatmul.mubr.bf16.gmra.mrb[0].mxu0 %v753
      %v832 = vpop.f32.mrb[0].mxu0
      %v833 = vadd.f32 %v739, %v832
      %v834 = vpop.f32.mrb[0].mxu0
      %v835 = vpop.f32.mrb[0].mxu0
      %v836 = vadd.f32 %v744, %v835
      %v837 = vpop.f32.mrb[0].mxu0
      %838 = vdwg.mxu0
      %839 = vst [vmem:[%s224] sm:$0xff] %v790
      %840 = vst [vmem:[%s224 + $0x8] sm:$0xff] %v792
      %vm841 = vcmask 523264
      %842 = vst.msk [vmem:[%s224 + $0x10] sm:$0xff] %vm841, %v833
      %843 = vst [vmem:[%s224 + $0x18] sm:$0xff] %v794
      %844 = vst [vmem:[%s224 + $0x20] sm:$0xff] %v796
      %845 = vst.msk [vmem:[%s224 + $0x28] sm:$0xff] %vm841, %v836
      %p846 = scmp.lt.s32.totalorder %s16, 1
      %s847 = scalar_select %p846, %s16, 1
      %s848 = smul.addr %s847, 6
      %s849 = smul.addr %s848, 8
      %s850 = scalar_lea.vmem %s5, %s849
      // Predicated region
      $region41: #{audio_diarization_forward.4} parent=39 // pred_check
        %p851 = pneg %p144
      $region42: #{audio_diarization_forward.4} parent=39 // pred_check_branch
        %853 = sbr.rel (%p851) target = $region44
      $region43: #{audio_diarization_forward.4} parent=39 // pred_region
        _
      $region44: #{audio_diarization_forward.4} parent=39 // pred_fallthru
        _
    $region40: #{audio_diarization_forward.4} parent=5 // pred_fallthru
      _
    %p854 = scmp.le.s32.totalorder 2, %s11
    // Predicated region
    $region45: #{audio_diarization_forward.4} parent=5 // pred_check
      %p855 = pneg %p854
    $region46: #{audio_diarization_forward.4} parent=5 // pred_check_branch
      %857 = sbr.rel (%p855) target = $region48
    $region47: #{audio_diarization_forward.4} parent=5 // pred_region
      %s858 = ssub.s32 %s11, 2
      // Predicated region
      $region49: #{audio_diarization_forward.4} parent=47 // pred_check
        %p859 = pneg %p150
      $region50: #{audio_diarization_forward.4} parent=47 // pred_check_branch
        %861 = sbr.rel (%p859) target = $region52
      $region51: #{audio_diarization_forward.4} parent=47 // pred_region
        %p862 = scmp.lt.s32.totalorder %s17, 1
        %s863 = scalar_select %p862, %s17, 1
        %s864 = smul.addr %s863, 6
        %s865 = smul.addr %s864, 8
        %s866 = scalar_lea.vmem %s5, %s865
      $region52: #{audio_diarization_forward.4} parent=47 // pred_fallthru
        _
    $region48: #{audio_diarization_forward.4} parent=5 // pred_fallthru
      _
  $region6: #{audio_diarization_forward.4} parent=0 // loop_footer
    %s15 = sadd.s32 1, %s11
  $region7: #{audio_diarization_forward.4} parent=0 // loop_footer_branch
    %10 = sbr.rel target = $region3
  $region8: #{audio_diarization_forward.4} parent=0 // loop_exit
    _

// kernel: audio_diarization_forward.5
$region0: #{audio_diarization_forward.5}
  #allocation0 [shape = 'u32[]', space=smem, size = 0x4, offset = 0x4, fixed_abs, tag = 'smem constant byte address 0x4 - core index']
  #allocation1 [shape = 'u32[144,128]{1,0:T(1,128)}', space=vmem, size = 0x12000, scoped, tag = 'internal scratch']
  %s0 = inlined_call_operand.vmem [shape: f32[2,20,64], index: 0, kind: input, shape index: {}]
  %s1 = inlined_call_operand.vmem [shape: f32[2,20,32], index: 1, kind: input, shape index: {}]
  %s2 = inlined_call_operand.vmem [shape: f32[20,20], index: 2, kind: input, shape index: {}]
  %s3 = inlined_call_operand.vmem [shape: f32[10,20], index: 3, kind: input, shape index: {}]
  %s4 = inlined_call_operand.vmem [shape: bf16[64,32], index: 4, kind: input, shape index: {}]
  %s5 = inlined_call_operand.vmem [shape: f32[1,32], index: 5, kind: input, shape index: {}]
  %s6 = inlined_call_operand.vmem [shape: bf16[2,32,96], index: 6, kind: input, shape index: {}]
  %s7 = inlined_call_operand.vmem [shape: f32[2,1,96], index: 7, kind: input, shape index: {}]
  %s8 = inlined_call_operand.vmem [shape: bf16[2,32,32], index: 8, kind: input, shape index: {}]
  %s9 = inlined_call_operand.vmem [shape: f32[2,1,32], index: 9, kind: input, shape index: {}]
  %s10 = inlined_call_operand.vmem [shape: bf16[2,32,64], index: 10, kind: input, shape index: {}]
  %s11 = inlined_call_operand.vmem [shape: f32[2,1,64], index: 11, kind: input, shape index: {}]
  %s12 = inlined_call_operand.vmem [shape: bf16[2,64,32], index: 12, kind: input, shape index: {}]
  %s13 = inlined_call_operand.vmem [shape: f32[2,1,32], index: 13, kind: input, shape index: {}]
  %s14 = inlined_call_operand.vmem [shape: f32[2,1,32], index: 14, kind: input, shape index: {}]
  %s15 = inlined_call_operand.vmem [shape: f32[2,1,32], index: 15, kind: input, shape index: {}]
  %s16 = inlined_call_operand.vmem [shape: f32[2,1,32], index: 16, kind: input, shape index: {}]
  %s17 = inlined_call_operand.vmem [shape: f32[2,1,32], index: 17, kind: input, shape index: {}]
  %s18 = inlined_call_operand.vmem [shape: bf16[32,32], index: 18, kind: input, shape index: {}]
  %s19 = inlined_call_operand.vmem [shape: f32[1,32], index: 19, kind: input, shape index: {}]
  %s20 = inlined_call_operand.vmem [shape: bf16[32,4], index: 20, kind: input, shape index: {}]
  %s21 = inlined_call_operand.vmem [shape: f32[1,4], index: 21, kind: input, shape index: {}]
  %s22 = inlined_call_operand.vmem [shape: f32[2,10,4], index: 22, kind: output, shape index: {}]
  %s23 = sld [smem:[#allocation0]]
  $region121: #{audio_diarization_forward.5} parent=0
    _
  %s25 = ssub.s32 1, %s23
  %s26 = scalar_select 0, %s25, %s23
  loop: start=0, step=1, limit=4
  $region2: #{audio_diarization_forward.5} parent=0 // loop_pre_header
    _
  $region3: #{audio_diarization_forward.5} parent=0 // loop_header
    %s28 = sphi 0, %s32
    %p29 = scmp.ge.s32.totalorder %s28, 4
    %s38 = sphi 0, %s40
    %s41 = sphi 0, %s38
    %s42 = sphi 0, %s41
    %s58 = sphi 0, %s42
    %s64 = sphi 0, %s66
    %s67 = sphi 0, %s64
    %s68 = sphi 0, %s67
    %s84 = sphi 0, %s68
    %s88 = sphi 0, %s88
    %s90 = sphi 0, %s88
    %s91 = sphi 0, %s90
    %s105 = sphi 0, %s91
    %s109 = sphi 0, %s109
    %s111 = sphi 0, %s109
    %s112 = sphi 0, %s111
    %s126 = sphi 0, %s112
    %s130 = sphi 0, %s130
    %s132 = sphi 0, %s130
    %s133 = sphi 0, %s132
    %s147 = sphi 0, %s133
    %s151 = sphi 0, %s151
    %s153 = sphi 0, %s151
    %s154 = sphi 0, %s153
    %s168 = sphi 0, %s154
    %s172 = sphi 0, %s172
    %s174 = sphi 0, %s172
    %s175 = sphi 0, %s174
    %s189 = sphi 0, %s175
    %s193 = sphi 0, %s193
    %s195 = sphi 0, %s193
    %s196 = sphi 0, %s195
    %s210 = sphi 0, %s196
    %s214 = sphi 0, %s214
    %s216 = sphi 0, %s214
    %s217 = sphi 0, %s216
    %s231 = sphi 0, %s217
    %s235 = sphi 0, %s235
    %s237 = sphi 0, %s235
    %s238 = sphi 0, %s237
    %s252 = sphi 0, %s238
    %s256 = sphi 0, %s256
    %s258 = sphi 0, %s256
    %s259 = sphi 0, %s258
    %s273 = sphi 0, %s259
    %s277 = sphi 0, %s277
    %s279 = sphi 0, %s277
    %s280 = sphi 0, %s279
    %s294 = sphi 0, %s280
    %s298 = sphi 0, %s298
    %s300 = sphi 0, %s298
    %s301 = sphi 0, %s300
    %s315 = sphi 0, %s301
    %s319 = sphi 0, %s319
    %s321 = sphi 0, %s319
    %s322 = sphi 0, %s321
    %s336 = sphi 0, %s322
    %s340 = sphi 0, %s340
    %s342 = sphi 0, %s340
    %s343 = sphi 0, %s342
    %s357 = sphi 0, %s343
    %s361 = sphi 0, %s361
    %s363 = sphi 0, %s361
    %s364 = sphi 0, %s363
    %s378 = sphi 0, %s364
    %s382 = sphi 0, %s382
    %s384 = sphi 0, %s382
    %s385 = sphi 0, %s384
    %s399 = sphi 0, %s385
    %s403 = sphi 0, %s403
    %s405 = sphi 0, %s403
    %s406 = sphi 0, %s405
    %s420 = sphi 0, %s406
    %s424 = sphi 0, %s424
    %s426 = sphi 0, %s424
    %s427 = sphi 0, %s426
    %s441 = sphi 0, %s427
    %s445 = sphi 0, %s445
    %s447 = sphi 0, %s445
    %s448 = sphi 0, %s447
    %s462 = sphi 0, %s448
    %s466 = sphi 0, %s466
    %s468 = sphi 0, %s466
    %s469 = sphi 0, %s468
    %s483 = sphi 0, %s469
    %s487 = sphi 0, %s487
    %s489 = sphi 0, %s487
    %s490 = sphi 0, %s489
    %s504 = sphi 0, %s490
    %s510 = sphi 0, %s512
    %s513 = sphi 0, %s510
    %s514 = sphi 0, %s513
    %s530 = sphi 0, %s514
  $region4: #{audio_diarization_forward.5} parent=0 // loop_header_branch
    %31 = sbr.rel (%p29) target = $region8
  $region5: #{audio_diarization_forward.5} parent=0 // loop_body
    %s33 = ssub.s32 %s28, 1
    %s34 = ssub.s32 %s28, 2
    %s35 = sadd.s32 %s28, 1
    %s36 = ssub.s32 %s28, %s35
    %p37 = scmp.eq.s32.totalorder %s36, 0
    %s39 = sadd.s32 %s38, 1
    %s40 = scalar_select %p37, %s38, %s39
    %p43 = pneg %p37
    %p44 = scmp.eq.s32.totalorder %s28, 1
    %p45 = por %p43, %p44
    %p46 = scmp.ne.s32.totalorder %s38, %s41
    %p47 = scmp.eq.s32.totalorder %s28, 0
    %p48 = por %p46, %p47
    %p49 = scmp.ne.s32.totalorder %s38, %s41
    %p50 = scmp.eq.s32.totalorder %s33, 1
    %p51 = por %p49, %p50
    %p52 = scmp.ne.s32.totalorder %s41, %s42
    %p53 = scmp.eq.s32.totalorder %s33, 0
    %p54 = por %p52, %p53
    %p55 = scmp.ne.s32.totalorder %s41, %s42
    %p56 = scmp.eq.s32.totalorder %s34, 1
    %p57 = por %p55, %p56
    %p59 = scmp.ne.s32.totalorder %s42, %s58
    %p60 = scmp.eq.s32.totalorder %s34, 0
    %p61 = por %p59, %p60
    %s62 = ssub.s32 %s28, %s35
    %p63 = scmp.eq.s32.totalorder %s62, 0
    %s65 = sadd.s32 %s64, 1
    %s66 = scalar_select %p63, %s64, %s65
    %p69 = pneg %p63
    %p70 = scmp.eq.s32.totalorder %s28, 1
    %p71 = por %p69, %p70
    %p72 = scmp.ne.s32.totalorder %s64, %s67
    %p73 = scmp.eq.s32.totalorder %s28, 0
    %p74 = por %p72, %p73
    %p75 = scmp.ne.s32.totalorder %s64, %s67
    %p76 = scmp.eq.s32.totalorder %s33, 1
    %p77 = por %p75, %p76
    %p78 = scmp.ne.s32.totalorder %s67, %s68
    %p79 = scmp.eq.s32.totalorder %s33, 0
    %p80 = por %p78, %p79
    %p81 = scmp.ne.s32.totalorder %s67, %s68
    %p82 = scmp.eq.s32.totalorder %s34, 1
    %p83 = por %p81, %p82
    %p85 = scmp.ne.s32.totalorder %s68, %s84
    %p86 = scmp.eq.s32.totalorder %s34, 0
    %p87 = por %p85, %p86
    %s89 = sadd.s32 %s88, 1
    %p92 = scmp.eq.s32.totalorder %s28, 1
    %p93 = scmp.ne.s32.totalorder %s88, %s90
    %p94 = scmp.eq.s32.totalorder %s28, 0
    %p95 = por %p93, %p94
    %p96 = scmp.ne.s32.totalorder %s88, %s90
    %p97 = scmp.eq.s32.totalorder %s33, 1
    %p98 = por %p96, %p97
    %p99 = scmp.ne.s32.totalorder %s90, %s91
    %p100 = scmp.eq.s32.totalorder %s33, 0
    %p101 = por %p99, %p100
    %p102 = scmp.ne.s32.totalorder %s90, %s91
    %p103 = scmp.eq.s32.totalorder %s34, 1
    %p104 = por %p102, %p103
    %p106 = scmp.ne.s32.totalorder %s91, %s105
    %p107 = scmp.eq.s32.totalorder %s34, 0
    %p108 = por %p106, %p107
    %s110 = sadd.s32 %s109, 1
    %p113 = scmp.eq.s32.totalorder %s28, 1
    %p114 = scmp.ne.s32.totalorder %s109, %s111
    %p115 = scmp.eq.s32.totalorder %s28, 0
    %p116 = por %p114, %p115
    %p117 = scmp.ne.s32.totalorder %s109, %s111
    %p118 = scmp.eq.s32.totalorder %s33, 1
    %p119 = por %p117, %p118
    %p120 = scmp.ne.s32.totalorder %s111, %s112
    %p121 = scmp.eq.s32.totalorder %s33, 0
    %p122 = por %p120, %p121
    %p123 = scmp.ne.s32.totalorder %s111, %s112
    %p124 = scmp.eq.s32.totalorder %s34, 1
    %p125 = por %p123, %p124
    %p127 = scmp.ne.s32.totalorder %s112, %s126
    %p128 = scmp.eq.s32.totalorder %s34, 0
    %p129 = por %p127, %p128
    %s131 = sadd.s32 %s130, 1
    %p134 = scmp.eq.s32.totalorder %s28, 1
    %p135 = scmp.ne.s32.totalorder %s130, %s132
    %p136 = scmp.eq.s32.totalorder %s28, 0
    %p137 = por %p135, %p136
    %p138 = scmp.ne.s32.totalorder %s130, %s132
    %p139 = scmp.eq.s32.totalorder %s33, 1
    %p140 = por %p138, %p139
    %p141 = scmp.ne.s32.totalorder %s132, %s133
    %p142 = scmp.eq.s32.totalorder %s33, 0
    %p143 = por %p141, %p142
    %p144 = scmp.ne.s32.totalorder %s132, %s133
    %p145 = scmp.eq.s32.totalorder %s34, 1
    %p146 = por %p144, %p145
    %p148 = scmp.ne.s32.totalorder %s133, %s147
    %p149 = scmp.eq.s32.totalorder %s34, 0
    %p150 = por %p148, %p149
    %s152 = sadd.s32 %s151, 1
    %p155 = scmp.eq.s32.totalorder %s28, 1
    %p156 = scmp.ne.s32.totalorder %s151, %s153
    %p157 = scmp.eq.s32.totalorder %s28, 0
    %p158 = por %p156, %p157
    %p159 = scmp.ne.s32.totalorder %s151, %s153
    %p160 = scmp.eq.s32.totalorder %s33, 1
    %p161 = por %p159, %p160
    %p162 = scmp.ne.s32.totalorder %s153, %s154
    %p163 = scmp.eq.s32.totalorder %s33, 0
    %p164 = por %p162, %p163
    %p165 = scmp.ne.s32.totalorder %s153, %s154
    %p166 = scmp.eq.s32.totalorder %s34, 1
    %p167 = por %p165, %p166
    %p169 = scmp.ne.s32.totalorder %s154, %s168
    %p170 = scmp.eq.s32.totalorder %s34, 0
    %p171 = por %p169, %p170
    %s173 = sadd.s32 %s172, 1
    %p176 = scmp.eq.s32.totalorder %s28, 1
    %p177 = scmp.ne.s32.totalorder %s172, %s174
    %p178 = scmp.eq.s32.totalorder %s28, 0
    %p179 = por %p177, %p178
    %p180 = scmp.ne.s32.totalorder %s172, %s174
    %p181 = scmp.eq.s32.totalorder %s33, 1
    %p182 = por %p180, %p181
    %p183 = scmp.ne.s32.totalorder %s174, %s175
    %p184 = scmp.eq.s32.totalorder %s33, 0
    %p185 = por %p183, %p184
    %p186 = scmp.ne.s32.totalorder %s174, %s175
    %p187 = scmp.eq.s32.totalorder %s34, 1
    %p188 = por %p186, %p187
    %p190 = scmp.ne.s32.totalorder %s175, %s189
    %p191 = scmp.eq.s32.totalorder %s34, 0
    %p192 = por %p190, %p191
    %s194 = sadd.s32 %s193, 1
    %p197 = scmp.eq.s32.totalorder %s28, 1
    %p198 = scmp.ne.s32.totalorder %s193, %s195
    %p199 = scmp.eq.s32.totalorder %s28, 0
    %p200 = por %p198, %p199
    %p201 = scmp.ne.s32.totalorder %s193, %s195
    %p202 = scmp.eq.s32.totalorder %s33, 1
    %p203 = por %p201, %p202
    %p204 = scmp.ne.s32.totalorder %s195, %s196
    %p205 = scmp.eq.s32.totalorder %s33, 0
    %p206 = por %p204, %p205
    %p207 = scmp.ne.s32.totalorder %s195, %s196
    %p208 = scmp.eq.s32.totalorder %s34, 1
    %p209 = por %p207, %p208
    %p211 = scmp.ne.s32.totalorder %s196, %s210
    %p212 = scmp.eq.s32.totalorder %s34, 0
    %p213 = por %p211, %p212
    %s215 = sadd.s32 %s214, 1
    %p218 = scmp.eq.s32.totalorder %s28, 1
    %p219 = scmp.ne.s32.totalorder %s214, %s216
    %p220 = scmp.eq.s32.totalorder %s28, 0
    %p221 = por %p219, %p220
    %p222 = scmp.ne.s32.totalorder %s214, %s216
    %p223 = scmp.eq.s32.totalorder %s33, 1
    %p224 = por %p222, %p223
    %p225 = scmp.ne.s32.totalorder %s216, %s217
    %p226 = scmp.eq.s32.totalorder %s33, 0
    %p227 = por %p225, %p226
    %p228 = scmp.ne.s32.totalorder %s216, %s217
    %p229 = scmp.eq.s32.totalorder %s34, 1
    %p230 = por %p228, %p229
    %p232 = scmp.ne.s32.totalorder %s217, %s231
    %p233 = scmp.eq.s32.totalorder %s34, 0
    %p234 = por %p232, %p233
    %s236 = sadd.s32 %s235, 1
    %p239 = scmp.eq.s32.totalorder %s28, 1
    %p240 = scmp.ne.s32.totalorder %s235, %s237
    %p241 = scmp.eq.s32.totalorder %s28, 0
    %p242 = por %p240, %p241
    %p243 = scmp.ne.s32.totalorder %s235, %s237
    %p244 = scmp.eq.s32.totalorder %s33, 1
    %p245 = por %p243, %p244
    %p246 = scmp.ne.s32.totalorder %s237, %s238
    %p247 = scmp.eq.s32.totalorder %s33, 0
    %p248 = por %p246, %p247
    %p249 = scmp.ne.s32.totalorder %s237, %s238
    %p250 = scmp.eq.s32.totalorder %s34, 1
    %p251 = por %p249, %p250
    %p253 = scmp.ne.s32.totalorder %s238, %s252
    %p254 = scmp.eq.s32.totalorder %s34, 0
    %p255 = por %p253, %p254
    %s257 = sadd.s32 %s256, 1
    %p260 = scmp.eq.s32.totalorder %s28, 1
    %p261 = scmp.ne.s32.totalorder %s256, %s258
    %p262 = scmp.eq.s32.totalorder %s28, 0
    %p263 = por %p261, %p262
    %p264 = scmp.ne.s32.totalorder %s256, %s258
    %p265 = scmp.eq.s32.totalorder %s33, 1
    %p266 = por %p264, %p265
    %p267 = scmp.ne.s32.totalorder %s258, %s259
    %p268 = scmp.eq.s32.totalorder %s33, 0
    %p269 = por %p267, %p268
    %p270 = scmp.ne.s32.totalorder %s258, %s259
    %p271 = scmp.eq.s32.totalorder %s34, 1
    %p272 = por %p270, %p271
    %p274 = scmp.ne.s32.totalorder %s259, %s273
    %p275 = scmp.eq.s32.totalorder %s34, 0
    %p276 = por %p274, %p275
    %s278 = sadd.s32 %s277, 1
    %p281 = scmp.eq.s32.totalorder %s28, 1
    %p282 = scmp.ne.s32.totalorder %s277, %s279
    %p283 = scmp.eq.s32.totalorder %s28, 0
    %p284 = por %p282, %p283
    %p285 = scmp.ne.s32.totalorder %s277, %s279
    %p286 = scmp.eq.s32.totalorder %s33, 1
    %p287 = por %p285, %p286
    %p288 = scmp.ne.s32.totalorder %s279, %s280
    %p289 = scmp.eq.s32.totalorder %s33, 0
    %p290 = por %p288, %p289
    %p291 = scmp.ne.s32.totalorder %s279, %s280
    %p292 = scmp.eq.s32.totalorder %s34, 1
    %p293 = por %p291, %p292
    %p295 = scmp.ne.s32.totalorder %s280, %s294
    %p296 = scmp.eq.s32.totalorder %s34, 0
    %p297 = por %p295, %p296
    %s299 = sadd.s32 %s298, 1
    %p302 = scmp.eq.s32.totalorder %s28, 1
    %p303 = scmp.ne.s32.totalorder %s298, %s300
    %p304 = scmp.eq.s32.totalorder %s28, 0
    %p305 = por %p303, %p304
    %p306 = scmp.ne.s32.totalorder %s298, %s300
    %p307 = scmp.eq.s32.totalorder %s33, 1
    %p308 = por %p306, %p307
    %p309 = scmp.ne.s32.totalorder %s300, %s301
    %p310 = scmp.eq.s32.totalorder %s33, 0
    %p311 = por %p309, %p310
    %p312 = scmp.ne.s32.totalorder %s300, %s301
    %p313 = scmp.eq.s32.totalorder %s34, 1
    %p314 = por %p312, %p313
    %p316 = scmp.ne.s32.totalorder %s301, %s315
    %p317 = scmp.eq.s32.totalorder %s34, 0
    %p318 = por %p316, %p317
    %s320 = sadd.s32 %s319, 1
    %p323 = scmp.eq.s32.totalorder %s28, 1
    %p324 = scmp.ne.s32.totalorder %s319, %s321
    %p325 = scmp.eq.s32.totalorder %s28, 0
    %p326 = por %p324, %p325
    %p327 = scmp.ne.s32.totalorder %s319, %s321
    %p328 = scmp.eq.s32.totalorder %s33, 1
    %p329 = por %p327, %p328
    %p330 = scmp.ne.s32.totalorder %s321, %s322
    %p331 = scmp.eq.s32.totalorder %s33, 0
    %p332 = por %p330, %p331
    %p333 = scmp.ne.s32.totalorder %s321, %s322
    %p334 = scmp.eq.s32.totalorder %s34, 1
    %p335 = por %p333, %p334
    %p337 = scmp.ne.s32.totalorder %s322, %s336
    %p338 = scmp.eq.s32.totalorder %s34, 0
    %p339 = por %p337, %p338
    %s341 = sadd.s32 %s340, 1
    %p344 = scmp.eq.s32.totalorder %s28, 1
    %p345 = scmp.ne.s32.totalorder %s340, %s342
    %p346 = scmp.eq.s32.totalorder %s28, 0
    %p347 = por %p345, %p346
    %p348 = scmp.ne.s32.totalorder %s340, %s342
    %p349 = scmp.eq.s32.totalorder %s33, 1
    %p350 = por %p348, %p349
    %p351 = scmp.ne.s32.totalorder %s342, %s343
    %p352 = scmp.eq.s32.totalorder %s33, 0
    %p353 = por %p351, %p352
    %p354 = scmp.ne.s32.totalorder %s342, %s343
    %p355 = scmp.eq.s32.totalorder %s34, 1
    %p356 = por %p354, %p355
    %p358 = scmp.ne.s32.totalorder %s343, %s357
    %p359 = scmp.eq.s32.totalorder %s34, 0
    %p360 = por %p358, %p359
    %s362 = sadd.s32 %s361, 1
    %p365 = scmp.eq.s32.totalorder %s28, 1
    %p366 = scmp.ne.s32.totalorder %s361, %s363
    %p367 = scmp.eq.s32.totalorder %s28, 0
    %p368 = por %p366, %p367
    %p369 = scmp.ne.s32.totalorder %s361, %s363
    %p370 = scmp.eq.s32.totalorder %s33, 1
    %p371 = por %p369, %p370
    %p372 = scmp.ne.s32.totalorder %s363, %s364
    %p373 = scmp.eq.s32.totalorder %s33, 0
    %p374 = por %p372, %p373
    %p375 = scmp.ne.s32.totalorder %s363, %s364
    %p376 = scmp.eq.s32.totalorder %s34, 1
    %p377 = por %p375, %p376
    %p379 = scmp.ne.s32.totalorder %s364, %s378
    %p380 = scmp.eq.s32.totalorder %s34, 0
    %p381 = por %p379, %p380
    %s383 = sadd.s32 %s382, 1
    %p386 = scmp.eq.s32.totalorder %s28, 1
    %p387 = scmp.ne.s32.totalorder %s382, %s384
    %p388 = scmp.eq.s32.totalorder %s28, 0
    %p389 = por %p387, %p388
    %p390 = scmp.ne.s32.totalorder %s382, %s384
    %p391 = scmp.eq.s32.totalorder %s33, 1
    %p392 = por %p390, %p391
    %p393 = scmp.ne.s32.totalorder %s384, %s385
    %p394 = scmp.eq.s32.totalorder %s33, 0
    %p395 = por %p393, %p394
    %p396 = scmp.ne.s32.totalorder %s384, %s385
    %p397 = scmp.eq.s32.totalorder %s34, 1
    %p398 = por %p396, %p397
    %p400 = scmp.ne.s32.totalorder %s385, %s399
    %p401 = scmp.eq.s32.totalorder %s34, 0
    %p402 = por %p400, %p401
    %s404 = sadd.s32 %s403, 1
    %p407 = scmp.eq.s32.totalorder %s28, 1
    %p408 = scmp.ne.s32.totalorder %s403, %s405
    %p409 = scmp.eq.s32.totalorder %s28, 0
    %p410 = por %p408, %p409
    %p411 = scmp.ne.s32.totalorder %s403, %s405
    %p412 = scmp.eq.s32.totalorder %s33, 1
    %p413 = por %p411, %p412
    %p414 = scmp.ne.s32.totalorder %s405, %s406
    %p415 = scmp.eq.s32.totalorder %s33, 0
    %p416 = por %p414, %p415
    %p417 = scmp.ne.s32.totalorder %s405, %s406
    %p418 = scmp.eq.s32.totalorder %s34, 1
    %p419 = por %p417, %p418
    %p421 = scmp.ne.s32.totalorder %s406, %s420
    %p422 = scmp.eq.s32.totalorder %s34, 0
    %p423 = por %p421, %p422
    %s425 = sadd.s32 %s424, 1
    %p428 = scmp.eq.s32.totalorder %s28, 1
    %p429 = scmp.ne.s32.totalorder %s424, %s426
    %p430 = scmp.eq.s32.totalorder %s28, 0
    %p431 = por %p429, %p430
    %p432 = scmp.ne.s32.totalorder %s424, %s426
    %p433 = scmp.eq.s32.totalorder %s33, 1
    %p434 = por %p432, %p433
    %p435 = scmp.ne.s32.totalorder %s426, %s427
    %p436 = scmp.eq.s32.totalorder %s33, 0
    %p437 = por %p435, %p436
    %p438 = scmp.ne.s32.totalorder %s426, %s427
    %p439 = scmp.eq.s32.totalorder %s34, 1
    %p440 = por %p438, %p439
    %p442 = scmp.ne.s32.totalorder %s427, %s441
    %p443 = scmp.eq.s32.totalorder %s34, 0
    %p444 = por %p442, %p443
    %s446 = sadd.s32 %s445, 1
    %p449 = scmp.eq.s32.totalorder %s28, 1
    %p450 = scmp.ne.s32.totalorder %s445, %s447
    %p451 = scmp.eq.s32.totalorder %s28, 0
    %p452 = por %p450, %p451
    %p453 = scmp.ne.s32.totalorder %s445, %s447
    %p454 = scmp.eq.s32.totalorder %s33, 1
    %p455 = por %p453, %p454
    %p456 = scmp.ne.s32.totalorder %s447, %s448
    %p457 = scmp.eq.s32.totalorder %s33, 0
    %p458 = por %p456, %p457
    %p459 = scmp.ne.s32.totalorder %s447, %s448
    %p460 = scmp.eq.s32.totalorder %s34, 1
    %p461 = por %p459, %p460
    %p463 = scmp.ne.s32.totalorder %s448, %s462
    %p464 = scmp.eq.s32.totalorder %s34, 0
    %p465 = por %p463, %p464
    %s467 = sadd.s32 %s466, 1
    %p470 = scmp.eq.s32.totalorder %s28, 1
    %p471 = scmp.ne.s32.totalorder %s466, %s468
    %p472 = scmp.eq.s32.totalorder %s28, 0
    %p473 = por %p471, %p472
    %p474 = scmp.ne.s32.totalorder %s466, %s468
    %p475 = scmp.eq.s32.totalorder %s33, 1
    %p476 = por %p474, %p475
    %p477 = scmp.ne.s32.totalorder %s468, %s469
    %p478 = scmp.eq.s32.totalorder %s33, 0
    %p479 = por %p477, %p478
    %p480 = scmp.ne.s32.totalorder %s468, %s469
    %p481 = scmp.eq.s32.totalorder %s34, 1
    %p482 = por %p480, %p481
    %p484 = scmp.ne.s32.totalorder %s469, %s483
    %p485 = scmp.eq.s32.totalorder %s34, 0
    %p486 = por %p484, %p485
    %s488 = sadd.s32 %s487, 1
    %p491 = scmp.eq.s32.totalorder %s28, 1
    %p492 = scmp.ne.s32.totalorder %s487, %s489
    %p493 = scmp.eq.s32.totalorder %s28, 0
    %p494 = por %p492, %p493
    %p495 = scmp.ne.s32.totalorder %s487, %s489
    %p496 = scmp.eq.s32.totalorder %s33, 1
    %p497 = por %p495, %p496
    %p498 = scmp.ne.s32.totalorder %s489, %s490
    %p499 = scmp.eq.s32.totalorder %s33, 0
    %p500 = por %p498, %p499
    %p501 = scmp.ne.s32.totalorder %s489, %s490
    %p502 = scmp.eq.s32.totalorder %s34, 1
    %p503 = por %p501, %p502
    %p505 = scmp.ne.s32.totalorder %s490, %s504
    %p506 = scmp.eq.s32.totalorder %s34, 0
    %p507 = por %p505, %p506
    %s508 = ssub.s32 %s28, %s35
    %p509 = scmp.eq.s32.totalorder %s508, 0
    %s511 = sadd.s32 %s510, 1
    %s512 = scalar_select %p509, %s510, %s511
    %p515 = pneg %p509
    %p516 = scmp.eq.s32.totalorder %s28, 1
    %p517 = por %p515, %p516
    %p518 = scmp.ne.s32.totalorder %s510, %s513
    %p519 = scmp.eq.s32.totalorder %s28, 0
    %p520 = por %p518, %p519
    %p521 = scmp.ne.s32.totalorder %s510, %s513
    %p522 = scmp.eq.s32.totalorder %s33, 1
    %p523 = por %p521, %p522
    %p524 = scmp.ne.s32.totalorder %s513, %s514
    %p525 = scmp.eq.s32.totalorder %s33, 0
    %p526 = por %p524, %p525
    %p527 = scmp.ne.s32.totalorder %s513, %s514
    %p528 = scmp.eq.s32.totalorder %s34, 1
    %p529 = por %p527, %p528
    %p531 = scmp.ne.s32.totalorder %s514, %s530
    %p532 = scmp.eq.s32.totalorder %s34, 0
    %p533 = por %p531, %p532
    %p534 = scmp.le.s32.totalorder 1, %s28
    %p535 = scmp.lt.s32.totalorder %s28, 3
    %p536 = pnand %p534, %p535
    %p537 = pneg %p536
    // Predicated region
    $region9: #{audio_diarization_forward.5} parent=5 // pred_check
      _
    $region10: #{audio_diarization_forward.5} parent=5 // pred_check_branch
      %539 = sbr.rel (%p536) target = $region12
    $region11: #{audio_diarization_forward.5} parent=5 // pred_region
      %s540 = ssub.s32 %s28, 1
      // Predicated region
      $region13: #{audio_diarization_forward.5} parent=11 // pred_check
        %p541 = pneg %p101
      $region14: #{audio_diarization_forward.5} parent=11 // pred_check_branch
        %543 = sbr.rel (%p541) target = $region16
      $region15: #{audio_diarization_forward.5} parent=11 // pred_region
        _
      $region16: #{audio_diarization_forward.5} parent=11 // pred_fallthru
        _
      // Predicated region
      $region17: #{audio_diarization_forward.5} parent=11 // pred_check
        %p544 = pneg %p122
      $region18: #{audio_diarization_forward.5} parent=11 // pred_check_branch
        %546 = sbr.rel (%p544) target = $region20
      $region19: #{audio_diarization_forward.5} parent=11 // pred_region
        _
      $region20: #{audio_diarization_forward.5} parent=11 // pred_fallthru
        _
      // Predicated region
      $region21: #{audio_diarization_forward.5} parent=11 // pred_check
        %p547 = pneg %p143
      $region22: #{audio_diarization_forward.5} parent=11 // pred_check_branch
        %549 = sbr.rel (%p547) target = $region24
      $region23: #{audio_diarization_forward.5} parent=11 // pred_region
        _
      $region24: #{audio_diarization_forward.5} parent=11 // pred_fallthru
        _
      // Predicated region
      $region25: #{audio_diarization_forward.5} parent=11 // pred_check
        %p550 = pneg %p164
      $region26: #{audio_diarization_forward.5} parent=11 // pred_check_branch
        %552 = sbr.rel (%p550) target = $region28
      $region27: #{audio_diarization_forward.5} parent=11 // pred_region
        _
      $region28: #{audio_diarization_forward.5} parent=11 // pred_fallthru
        _
      // Predicated region
      $region29: #{audio_diarization_forward.5} parent=11 // pred_check
        %p553 = pneg %p185
      $region30: #{audio_diarization_forward.5} parent=11 // pred_check_branch
        %555 = sbr.rel (%p553) target = $region32
      $region31: #{audio_diarization_forward.5} parent=11 // pred_region
        _
      $region32: #{audio_diarization_forward.5} parent=11 // pred_fallthru
        _
      // Predicated region
      $region33: #{audio_diarization_forward.5} parent=11 // pred_check
        %p556 = pneg %p206
      $region34: #{audio_diarization_forward.5} parent=11 // pred_check_branch
        %558 = sbr.rel (%p556) target = $region36
      $region35: #{audio_diarization_forward.5} parent=11 // pred_region
        _
      $region36: #{audio_diarization_forward.5} parent=11 // pred_fallthru
        _
      // Predicated region
      $region37: #{audio_diarization_forward.5} parent=11 // pred_check
        %p559 = pneg %p227
      $region38: #{audio_diarization_forward.5} parent=11 // pred_check_branch
        %561 = sbr.rel (%p559) target = $region40
      $region39: #{audio_diarization_forward.5} parent=11 // pred_region
        _
      $region40: #{audio_diarization_forward.5} parent=11 // pred_fallthru
        _
      // Predicated region
      $region41: #{audio_diarization_forward.5} parent=11 // pred_check
        %p562 = pneg %p248
      $region42: #{audio_diarization_forward.5} parent=11 // pred_check_branch
        %564 = sbr.rel (%p562) target = $region44
      $region43: #{audio_diarization_forward.5} parent=11 // pred_region
        _
      $region44: #{audio_diarization_forward.5} parent=11 // pred_fallthru
        _
      // Predicated region
      $region45: #{audio_diarization_forward.5} parent=11 // pred_check
        %p565 = pneg %p269
      $region46: #{audio_diarization_forward.5} parent=11 // pred_check_branch
        %567 = sbr.rel (%p565) target = $region48
      $region47: #{audio_diarization_forward.5} parent=11 // pred_region
        _
      $region48: #{audio_diarization_forward.5} parent=11 // pred_fallthru
        _
      // Predicated region
      $region49: #{audio_diarization_forward.5} parent=11 // pred_check
        %p568 = pneg %p290
      $region50: #{audio_diarization_forward.5} parent=11 // pred_check_branch
        %570 = sbr.rel (%p568) target = $region52
      $region51: #{audio_diarization_forward.5} parent=11 // pred_region
        _
      $region52: #{audio_diarization_forward.5} parent=11 // pred_fallthru
        _
      // Predicated region
      $region53: #{audio_diarization_forward.5} parent=11 // pred_check
        %p571 = pneg %p311
      $region54: #{audio_diarization_forward.5} parent=11 // pred_check_branch
        %573 = sbr.rel (%p571) target = $region56
      $region55: #{audio_diarization_forward.5} parent=11 // pred_region
        _
      $region56: #{audio_diarization_forward.5} parent=11 // pred_fallthru
        _
      // Predicated region
      $region57: #{audio_diarization_forward.5} parent=11 // pred_check
        %p574 = pneg %p332
      $region58: #{audio_diarization_forward.5} parent=11 // pred_check_branch
        %576 = sbr.rel (%p574) target = $region60
      $region59: #{audio_diarization_forward.5} parent=11 // pred_region
        _
      $region60: #{audio_diarization_forward.5} parent=11 // pred_fallthru
        _
      // Predicated region
      $region61: #{audio_diarization_forward.5} parent=11 // pred_check
        %p577 = pneg %p353
      $region62: #{audio_diarization_forward.5} parent=11 // pred_check_branch
        %579 = sbr.rel (%p577) target = $region64
      $region63: #{audio_diarization_forward.5} parent=11 // pred_region
        _
      $region64: #{audio_diarization_forward.5} parent=11 // pred_fallthru
        _
      // Predicated region
      $region65: #{audio_diarization_forward.5} parent=11 // pred_check
        %p580 = pneg %p374
      $region66: #{audio_diarization_forward.5} parent=11 // pred_check_branch
        %582 = sbr.rel (%p580) target = $region68
      $region67: #{audio_diarization_forward.5} parent=11 // pred_region
        _
      $region68: #{audio_diarization_forward.5} parent=11 // pred_fallthru
        _
      // Predicated region
      $region69: #{audio_diarization_forward.5} parent=11 // pred_check
        %p583 = pneg %p395
      $region70: #{audio_diarization_forward.5} parent=11 // pred_check_branch
        %585 = sbr.rel (%p583) target = $region72
      $region71: #{audio_diarization_forward.5} parent=11 // pred_region
        _
      $region72: #{audio_diarization_forward.5} parent=11 // pred_fallthru
        _
      // Predicated region
      $region73: #{audio_diarization_forward.5} parent=11 // pred_check
        %p586 = pneg %p416
      $region74: #{audio_diarization_forward.5} parent=11 // pred_check_branch
        %588 = sbr.rel (%p586) target = $region76
      $region75: #{audio_diarization_forward.5} parent=11 // pred_region
        _
      $region76: #{audio_diarization_forward.5} parent=11 // pred_fallthru
        _
      // Predicated region
      $region77: #{audio_diarization_forward.5} parent=11 // pred_check
        %p589 = pneg %p437
      $region78: #{audio_diarization_forward.5} parent=11 // pred_check_branch
        %591 = sbr.rel (%p589) target = $region80
      $region79: #{audio_diarization_forward.5} parent=11 // pred_region
        _
      $region80: #{audio_diarization_forward.5} parent=11 // pred_fallthru
        _
      // Predicated region
      $region81: #{audio_diarization_forward.5} parent=11 // pred_check
        %p592 = pneg %p458
      $region82: #{audio_diarization_forward.5} parent=11 // pred_check_branch
        %594 = sbr.rel (%p592) target = $region84
      $region83: #{audio_diarization_forward.5} parent=11 // pred_region
        _
      $region84: #{audio_diarization_forward.5} parent=11 // pred_fallthru
        _
      // Predicated region
      $region85: #{audio_diarization_forward.5} parent=11 // pred_check
        %p595 = pneg %p479
      $region86: #{audio_diarization_forward.5} parent=11 // pred_check_branch
        %597 = sbr.rel (%p595) target = $region88
      $region87: #{audio_diarization_forward.5} parent=11 // pred_region
        _
      $region88: #{audio_diarization_forward.5} parent=11 // pred_fallthru
        _
      // Predicated region
      $region89: #{audio_diarization_forward.5} parent=11 // pred_check
        %p598 = pneg %p500
      $region90: #{audio_diarization_forward.5} parent=11 // pred_check_branch
        %600 = sbr.rel (%p598) target = $region92
      $region91: #{audio_diarization_forward.5} parent=11 // pred_region
        _
      $region92: #{audio_diarization_forward.5} parent=11 // pred_fallthru
        _
    $region12: #{audio_diarization_forward.5} parent=5 // pred_fallthru
      _
    %p601 = scmp.lt.s32.totalorder %s28, 2
    // Predicated region
    $region93: #{audio_diarization_forward.5} parent=5 // pred_check
      %p602 = pneg %p601
    $region94: #{audio_diarization_forward.5} parent=5 // pred_check_branch
      %604 = sbr.rel (%p602) target = $region96
    $region95: #{audio_diarization_forward.5} parent=5 // pred_region
      // Predicated region
      $region97: #{audio_diarization_forward.5} parent=95 // pred_check
        %p605 = pneg %p48
      $region98: #{audio_diarization_forward.5} parent=95 // pred_check_branch
        %607 = sbr.rel (%p605) target = $region100
      $region99: #{audio_diarization_forward.5} parent=95 // pred_region
        %p608 = scmp.lt.s32.totalorder %s28, 1
        %s609 = scalar_select %p608, %s28, 1
        %s610 = smul.addr %s609, 3
        %s611 = smul.addr %s610, 8
        %s612 = scalar_lea.vmem %s0, %s611
      $region100: #{audio_diarization_forward.5} parent=95 // pred_fallthru
        _
      // Predicated region
      $region101: #{audio_diarization_forward.5} parent=95 // pred_check
        %p613 = pneg %p74
      $region102: #{audio_diarization_forward.5} parent=95 // pred_check_branch
        %615 = sbr.rel (%p613) target = $region104
      $region103: #{audio_diarization_forward.5} parent=95 // pred_region
        %p616 = scmp.lt.s32.totalorder %s28, 1
        %s617 = scalar_select %p616, %s28, 1
        %s618 = smul.addr %s617, 3
        %s619 = smul.addr %s618, 8
        %s620 = scalar_lea.vmem %s1, %s619
      $region104: #{audio_diarization_forward.5} parent=95 // pred_fallthru
        _
    $region96: #{audio_diarization_forward.5} parent=5 // pred_fallthru
      _
    %p621 = scmp.le.s32.totalorder 1, %s28
    %p622 = scmp.lt.s32.totalorder %s28, 3
    %p623 = pnand %p621, %p622
    %p624 = pneg %p623
    // Predicated region
    $region105: #{audio_diarization_forward.5} parent=5 // pred_check
      _
    $region106: #{audio_diarization_forward.5} parent=5 // pred_check_branch
      %626 = sbr.rel (%p623) target = $region108
    $region107: #{audio_diarization_forward.5} parent=5 // pred_region
      %s627 = ssub.s32 %s28, 1
      %p628 = scmp.lt.s32.totalorder %s33, 1
      %s629 = scalar_select %p628, %s33, 1
      %s630 = smul.addr %s629, 3
      %s631 = smul.addr %s630, 8
      %s632 = scalar_lea.vmem %s0, %s631
      %p633 = pneg %p54
      %p634 = pneg %p51
      %p635 = scmp.lt.s32.totalorder %s33, 1
      %s636 = scalar_select %p635, %s33, 1
      %s637 = smul.addr %s636, 3
      %s638 = smul.addr %s637, 8
      %s639 = scalar_lea.vmem %s1, %s638
      %p640 = pneg %p80
      %p641 = pneg %p77
      %p642 = pneg %p101
      %p643 = pneg %p98
      %p644 = pneg %p122
      %p645 = pneg %p119
      %p646 = pneg %p143
      %p647 = pneg %p140
      %p648 = pneg %p164
      %p649 = pneg %p161
      %p650 = pneg %p185
      %p651 = pneg %p182
      %p652 = pneg %p206
      %p653 = pneg %p203
      %p654 = pneg %p227
      %p655 = pneg %p224
      %p656 = pneg %p248
      %p657 = pneg %p245
      %p658 = pneg %p269
      %p659 = pneg %p266
      %p660 = pneg %p290
      %p661 = pneg %p287
      %p662 = pneg %p311
      %p663 = pneg %p308
      %p664 = pneg %p332
      %p665 = pneg %p329
      %p666 = pneg %p353
      %p667 = pneg %p350
      %p668 = pneg %p374
      %p669 = pneg %p371
      %p670 = pneg %p395
      %p671 = pneg %p392
      %p672 = pneg %p416
      %p673 = pneg %p413
      %p674 = pneg %p437
      %p675 = pneg %p434
      %p676 = pneg %p458
      %p677 = pneg %p455
      %p678 = pneg %p479
      %p679 = pneg %p476
      %p680 = pneg %p500
      %p681 = pneg %p497
      %p682 = pneg %p526
      %p683 = pneg %p523
      %p684 = scmp.lt.s32.totalorder %s33, 1
      %s685 = scalar_select %p684, %s33, 1
      %s686 = smul.addr %s685, 2
      %s687 = smul.addr %s686, 8
      %s688 = scalar_lea.vmem %s22, %s687
      %p689 = scmp.lt.s32.totalorder %s33, 1
      %s690 = scalar_select %p689, %s33, 1
      %s691 = smul.addr %s690, 3
      %s692 = smul.addr %s691, 8
      %s693 = scalar_lea.vmem %s0, %s692
      %p694 = scmp.lt.s32.totalorder %s33, 1
      %s695 = scalar_select %p694, %s33, 1
      %s696 = smul.addr %s695, 3
      %s697 = smul.addr %s696, 8
      %s698 = scalar_lea.vmem %s1, %s697
      %p699 = scmp.lt.s32.totalorder %s33, 1
      %s700 = scalar_select %p699, %s33, 1
      %s701 = smul.addr %s700, 2
      %s702 = smul.addr %s701, 8
      %s703 = scalar_lea.vmem %s22, %s702
      %v705 = vld [vmem:[%s693] sm:$0xff]
      %v706 = vld [vmem:[%s693 + $0x8] sm:$0xff]
      %v707 = vld [vmem:[%s693 + $0x10] sm:$0xf]
      %v708 = vpack.c.bf16 %v706, %v705
      %v709 = vpack.c.bf16 %v707, %v707
      %v710 = vld [vmem:[%s4] sm:$0xf]
      %v711 = vld [vmem:[%s4 + $0x4] sm:$0xf]
      %v712 = vld [vmem:[%s4 + $0x8] sm:$0xf]
      %v713 = vld [vmem:[%s4 + $0xc] sm:$0xf]
      %v714 = vld [vmem:[%s4 + $0x10] sm:$0xf]
      %v715 = vld [vmem:[%s4 + $0x14] sm:$0xf]
      %v716 = vld [vmem:[%s4 + $0x18] sm:$0xf]
      %v717 = vld [vmem:[%s4 + $0x1c] sm:$0xf]
      %v718 = vld [vmem:[%s5] sm:$0x1]
      %v720 = vlaneseq
      %v721 = vshrl.u32 %v720, 7
      %v722 = vsub.s32 0, %v721
      %v723 = vrot.slane %v718, %v722
      %v733 = vunpack.c.l.b16 %v710
      %v734 = vunpack.c.l.b16 %v711
      %v735 = vunpack.c.l.b16 %v712
      %v736 = vunpack.c.l.b16 %v713
      %v737 = vunpack.c.l.b16 %v714
      %v738 = vunpack.c.l.b16 %v715
      %v739 = vunpack.c.l.b16 %v716
      %v740 = vunpack.c.l.b16 %v717
      %v741 = vpack.c.b16 %v734, %v733
      %v742 = vpack.c.b16 %v736, %v735
      %v743 = vpack.c.b16 %v738, %v737
      %v744 = vpack.c.b16 %v740, %v739
      %vm749 = vcmask 523264
      %v751 = vsel %vm749, %v708, 0
      %v754 = vsel %vm749, %v709, 0
      %756 = vmatprep.subr.bf16.mxu0 0
      %757 = vmatpush1.bf16.msra.mxu0 %v741
      %758 = vmatprep.subr.bf16.mxu0 0
      %759 = vmatpush1.bf16.msra.mxu0 %v742
      %760 = vmatprep.subr.bf16.mxu0 0
      %761 = vmatpush1.bf16.msra.mxu0 %v743
      %762 = vmatprep.subr.bf16.mxu0 0
      %763 = vmatpush1.bf16.msra.mxu0 %v744
      %764 = vmatprep.subr.bf16.mxu0 0
      %765 = vmatpush1.bf16.msra.mxu0 0
      %766 = vmatprep.subr.bf16.mxu0 0
      %767 = vmatpush1.bf16.msra.mxu0 0
      %768 = vmatprep.subr.bf16.mxu0 0
      %769 = vmatpush1.bf16.msra.mxu0 0
      %770 = vmatprep.subr.bf16.mxu0 0
      %771 = vmatpush1.bf16.msra.mxu0 0
      %772 = vmatprep.subr.bf16.mxu0 0
      %773 = vmatpush1.bf16.msra.mxu0 0
      %774 = vmatprep.subr.bf16.mxu0 0
      %775 = vmatpush1.bf16.msra.mxu0 0
      %776 = vmatprep.subr.bf16.mxu0 0
      %777 = vmatpush1.bf16.msra.mxu0 0
      %778 = vmatprep.subr.bf16.mxu0 0
      %779 = vmatpush1.bf16.msra.mxu0 0
      %780 = vmatprep.subr.bf16.mxu0 0
      %781 = vmatpush1.bf16.msra.mxu0 0
      %782 = vmatprep.subr.bf16.mxu0 0
      %783 = vmatpush1.bf16.msra.mxu0 0
      %784 = vmatprep.subr.bf16.mxu0 0
      %785 = vmatpush1.bf16.msra.mxu0 0
      %786 = vmatprep.subr.bf16.mxu0 0
      %787 = vmatpush1.bf16.msra.mxu0 0
      %788 = vmatprep.mubr.bf16.mxu0 0
      %789 = vmatmul.mubr.bf16.gmra.mrb[0].mxu0 %v751
      %v790 = vpop.f32.mrb[0].mxu0
      %v791 = vadd.f32 %v723, %v790
      %v792 = vpop.f32.mrb[0].mxu0
      %v793 = vpop.f32.mrb[0].mxu0
      %v794 = vadd.f32 %v723, %v793
      %v795 = vpop.f32.mrb[0].mxu0
      %796 = vmatprep.mubr.bf16.mxu0 0
      %797 = vmatmul.mubr.bf16.gmra.mrb[0].mxu0 %v754
      %v798 = vpop.f32.mrb[0].mxu0
      %v799 = vadd.f32 %v723, %v798
      %v800 = vpop.f32.mrb[0].mxu0
      %v801 = vpop.f32.mrb[0].mxu0
      %v802 = vpop.f32.mrb[0].mxu0
      %803 = vdwg.mxu0
      %v804 = vld [vmem:[%s698] sm:$0xff]
      %v805 = vld [vmem:[%s698 + $0x8] sm:$0xff]
      %v806 = vld [vmem:[%s698 + $0x10] sm:$0xf]
      %v807 = vadd.f32 %v791, %v804
      %v808 = vadd.f32 %v794, %v805
      %v809 = vadd.f32 %v799, %v806
      %v810 = vld [vmem:[%s2] sm:$0xff]
      %v811 = vld [vmem:[%s2 + $0x8] sm:$0xff]
      %v812 = vld [vmem:[%s2 + $0x10] sm:$0xf]
      %v813 = vpack.c.bf16 %v808, %v807
      %v814 = vpack.c.bf16 %v809, %v809
      %v815 = vld [vmem:[%s6] sm:$0xf]
      %v816 = vld [vmem:[%s6 + $0x4] sm:$0xf]
      %v817 = vld [vmem:[%s6 + $0x8] sm:$0xf]
      %v818 = vld [vmem:[%s6 + $0xc] sm:$0xf]
      %v819 = vld [vmem:[%s7] sm:$0x1]
      %v821 = vlaneseq
      %v822 = vshrl.u32 %v821, 7
      %v823 = vsub.s32 0, %v822
      %v824 = vrot.slane %v819, %v823
      %v830 = vunpack.c.l.b16 %v815
      %v831 = vunpack.c.l.b16 %v816
      %v832 = vunpack.c.l.b16 %v817
      %v833 = vunpack.c.l.b16 %v818
      %v834 = vpack.c.b16 %v831, %v830
      %v835 = vpack.c.b16 %v833, %v832
      %vm838 = vcmask 261120
      %v840 = vsel %vm838, %v813, 0
      %v843 = vsel %vm838, %v814, 0
      %845 = vmatprep.subr.bf16.mxu0 0
      %846 = vmatpush1.bf16.msra.mxu0 %v834
      %847 = vmatprep.subr.bf16.mxu0 0
      %848 = vmatpush1.bf16.msra.mxu0 %v835
      %849 = vmatprep.subr.bf16.mxu0 0
      %850 = vmatpush1.bf16.msra.mxu0 0
      %851 = vmatprep.subr.bf16.mxu0 0
      %852 = vmatpush1.bf16.msra.mxu0 0
      %853 = vmatprep.subr.bf16.mxu0 0
      %854 = vmatpush1.bf16.msra.mxu0 0
      %855 = vmatprep.subr.bf16.mxu0 0
      %856 = vmatpush1.bf16.msra.mxu0 0
      %857 = vmatprep.subr.bf16.mxu0 0
      %858 = vmatpush1.bf16.msra.mxu0 0
      %859 = vmatprep.subr.bf16.mxu0 0
      %860 = vmatpush1.bf16.msra.mxu0 0
      %861 = vmatprep.subr.bf16.mxu0 0
      %862 = vmatpush1.bf16.msra.mxu0 0
      %863 = vmatprep.subr.bf16.mxu0 0
      %864 = vmatpush1.bf16.msra.mxu0 0
      %865 = vmatprep.subr.bf16.mxu0 0
      %866 = vmatpush1.bf16.msra.mxu0 0
      %867 = vmatprep.subr.bf16.mxu0 0
      %868 = vmatpush1.bf16.msra.mxu0 0
      %869 = vmatprep.subr.bf16.mxu0 0
      %870 = vmatpush1.bf16.msra.mxu0 0
      %871 = vmatprep.subr.bf16.mxu0 0
      %872 = vmatpush1.bf16.msra.mxu0 0
      %873 = vmatprep.subr.bf16.mxu0 0
      %874 = vmatpush1.bf16.msra.mxu0 0
      %875 = vmatprep.subr.bf16.mxu0 0
      %876 = vmatpush1.bf16.msra.mxu0 0
      %877 = vmatprep.mubr.bf16.mxu0 0
      %878 = vmatmul.mubr.bf16.gmra.mrb[0].mxu0 %v840
      %v879 = vpop.f32.mrb[0].mxu0
      %v880 = vadd.f32 %v824, %v879
      %v881 = vpop.f32.mrb[0].mxu0
      %v882 = vpop.f32.mrb[0].mxu0
      %v883 = vadd.f32 %v824, %v882
      %v884 = vpop.f32.mrb[0].mxu0
      %885 = vmatprep.mubr.bf16.mxu0 0
      %886 = vmatmul.mubr.bf16.gmra.mrb[0].mxu0 %v843
      %v887 = vpop.f32.mrb[0].mxu0
      %v888 = vadd.f32 %v824, %v887
      %v889 = vpop.f32.mrb[0].mxu0
      %v890 = vpop.f32.mrb[0].mxu0
      %v891 = vpop.f32.mrb[0].mxu0
      %892 = vdwg.mxu0
      %896 = vrot.lane.b32.xlu0 %v880, 96
      %v897 = vpop.permute.xlu0 %896
      %898 = vrot.lane.b32.xlu0 %v883, 96
      %v899 = vpop.permute.xlu0 %898
      %900 = vrot.lane.b32.xlu0 %v888, 96
      %v901 = vpop.permute.xlu0 %900
      %vm902 = vcmask 64512
      %v903 = vsel %vm902, %v880, 0
      %v905 = vsel %vm902, %v883, 0
      %v907 = vsel %vm902, %v888, 0
      %v909 = vsel %vm902, %v897, 0
      %v911 = vsel %vm902, %v899, 0
      %v913 = vsel %vm902, %v901, 0
      %915 = vmatprep.subr.mxu0 0.0
      %916 = vmatpush1.xpose.msra.mxu0 %v909
      %917 = vmatprep.subr.mxu0 0.0
      %918 = vmatpush1.xpose.msra.mxu0 %v911
      %919 = vmatprep.subr.mxu0 0.0
      %920 = vmatpush1.xpose.msra.mxu0 %v913
      %921 = vmatprep.subr.mxu0 0.0
      %922 = vmatpush1.xpose.msra.mxu0 0.0
      %923 = vmatprep.subr.mxu0 0.0
      %924 = vmatpush1.xpose.msra.mxu0 0.0
      %925 = vmatprep.subr.mxu0 0.0
      %926 = vmatpush1.xpose.msra.mxu0 0.0
      %927 = vmatprep.subr.mxu0 0.0
      %928 = vmatpush1.xpose.msra.mxu0 0.0
      %929 = vmatprep.subr.mxu0 0.0
      %930 = vmatpush1.xpose.msra.mxu0 0.0
      %931 = vmatprep.subr.mxu0 0.0
      %932 = vmatpush1.xpose.msra.mxu0 0.0
      %933 = vmatprep.subr.mxu0 0.0
      %934 = vmatpush1.xpose.msra.mxu0 0.0
      %935 = vmatprep.subr.mxu0 0.0
      %936 = vmatpush1.xpose.msra.mxu0 0.0
      %937 = vmatprep.subr.mxu0 0.0
      %938 = vmatpush1.xpose.msra.mxu0 0.0
      %939 = vmatprep.subr.mxu0 0.0
      %940 = vmatpush1.xpose.msra.mxu0 0.0
      %941 = vmatprep.subr.mxu0 0.0
      %942 = vmatpush1.xpose.msra.mxu0 0.0
      %943 = vmatprep.subr.mxu0 0.0
      %944 = vmatpush1.xpose.msra.mxu0 0.0
      %945 = vmatprep.subr.mxu0 0.0
      %946 = vmatpush1.xpose.msra.mxu0 0.0
      %947 = vmatprep.subr.mxu0 0.0
      %948 = vmatpush1.xpose.msra.mxu0 0.0
      %949 = vmatprep.subr.mxu0 0.0
      %950 = vmatpush1.xpose.msra.mxu0 0.0
      %951 = vmatprep.subr.mxu0 0.0
      %952 = vmatpush1.xpose.msra.mxu0 0.0
      %953 = vmatprep.subr.mxu0 0.0
      %954 = vmatpush1.xpose.msra.mxu0 0.0
      %955 = vmatprep.subr.mxu0 0.0
      %956 = vmatpush1.xpose.msra.mxu0 0.0
      %957 = vmatprep.subr.mxu0 0.0
      %958 = vmatpush1.xpose.msra.mxu0 0.0
      %959 = vmatprep.subr.mxu0 0.0
      %960 = vmatpush1.xpose.msra.mxu0 0.0
      %961 = vmatprep.subr.mxu0 0.0
      %962 = vmatpush1.xpose.msra.mxu0 0.0
      %963 = vmatprep.subr.mxu0 0.0
      %964 = vmatpush1.xpose.msra.mxu0 0.0
      %965 = vmatprep.subr.mxu0 0.0
      %966 = vmatpush1.xpose.msra.mxu0 0.0
      %967 = vmatprep.subr.mxu0 0.0
      %968 = vmatpush1.xpose.msra.mxu0 0.0
      %969 = vmatprep.subr.mxu0 0.0
      %970 = vmatpush1.xpose.msra.mxu0 0.0
      %971 = vmatprep.subr.mxu0 0.0
      %972 = vmatpush1.xpose.msra.mxu0 0.0
      %973 = vmatprep.subr.mxu0 0.0
      %974 = vmatpush1.xpose.msra.mxu0 0.0
      %975 = vmatprep.subr.mxu0 0.0
      %976 = vmatpush1.xpose.msra.mxu0 0.0
      %977 = vmatprep.subr.mxu0 0.0
      %978 = vmatpush1.xpose.msra.mxu0 0.0
      %979 = vmatprep.mubr.f32.mxu0 0.0
      %980 = vmatmul.mubr.f32.gmra.mrb[0].mxu0 %v903
      %v981 = vpop.f32.mrb[0].mxu0
      %v982 = vadd.f32 0.0, %v981
      %v983 = vpop.f32.mrb[0].mxu0
      %984 = vmatprep.mubr.f32.mxu0 0.0
      %985 = vmatmul.mubr.f32.gmra.mrb[0].mxu0 %v905
      %v986 = vpop.f32.mrb[0].mxu0
      %v987 = vadd.f32 0.0, %v986
      %v988 = vpop.f32.mrb[0].mxu0
      %989 = vmatprep.mubr.f32.mxu0 0.0
      %990 = vmatmul.mubr.f32.gmra.mrb[0].mxu0 %v907
      %v991 = vpop.f32.mrb[0].mxu0
      %v992 = vadd.f32 0.0, %v991
      %v993 = vpop.f32.mrb[0].mxu0
      %994 = vdwg.mxu0
      %v995 = vmul.f32 %v982, 0.35355338
      %v996 = vmul.f32 %v987, 0.35355338
      %v997 = vmul.f32 %v992, 0.35355338
      %v998 = vadd.f32 %v995, %v810
      %v999 = vadd.f32 %v996, %v811
      %v1000 = vadd.f32 %v997, %v812
      %vm1001 = vcmask 162816
      %v1002 = vsel %vm1001, %v998, -inf
      %1003 = vmax.xlane.f32.xlu0 %v1002
      %v1004 = vpop.xlane.xlu0 %1003
      %v1005 = vsel %vm1001, %v999, -inf
      %1006 = vmax.xlane.f32.xlu0 %v1005
      %v1007 = vpop.xlane.xlu0 %1006
      %vm1008 = vcmask 158720
      %v1009 = vsel %vm1008, %v1000, -inf
      %1010 = vmax.xlane.f32.xlu0 %v1009
      %v1011 = vpop.xlane.xlu0 %1010
      %v1012 = vsub.f32 %v998, %v1004
      %v1013 = vsub.f32 %v999, %v1007
      %v1014 = vsub.f32 %v1000, %v1011
      %v1015 = vmul.f32 %v1012, 1.442695
      %v1016 = vpow.pop %v1015
      %v1017 = vmul.f32 %v1013, 1.442695
      %v1018 = vpow.pop %v1017
      %v1019 = vmul.f32 %v1014, 1.442695
      %v1020 = vpow.pop %v1019
      %v1021 = vsel %vm1001, %v1016, 0.0
      %1022 = vadd.xlane.f32.xlu0 %v1021
      %v1023 = vpop.xlane.xlu0 %1022
      %v1024 = vsel %vm1001, %v1018, 0.0
      %1025 = vadd.xlane.f32.xlu0 %v1024
      %v1026 = vpop.xlane.xlu0 %1025
      %v1027 = vsel %vm1008, %v1020, 0.0
      %1028 = vadd.xlane.f32.xlu0 %v1027
      %v1029 = vpop.xlane.xlu0 %1028
      %v1030 = vrcp.pop %v1023
      %v1031 = vrcp.pop %v1026
      %v1032 = vrcp.pop %v1029
      %v1033 = vmul.f32 %v1016, %v1030
      %v1034 = vmul.f32 %v1018, %v1031
      %v1035 = vmul.f32 %v1020, %v1032
      %1036 = vrot.lane.b32.xlu0 %v880, 64
      %v1037 = vpop.permute.xlu0 %1036
      %1038 = vrot.lane.b32.xlu0 %v883, 64
      %v1039 = vpop.permute.xlu0 %1038
      %1040 = vrot.lane.b32.xlu0 %v888, 64
      %v1041 = vpop.permute.xlu0 %1040
      %v1045 = vsel %vm1001, %v1033, 0
      %v1048 = vsel %vm1001, %v1034, 0
      %v1051 = vsel %vm1001, %v1035, 0
      %vm1053 = vcmask 1043456
      %v1054 = vsel %vm1053, %v1041, 0
      %1056 = vmatprep.subr.mxu0 0.0
      %1057 = vmatpush1.msra.mxu0 %v1037
      %1058 = vmatprep.subr.mxu0 0.0
      %1059 = vmatpush1.msra.mxu0 %v1039
      %1060 = vmatprep.subr.mxu0 0.0
      %1061 = vmatpush1.msra.mxu0 %v1054
      %1062 = vmatprep.subr.mxu0 0.0
      %1063 = vmatpush1.msra.mxu0 0.0
      %1064 = vmatprep.subr.mxu0 0.0
      %1065 = vmatpush1.msra.mxu0 0.0
      %1066 = vmatprep.subr.mxu0 0.0
      %1067 = vmatpush1.msra.mxu0 0.0
      %1068 = vmatprep.subr.mxu0 0.0
      %1069 = vmatpush1.msra.mxu0 0.0
      %1070 = vmatprep.subr.mxu0 0.0
      %1071 = vmatpush1.msra.mxu0 0.0
      %1072 = vmatprep.subr.mxu0 0.0
      %1073 = vmatpush1.msra.mxu0 0.0
      %1074 = vmatprep.subr.mxu0 0.0
      %1075 = vmatpush1.msra.mxu0 0.0
      %1076 = vmatprep.subr.mxu0 0.0
      %1077 = vmatpush1.msra.mxu0 0.0
      %1078 = vmatprep.subr.mxu0 0.0
      %1079 = vmatpush1.msra.mxu0 0.0
      %1080 = vmatprep.subr.mxu0 0.0
      %1081 = vmatpush1.msra.mxu0 0.0
      %1082 = vmatprep.subr.mxu0 0.0
      %1083 = vmatpush1.msra.mxu0 0.0
      %1084 = vmatprep.subr.mxu0 0.0
      %1085 = vmatpush1.msra.mxu0 0.0
      %1086 = vmatprep.subr.mxu0 0.0
      %1087 = vmatpush1.msra.mxu0 0.0
      %1088 = vmatprep.subr.mxu0 0.0
      %1089 = vmatpush1.msra.mxu0 0.0
      %1090 = vmatprep.subr.mxu0 0.0
      %1091 = vmatpush1.msra.mxu0 0.0
      %1092 = vmatprep.subr.mxu0 0.0
      %1093 = vmatpush1.msra.mxu0 0.0
      %1094 = vmatprep.subr.mxu0 0.0
      %1095 = vmatpush1.msra.mxu0 0.0
      %1096 = vmatprep.subr.mxu0 0.0
      %1097 = vmatpush1.msra.mxu0 0.0
      %1098 = vmatprep.subr.mxu0 0.0
      %1099 = vmatpush1.msra.mxu0 0.0
      %1100 = vmatprep.subr.mxu0 0.0
      %1101 = vmatpush1.msra.mxu0 0.0
      %1102 = vmatprep.subr.mxu0 0.0
      %1103 = vmatpush1.msra.mxu0 0.0
      %1104 = vmatprep.subr.mxu0 0.0
      %1105 = vmatpush1.msra.mxu0 0.0
      %1106 = vmatprep.subr.mxu0 0.0
      %1107 = vmatpush1.msra.mxu0 0.0
      %1108 = vmatprep.subr.mxu0 0.0
      %1109 = vmatpush1.msra.mxu0 0.0
      %1110 = vmatprep.subr.mxu0 0.0
      %1111 = vmatpush1.msra.mxu0 0.0
      %1112 = vmatprep.subr.mxu0 0.0
      %1113 = vmatpush1.msra.mxu0 0.0
      %1114 = vmatprep.subr.mxu0 0.0
      %1115 = vmatpush1.msra.mxu0 0.0
      %1116 = vmatprep.subr.mxu0 0.0
      %1117 = vmatpush1.msra.mxu0 0.0
      %1118 = vmatprep.subr.mxu0 0.0
      %1119 = vmatpush1.msra.mxu0 0.0
      %1120 = vmatprep.mubr.f32.mxu0 0.0
      %1121 = vmatmul.mubr.f32.gmra.mrb[0].mxu0 %v1045
      %v1122 = vpop.f32.mrb[0].mxu0
      %v1123 = vadd.f32 0.0, %v1122
      %v1124 = vpop.f32.mrb[0].mxu0
      %1125 = vmatprep.mubr.f32.mxu0 0.0
      %1126 = vmatmul.mubr.f32.gmra.mrb[0].mxu0 %v1048
      %v1127 = vpop.f32.mrb[0].mxu0
      %v1128 = vadd.f32 0.0, %v1127
      %v1129 = vpop.f32.mrb[0].mxu0
      %1130 = vmatprep.mubr.f32.mxu0 0.0
      %1131 = vmatmul.mubr.f32.gmra.mrb[0].mxu0 %v1051
      %v1132 = vpop.f32.mrb[0].mxu0
      %v1133 = vadd.f32 0.0, %v1132
      %v1134 = vpop.f32.mrb[0].mxu0
      %1135 = vdwg.mxu0
      %1136 = vrot.lane.b32.xlu0 %v880, 120
      %v1137 = vpop.permute.xlu0 %1136
      %1138 = vrot.lane.b32.xlu0 %v883, 120
      %v1139 = vpop.permute.xlu0 %1138
      %1140 = vrot.lane.b32.xlu0 %v888, 120
      %v1141 = vpop.permute.xlu0 %1140
      %1142 = vrot.lane.b32.xlu0 %v880, 88
      %v1143 = vpop.permute.xlu0 %1142
      %1144 = vrot.lane.b32.xlu0 %v883, 88
      %v1145 = vpop.permute.xlu0 %1144
      %1146 = vrot.lane.b32.xlu0 %v888, 88
      %v1147 = vpop.permute.xlu0 %1146
      %v1148 = vsel %vm902, %v1137, 0
      %v1150 = vsel %vm902, %v1139, 0
      %v1152 = vsel %vm902, %v1141, 0
      %v1154 = vsel %vm902, %v1143, 0
      %v1156 = vsel %vm902, %v1145, 0
      %v1158 = vsel %vm902, %v1147, 0
      %1160 = vmatprep.subr.mxu0 0.0
      %1161 = vmatpush1.xpose.msra.mxu0 %v1154
      %1162 = vmatprep.subr.mxu0 0.0
      %1163 = vmatpush1.xpose.msra.mxu0 %v1156
      %1164 = vmatprep.subr.mxu0 0.0
      %1165 = vmatpush1.xpose.msra.mxu0 %v1158
      %1166 = vmatprep.subr.mxu0 0.0
      %1167 = vmatpush1.xpose.msra.mxu0 0.0
      %1168 = vmatprep.subr.mxu0 0.0
      %1169 = vmatpush1.xpose.msra.mxu0 0.0
      %1170 = vmatprep.subr.mxu0 0.0
      %1171 = vmatpush1.xpose.msra.mxu0 0.0
      %1172 = vmatprep.subr.mxu0 0.0
      %1173 = vmatpush1.xpose.msra.mxu0 0.0
      %1174 = vmatprep.subr.mxu0 0.0
      %1175 = vmatpush1.xpose.msra.mxu0 0.0
      %1176 = vmatprep.subr.mxu0 0.0
      %1177 = vmatpush1.xpose.msra.mxu0 0.0
      %1178 = vmatprep.subr.mxu0 0.0
      %1179 = vmatpush1.xpose.msra.mxu0 0.0
      %1180 = vmatprep.subr.mxu0 0.0
      %1181 = vmatpush1.xpose.msra.mxu0 0.0
      %1182 = vmatprep.subr.mxu0 0.0
      %1183 = vmatpush1.xpose.msra.mxu0 0.0
      %1184 = vmatprep.subr.mxu0 0.0
      %1185 = vmatpush1.xpose.msra.mxu0 0.0
      %1186 = vmatprep.subr.mxu0 0.0
      %1187 = vmatpush1.xpose.msra.mxu0 0.0
      %1188 = vmatprep.subr.mxu0 0.0
      %1189 = vmatpush1.xpose.msra.mxu0 0.0
      %1190 = vmatprep.subr.mxu0 0.0
      %1191 = vmatpush1.xpose.msra.mxu0 0.0
      %1192 = vmatprep.subr.mxu0 0.0
      %1193 = vmatpush1.xpose.msra.mxu0 0.0
      %1194 = vmatprep.subr.mxu0 0.0
      %1195 = vmatpush1.xpose.msra.mxu0 0.0
      %1196 = vmatprep.subr.mxu0 0.0
      %1197 = vmatpush1.xpose.msra.mxu0 0.0
      %1198 = vmatprep.subr.mxu0 0.0
      %1199 = vmatpush1.xpose.msra.mxu0 0.0
      %1200 = vmatprep.subr.mxu0 0.0
      %1201 = vmatpush1.xpose.msra.mxu0 0.0
      %1202 = vmatprep.subr.mxu0 0.0
      %1203 = vmatpush1.xpose.msra.mxu0 0.0
      %1204 = vmatprep.subr.mxu0 0.0
      %1205 = vmatpush1.xpose.msra.mxu0 0.0
      %1206 = vmatprep.subr.mxu0 0.0
      %1207 = vmatpush1.xpose.msra.mxu0 0.0
      %1208 = vmatprep.subr.mxu0 0.0
      %1209 = vmatpush1.xpose.msra.mxu0 0.0
      %1210 = vmatprep.subr.mxu0 0.0
      %1211 = vmatpush1.xpose.msra.mxu0 0.0
      %1212 = vmatprep.subr.mxu0 0.0
      %1213 = vmatpush1.xpose.msra.mxu0 0.0
      %1214 = vmatprep.subr.mxu0 0.0
      %1215 = vmatpush1.xpose.msra.mxu0 0.0
      %1216 = vmatprep.subr.mxu0 0.0
      %1217 = vmatpush1.xpose.msra.mxu0 0.0
      %1218 = vmatprep.subr.mxu0 0.0
      %1219 = vmatpush1.xpose.msra.mxu0 0.0
      %1220 = vmatprep.subr.mxu0 0.0
      %1221 = vmatpush1.xpose.msra.mxu0 0.0
      %1222 = vmatprep.subr.mxu0 0.0
      %1223 = vmatpush1.xpose.msra.mxu0 0.0
      %1224 = vmatprep.mubr.f32.mxu0 0.0
      %1225 = vmatmul.mubr.f32.gmra.mrb[0].mxu0 %v1148
      %v1226 = vpop.f32.mrb[0].mxu0
      %v1227 = vadd.f32 0.0, %v1226
      %v1228 = vpop.f32.mrb[0].mxu0
      %1229 = vmatprep.mubr.f32.mxu0 0.0
      %1230 = vmatmul.mubr.f32.gmra.mrb[0].mxu0 %v1150
      %v1231 = vpop.f32.mrb[0].mxu0
      %v1232 = vadd.f32 0.0, %v1231
      %v1233 = vpop.f32.mrb[0].mxu0
      %1234 = vmatprep.mubr.f32.mxu0 0.0
      %1235 = vmatmul.mubr.f32.gmra.mrb[0].mxu0 %v1152
      %v1236 = vpop.f32.mrb[0].mxu0
      %v1237 = vadd.f32 0.0, %v1236
      %v1238 = vpop.f32.mrb[0].mxu0
      %1239 = vdwg.mxu0
      %v1240 = vmul.f32 %v1227, 0.35355338
      %v1241 = vmul.f32 %v1232, 0.35355338
      %v1242 = vmul.f32 %v1237, 0.35355338
      %v1243 = vadd.f32 %v1240, %v810
      %v1244 = vadd.f32 %v1241, %v811
      %v1245 = vadd.f32 %v1242, %v812
      %v1246 = vsel %vm1001, %v1243, -inf
      %1247 = vmax.xlane.f32.xlu0 %v1246
      %v1248 = vpop.xlane.xlu0 %1247
      %v1249 = vsel %vm1001, %v1244, -inf
      %1250 = vmax.xlane.f32.xlu0 %v1249
      %v1251 = vpop.xlane.xlu0 %1250
      %v1252 = vsel %vm1008, %v1245, -inf
      %1253 = vmax.xlane.f32.xlu0 %v1252
      %v1254 = vpop.xlane.xlu0 %1253
      %v1255 = vsub.f32 %v1243, %v1248
      %v1256 = vsub.f32 %v1244, %v1251
      %v1257 = vsub.f32 %v1245, %v1254
      %v1258 = vmul.f32 %v1255, 1.442695
      %v1259 = vpow.pop %v1258
      %v1260 = vmul.f32 %v1256, 1.442695
      %v1261 = vpow.pop %v1260
      %v1262 = vmul.f32 %v1257, 1.442695
      %v1263 = vpow.pop %v1262
      %v1264 = vsel %vm1001, %v1259, 0.0
      %1265 = vadd.xlane.f32.xlu0 %v1264
      %v1266 = vpop.xlane.xlu0 %1265
      %v1267 = vsel %vm1001, %v1261, 0.0
      %1268 = vadd.xlane.f32.xlu0 %v1267
      %v1269 = vpop.xlane.xlu0 %1268
      %v1270 = vsel %vm1008, %v1263, 0.0
      %1271 = vadd.xlane.f32.xlu0 %v1270
      %v1272 = vpop.xlane.xlu0 %1271
      %v1273 = vrcp.pop %v1266
      %v1274 = vrcp.pop %v1269
      %v1275 = vrcp.pop %v1272
      %v1276 = vmul.f32 %v1259, %v1273
      %v1277 = vmul.f32 %v1261, %v1274
      %v1278 = vmul.f32 %v1263, %v1275
      %1279 = vrot.lane.b32.xlu0 %v880, 56
      %v1280 = vpop.permute.xlu0 %1279
      %1281 = vrot.lane.b32.xlu0 %v883, 56
      %v1282 = vpop.permute.xlu0 %1281
      %1283 = vrot.lane.b32.xlu0 %v888, 56
      %v1284 = vpop.permute.xlu0 %1283
      %v1288 = vsel %vm1001, %v1276, 0
      %v1291 = vsel %vm1001, %v1277, 0
      %v1294 = vsel %vm1001, %v1278, 0
      %v1296 = vsel %vm1053, %v1284, 0
      %1298 = vmatprep.subr.mxu0 0.0
      %1299 = vmatpush1.msra.mxu0 %v1280
      %1300 = vmatprep.subr.mxu0 0.0
      %1301 = vmatpush1.msra.mxu0 %v1282
      %1302 = vmatprep.subr.mxu0 0.0
      %1303 = vmatpush1.msra.mxu0 %v1296
      %1304 = vmatprep.subr.mxu0 0.0
      %1305 = vmatpush1.msra.mxu0 0.0
      %1306 = vmatprep.subr.mxu0 0.0
      %1307 = vmatpush1.msra.mxu0 0.0
      %1308 = vmatprep.subr.mxu0 0.0
      %1309 = vmatpush1.msra.mxu0 0.0
      %1310 = vmatprep.subr.mxu0 0.0
      %1311 = vmatpush1.msra.mxu0 0.0
      %1312 = vmatprep.subr.mxu0 0.0
      %1313 = vmatpush1.msra.mxu0 0.0
      %1314 = vmatprep.subr.mxu0 0.0
      %1315 = vmatpush1.msra.mxu0 0.0
      %1316 = vmatprep.subr.mxu0 0.0
      %1317 = vmatpush1.msra.mxu0 0.0
      %1318 = vmatprep.subr.mxu0 0.0
      %1319 = vmatpush1.msra.mxu0 0.0
      %1320 = vmatprep.subr.mxu0 0.0
      %1321 = vmatpush1.msra.mxu0 0.0
      %1322 = vmatprep.subr.mxu0 0.0
      %1323 = vmatpush1.msra.mxu0 0.0
      %1324 = vmatprep.subr.mxu0 0.0
      %1325 = vmatpush1.msra.mxu0 0.0
      %1326 = vmatprep.subr.mxu0 0.0
      %1327 = vmatpush1.msra.mxu0 0.0
      %1328 = vmatprep.subr.mxu0 0.0
      %1329 = vmatpush1.msra.mxu0 0.0
      %1330 = vmatprep.subr.mxu0 0.0
      %1331 = vmatpush1.msra.mxu0 0.0
      %1332 = vmatprep.subr.mxu0 0.0
      %1333 = vmatpush1.msra.mxu0 0.0
      %1334 = vmatprep.subr.mxu0 0.0
      %1335 = vmatpush1.msra.mxu0 0.0
      %1336 = vmatprep.subr.mxu0 0.0
      %1337 = vmatpush1.msra.mxu0 0.0
      %1338 = vmatprep.subr.mxu0 0.0
      %1339 = vmatpush1.msra.mxu0 0.0
      %1340 = vmatprep.subr.mxu0 0.0
      %1341 = vmatpush1.msra.mxu0 0.0
      %1342 = vmatprep.subr.mxu0 0.0
      %1343 = vmatpush1.msra.mxu0 0.0
      %1344 = vmatprep.subr.mxu0 0.0
      %1345 = vmatpush1.msra.mxu0 0.0
      %1346 = vmatprep.subr.mxu0 0.0
      %1347 = vmatpush1.msra.mxu0 0.0
      %1348 = vmatprep.subr.mxu0 0.0
      %1349 = vmatpush1.msra.mxu0 0.0
      %1350 = vmatprep.subr.mxu0 0.0
      %1351 = vmatpush1.msra.mxu0 0.0
      %1352 = vmatprep.subr.mxu0 0.0
      %1353 = vmatpush1.msra.mxu0 0.0
      %1354 = vmatprep.subr.mxu0 0.0
      %1355 = vmatpush1.msra.mxu0 0.0
      %1356 = vmatprep.subr.mxu0 0.0
      %1357 = vmatpush1.msra.mxu0 0.0
      %1358 = vmatprep.subr.mxu0 0.0
      %1359 = vmatpush1.msra.mxu0 0.0
      %1360 = vmatprep.subr.mxu0 0.0
      %1361 = vmatpush1.msra.mxu0 0.0
      %1362 = vmatprep.mubr.f32.mxu0 0.0
      %1363 = vmatmul.mubr.f32.gmra.mrb[0].mxu0 %v1288
      %v1364 = vpop.f32.mrb[0].mxu0
      %v1365 = vadd.f32 0.0, %v1364
      %v1366 = vpop.f32.mrb[0].mxu0
      %1367 = vmatprep.mubr.f32.mxu0 0.0
      %1368 = vmatmul.mubr.f32.gmra.mrb[0].mxu0 %v1291
      %v1369 = vpop.f32.mrb[0].mxu0
      %v1370 = vadd.f32 0.0, %v1369
      %v1371 = vpop.f32.mrb[0].mxu0
      %1372 = vmatprep.mubr.f32.mxu0 0.0
      %1373 = vmatmul.mubr.f32.gmra.mrb[0].mxu0 %v1294
      %v1374 = vpop.f32.mrb[0].mxu0
      %v1375 = vadd.f32 0.0, %v1374
      %v1376 = vpop.f32.mrb[0].mxu0
      %1377 = vdwg.mxu0
      %1378 = vrot.lane.b32.xlu0 %v880, 112
      %v1379 = vpop.permute.xlu0 %1378
      %1380 = vrot.lane.b32.xlu0 %v883, 112
      %v1381 = vpop.permute.xlu0 %1380
      %1382 = vrot.lane.b32.xlu0 %v888, 112
      %v1383 = vpop.permute.xlu0 %1382
      %1384 = vrot.lane.b32.xlu0 %v880, 80
      %v1385 = vpop.permute.xlu0 %1384
      %1386 = vrot.lane.b32.xlu0 %v883, 80
      %v1387 = vpop.permute.xlu0 %1386
      %1388 = vrot.lane.b32.xlu0 %v888, 80
      %v1389 = vpop.permute.xlu0 %1388
      %v1390 = vsel %vm902, %v1379, 0
      %v1392 = vsel %vm902, %v1381, 0
      %v1394 = vsel %vm902, %v1383, 0
      %v1396 = vsel %vm902, %v1385, 0
      %v1398 = vsel %vm902, %v1387, 0
      %v1400 = vsel %vm902, %v1389, 0
      %1402 = vmatprep.subr.mxu0 0.0
      %1403 = vmatpush1.xpose.msra.mxu0 %v1396
      %1404 = vmatprep.subr.mxu0 0.0
      %1405 = vmatpush1.xpose.msra.mxu0 %v1398
      %1406 = vmatprep.subr.mxu0 0.0
      %1407 = vmatpush1.xpose.msra.mxu0 %v1400
      %1408 = vmatprep.subr.mxu0 0.0
      %1409 = vmatpush1.xpose.msra.mxu0 0.0
      %1410 = vmatprep.subr.mxu0 0.0
      %1411 = vmatpush1.xpose.msra.mxu0 0.0
      %1412 = vmatprep.subr.mxu0 0.0
      %1413 = vmatpush1.xpose.msra.mxu0 0.0
      %1414 = vmatprep.subr.mxu0 0.0
      %1415 = vmatpush1.xpose.msra.mxu0 0.0
      %1416 = vmatprep.subr.mxu0 0.0
      %1417 = vmatpush1.xpose.msra.mxu0 0.0
      %1418 = vmatprep.subr.mxu0 0.0
      %1419 = vmatpush1.xpose.msra.mxu0 0.0
      %1420 = vmatprep.subr.mxu0 0.0
      %1421 = vmatpush1.xpose.msra.mxu0 0.0
      %1422 = vmatprep.subr.mxu0 0.0
      %1423 = vmatpush1.xpose.msra.mxu0 0.0
      %1424 = vmatprep.subr.mxu0 0.0
      %1425 = vmatpush1.xpose.msra.mxu0 0.0
      %1426 = vmatprep.subr.mxu0 0.0
      %1427 = vmatpush1.xpose.msra.mxu0 0.0
      %1428 = vmatprep.subr.mxu0 0.0
      %1429 = vmatpush1.xpose.msra.mxu0 0.0
      %1430 = vmatprep.subr.mxu0 0.0
      %1431 = vmatpush1.xpose.msra.mxu0 0.0
      %1432 = vmatprep.subr.mxu0 0.0
      %1433 = vmatpush1.xpose.msra.mxu0 0.0
      %1434 = vmatprep.subr.mxu0 0.0
      %1435 = vmatpush1.xpose.msra.mxu0 0.0
      %1436 = vmatprep.subr.mxu0 0.0
      %1437 = vmatpush1.xpose.msra.mxu0 0.0
      %1438 = vmatprep.subr.mxu0 0.0
      %1439 = vmatpush1.xpose.msra.mxu0 0.0
      %1440 = vmatprep.subr.mxu0 0.0
      %1441 = vmatpush1.xpose.msra.mxu0 0.0
      %1442 = vmatprep.subr.mxu0 0.0
      %1443 = vmatpush1.xpose.msra.mxu0 0.0
      %1444 = vmatprep.subr.mxu0 0.0
      %1445 = vmatpush1.xpose.msra.mxu0 0.0
      %1446 = vmatprep.subr.mxu0 0.0
      %1447 = vmatpush1.xpose.msra.mxu0 0.0
      %1448 = vmatprep.subr.mxu0 0.0
      %1449 = vmatpush1.xpose.msra.mxu0 0.0
      %1450 = vmatprep.subr.mxu0 0.0
      %1451 = vmatpush1.xpose.msra.mxu0 0.0
      %1452 = vmatprep.subr.mxu0 0.0
      %1453 = vmatpush1.xpose.msra.mxu0 0.0
      %1454 = vmatprep.subr.mxu0 0.0
      %1455 = vmatpush1.xpose.msra.mxu0 0.0
      %1456 = vmatprep.subr.mxu0 0.0
      %1457 = vmatpush1.xpose.msra.mxu0 0.0
      %1458 = vmatprep.subr.mxu0 0.0
      %1459 = vmatpush1.xpose.msra.mxu0 0.0
      %1460 = vmatprep.subr.mxu0 0.0
      %1461 = vmatpush1.xpose.msra.mxu0 0.0
      %1462 = vmatprep.subr.mxu0 0.0
      %1463 = vmatpush1.xpose.msra.mxu0 0.0
      %1464 = vmatprep.subr.mxu0 0.0
      %1465 = vmatpush1.xpose.msra.mxu0 0.0
      %1466 = vmatprep.mubr.f32.mxu0 0.0
      %1467 = vmatmul.mubr.f32.gmra.mrb[0].mxu0 %v1390
      %v1468 = vpop.f32.mrb[0].mxu0
      %v1469 = vadd.f32 0.0, %v1468
      %v1470 = vpop.f32.mrb[0].mxu0
      %1471 = vmatprep.mubr.f32.mxu0 0.0
      %1472 = vmatmul.mubr.f32.gmra.mrb[0].mxu0 %v1392
      %v1473 = vpop.f32.mrb[0].mxu0
      %v1474 = vadd.f32 0.0, %v1473
      %v1475 = vpop.f32.mrb[0].mxu0
      %1476 = vmatprep.mubr.f32.mxu0 0.0
      %1477 = vmatmul.mubr.f32.gmra.mrb[0].mxu0 %v1394
      %v1478 = vpop.f32.mrb[0].mxu0
      %v1479 = vadd.f32 0.0, %v1478
      %v1480 = vpop.f32.mrb[0].mxu0
      %1481 = vdwg.mxu0
      %v1482 = vmul.f32 %v1469, 0.35355338
      %v1483 = vmul.f32 %v1474, 0.35355338
      %v1484 = vmul.f32 %v1479, 0.35355338
      %v1485 = vadd.f32 %v1482, %v810
      %v1486 = vadd.f32 %v1483, %v811
      %v1487 = vadd.f32 %v1484, %v812
      %v1488 = vsel %vm1001, %v1485, -inf
      %1489 = vmax.xlane.f32.xlu0 %v1488
      %v1490 = vpop.xlane.xlu0 %1489
      %v1491 = vsel %vm1001, %v1486, -inf
      %1492 = vmax.xlane.f32.xlu0 %v1491
      %v1493 = vpop.xlane.xlu0 %1492
      %v1494 = vsel %vm1008, %v1487, -inf
      %1495 = vmax.xlane.f32.xlu0 %v1494
      %v1496 = vpop.xlane.xlu0 %1495
      %v1497 = vsub.f32 %v1485, %v1490
      %v1498 = vsub.f32 %v1486, %v1493
      %v1499 = vsub.f32 %v1487, %v1496
      %v1500 = vmul.f32 %v1497, 1.442695
      %v1501 = vpow.pop %v1500
      %v1502 = vmul.f32 %v1498, 1.442695
      %v1503 = vpow.pop %v1502
      %v1504 = vmul.f32 %v1499, 1.442695
      %v1505 = vpow.pop %v1504
      %v1506 = vsel %vm1001, %v1501, 0.0
      %1507 = vadd.xlane.f32.xlu0 %v1506
      %v1508 = vpop.xlane.xlu0 %1507
      %v1509 = vsel %vm1001, %v1503, 0.0
      %1510 = vadd.xlane.f32.xlu0 %v1509
      %v1511 = vpop.xlane.xlu0 %1510
      %v1512 = vsel %vm1008, %v1505, 0.0
      %1513 = vadd.xlane.f32.xlu0 %v1512
      %v1514 = vpop.xlane.xlu0 %1513
      %v1515 = vrcp.pop %v1508
      %v1516 = vrcp.pop %v1511
      %v1517 = vrcp.pop %v1514
      %v1518 = vmul.f32 %v1501, %v1515
      %v1519 = vmul.f32 %v1503, %v1516
      %v1520 = vmul.f32 %v1505, %v1517
      %1521 = vrot.lane.b32.xlu0 %v880, 48
      %v1522 = vpop.permute.xlu0 %1521
      %1523 = vrot.lane.b32.xlu0 %v883, 48
      %v1524 = vpop.permute.xlu0 %1523
      %1525 = vrot.lane.b32.xlu0 %v888, 48
      %v1526 = vpop.permute.xlu0 %1525
      %v1530 = vsel %vm1001, %v1518, 0
      %v1533 = vsel %vm1001, %v1519, 0
      %v1536 = vsel %vm1001, %v1520, 0
      %v1538 = vsel %vm1053, %v1526, 0
      %1540 = vmatprep.subr.mxu0 0.0
      %1541 = vmatpush1.msra.mxu0 %v1522
      %1542 = vmatprep.subr.mxu0 0.0
      %1543 = vmatpush1.msra.mxu0 %v1524
      %1544 = vmatprep.subr.mxu0 0.0
      %1545 = vmatpush1.msra.mxu0 %v1538
      %1546 = vmatprep.subr.mxu0 0.0
      %1547 = vmatpush1.msra.mxu0 0.0
      %1548 = vmatprep.subr.mxu0 0.0
      %1549 = vmatpush1.msra.mxu0 0.0
      %1550 = vmatprep.subr.mxu0 0.0
      %1551 = vmatpush1.msra.mxu0 0.0
      %1552 = vmatprep.subr.mxu0 0.0
      %1553 = vmatpush1.msra.mxu0 0.0
      %1554 = vmatprep.subr.mxu0 0.0
      %1555 = vmatpush1.msra.mxu0 0.0
      %1556 = vmatprep.subr.mxu0 0.0
      %1557 = vmatpush1.msra.mxu0 0.0
      %1558 = vmatprep.subr.mxu0 0.0
      %1559 = vmatpush1.msra.mxu0 0.0
      %1560 = vmatprep.subr.mxu0 0.0
      %1561 = vmatpush1.msra.mxu0 0.0
      %1562 = vmatprep.subr.mxu0 0.0
      %1563 = vmatpush1.msra.mxu0 0.0
      %1564 = vmatprep.subr.mxu0 0.0
      %1565 = vmatpush1.msra.mxu0 0.0
      %1566 = vmatprep.subr.mxu0 0.0
      %1567 = vmatpush1.msra.mxu0 0.0
      %1568 = vmatprep.subr.mxu0 0.0
      %1569 = vmatpush1.msra.mxu0 0.0
      %1570 = vmatprep.subr.mxu0 0.0
      %1571 = vmatpush1.msra.mxu0 0.0
      %1572 = vmatprep.subr.mxu0 0.0
      %1573 = vmatpush1.msra.mxu0 0.0
      %1574 = vmatprep.subr.mxu0 0.0
      %1575 = vmatpush1.msra.mxu0 0.0
      %1576 = vmatprep.subr.mxu0 0.0
      %1577 = vmatpush1.msra.mxu0 0.0
      %1578 = vmatprep.subr.mxu0 0.0
      %1579 = vmatpush1.msra.mxu0 0.0
      %1580 = vmatprep.subr.mxu0 0.0
      %1581 = vmatpush1.msra.mxu0 0.0
      %1582 = vmatprep.subr.mxu0 0.0
      %1583 = vmatpush1.msra.mxu0 0.0
      %1584 = vmatprep.subr.mxu0 0.0
      %1585 = vmatpush1.msra.mxu0 0.0
      %1586 = vmatprep.subr.mxu0 0.0
      %1587 = vmatpush1.msra.mxu0 0.0
      %1588 = vmatprep.subr.mxu0 0.0
      %1589 = vmatpush1.msra.mxu0 0.0
      %1590 = vmatprep.subr.mxu0 0.0
      %1591 = vmatpush1.msra.mxu0 0.0
      %1592 = vmatprep.subr.mxu0 0.0
      %1593 = vmatpush1.msra.mxu0 0.0
      %1594 = vmatprep.subr.mxu0 0.0
      %1595 = vmatpush1.msra.mxu0 0.0
      %1596 = vmatprep.subr.mxu0 0.0
      %1597 = vmatpush1.msra.mxu0 0.0
      %1598 = vmatprep.subr.mxu0 0.0
      %1599 = vmatpush1.msra.mxu0 0.0
      %1600 = vmatprep.subr.mxu0 0.0
      %1601 = vmatpush1.msra.mxu0 0.0
      %1602 = vmatprep.subr.mxu0 0.0
      %1603 = vmatpush1.msra.mxu0 0.0
      %1604 = vmatprep.mubr.f32.mxu0 0.0
      %1605 = vmatmul.mubr.f32.gmra.mrb[0].mxu0 %v1530
      %v1606 = vpop.f32.mrb[0].mxu0
      %v1607 = vadd.f32 0.0, %v1606
      %v1608 = vpop.f32.mrb[0].mxu0
      %1609 = vmatprep.mubr.f32.mxu0 0.0
      %1610 = vmatmul.mubr.f32.gmra.mrb[0].mxu0 %v1533
      %v1611 = vpop.f32.mrb[0].mxu0
      %v1612 = vadd.f32 0.0, %v1611
      %v1613 = vpop.f32.mrb[0].mxu0
      %1614 = vmatprep.mubr.f32.mxu0 0.0
      %1615 = vmatmul.mubr.f32.gmra.mrb[0].mxu0 %v1536
      %v1616 = vpop.f32.mrb[0].mxu0
      %v1617 = vadd.f32 0.0, %v1616
      %v1618 = vpop.f32.mrb[0].mxu0
      %1619 = vdwg.mxu0
      %1620 = vrot.lane.b32.xlu0 %v880, 104
      %v1621 = vpop.permute.xlu0 %1620
      %1622 = vrot.lane.b32.xlu0 %v883, 104
      %v1623 = vpop.permute.xlu0 %1622
      %1624 = vrot.lane.b32.xlu0 %v888, 104
      %v1625 = vpop.permute.xlu0 %1624
      %1626 = vrot.lane.b32.xlu0 %v880, 72
      %v1627 = vpop.permute.xlu0 %1626
      %1628 = vrot.lane.b32.xlu0 %v883, 72
      %v1629 = vpop.permute.xlu0 %1628
      %1630 = vrot.lane.b32.xlu0 %v888, 72
      %v1631 = vpop.permute.xlu0 %1630
      %v1632 = vsel %vm902, %v1621, 0
      %v1634 = vsel %vm902, %v1623, 0
      %v1636 = vsel %vm902, %v1625, 0
      %v1638 = vsel %vm902, %v1627, 0
      %v1640 = vsel %vm902, %v1629, 0
      %v1642 = vsel %vm902, %v1631, 0
      %1644 = vmatprep.subr.mxu0 0.0
      %1645 = vmatpush1.xpose.msra.mxu0 %v1638
      %1646 = vmatprep.subr.mxu0 0.0
      %1647 = vmatpush1.xpose.msra.mxu0 %v1640
      %1648 = vmatprep.subr.mxu0 0.0
      %1649 = vmatpush1.xpose.msra.mxu0 %v1642
      %1650 = vmatprep.subr.mxu0 0.0
      %1651 = vmatpush1.xpose.msra.mxu0 0.0
      %1652 = vmatprep.subr.mxu0 0.0
      %1653 = vmatpush1.xpose.msra.mxu0 0.0
      %1654 = vmatprep.subr.mxu0 0.0
      %1655 = vmatpush1.xpose.msra.mxu0 0.0
      %1656 = vmatprep.subr.mxu0 0.0
      %1657 = vmatpush1.xpose.msra.mxu0 0.0
      %1658 = vmatprep.subr.mxu0 0.0
      %1659 = vmatpush1.xpose.msra.mxu0 0.0
      %1660 = vmatprep.subr.mxu0 0.0
      %1661 = vmatpush1.xpose.msra.mxu0 0.0
      %1662 = vmatprep.subr.mxu0 0.0
      %1663 = vmatpush1.xpose.msra.mxu0 0.0
      %1664 = vmatprep.subr.mxu0 0.0
      %1665 = vmatpush1.xpose.msra.mxu0 0.0
      %1666 = vmatprep.subr.mxu0 0.0
      %1667 = vmatpush1.xpose.msra.mxu0 0.0
      %1668 = vmatprep.subr.mxu0 0.0
      %1669 = vmatpush1.xpose.msra.mxu0 0.0
      %1670 = vmatprep.subr.mxu0 0.0
      %1671 = vmatpush1.xpose.msra.mxu0 0.0
      %1672 = vmatprep.subr.mxu0 0.0
      %1673 = vmatpush1.xpose.msra.mxu0 0.0
      %1674 = vmatprep.subr.mxu0 0.0
      %1675 = vmatpush1.xpose.msra.mxu0 0.0
      %1676 = vmatprep.subr.mxu0 0.0
      %1677 = vmatpush1.xpose.msra.mxu0 0.0
      %1678 = vmatprep.subr.mxu0 0.0
      %1679 = vmatpush1.xpose.msra.mxu0 0.0
      %1680 = vmatprep.subr.mxu0 0.0
      %1681 = vmatpush1.xpose.msra.mxu0 0.0
      %1682 = vmatprep.subr.mxu0 0.0
      %1683 = vmatpush1.xpose.msra.mxu0 0.0
      %1684 = vmatprep.subr.mxu0 0.0
      %1685 = vmatpush1.xpose.msra.mxu0 0.0
      %1686 = vmatprep.subr.mxu0 0.0
      %1687 = vmatpush1.xpose.msra.mxu0 0.0
      %1688 = vmatprep.subr.mxu0 0.0
      %1689 = vmatpush1.xpose.msra.mxu0 0.0
      %1690 = vmatprep.subr.mxu0 0.0
      %1691 = vmatpush1.xpose.msra.mxu0 0.0
      %1692 = vmatprep.subr.mxu0 0.0
      %1693 = vmatpush1.xpose.msra.mxu0 0.0
      %1694 = vmatprep.subr.mxu0 0.0
      %1695 = vmatpush1.xpose.msra.mxu0 0.0
      %1696 = vmatprep.subr.mxu0 0.0
      %1697 = vmatpush1.xpose.msra.mxu0 0.0
      %1698 = vmatprep.subr.mxu0 0.0
      %1699 = vmatpush1.xpose.msra.mxu0 0.0
      %1700 = vmatprep.subr.mxu0 0.0
      %1701 = vmatpush1.xpose.msra.mxu0 0.0
      %1702 = vmatprep.subr.mxu0 0.0
      %1703 = vmatpush1.xpose.msra.mxu0 0.0
      %1704 = vmatprep.subr.mxu0 0.0
      %1705 = vmatpush1.xpose.msra.mxu0 0.0
      %1706 = vmatprep.subr.mxu0 0.0
      %1707 = vmatpush1.xpose.msra.mxu0 0.0
      %1708 = vmatprep.mubr.f32.mxu0 0.0
      %1709 = vmatmul.mubr.f32.gmra.mrb[0].mxu0 %v1632
      %v1710 = vpop.f32.mrb[0].mxu0
      %v1711 = vadd.f32 0.0, %v1710
      %v1712 = vpop.f32.mrb[0].mxu0
      %1713 = vmatprep.mubr.f32.mxu0 0.0
      %1714 = vmatmul.mubr.f32.gmra.mrb[0].mxu0 %v1634
      %v1715 = vpop.f32.mrb[0].mxu0
      %v1716 = vadd.f32 0.0, %v1715
      %v1717 = vpop.f32.mrb[0].mxu0
      %1718 = vmatprep.mubr.f32.mxu0 0.0
      %1719 = vmatmul.mubr.f32.gmra.mrb[0].mxu0 %v1636
      %v1720 = vpop.f32.mrb[0].mxu0
      %v1721 = vadd.f32 0.0, %v1720
      %v1722 = vpop.f32.mrb[0].mxu0
      %1723 = vdwg.mxu0
      %v1724 = vmul.f32 %v1711, 0.35355338
      %v1725 = vmul.f32 %v1716, 0.35355338
      %v1726 = vmul.f32 %v1721, 0.35355338
      %v1727 = vadd.f32 %v1724, %v810
      %v1728 = vadd.f32 %v1725, %v811
      %v1729 = vadd.f32 %v1726, %v812
      %v1730 = vsel %vm1001, %v1727, -inf
      %1731 = vmax.xlane.f32.xlu0 %v1730
      %v1732 = vpop.xlane.xlu0 %1731
      %v1733 = vsel %vm1001, %v1728, -inf
      %1734 = vmax.xlane.f32.xlu0 %v1733
      %v1735 = vpop.xlane.xlu0 %1734
      %v1736 = vsel %vm1008, %v1729, -inf
      %1737 = vmax.xlane.f32.xlu0 %v1736
      %v1738 = vpop.xlane.xlu0 %1737
      %v1739 = vsub.f32 %v1727, %v1732
      %v1740 = vsub.f32 %v1728, %v1735
      %v1741 = vsub.f32 %v1729, %v1738
      %v1742 = vmul.f32 %v1739, 1.442695
      %v1743 = vpow.pop %v1742
      %v1744 = vmul.f32 %v1740, 1.442695
      %v1745 = vpow.pop %v1744
      %v1746 = vmul.f32 %v1741, 1.442695
      %v1747 = vpow.pop %v1746
      %v1748 = vsel %vm1001, %v1743, 0.0
      %1749 = vadd.xlane.f32.xlu0 %v1748
      %v1750 = vpop.xlane.xlu0 %1749
      %v1751 = vsel %vm1001, %v1745, 0.0
      %1752 = vadd.xlane.f32.xlu0 %v1751
      %v1753 = vpop.xlane.xlu0 %1752
      %v1754 = vsel %vm1008, %v1747, 0.0
      %1755 = vadd.xlane.f32.xlu0 %v1754
      %v1756 = vpop.xlane.xlu0 %1755
      %v1757 = vrcp.pop %v1750
      %v1758 = vrcp.pop %v1753
      %v1759 = vrcp.pop %v1756
      %v1760 = vmul.f32 %v1743, %v1757
      %v1761 = vmul.f32 %v1745, %v1758
      %v1762 = vmul.f32 %v1747, %v1759
      %1763 = vrot.lane.b32.xlu0 %v880, 40
      %v1764 = vpop.permute.xlu0 %1763
      %1765 = vrot.lane.b32.xlu0 %v883, 40
      %v1766 = vpop.permute.xlu0 %1765
      %1767 = vrot.lane.b32.xlu0 %v888, 40
      %v1768 = vpop.permute.xlu0 %1767
      %v1772 = vsel %vm1001, %v1760, 0
      %v1775 = vsel %vm1001, %v1761, 0
      %v1778 = vsel %vm1001, %v1762, 0
      %v1780 = vsel %vm1053, %v1768, 0
      %1782 = vmatprep.subr.mxu0 0.0
      %1783 = vmatpush1.msra.mxu0 %v1764
      %1784 = vmatprep.subr.mxu0 0.0
      %1785 = vmatpush1.msra.mxu0 %v1766
      %1786 = vmatprep.subr.mxu0 0.0
      %1787 = vmatpush1.msra.mxu0 %v1780
      %1788 = vmatprep.subr.mxu0 0.0
      %1789 = vmatpush1.msra.mxu0 0.0
      %1790 = vmatprep.subr.mxu0 0.0
      %1791 = vmatpush1.msra.mxu0 0.0
      %1792 = vmatprep.subr.mxu0 0.0
      %1793 = vmatpush1.msra.mxu0 0.0
      %1794 = vmatprep.subr.mxu0 0.0
      %1795 = vmatpush1.msra.mxu0 0.0
      %1796 = vmatprep.subr.mxu0 0.0
      %1797 = vmatpush1.msra.mxu0 0.0
      %1798 = vmatprep.subr.mxu0 0.0
      %1799 = vmatpush1.msra.mxu0 0.0
      %1800 = vmatprep.subr.mxu0 0.0
      %1801 = vmatpush1.msra.mxu0 0.0
      %1802 = vmatprep.subr.mxu0 0.0
      %1803 = vmatpush1.msra.mxu0 0.0
      %1804 = vmatprep.subr.mxu0 0.0
      %1805 = vmatpush1.msra.mxu0 0.0
      %1806 = vmatprep.subr.mxu0 0.0
      %1807 = vmatpush1.msra.mxu0 0.0
      %1808 = vmatprep.subr.mxu0 0.0
      %1809 = vmatpush1.msra.mxu0 0.0
      %1810 = vmatprep.subr.mxu0 0.0
      %1811 = vmatpush1.msra.mxu0 0.0
      %1812 = vmatprep.subr.mxu0 0.0
      %1813 = vmatpush1.msra.mxu0 0.0
      %1814 = vmatprep.subr.mxu0 0.0
      %1815 = vmatpush1.msra.mxu0 0.0
      %1816 = vmatprep.subr.mxu0 0.0
      %1817 = vmatpush1.msra.mxu0 0.0
      %1818 = vmatprep.subr.mxu0 0.0
      %1819 = vmatpush1.msra.mxu0 0.0
      %1820 = vmatprep.subr.mxu0 0.0
      %1821 = vmatpush1.msra.mxu0 0.0
      %1822 = vmatprep.subr.mxu0 0.0
      %1823 = vmatpush1.msra.mxu0 0.0
      %1824 = vmatprep.subr.mxu0 0.0
      %1825 = vmatpush1.msra.mxu0 0.0
      %1826 = vmatprep.subr.mxu0 0.0
      %1827 = vmatpush1.msra.mxu0 0.0
      %1828 = vmatprep.subr.mxu0 0.0
      %1829 = vmatpush1.msra.mxu0 0.0
      %1830 = vmatprep.subr.mxu0 0.0
      %1831 = vmatpush1.msra.mxu0 0.0
      %1832 = vmatprep.subr.mxu0 0.0
      %1833 = vmatpush1.msra.mxu0 0.0
      %1834 = vmatprep.subr.mxu0 0.0
      %1835 = vmatpush1.msra.mxu0 0.0
      %1836 = vmatprep.subr.mxu0 0.0
      %1837 = vmatpush1.msra.mxu0 0.0
      %1838 = vmatprep.subr.mxu0 0.0
      %1839 = vmatpush1.msra.mxu0 0.0
      %1840 = vmatprep.subr.mxu0 0.0
      %1841 = vmatpush1.msra.mxu0 0.0
      %1842 = vmatprep.subr.mxu0 0.0
      %1843 = vmatpush1.msra.mxu0 0.0
      %1844 = vmatprep.subr.mxu0 0.0
      %1845 = vmatpush1.msra.mxu0 0.0
      %1846 = vmatprep.mubr.f32.mxu0 0.0
      %1847 = vmatmul.mubr.f32.gmra.mrb[0].mxu0 %v1772
      %v1848 = vpop.f32.mrb[0].mxu0
      %v1849 = vadd.f32 0.0, %v1848
      %v1850 = vpop.f32.mrb[0].mxu0
      %1851 = vmatprep.mubr.f32.mxu0 0.0
      %1852 = vmatmul.mubr.f32.gmra.mrb[0].mxu0 %v1775
      %v1853 = vpop.f32.mrb[0].mxu0
      %v1854 = vadd.f32 0.0, %v1853
      %v1855 = vpop.f32.mrb[0].mxu0
      %1856 = vmatprep.mubr.f32.mxu0 0.0
      %1857 = vmatmul.mubr.f32.gmra.mrb[0].mxu0 %v1778
      %v1858 = vpop.f32.mrb[0].mxu0
      %v1859 = vadd.f32 0.0, %v1858
      %v1860 = vpop.f32.mrb[0].mxu0
      %1861 = vdwg.mxu0
      %1865 = vrot.lane.b32.xlu0 %v1365, 8
      %v1866 = vpop.permute.xlu0 %1865
      %1867 = vrot.lane.b32.xlu0 %v1370, 8
      %v1868 = vpop.permute.xlu0 %1867
      %1869 = vrot.lane.b32.xlu0 %v1375, 8
      %v1870 = vpop.permute.xlu0 %1869
      %1877 = vrot.lane.b32.xlu0 %v1607, 16
      %v1878 = vpop.permute.xlu0 %1877
      %1879 = vrot.lane.b32.xlu0 %v1612, 16
      %v1880 = vpop.permute.xlu0 %1879
      %1881 = vrot.lane.b32.xlu0 %v1617, 16
      %v1882 = vpop.permute.xlu0 %1881
      %1889 = vrot.lane.b32.xlu0 %v1849, 24
      %v1890 = vpop.permute.xlu0 %1889
      %1891 = vrot.lane.b32.xlu0 %v1854, 24
      %v1892 = vpop.permute.xlu0 %1891
      %1893 = vrot.lane.b32.xlu0 %v1859, 24
      %v1894 = vpop.permute.xlu0 %1893
      %v1898 = vsel %vm902, %v1123, %v1866
      %v1899 = vsel %vm902, %v1128, %v1868
      %v1900 = vsel %vm902, %v1133, %v1870
      %vm1901 = vcmask 130048
      %v1902 = vsel %vm1901, %v1898, %v1878
      %v1903 = vsel %vm1901, %v1899, %v1880
      %v1904 = vsel %vm1901, %v1900, %v1882
      %vm1905 = vcmask 195584
      %v1906 = vsel %vm1905, %v1902, %v1890
      %v1907 = vsel %vm1905, %v1903, %v1892
      %v1908 = vsel %vm1905, %v1904, %v1894
      %v1909 = vpack.c.bf16 %v1907, %v1906
      %v1910 = vpack.c.bf16 %v1908, %v1908
      %v1911 = vld [vmem:[%s8] sm:$0xf]
      %v1912 = vld [vmem:[%s8 + $0x4] sm:$0xf]
      %v1913 = vld [vmem:[%s8 + $0x8] sm:$0xf]
      %v1914 = vld [vmem:[%s8 + $0xc] sm:$0xf]
      %v1915 = vld [vmem:[%s9] sm:$0x1]
      %v1917 = vlaneseq
      %v1918 = vshrl.u32 %v1917, 7
      %v1919 = vsub.s32 0, %v1918
      %v1920 = vrot.slane %v1915, %v1919
      %v1926 = vunpack.c.l.b16 %v1911
      %v1927 = vunpack.c.l.b16 %v1912
      %v1928 = vunpack.c.l.b16 %v1913
      %v1929 = vunpack.c.l.b16 %v1914
      %v1930 = vpack.c.b16 %v1927, %v1926
      %v1931 = vpack.c.b16 %v1929, %v1928
      %v1935 = vsel %vm838, %v1909, 0
      %v1938 = vsel %vm838, %v1910, 0
      %1940 = vmatprep.subr.bf16.mxu0 0
      %1941 = vmatpush1.bf16.msra.mxu0 %v1930
      %1942 = vmatprep.subr.bf16.mxu0 0
      %1943 = vmatpush1.bf16.msra.mxu0 %v1931
      %1944 = vmatprep.subr.bf16.mxu0 0
      %1945 = vmatpush1.bf16.msra.mxu0 0
      %1946 = vmatprep.subr.bf16.mxu0 0
      %1947 = vmatpush1.bf16.msra.mxu0 0
      %1948 = vmatprep.subr.bf16.mxu0 0
      %1949 = vmatpush1.bf16.msra.mxu0 0
      %1950 = vmatprep.subr.bf16.mxu0 0
      %1951 = vmatpush1.bf16.msra.mxu0 0
      %1952 = vmatprep.subr.bf16.mxu0 0
      %1953 = vmatpush1.bf16.msra.mxu0 0
      %1954 = vmatprep.subr.bf16.mxu0 0
      %1955 = vmatpush1.bf16.msra.mxu0 0
      %1956 = vmatprep.subr.bf16.mxu0 0
      %1957 = vmatpush1.bf16.msra.mxu0 0
      %1958 = vmatprep.subr.bf16.mxu0 0
      %1959 = vmatpush1.bf16.msra.mxu0 0
      %1960 = vmatprep.subr.bf16.mxu0 0
      %1961 = vmatpush1.bf16.msra.mxu0 0
      %1962 = vmatprep.subr.bf16.mxu0 0
      %1963 = vmatpush1.bf16.msra.mxu0 0
      %1964 = vmatprep.subr.bf16.mxu0 0
      %1965 = vmatpush1.bf16.msra.mxu0 0
      %1966 = vmatprep.subr.bf16.mxu0 0
      %1967 = vmatpush1.bf16.msra.mxu0 0
      %1968 = vmatprep.subr.bf16.mxu0 0
      %1969 = vmatpush1.bf16.msra.mxu0 0
      %1970 = vmatprep.subr.bf16.mxu0 0
      %1971 = vmatpush1.bf16.msra.mxu0 0
      %1972 = vmatprep.mubr.bf16.mxu0 0
      %1973 = vmatmul.mubr.bf16.gmra.mrb[0].mxu0 %v1935
      %v1974 = vpop.f32.mrb[0].mxu0
      %v1975 = vadd.f32 %v1920, %v1974
      %v1976 = vpop.f32.mrb[0].mxu0
      %v1977 = vpop.f32.mrb[0].mxu0
      %v1978 = vadd.f32 %v1920, %v1977
      %v1979 = vpop.f32.mrb[0].mxu0
      %1980 = vmatprep.mubr.bf16.mxu0 0
      %1981 = vmatmul.mubr.bf16.gmra.mrb[0].mxu0 %v1938
      %v1982 = vpop.f32.mrb[0].mxu0
      %v1983 = vadd.f32 %v1920, %v1982
      %v1984 = vpop.f32.mrb[0].mxu0
      %v1985 = vpop.f32.mrb[0].mxu0
      %v1986 = vpop.f32.mrb[0].mxu0
      %1987 = vdwg.mxu0
      %v1988 = vadd.f32 %v807, %v1975
      %v1989 = vadd.f32 %v808, %v1978
      %v1990 = vadd.f32 %v809, %v1983
      %v1991 = vld [vmem:[%s14] sm:$0x1]
      %v1992 = vld [vmem:[%s15] sm:$0x1]
      %v1993 = vsel %vm838, %v1988, 0.0
      %1994 = vadd.xlane.f32.xlu0 %v1993
      %v1995 = vpop.xlane.xlu0 %1994
      %v1996 = vsel %vm838, %v1989, 0.0
      %1997 = vadd.xlane.f32.xlu0 %v1996
      %v1998 = vpop.xlane.xlu0 %1997
      %vm1999 = vcmask 257024
      %v2000 = vsel %vm1999, %v1990, 0.0
      %2001 = vadd.xlane.f32.xlu0 %v2000
      %v2002 = vpop.xlane.xlu0 %2001
      %v2003 = vrcp.pop 32.0
      %v2004 = vmul.f32 %v1995, %v2003
      %v2005 = vmul.f32 %v1998, %v2003
      %v2006 = vmul.f32 %v2002, %v2003
      %v2007 = vsub.f32 %v1988, %v2004
      %v2008 = vsub.f32 %v1989, %v2005
      %v2009 = vsub.f32 %v1990, %v2006
      %v2010 = vmul.f32 %v2007, %v2007
      %v2011 = vmul.f32 %v2008, %v2008
      %v2012 = vmul.f32 %v2009, %v2009
      %v2013 = vsel %vm838, %v2010, 0.0
      %2014 = vadd.xlane.f32.xlu0 %v2013
      %v2015 = vpop.xlane.xlu0 %2014
      %v2016 = vsel %vm838, %v2011, 0.0
      %2017 = vadd.xlane.f32.xlu0 %v2016
      %v2018 = vpop.xlane.xlu0 %2017
      %v2019 = vsel %vm1999, %v2012, 0.0
      %2020 = vadd.xlane.f32.xlu0 %v2019
      %v2021 = vpop.xlane.xlu0 %2020
      %v2022 = vmul.f32 %v2015, %v2003
      %v2023 = vmul.f32 %v2018, %v2003
      %v2024 = vmul.f32 %v2021, %v2003
      %v2025 = vadd.f32 %v2022, 1e-05
      %v2026 = vadd.f32 %v2023, 1e-05
      %v2027 = vadd.f32 %v2024, 1e-05
      %v2028 = vrsqrt.pop %v2025
      %v2029 = vrsqrt.pop %v2026
      %v2030 = vrsqrt.pop %v2027
      %v2031 = vmul.f32 %v2007, %v2028
      %v2032 = vmul.f32 %v2008, %v2029
      %v2033 = vmul.f32 %v2009, %v2030
      %v2035 = vlaneseq
      %v2036 = vshrl.u32 %v2035, 7
      %v2037 = vsub.s32 0, %v2036
      %v2038 = vrot.slane %v1991, %v2037
      %v2040 = vmul.f32 %v2031, %v2038
      %v2041 = vmul.f32 %v2032, %v2038
      %v2042 = vmul.f32 %v2033, %v2038
      %v2044 = vlaneseq
      %v2045 = vshrl.u32 %v2044, 7
      %v2046 = vsub.s32 0, %v2045
      %v2047 = vrot.slane %v1992, %v2046
      %v2049 = vadd.f32 %v2040, %v2047
      %v2050 = vadd.f32 %v2041, %v2047
      %v2051 = vadd.f32 %v2042, %v2047
      %v2052 = vpack.c.bf16 %v2050, %v2049
      %v2053 = vpack.c.bf16 %v2051, %v2051
      %v2054 = vld [vmem:[%s10] sm:$0xf]
      %v2055 = vld [vmem:[%s10 + $0x4] sm:$0xf]
      %v2056 = vld [vmem:[%s10 + $0x8] sm:$0xf]
      %v2057 = vld [vmem:[%s10 + $0xc] sm:$0xf]
      %v2058 = vld [vmem:[%s11] sm:$0x1]
      %v2060 = vlaneseq
      %v2061 = vshrl.u32 %v2060, 7
      %v2062 = vsub.s32 0, %v2061
      %v2063 = vrot.slane %v2058, %v2062
      %v2069 = vunpack.c.l.b16 %v2054
      %v2070 = vunpack.c.l.b16 %v2055
      %v2071 = vunpack.c.l.b16 %v2056
      %v2072 = vunpack.c.l.b16 %v2057
      %v2073 = vpack.c.b16 %v2070, %v2069
      %v2074 = vpack.c.b16 %v2072, %v2071
      %v2078 = vsel %vm838, %v2052, 0
      %v2081 = vsel %vm838, %v2053, 0
      %2083 = vmatprep.subr.bf16.mxu0 0
      %2084 = vmatpush1.bf16.msra.mxu0 %v2073
      %2085 = vmatprep.subr.bf16.mxu0 0
      %2086 = vmatpush1.bf16.msra.mxu0 %v2074
      %2087 = vmatprep.subr.bf16.mxu0 0
      %2088 = vmatpush1.bf16.msra.mxu0 0
      %2089 = vmatprep.subr.bf16.mxu0 0
      %2090 = vmatpush1.bf16.msra.mxu0 0
      %2091 = vmatprep.subr.bf16.mxu0 0
      %2092 = vmatpush1.bf16.msra.mxu0 0
      %2093 = vmatprep.subr.bf16.mxu0 0
      %2094 = vmatpush1.bf16.msra.mxu0 0
      %2095 = vmatprep.subr.bf16.mxu0 0
      %2096 = vmatpush1.bf16.msra.mxu0 0
      %2097 = vmatprep.subr.bf16.mxu0 0
      %2098 = vmatpush1.bf16.msra.mxu0 0
      %2099 = vmatprep.subr.bf16.mxu0 0
      %2100 = vmatpush1.bf16.msra.mxu0 0
      %2101 = vmatprep.subr.bf16.mxu0 0
      %2102 = vmatpush1.bf16.msra.mxu0 0
      %2103 = vmatprep.subr.bf16.mxu0 0
      %2104 = vmatpush1.bf16.msra.mxu0 0
      %2105 = vmatprep.subr.bf16.mxu0 0
      %2106 = vmatpush1.bf16.msra.mxu0 0
      %2107 = vmatprep.subr.bf16.mxu0 0
      %2108 = vmatpush1.bf16.msra.mxu0 0
      %2109 = vmatprep.subr.bf16.mxu0 0
      %2110 = vmatpush1.bf16.msra.mxu0 0
      %2111 = vmatprep.subr.bf16.mxu0 0
      %2112 = vmatpush1.bf16.msra.mxu0 0
      %2113 = vmatprep.subr.bf16.mxu0 0
      %2114 = vmatpush1.bf16.msra.mxu0 0
      %2115 = vmatprep.mubr.bf16.mxu0 0
      %2116 = vmatmul.mubr.bf16.gmra.mrb[0].mxu0 %v2078
      %v2117 = vpop.f32.mrb[0].mxu0
      %v2118 = vadd.f32 %v2063, %v2117
      %v2119 = vpop.f32.mrb[0].mxu0
      %v2120 = vpop.f32.mrb[0].mxu0
      %v2121 = vadd.f32 %v2063, %v2120
      %v2122 = vpop.f32.mrb[0].mxu0
      %2123 = vmatprep.mubr.bf16.mxu0 0
      %2124 = vmatmul.mubr.bf16.gmra.mrb[0].mxu0 %v2081
      %v2125 = vpop.f32.mrb[0].mxu0
      %v2126 = vadd.f32 %v2063, %v2125
      %v2127 = vpop.f32.mrb[0].mxu0
      %v2128 = vpop.f32.mrb[0].mxu0
      %v2129 = vpop.f32.mrb[0].mxu0
      %2130 = vdwg.mxu0
      %v2131 = vmax.f32 %v2118, 0.0
      %v2132 = vmax.f32 %v2121, 0.0
      %v2133 = vmax.f32 %v2126, 0.0
      %v2134 = vpack.c.bf16 %v2132, %v2131
      %v2135 = vpack.c.bf16 %v2133, %v2133
      %v2136 = vld [vmem:[%s12] sm:$0xf]
      %v2137 = vld [vmem:[%s12 + $0x4] sm:$0xf]
      %v2138 = vld [vmem:[%s12 + $0x8] sm:$0xf]
      %v2139 = vld [vmem:[%s12 + $0xc] sm:$0xf]
      %v2140 = vld [vmem:[%s12 + $0x10] sm:$0xf]
      %v2141 = vld [vmem:[%s12 + $0x14] sm:$0xf]
      %v2142 = vld [vmem:[%s12 + $0x18] sm:$0xf]
      %v2143 = vld [vmem:[%s12 + $0x1c] sm:$0xf]
      %v2144 = vld [vmem:[%s13] sm:$0x1]
      %v2146 = vlaneseq
      %v2147 = vshrl.u32 %v2146, 7
      %v2148 = vsub.s32 0, %v2147
      %v2149 = vrot.slane %v2144, %v2148
      %v2159 = vunpack.c.l.b16 %v2136
      %v2160 = vunpack.c.l.b16 %v2137
      %v2161 = vunpack.c.l.b16 %v2138
      %v2162 = vunpack.c.l.b16 %v2139
      %v2163 = vunpack.c.l.b16 %v2140
      %v2164 = vunpack.c.l.b16 %v2141
      %v2165 = vunpack.c.l.b16 %v2142
      %v2166 = vunpack.c.l.b16 %v2143
      %v2167 = vpack.c.b16 %v2160, %v2159
      %v2168 = vpack.c.b16 %v2162, %v2161
      %v2169 = vpack.c.b16 %v2164, %v2163
      %v2170 = vpack.c.b16 %v2166, %v2165
      %v2176 = vsel %vm749, %v2134, 0
      %v2179 = vsel %vm749, %v2135, 0
      %2181 = vmatprep.subr.bf16.mxu0 0
      %2182 = vmatpush1.bf16.msra.mxu0 %v2167
      %2183 = vmatprep.subr.bf16.mxu0 0
      %2184 = vmatpush1.bf16.msra.mxu0 %v2168
      %2185 = vmatprep.subr.bf16.mxu0 0
      %2186 = vmatpush1.bf16.msra.mxu0 %v2169
      %2187 = vmatprep.subr.bf16.mxu0 0
      %2188 = vmatpush1.bf16.msra.mxu0 %v2170
      %2189 = vmatprep.subr.bf16.mxu0 0
      %2190 = vmatpush1.bf16.msra.mxu0 0
      %2191 = vmatprep.subr.bf16.mxu0 0
      %2192 = vmatpush1.bf16.msra.mxu0 0
      %2193 = vmatprep.subr.bf16.mxu0 0
      %2194 = vmatpush1.bf16.msra.mxu0 0
      %2195 = vmatprep.subr.bf16.mxu0 0
      %2196 = vmatpush1.bf16.msra.mxu0 0
      %2197 = vmatprep.subr.bf16.mxu0 0
      %2198 = vmatpush1.bf16.msra.mxu0 0
      %2199 = vmatprep.subr.bf16.mxu0 0
      %2200 = vmatpush1.bf16.msra.mxu0 0
      %2201 = vmatprep.subr.bf16.mxu0 0
      %2202 = vmatpush1.bf16.msra.mxu0 0
      %2203 = vmatprep.subr.bf16.mxu0 0
      %2204 = vmatpush1.bf16.msra.mxu0 0
      %2205 = vmatprep.subr.bf16.mxu0 0
      %2206 = vmatpush1.bf16.msra.mxu0 0
      %2207 = vmatprep.subr.bf16.mxu0 0
      %2208 = vmatpush1.bf16.msra.mxu0 0
      %2209 = vmatprep.subr.bf16.mxu0 0
      %2210 = vmatpush1.bf16.msra.mxu0 0
      %2211 = vmatprep.subr.bf16.mxu0 0
      %2212 = vmatpush1.bf16.msra.mxu0 0
      %2213 = vmatprep.mubr.bf16.mxu0 0
      %2214 = vmatmul.mubr.bf16.gmra.mrb[0].mxu0 %v2176
      %v2215 = vpop.f32.mrb[0].mxu0
      %v2216 = vadd.f32 %v2149, %v2215
      %v2217 = vpop.f32.mrb[0].mxu0
      %v2218 = vpop.f32.mrb[0].mxu0
      %v2219 = vadd.f32 %v2149, %v2218
      %v2220 = vpop.f32.mrb[0].mxu0
      %2221 = vmatprep.mubr.bf16.mxu0 0
      %2222 = vmatmul.mubr.bf16.gmra.mrb[0].mxu0 %v2179
      %v2223 = vpop.f32.mrb[0].mxu0
      %v2224 = vadd.f32 %v2149, %v2223
      %v2225 = vpop.f32.mrb[0].mxu0
      %v2226 = vpop.f32.mrb[0].mxu0
      %v2227 = vpop.f32.mrb[0].mxu0
      %2228 = vdwg.mxu0
      %v2229 = vadd.f32 %v2049, %v2216
      %v2230 = vadd.f32 %v2050, %v2219
      %v2231 = vadd.f32 %v2051, %v2224
      %v2232 = vld [vmem:[%s16] sm:$0x1]
      %v2233 = vld [vmem:[%s17] sm:$0x1]
      %v2234 = vsel %vm838, %v2229, 0.0
      %2235 = vadd.xlane.f32.xlu0 %v2234
      %v2236 = vpop.xlane.xlu0 %2235
      %v2237 = vsel %vm838, %v2230, 0.0
      %2238 = vadd.xlane.f32.xlu0 %v2237
      %v2239 = vpop.xlane.xlu0 %2238
      %v2240 = vsel %vm1999, %v2231, 0.0
      %2241 = vadd.xlane.f32.xlu0 %v2240
      %v2242 = vpop.xlane.xlu0 %2241
      %v2243 = vmul.f32 %v2236, %v2003
      %v2244 = vmul.f32 %v2239, %v2003
      %v2245 = vmul.f32 %v2242, %v2003
      %v2246 = vsub.f32 %v2229, %v2243
      %v2247 = vsub.f32 %v2230, %v2244
      %v2248 = vsub.f32 %v2231, %v2245
      %v2249 = vmul.f32 %v2246, %v2246
      %v2250 = vmul.f32 %v2247, %v2247
      %v2251 = vmul.f32 %v2248, %v2248
      %v2252 = vsel %vm838, %v2249, 0.0
      %2253 = vadd.xlane.f32.xlu0 %v2252
      %v2254 = vpop.xlane.xlu0 %2253
      %v2255 = vsel %vm838, %v2250, 0.0
      %2256 = vadd.xlane.f32.xlu0 %v2255
      %v2257 = vpop.xlane.xlu0 %2256
      %v2258 = vsel %vm1999, %v2251, 0.0
      %2259 = vadd.xlane.f32.xlu0 %v2258
      %v2260 = vpop.xlane.xlu0 %2259
      %v2261 = vmul.f32 %v2254, %v2003
      %v2262 = vmul.f32 %v2257, %v2003
      %v2263 = vmul.f32 %v2260, %v2003
      %v2264 = vadd.f32 %v2261, 1e-05
      %v2265 = vadd.f32 %v2262, 1e-05
      %v2266 = vadd.f32 %v2263, 1e-05
      %v2267 = vrsqrt.pop %v2264
      %v2268 = vrsqrt.pop %v2265
      %v2269 = vrsqrt.pop %v2266
      %v2270 = vmul.f32 %v2246, %v2267
      %v2271 = vmul.f32 %v2247, %v2268
      %v2272 = vmul.f32 %v2248, %v2269
      %v2274 = vlaneseq
      %v2275 = vshrl.u32 %v2274, 7
      %v2276 = vsub.s32 0, %v2275
      %v2277 = vrot.slane %v2232, %v2276
      %v2279 = vmul.f32 %v2270, %v2277
      %v2280 = vmul.f32 %v2271, %v2277
      %v2281 = vmul.f32 %v2272, %v2277
      %v2283 = vlaneseq
      %v2284 = vshrl.u32 %v2283, 7
      %v2285 = vsub.s32 0, %v2284
      %v2286 = vrot.slane %v2233, %v2285
      %v2288 = vadd.f32 %v2279, %v2286
      %v2289 = vadd.f32 %v2280, %v2286
      %v2290 = vadd.f32 %v2281, %v2286
      %v2291 = vpack.c.bf16 %v2289, %v2288
      %v2292 = vpack.c.bf16 %v2290, %v2290
      %s2293 = scalar_lea.vmem %s6, 16
      %v2294 = vld [vmem:[%s2293] sm:$0xf]
      %v2295 = vld [vmem:[%s2293 + $0x4] sm:$0xf]
      %v2296 = vld [vmem:[%s2293 + $0x8] sm:$0xf]
      %v2297 = vld [vmem:[%s2293 + $0xc] sm:$0xf]
      %s2298 = scalar_lea.vmem %s7, 1
      %v2299 = vld [vmem:[%s2298] sm:$0x1]
      %v2301 = vlaneseq
      %v2302 = vshrl.u32 %v2301, 7
      %v2303 = vsub.s32 0, %v2302
      %v2304 = vrot.slane %v2299, %v2303
      %v2310 = vunpack.c.l.b16 %v2294
      %v2311 = vunpack.c.l.b16 %v2295
      %v2312 = vunpack.c.l.b16 %v2296
      %v2313 = vunpack.c.l.b16 %v2297
      %v2314 = vpack.c.b16 %v2311, %v2310
      %v2315 = vpack.c.b16 %v2313, %v2312
      %v2319 = vsel %vm838, %v2291, 0
      %v2322 = vsel %vm838, %v2292, 0
      %2324 = vmatprep.subr.bf16.mxu0 0
      %2325 = vmatpush1.bf16.msra.mxu0 %v2314
      %2326 = vmatprep.subr.bf16.mxu0 0
      %2327 = vmatpush1.bf16.msra.mxu0 %v2315
      %2328 = vmatprep.subr.bf16.mxu0 0
      %2329 = vmatpush1.bf16.msra.mxu0 0
      %2330 = vmatprep.subr.bf16.mxu0 0
      %2331 = vmatpush1.bf16.msra.mxu0 0
      %2332 = vmatprep.subr.bf16.mxu0 0
      %2333 = vmatpush1.bf16.msra.mxu0 0
      %2334 = vmatprep.subr.bf16.mxu0 0
      %2335 = vmatpush1.bf16.msra.mxu0 0
      %2336 = vmatprep.subr.bf16.mxu0 0
      %2337 = vmatpush1.bf16.msra.mxu0 0
      %2338 = vmatprep.subr.bf16.mxu0 0
      %2339 = vmatpush1.bf16.msra.mxu0 0
      %2340 = vmatprep.subr.bf16.mxu0 0
      %2341 = vmatpush1.bf16.msra.mxu0 0
      %2342 = vmatprep.subr.bf16.mxu0 0
      %2343 = vmatpush1.bf16.msra.mxu0 0
      %2344 = vmatprep.subr.bf16.mxu0 0
      %2345 = vmatpush1.bf16.msra.mxu0 0
      %2346 = vmatprep.subr.bf16.mxu0 0
      %2347 = vmatpush1.bf16.msra.mxu0 0
      %2348 = vmatprep.subr.bf16.mxu0 0
      %2349 = vmatpush1.bf16.msra.mxu0 0
      %2350 = vmatprep.subr.bf16.mxu0 0
      %2351 = vmatpush1.bf16.msra.mxu0 0
      %2352 = vmatprep.subr.bf16.mxu0 0
      %2353 = vmatpush1.bf16.msra.mxu0 0
      %2354 = vmatprep.subr.bf16.mxu0 0
      %2355 = vmatpush1.bf16.msra.mxu0 0
      %2356 = vmatprep.mubr.bf16.mxu0 0
      %2357 = vmatmul.mubr.bf16.gmra.mrb[0].mxu0 %v2319
      %v2358 = vpop.f32.mrb[0].mxu0
      %v2359 = vadd.f32 %v2304, %v2358
      %v2360 = vpop.f32.mrb[0].mxu0
      %v2361 = vpop.f32.mrb[0].mxu0
      %v2362 = vadd.f32 %v2304, %v2361
      %v2363 = vpop.f32.mrb[0].mxu0
      %2364 = vmatprep.mubr.bf16.mxu0 0
      %2365 = vmatmul.mubr.bf16.gmra.mrb[0].mxu0 %v2322
      %v2366 = vpop.f32.mrb[0].mxu0
      %v2367 = vadd.f32 %v2304, %v2366
      %v2368 = vpop.f32.mrb[0].mxu0
      %v2369 = vpop.f32.mrb[0].mxu0
      %v2370 = vpop.f32.mrb[0].mxu0
      %2371 = vdwg.mxu0
      %2375 = vrot.lane.b32.xlu0 %v2359, 96
      %v2376 = vpop.permute.xlu0 %2375
      %2377 = vrot.lane.b32.xlu0 %v2362, 96
      %v2378 = vpop.permute.xlu0 %2377
      %2379 = vrot.lane.b32.xlu0 %v2367, 96
      %v2380 = vpop.permute.xlu0 %2379
      %v2381 = vsel %vm902, %v2359, 0
      %v2383 = vsel %vm902, %v2362, 0
      %v2385 = vsel %vm902, %v2367, 0
      %v2387 = vsel %vm902, %v2376, 0
      %v2389 = vsel %vm902, %v2378, 0
      %v2391 = vsel %vm902, %v2380, 0
      %2393 = vmatprep.subr.mxu0 0.0
      %2394 = vmatpush1.xpose.msra.mxu0 %v2387
      %2395 = vmatprep.subr.mxu0 0.0
      %2396 = vmatpush1.xpose.msra.mxu0 %v2389
      %2397 = vmatprep.subr.mxu0 0.0
      %2398 = vmatpush1.xpose.msra.mxu0 %v2391
      %2399 = vmatprep.subr.mxu0 0.0
      %2400 = vmatpush1.xpose.msra.mxu0 0.0
      %2401 = vmatprep.subr.mxu0 0.0
      %2402 = vmatpush1.xpose.msra.mxu0 0.0
      %2403 = vmatprep.subr.mxu0 0.0
      %2404 = vmatpush1.xpose.msra.mxu0 0.0
      %2405 = vmatprep.subr.mxu0 0.0
      %2406 = vmatpush1.xpose.msra.mxu0 0.0
      %2407 = vmatprep.subr.mxu0 0.0
      %2408 = vmatpush1.xpose.msra.mxu0 0.0
      %2409 = vmatprep.subr.mxu0 0.0
      %2410 = vmatpush1.xpose.msra.mxu0 0.0
      %2411 = vmatprep.subr.mxu0 0.0
      %2412 = vmatpush1.xpose.msra.mxu0 0.0
      %2413 = vmatprep.subr.mxu0 0.0
      %2414 = vmatpush1.xpose.msra.mxu0 0.0
      %2415 = vmatprep.subr.mxu0 0.0
      %2416 = vmatpush1.xpose.msra.mxu0 0.0
      %2417 = vmatprep.subr.mxu0 0.0
      %2418 = vmatpush1.xpose.msra.mxu0 0.0
      %2419 = vmatprep.subr.mxu0 0.0
      %2420 = vmatpush1.xpose.msra.mxu0 0.0
      %2421 = vmatprep.subr.mxu0 0.0
      %2422 = vmatpush1.xpose.msra.mxu0 0.0
      %2423 = vmatprep.subr.mxu0 0.0
      %2424 = vmatpush1.xpose.msra.mxu0 0.0
      %2425 = vmatprep.subr.mxu0 0.0
      %2426 = vmatpush1.xpose.msra.mxu0 0.0
      %2427 = vmatprep.subr.mxu0 0.0
      %2428 = vmatpush1.xpose.msra.mxu0 0.0
      %2429 = vmatprep.subr.mxu0 0.0
      %2430 = vmatpush1.xpose.msra.mxu0 0.0
      %2431 = vmatprep.subr.mxu0 0.0
      %2432 = vmatpush1.xpose.msra.mxu0 0.0
      %2433 = vmatprep.subr.mxu0 0.0
      %2434 = vmatpush1.xpose.msra.mxu0 0.0
      %2435 = vmatprep.subr.mxu0 0.0
      %2436 = vmatpush1.xpose.msra.mxu0 0.0
      %2437 = vmatprep.subr.mxu0 0.0
      %2438 = vmatpush1.xpose.msra.mxu0 0.0
      %2439 = vmatprep.subr.mxu0 0.0
      %2440 = vmatpush1.xpose.msra.mxu0 0.0
      %2441 = vmatprep.subr.mxu0 0.0
      %2442 = vmatpush1.xpose.msra.mxu0 0.0
      %2443 = vmatprep.subr.mxu0 0.0
      %2444 = vmatpush1.xpose.msra.mxu0 0.0
      %2445 = vmatprep.subr.mxu0 0.0
      %2446 = vmatpush1.xpose.msra.mxu0 0.0
      %2447 = vmatprep.subr.mxu0 0.0
      %2448 = vmatpush1.xpose.msra.mxu0 0.0
      %2449 = vmatprep.subr.mxu0 0.0
      %2450 = vmatpush1.xpose.msra.mxu0 0.0
      %2451 = vmatprep.subr.mxu0 0.0
      %2452 = vmatpush1.xpose.msra.mxu0 0.0
      %2453 = vmatprep.subr.mxu0 0.0
      %2454 = vmatpush1.xpose.msra.mxu0 0.0
      %2455 = vmatprep.subr.mxu0 0.0
      %2456 = vmatpush1.xpose.msra.mxu0 0.0
      %2457 = vmatprep.mubr.f32.mxu0 0.0
      %2458 = vmatmul.mubr.f32.gmra.mrb[0].mxu0 %v2381
      %v2459 = vpop.f32.mrb[0].mxu0
      %v2460 = vadd.f32 0.0, %v2459
      %v2461 = vpop.f32.mrb[0].mxu0
      %2462 = vmatprep.mubr.f32.mxu0 0.0
      %2463 = vmatmul.mubr.f32.gmra.mrb[0].mxu0 %v2383
      %v2464 = vpop.f32.mrb[0].mxu0
      %v2465 = vadd.f32 0.0, %v2464
      %v2466 = vpop.f32.mrb[0].mxu0
      %2467 = vmatprep.mubr.f32.mxu0 0.0
      %2468 = vmatmul.mubr.f32.gmra.mrb[0].mxu0 %v2385
      %v2469 = vpop.f32.mrb[0].mxu0
      %v2470 = vadd.f32 0.0, %v2469
      %v2471 = vpop.f32.mrb[0].mxu0
      %2472 = vdwg.mxu0
      %v2473 = vmul.f32 %v2460, 0.35355338
      %v2474 = vmul.f32 %v2465, 0.35355338
      %v2475 = vmul.f32 %v2470, 0.35355338
      %v2476 = vadd.f32 %v2473, %v810
      %v2477 = vadd.f32 %v2474, %v811
      %v2478 = vadd.f32 %v2475, %v812
      %v2479 = vsel %vm1001, %v2476, -inf
      %2480 = vmax.xlane.f32.xlu0 %v2479
      %v2481 = vpop.xlane.xlu0 %2480
      %v2482 = vsel %vm1001, %v2477, -inf
      %2483 = vmax.xlane.f32.xlu0 %v2482
      %v2484 = vpop.xlane.xlu0 %2483
      %v2485 = vsel %vm1008, %v2478, -inf
      %2486 = vmax.xlane.f32.xlu0 %v2485
      %v2487 = vpop.xlane.xlu0 %2486
      %v2488 = vsub.f32 %v2476, %v2481
      %v2489 = vsub.f32 %v2477, %v2484
      %v2490 = vsub.f32 %v2478, %v2487
      %v2491 = vmul.f32 %v2488, 1.442695
      %v2492 = vpow.pop %v2491
      %v2493 = vmul.f32 %v2489, 1.442695
      %v2494 = vpow.pop %v2493
      %v2495 = vmul.f32 %v2490, 1.442695
      %v2496 = vpow.pop %v2495
      %v2497 = vsel %vm1001, %v2492, 0.0
      %2498 = vadd.xlane.f32.xlu0 %v2497
      %v2499 = vpop.xlane.xlu0 %2498
      %v2500 = vsel %vm1001, %v2494, 0.0
      %2501 = vadd.xlane.f32.xlu0 %v2500
      %v2502 = vpop.xlane.xlu0 %2501
      %v2503 = vsel %vm1008, %v2496, 0.0
      %2504 = vadd.xlane.f32.xlu0 %v2503
      %v2505 = vpop.xlane.xlu0 %2504
      %v2506 = vrcp.pop %v2499
      %v2507 = vrcp.pop %v2502
      %v2508 = vrcp.pop %v2505
      %v2509 = vmul.f32 %v2492, %v2506
      %v2510 = vmul.f32 %v2494, %v2507
      %v2511 = vmul.f32 %v2496, %v2508
      %2512 = vrot.lane.b32.xlu0 %v2359, 64
      %v2513 = vpop.permute.xlu0 %2512
      %2514 = vrot.lane.b32.xlu0 %v2362, 64
      %v2515 = vpop.permute.xlu0 %2514
      %2516 = vrot.lane.b32.xlu0 %v2367, 64
      %v2517 = vpop.permute.xlu0 %2516
      %v2521 = vsel %vm1001, %v2509, 0
      %v2524 = vsel %vm1001, %v2510, 0
      %v2527 = vsel %vm1001, %v2511, 0
      %v2529 = vsel %vm1053, %v2517, 0
      %2531 = vmatprep.subr.mxu0 0.0
      %2532 = vmatpush1.msra.mxu0 %v2513
      %2533 = vmatprep.subr.mxu0 0.0
      %2534 = vmatpush1.msra.mxu0 %v2515
      %2535 = vmatprep.subr.mxu0 0.0
      %2536 = vmatpush1.msra.mxu0 %v2529
      %2537 = vmatprep.subr.mxu0 0.0
      %2538 = vmatpush1.msra.mxu0 0.0
      %2539 = vmatprep.subr.mxu0 0.0
      %2540 = vmatpush1.msra.mxu0 0.0
      %2541 = vmatprep.subr.mxu0 0.0
      %2542 = vmatpush1.msra.mxu0 0.0
      %2543 = vmatprep.subr.mxu0 0.0
      %2544 = vmatpush1.msra.mxu0 0.0
      %2545 = vmatprep.subr.mxu0 0.0
      %2546 = vmatpush1.msra.mxu0 0.0
      %2547 = vmatprep.subr.mxu0 0.0
      %2548 = vmatpush1.msra.mxu0 0.0
      %2549 = vmatprep.subr.mxu0 0.0
      %2550 = vmatpush1.msra.mxu0 0.0
      %2551 = vmatprep.subr.mxu0 0.0
      %2552 = vmatpush1.msra.mxu0 0.0
      %2553 = vmatprep.subr.mxu0 0.0
      %2554 = vmatpush1.msra.mxu0 0.0
      %2555 = vmatprep.subr.mxu0 0.0
      %2556 = vmatpush1.msra.mxu0 0.0
      %2557 = vmatprep.subr.mxu0 0.0
      %2558 = vmatpush1.msra.mxu0 0.0
      %2559 = vmatprep.subr.mxu0 0.0
      %2560 = vmatpush1.msra.mxu0 0.0
      %2561 = vmatprep.subr.mxu0 0.0
      %2562 = vmatpush1.msra.mxu0 0.0
      %2563 = vmatprep.subr.mxu0 0.0
      %2564 = vmatpush1.msra.mxu0 0.0
      %2565 = vmatprep.subr.mxu0 0.0
      %2566 = vmatpush1.msra.mxu0 0.0
      %2567 = vmatprep.subr.mxu0 0.0
      %2568 = vmatpush1.msra.mxu0 0.0
      %2569 = vmatprep.subr.mxu0 0.0
      %2570 = vmatpush1.msra.mxu0 0.0
      %2571 = vmatprep.subr.mxu0 0.0
      %2572 = vmatpush1.msra.mxu0 0.0
      %2573 = vmatprep.subr.mxu0 0.0
      %2574 = vmatpush1.msra.mxu0 0.0
      %2575 = vmatprep.subr.mxu0 0.0
      %2576 = vmatpush1.msra.mxu0 0.0
      %2577 = vmatprep.subr.mxu0 0.0
      %2578 = vmatpush1.msra.mxu0 0.0
      %2579 = vmatprep.subr.mxu0 0.0
      %2580 = vmatpush1.msra.mxu0 0.0
      %2581 = vmatprep.subr.mxu0 0.0
      %2582 = vmatpush1.msra.mxu0 0.0
      %2583 = vmatprep.subr.mxu0 0.0
      %2584 = vmatpush1.msra.mxu0 0.0
      %2585 = vmatprep.subr.mxu0 0.0
      %2586 = vmatpush1.msra.mxu0 0.0
      %2587 = vmatprep.subr.mxu0 0.0
      %2588 = vmatpush1.msra.mxu0 0.0
      %2589 = vmatprep.subr.mxu0 0.0
      %2590 = vmatpush1.msra.mxu0 0.0
      %2591 = vmatprep.subr.mxu0 0.0
      %2592 = vmatpush1.msra.mxu0 0.0
      %2593 = vmatprep.subr.mxu0 0.0
      %2594 = vmatpush1.msra.mxu0 0.0
      %2595 = vmatprep.mubr.f32.mxu0 0.0
      %2596 = vmatmul.mubr.f32.gmra.mrb[0].mxu0 %v2521
      %v2597 = vpop.f32.mrb[0].mxu0
      %v2598 = vadd.f32 0.0, %v2597
      %v2599 = vpop.f32.mrb[0].mxu0
      %2600 = vmatprep.mubr.f32.mxu0 0.0
      %2601 = vmatmul.mubr.f32.gmra.mrb[0].mxu0 %v2524
      %v2602 = vpop.f32.mrb[0].mxu0
      %v2603 = vadd.f32 0.0, %v2602
      %v2604 = vpop.f32.mrb[0].mxu0
      %2605 = vmatprep.mubr.f32.mxu0 0.0
      %2606 = vmatmul.mubr.f32.gmra.mrb[0].mxu0 %v2527
      %v2607 = vpop.f32.mrb[0].mxu0
      %v2608 = vadd.f32 0.0, %v2607
      %v2609 = vpop.f32.mrb[0].mxu0
      %2610 = vdwg.mxu0
      %2611 = vrot.lane.b32.xlu0 %v2359, 120
      %v2612 = vpop.permute.xlu0 %2611
      %2613 = vrot.lane.b32.xlu0 %v2362, 120
      %v2614 = vpop.permute.xlu0 %2613
      %2615 = vrot.lane.b32.xlu0 %v2367, 120
      %v2616 = vpop.permute.xlu0 %2615
      %2617 = vrot.lane.b32.xlu0 %v2359, 88
      %v2618 = vpop.permute.xlu0 %2617
      %2619 = vrot.lane.b32.xlu0 %v2362, 88
      %v2620 = vpop.permute.xlu0 %2619
      %2621 = vrot.lane.b32.xlu0 %v2367, 88
      %v2622 = vpop.permute.xlu0 %2621
      %v2623 = vsel %vm902, %v2612, 0
      %v2625 = vsel %vm902, %v2614, 0
      %v2627 = vsel %vm902, %v2616, 0
      %v2629 = vsel %vm902, %v2618, 0
      %v2631 = vsel %vm902, %v2620, 0
      %v2633 = vsel %vm902, %v2622, 0
      %2635 = vmatprep.subr.mxu0 0.0
      %2636 = vmatpush1.xpose.msra.mxu0 %v2629
      %2637 = vmatprep.subr.mxu0 0.0
      %2638 = vmatpush1.xpose.msra.mxu0 %v2631
      %2639 = vmatprep.subr.mxu0 0.0
      %2640 = vmatpush1.xpose.msra.mxu0 %v2633
      %2641 = vmatprep.subr.mxu0 0.0
      %2642 = vmatpush1.xpose.msra.mxu0 0.0
      %2643 = vmatprep.subr.mxu0 0.0
      %2644 = vmatpush1.xpose.msra.mxu0 0.0
      %2645 = vmatprep.subr.mxu0 0.0
      %2646 = vmatpush1.xpose.msra.mxu0 0.0
      %2647 = vmatprep.subr.mxu0 0.0
      %2648 = vmatpush1.xpose.msra.mxu0 0.0
      %2649 = vmatprep.subr.mxu0 0.0
      %2650 = vmatpush1.xpose.msra.mxu0 0.0
      %2651 = vmatprep.subr.mxu0 0.0
      %2652 = vmatpush1.xpose.msra.mxu0 0.0
      %2653 = vmatprep.subr.mxu0 0.0
      %2654 = vmatpush1.xpose.msra.mxu0 0.0
      %2655 = vmatprep.subr.mxu0 0.0
      %2656 = vmatpush1.xpose.msra.mxu0 0.0
      %2657 = vmatprep.subr.mxu0 0.0
      %2658 = vmatpush1.xpose.msra.mxu0 0.0
      %2659 = vmatprep.subr.mxu0 0.0
      %2660 = vmatpush1.xpose.msra.mxu0 0.0
      %2661 = vmatprep.subr.mxu0 0.0
      %2662 = vmatpush1.xpose.msra.mxu0 0.0
      %2663 = vmatprep.subr.mxu0 0.0
      %2664 = vmatpush1.xpose.msra.mxu0 0.0
      %2665 = vmatprep.subr.mxu0 0.0
      %2666 = vmatpush1.xpose.msra.mxu0 0.0
      %2667 = vmatprep.subr.mxu0 0.0
      %2668 = vmatpush1.xpose.msra.mxu0 0.0
      %2669 = vmatprep.subr.mxu0 0.0
      %2670 = vmatpush1.xpose.msra.mxu0 0.0
      %2671 = vmatprep.subr.mxu0 0.0
      %2672 = vmatpush1.xpose.msra.mxu0 0.0
      %2673 = vmatprep.subr.mxu0 0.0
      %2674 = vmatpush1.xpose.msra.mxu0 0.0
      %2675 = vmatprep.subr.mxu0 0.0
      %2676 = vmatpush1.xpose.msra.mxu0 0.0
      %2677 = vmatprep.subr.mxu0 0.0
      %2678 = vmatpush1.xpose.msra.mxu0 0.0
      %2679 = vmatprep.subr.mxu0 0.0
      %2680 = vmatpush1.xpose.msra.mxu0 0.0
      %2681 = vmatprep.subr.mxu0 0.0
      %2682 = vmatpush1.xpose.msra.mxu0 0.0
      %2683 = vmatprep.subr.mxu0 0.0
      %2684 = vmatpush1.xpose.msra.mxu0 0.0
      %2685 = vmatprep.subr.mxu0 0.0
      %2686 = vmatpush1.xpose.msra.mxu0 0.0
      %2687 = vmatprep.subr.mxu0 0.0
      %2688 = vmatpush1.xpose.msra.mxu0 0.0
      %2689 = vmatprep.subr.mxu0 0.0
      %2690 = vmatpush1.xpose.msra.mxu0 0.0
      %2691 = vmatprep.subr.mxu0 0.0
      %2692 = vmatpush1.xpose.msra.mxu0 0.0
      %2693 = vmatprep.subr.mxu0 0.0
      %2694 = vmatpush1.xpose.msra.mxu0 0.0
      %2695 = vmatprep.subr.mxu0 0.0
      %2696 = vmatpush1.xpose.msra.mxu0 0.0
      %2697 = vmatprep.subr.mxu0 0.0
      %2698 = vmatpush1.xpose.msra.mxu0 0.0
      %2699 = vmatprep.mubr.f32.mxu0 0.0
      %2700 = vmatmul.mubr.f32.gmra.mrb[0].mxu0 %v2623
      %v2701 = vpop.f32.mrb[0].mxu0
      %v2702 = vadd.f32 0.0, %v2701
      %v2703 = vpop.f32.mrb[0].mxu0
      %2704 = vmatprep.mubr.f32.mxu0 0.0
      %2705 = vmatmul.mubr.f32.gmra.mrb[0].mxu0 %v2625
      %v2706 = vpop.f32.mrb[0].mxu0
      %v2707 = vadd.f32 0.0, %v2706
      %v2708 = vpop.f32.mrb[0].mxu0
      %2709 = vmatprep.mubr.f32.mxu0 0.0
      %2710 = vmatmul.mubr.f32.gmra.mrb[0].mxu0 %v2627
      %v2711 = vpop.f32.mrb[0].mxu0
      %v2712 = vadd.f32 0.0, %v2711
      %v2713 = vpop.f32.mrb[0].mxu0
      %2714 = vdwg.mxu0
      %v2715 = vmul.f32 %v2702, 0.35355338
      %v2716 = vmul.f32 %v2707, 0.35355338
      %v2717 = vmul.f32 %v2712, 0.35355338
      %v2718 = vadd.f32 %v2715, %v810
      %v2719 = vadd.f32 %v2716, %v811
      %v2720 = vadd.f32 %v2717, %v812
      %v2721 = vsel %vm1001, %v2718, -inf
      %2722 = vmax.xlane.f32.xlu0 %v2721
      %v2723 = vpop.xlane.xlu0 %2722
      %v2724 = vsel %vm1001, %v2719, -inf
      %2725 = vmax.xlane.f32.xlu0 %v2724
      %v2726 = vpop.xlane.xlu0 %2725
      %v2727 = vsel %vm1008, %v2720, -inf
      %2728 = vmax.xlane.f32.xlu0 %v2727
      %v2729 = vpop.xlane.xlu0 %2728
      %v2730 = vsub.f32 %v2718, %v2723
      %v2731 = vsub.f32 %v2719, %v2726
      %v2732 = vsub.f32 %v2720, %v2729
      %v2733 = vmul.f32 %v2730, 1.442695
      %v2734 = vpow.pop %v2733
      %v2735 = vmul.f32 %v2731, 1.442695
      %v2736 = vpow.pop %v2735
      %v2737 = vmul.f32 %v2732, 1.442695
      %v2738 = vpow.pop %v2737
      %v2739 = vsel %vm1001, %v2734, 0.0
      %2740 = vadd.xlane.f32.xlu0 %v2739
      %v2741 = vpop.xlane.xlu0 %2740
      %v2742 = vsel %vm1001, %v2736, 0.0
      %2743 = vadd.xlane.f32.xlu0 %v2742
      %v2744 = vpop.xlane.xlu0 %2743
      %v2745 = vsel %vm1008, %v2738, 0.0
      %2746 = vadd.xlane.f32.xlu0 %v2745
      %v2747 = vpop.xlane.xlu0 %2746
      %v2748 = vrcp.pop %v2741
      %v2749 = vrcp.pop %v2744
      %v2750 = vrcp.pop %v2747
      %v2751 = vmul.f32 %v2734, %v2748
      %v2752 = vmul.f32 %v2736, %v2749
      %v2753 = vmul.f32 %v2738, %v2750
      %2754 = vrot.lane.b32.xlu0 %v2359, 56
      %v2755 = vpop.permute.xlu0 %2754
      %2756 = vrot.lane.b32.xlu0 %v2362, 56
      %v2757 = vpop.permute.xlu0 %2756
      %2758 = vrot.lane.b32.xlu0 %v2367, 56
      %v2759 = vpop.permute.xlu0 %2758
      %v2763 = vsel %vm1001, %v2751, 0
      %v2766 = vsel %vm1001, %v2752, 0
      %v2769 = vsel %vm1001, %v2753, 0
      %v2771 = vsel %vm1053, %v2759, 0
      %2773 = vmatprep.subr.mxu0 0.0
      %2774 = vmatpush1.msra.mxu0 %v2755
      %2775 = vmatprep.subr.mxu0 0.0
      %2776 = vmatpush1.msra.mxu0 %v2757
      %2777 = vmatprep.subr.mxu0 0.0
      %2778 = vmatpush1.msra.mxu0 %v2771
      %2779 = vmatprep.subr.mxu0 0.0
      %2780 = vmatpush1.msra.mxu0 0.0
      %2781 = vmatprep.subr.mxu0 0.0
      %2782 = vmatpush1.msra.mxu0 0.0
      %2783 = vmatprep.subr.mxu0 0.0
      %2784 = vmatpush1.msra.mxu0 0.0
      %2785 = vmatprep.subr.mxu0 0.0
      %2786 = vmatpush1.msra.mxu0 0.0
      %2787 = vmatprep.subr.mxu0 0.0
      %2788 = vmatpush1.msra.mxu0 0.0
      %2789 = vmatprep.subr.mxu0 0.0
      %2790 = vmatpush1.msra.mxu0 0.0
      %2791 = vmatprep.subr.mxu0 0.0
      %2792 = vmatpush1.msra.mxu0 0.0
      %2793 = vmatprep.subr.mxu0 0.0
      %2794 = vmatpush1.msra.mxu0 0.0
      %2795 = vmatprep.subr.mxu0 0.0
      %2796 = vmatpush1.msra.mxu0 0.0
      %2797 = vmatprep.subr.mxu0 0.0
      %2798 = vmatpush1.msra.mxu0 0.0
      %2799 = vmatprep.subr.mxu0 0.0
      %2800 = vmatpush1.msra.mxu0 0.0
      %2801 = vmatprep.subr.mxu0 0.0
      %2802 = vmatpush1.msra.mxu0 0.0
      %2803 = vmatprep.subr.mxu0 0.0
      %2804 = vmatpush1.msra.mxu0 0.0
      %2805 = vmatprep.subr.mxu0 0.0
      %2806 = vmatpush1.msra.mxu0 0.0
      %2807 = vmatprep.subr.mxu0 0.0
      %2808 = vmatpush1.msra.mxu0 0.0
      %2809 = vmatprep.subr.mxu0 0.0
      %2810 = vmatpush1.msra.mxu0 0.0
      %2811 = vmatprep.subr.mxu0 0.0
      %2812 = vmatpush1.msra.mxu0 0.0
      %2813 = vmatprep.subr.mxu0 0.0
      %2814 = vmatpush1.msra.mxu0 0.0
      %2815 = vmatprep.subr.mxu0 0.0
      %2816 = vmatpush1.msra.mxu0 0.0
      %2817 = vmatprep.subr.mxu0 0.0
      %2818 = vmatpush1.msra.mxu0 0.0
      %2819 = vmatprep.subr.mxu0 0.0
      %2820 = vmatpush1.msra.mxu0 0.0
      %2821 = vmatprep.subr.mxu0 0.0
      %2822 = vmatpush1.msra.mxu0 0.0
      %2823 = vmatprep.subr.mxu0 0.0
      %2824 = vmatpush1.msra.mxu0 0.0
      %2825 = vmatprep.subr.mxu0 0.0
      %2826 = vmatpush1.msra.mxu0 0.0
      %2827 = vmatprep.subr.mxu0 0.0
      %2828 = vmatpush1.msra.mxu0 0.0
      %2829 = vmatprep.subr.mxu0 0.0
      %2830 = vmatpush1.msra.mxu0 0.0
      %2831 = vmatprep.subr.mxu0 0.0
      %2832 = vmatpush1.msra.mxu0 0.0
      %2833 = vmatprep.subr.mxu0 0.0
      %2834 = vmatpush1.msra.mxu0 0.0
      %2835 = vmatprep.subr.mxu0 0.0
      %2836 = vmatpush1.msra.mxu0 0.0
      %2837 = vmatprep.mubr.f32.mxu0 0.0
      %2838 = vmatmul.mubr.f32.gmra.mrb[0].mxu0 %v2763
      %v2839 = vpop.f32.mrb[0].mxu0
      %v2840 = vadd.f32 0.0, %v2839
      %v2841 = vpop.f32.mrb[0].mxu0
      %2842 = vmatprep.mubr.f32.mxu0 0.0
      %2843 = vmatmul.mubr.f32.gmra.mrb[0].mxu0 %v2766
      %v2844 = vpop.f32.mrb[0].mxu0
      %v2845 = vadd.f32 0.0, %v2844
      %v2846 = vpop.f32.mrb[0].mxu0
      %2847 = vmatprep.mubr.f32.mxu0 0.0
      %2848 = vmatmul.mubr.f32.gmra.mrb[0].mxu0 %v2769
      %v2849 = vpop.f32.mrb[0].mxu0
      %v2850 = vadd.f32 0.0, %v2849
      %v2851 = vpop.f32.mrb[0].mxu0
      %2852 = vdwg.mxu0
      %2853 = vrot.lane.b32.xlu0 %v2359, 112
      %v2854 = vpop.permute.xlu0 %2853
      %2855 = vrot.lane.b32.xlu0 %v2362, 112
      %v2856 = vpop.permute.xlu0 %2855
      %2857 = vrot.lane.b32.xlu0 %v2367, 112
      %v2858 = vpop.permute.xlu0 %2857
      %2859 = vrot.lane.b32.xlu0 %v2359, 80
      %v2860 = vpop.permute.xlu0 %2859
      %2861 = vrot.lane.b32.xlu0 %v2362, 80
      %v2862 = vpop.permute.xlu0 %2861
      %2863 = vrot.lane.b32.xlu0 %v2367, 80
      %v2864 = vpop.permute.xlu0 %2863
      %v2865 = vsel %vm902, %v2854, 0
      %v2867 = vsel %vm902, %v2856, 0
      %v2869 = vsel %vm902, %v2858, 0
      %v2871 = vsel %vm902, %v2860, 0
      %v2873 = vsel %vm902, %v2862, 0
      %v2875 = vsel %vm902, %v2864, 0
      %2877 = vmatprep.subr.mxu0 0.0
      %2878 = vmatpush1.xpose.msra.mxu0 %v2871
      %2879 = vmatprep.subr.mxu0 0.0
      %2880 = vmatpush1.xpose.msra.mxu0 %v2873
      %2881 = vmatprep.subr.mxu0 0.0
      %2882 = vmatpush1.xpose.msra.mxu0 %v2875
      %2883 = vmatprep.subr.mxu0 0.0
      %2884 = vmatpush1.xpose.msra.mxu0 0.0
      %2885 = vmatprep.subr.mxu0 0.0
      %2886 = vmatpush1.xpose.msra.mxu0 0.0
      %2887 = vmatprep.subr.mxu0 0.0
      %2888 = vmatpush1.xpose.msra.mxu0 0.0
      %2889 = vmatprep.subr.mxu0 0.0
      %2890 = vmatpush1.xpose.msra.mxu0 0.0
      %2891 = vmatprep.subr.mxu0 0.0
      %2892 = vmatpush1.xpose.msra.mxu0 0.0
      %2893 = vmatprep.subr.mxu0 0.0
      %2894 = vmatpush1.xpose.msra.mxu0 0.0
      %2895 = vmatprep.subr.mxu0 0.0
      %2896 = vmatpush1.xpose.msra.mxu0 0.0
      %2897 = vmatprep.subr.mxu0 0.0
      %2898 = vmatpush1.xpose.msra.mxu0 0.0
      %2899 = vmatprep.subr.mxu0 0.0
      %2900 = vmatpush1.xpose.msra.mxu0 0.0
      %2901 = vmatprep.subr.mxu0 0.0
      %2902 = vmatpush1.xpose.msra.mxu0 0.0
      %2903 = vmatprep.subr.mxu0 0.0
      %2904 = vmatpush1.xpose.msra.mxu0 0.0
      %2905 = vmatprep.subr.mxu0 0.0
      %2906 = vmatpush1.xpose.msra.mxu0 0.0
      %2907 = vmatprep.subr.mxu0 0.0
      %2908 = vmatpush1.xpose.msra.mxu0 0.0
      %2909 = vmatprep.subr.mxu0 0.0
      %2910 = vmatpush1.xpose.msra.mxu0 0.0
      %2911 = vmatprep.subr.mxu0 0.0
      %2912 = vmatpush1.xpose.msra.mxu0 0.0
      %2913 = vmatprep.subr.mxu0 0.0
      %2914 = vmatpush1.xpose.msra.mxu0 0.0
      %2915 = vmatprep.subr.mxu0 0.0
      %2916 = vmatpush1.xpose.msra.mxu0 0.0
      %2917 = vmatprep.subr.mxu0 0.0
      %2918 = vmatpush1.xpose.msra.mxu0 0.0
      %2919 = vmatprep.subr.mxu0 0.0
      %2920 = vmatpush1.xpose.msra.mxu0 0.0
      %2921 = vmatprep.subr.mxu0 0.0
      %2922 = vmatpush1.xpose.msra.mxu0 0.0
      %2923 = vmatprep.subr.mxu0 0.0
      %2924 = vmatpush1.xpose.msra.mxu0 0.0
      %2925 = vmatprep.subr.mxu0 0.0
      %2926 = vmatpush1.xpose.msra.mxu0 0.0
      %2927 = vmatprep.subr.mxu0 0.0
      %2928 = vmatpush1.xpose.msra.mxu0 0.0
      %2929 = vmatprep.subr.mxu0 0.0
      %2930 = vmatpush1.xpose.msra.mxu0 0.0
      %2931 = vmatprep.subr.mxu0 0.0
      %2932 = vmatpush1.xpose.msra.mxu0 0.0
      %2933 = vmatprep.subr.mxu0 0.0
      %2934 = vmatpush1.xpose.msra.mxu0 0.0
      %2935 = vmatprep.subr.mxu0 0.0
      %2936 = vmatpush1.xpose.msra.mxu0 0.0
      %2937 = vmatprep.subr.mxu0 0.0
      %2938 = vmatpush1.xpose.msra.mxu0 0.0
      %2939 = vmatprep.subr.mxu0 0.0
      %2940 = vmatpush1.xpose.msra.mxu0 0.0
      %2941 = vmatprep.mubr.f32.mxu0 0.0
      %2942 = vmatmul.mubr.f32.gmra.mrb[0].mxu0 %v2865
      %v2943 = vpop.f32.mrb[0].mxu0
      %v2944 = vadd.f32 0.0, %v2943
      %v2945 = vpop.f32.mrb[0].mxu0
      %2946 = vmatprep.mubr.f32.mxu0 0.0
      %2947 = vmatmul.mubr.f32.gmra.mrb[0].mxu0 %v2867
      %v2948 = vpop.f32.mrb[0].mxu0
      %v2949 = vadd.f32 0.0, %v2948
      %v2950 = vpop.f32.mrb[0].mxu0
      %2951 = vmatprep.mubr.f32.mxu0 0.0
      %2952 = vmatmul.mubr.f32.gmra.mrb[0].mxu0 %v2869
      %v2953 = vpop.f32.mrb[0].mxu0
      %v2954 = vadd.f32 0.0, %v2953
      %v2955 = vpop.f32.mrb[0].mxu0
      %2956 = vdwg.mxu0
      %v2957 = vmul.f32 %v2944, 0.35355338
      %v2958 = vmul.f32 %v2949, 0.35355338
      %v2959 = vmul.f32 %v2954, 0.35355338
      %v2960 = vadd.f32 %v2957, %v810
      %v2961 = vadd.f32 %v2958, %v811
      %v2962 = vadd.f32 %v2959, %v812
      %v2963 = vsel %vm1001, %v2960, -inf
      %2964 = vmax.xlane.f32.xlu0 %v2963
      %v2965 = vpop.xlane.xlu0 %2964
      %v2966 = vsel %vm1001, %v2961, -inf
      %2967 = vmax.xlane.f32.xlu0 %v2966
      %v2968 = vpop.xlane.xlu0 %2967
      %v2969 = vsel %vm1008, %v2962, -inf
      %2970 = vmax.xlane.f32.xlu0 %v2969
      %v2971 = vpop.xlane.xlu0 %2970
      %v2972 = vsub.f32 %v2960, %v2965
      %v2973 = vsub.f32 %v2961, %v2968
      %v2974 = vsub.f32 %v2962, %v2971
      %v2975 = vmul.f32 %v2972, 1.442695
      %v2976 = vpow.pop %v2975
      %v2977 = vmul.f32 %v2973, 1.442695
      %v2978 = vpow.pop %v2977
      %v2979 = vmul.f32 %v2974, 1.442695
      %v2980 = vpow.pop %v2979
      %v2981 = vsel %vm1001, %v2976, 0.0
      %2982 = vadd.xlane.f32.xlu0 %v2981
      %v2983 = vpop.xlane.xlu0 %2982
      %v2984 = vsel %vm1001, %v2978, 0.0
      %2985 = vadd.xlane.f32.xlu0 %v2984
      %v2986 = vpop.xlane.xlu0 %2985
      %v2987 = vsel %vm1008, %v2980, 0.0
      %2988 = vadd.xlane.f32.xlu0 %v2987
      %v2989 = vpop.xlane.xlu0 %2988
      %v2990 = vrcp.pop %v2983
      %v2991 = vrcp.pop %v2986
      %v2992 = vrcp.pop %v2989
      %v2993 = vmul.f32 %v2976, %v2990
      %v2994 = vmul.f32 %v2978, %v2991
      %v2995 = vmul.f32 %v2980, %v2992
      %2996 = vrot.lane.b32.xlu0 %v2359, 48
      %v2997 = vpop.permute.xlu0 %2996
      %2998 = vrot.lane.b32.xlu0 %v2362, 48
      %v2999 = vpop.permute.xlu0 %2998
      %3000 = vrot.lane.b32.xlu0 %v2367, 48
      %v3001 = vpop.permute.xlu0 %3000
      %v3005 = vsel %vm1001, %v2993, 0
      %v3008 = vsel %vm1001, %v2994, 0
      %v3011 = vsel %vm1001, %v2995, 0
      %v3013 = vsel %vm1053, %v3001, 0
      %3015 = vmatprep.subr.mxu0 0.0
      %3016 = vmatpush1.msra.mxu0 %v2997
      %3017 = vmatprep.subr.mxu0 0.0
      %3018 = vmatpush1.msra.mxu0 %v2999
      %3019 = vmatprep.subr.mxu0 0.0
      %3020 = vmatpush1.msra.mxu0 %v3013
      %3021 = vmatprep.subr.mxu0 0.0
      %3022 = vmatpush1.msra.mxu0 0.0
      %3023 = vmatprep.subr.mxu0 0.0
      %3024 = vmatpush1.msra.mxu0 0.0
      %3025 = vmatprep.subr.mxu0 0.0
      %3026 = vmatpush1.msra.mxu0 0.0
      %3027 = vmatprep.subr.mxu0 0.0
      %3028 = vmatpush1.msra.mxu0 0.0
      %3029 = vmatprep.subr.mxu0 0.0
      %3030 = vmatpush1.msra.mxu0 0.0
      %3031 = vmatprep.subr.mxu0 0.0
      %3032 = vmatpush1.msra.mxu0 0.0
      %3033 = vmatprep.subr.mxu0 0.0
      %3034 = vmatpush1.msra.mxu0 0.0
      %3035 = vmatprep.subr.mxu0 0.0
      %3036 = vmatpush1.msra.mxu0 0.0
      %3037 = vmatprep.subr.mxu0 0.0
      %3038 = vmatpush1.msra.mxu0 0.0
      %3039 = vmatprep.subr.mxu0 0.0
      %3040 = vmatpush1.msra.mxu0 0.0
      %3041 = vmatprep.subr.mxu0 0.0
      %3042 = vmatpush1.msra.mxu0 0.0
      %3043 = vmatprep.subr.mxu0 0.0
      %3044 = vmatpush1.msra.mxu0 0.0
      %3045 = vmatprep.subr.mxu0 0.0
      %3046 = vmatpush1.msra.mxu0 0.0
      %3047 = vmatprep.subr.mxu0 0.0
      %3048 = vmatpush1.msra.mxu0 0.0
      %3049 = vmatprep.subr.mxu0 0.0
      %3050 = vmatpush1.msra.mxu0 0.0
      %3051 = vmatprep.subr.mxu0 0.0
      %3052 = vmatpush1.msra.mxu0 0.0
      %3053 = vmatprep.subr.mxu0 0.0
      %3054 = vmatpush1.msra.mxu0 0.0
      %3055 = vmatprep.subr.mxu0 0.0
      %3056 = vmatpush1.msra.mxu0 0.0
      %3057 = vmatprep.subr.mxu0 0.0
      %3058 = vmatpush1.msra.mxu0 0.0
      %3059 = vmatprep.subr.mxu0 0.0
      %3060 = vmatpush1.msra.mxu0 0.0
      %3061 = vmatprep.subr.mxu0 0.0
      %3062 = vmatpush1.msra.mxu0 0.0
      %3063 = vmatprep.subr.mxu0 0.0
      %3064 = vmatpush1.msra.mxu0 0.0
      %3065 = vmatprep.subr.mxu0 0.0
      %3066 = vmatpush1.msra.mxu0 0.0
      %3067 = vmatprep.subr.mxu0 0.0
      %3068 = vmatpush1.msra.mxu0 0.0
      %3069 = vmatprep.subr.mxu0 0.0
      %3070 = vmatpush1.msra.mxu0 0.0
      %3071 = vmatprep.subr.mxu0 0.0
      %3072 = vmatpush1.msra.mxu0 0.0
      %3073 = vmatprep.subr.mxu0 0.0
      %3074 = vmatpush1.msra.mxu0 0.0
      %3075 = vmatprep.subr.mxu0 0.0
      %3076 = vmatpush1.msra.mxu0 0.0
      %3077 = vmatprep.subr.mxu0 0.0
      %3078 = vmatpush1.msra.mxu0 0.0
      %3079 = vmatprep.mubr.f32.mxu0 0.0
      %3080 = vmatmul.mubr.f32.gmra.mrb[0].mxu0 %v3005
      %v3081 = vpop.f32.mrb[0].mxu0
      %v3082 = vadd.f32 0.0, %v3081
      %v3083 = vpop.f32.mrb[0].mxu0
      %3084 = vmatprep.mubr.f32.mxu0 0.0
      %3085 = vmatmul.mubr.f32.gmra.mrb[0].mxu0 %v3008
      %v3086 = vpop.f32.mrb[0].mxu0
      %v3087 = vadd.f32 0.0, %v3086
      %v3088 = vpop.f32.mrb[0].mxu0
      %3089 = vmatprep.mubr.f32.mxu0 0.0
      %3090 = vmatmul.mubr.f32.gmra.mrb[0].mxu0 %v3011
      %v3091 = vpop.f32.mrb[0].mxu0
      %v3092 = vadd.f32 0.0, %v3091
      %v3093 = vpop.f32.mrb[0].mxu0
      %3094 = vdwg.mxu0
      %3095 = vrot.lane.b32.xlu0 %v2359, 104
      %v3096 = vpop.permute.xlu0 %3095
      %3097 = vrot.lane.b32.xlu0 %v2362, 104
      %v3098 = vpop.permute.xlu0 %3097
      %3099 = vrot.lane.b32.xlu0 %v2367, 104
      %v3100 = vpop.permute.xlu0 %3099
      %3101 = vrot.lane.b32.xlu0 %v2359, 72
      %v3102 = vpop.permute.xlu0 %3101
      %3103 = vrot.lane.b32.xlu0 %v2362, 72
      %v3104 = vpop.permute.xlu0 %3103
      %3105 = vrot.lane.b32.xlu0 %v2367, 72
      %v3106 = vpop.permute.xlu0 %3105
      %v3107 = vsel %vm902, %v3096, 0
      %v3109 = vsel %vm902, %v3098, 0
      %v3111 = vsel %vm902, %v3100, 0
      %v3113 = vsel %vm902, %v3102, 0
      %v3115 = vsel %vm902, %v3104, 0
      %v3117 = vsel %vm902, %v3106, 0
      %3119 = vmatprep.subr.mxu0 0.0
      %3120 = vmatpush1.xpose.msra.mxu0 %v3113
      %3121 = vmatprep.subr.mxu0 0.0
      %3122 = vmatpush1.xpose.msra.mxu0 %v3115
      %3123 = vmatprep.subr.mxu0 0.0
      %3124 = vmatpush1.xpose.msra.mxu0 %v3117
      %3125 = vmatprep.subr.mxu0 0.0
      %3126 = vmatpush1.xpose.msra.mxu0 0.0
      %3127 = vmatprep.subr.mxu0 0.0
      %3128 = vmatpush1.xpose.msra.mxu0 0.0
      %3129 = vmatprep.subr.mxu0 0.0
      %3130 = vmatpush1.xpose.msra.mxu0 0.0
      %3131 = vmatprep.subr.mxu0 0.0
      %3132 = vmatpush1.xpose.msra.mxu0 0.0
      %3133 = vmatprep.subr.mxu0 0.0
      %3134 = vmatpush1.xpose.msra.mxu0 0.0
      %3135 = vmatprep.subr.mxu0 0.0
      %3136 = vmatpush1.xpose.msra.mxu0 0.0
      %3137 = vmatprep.subr.mxu0 0.0
      %3138 = vmatpush1.xpose.msra.mxu0 0.0
      %3139 = vmatprep.subr.mxu0 0.0
      %3140 = vmatpush1.xpose.msra.mxu0 0.0
      %3141 = vmatprep.subr.mxu0 0.0
      %3142 = vmatpush1.xpose.msra.mxu0 0.0
      %3143 = vmatprep.subr.mxu0 0.0
      %3144 = vmatpush1.xpose.msra.mxu0 0.0
      %3145 = vmatprep.subr.mxu0 0.0
      %3146 = vmatpush1.xpose.msra.mxu0 0.0
      %3147 = vmatprep.subr.mxu0 0.0
      %3148 = vmatpush1.xpose.msra.mxu0 0.0
      %3149 = vmatprep.subr.mxu0 0.0
      %3150 = vmatpush1.xpose.msra.mxu0 0.0
      %3151 = vmatprep.subr.mxu0 0.0
      %3152 = vmatpush1.xpose.msra.mxu0 0.0
      %3153 = vmatprep.subr.mxu0 0.0
      %3154 = vmatpush1.xpose.msra.mxu0 0.0
      %3155 = vmatprep.subr.mxu0 0.0
      %3156 = vmatpush1.xpose.msra.mxu0 0.0
      %3157 = vmatprep.subr.mxu0 0.0
      %3158 = vmatpush1.xpose.msra.mxu0 0.0
      %3159 = vmatprep.subr.mxu0 0.0
      %3160 = vmatpush1.xpose.msra.mxu0 0.0
      %3161 = vmatprep.subr.mxu0 0.0
      %3162 = vmatpush1.xpose.msra.mxu0 0.0
      %3163 = vmatprep.subr.mxu0 0.0
      %3164 = vmatpush1.xpose.msra.mxu0 0.0
      %3165 = vmatprep.subr.mxu0 0.0
      %3166 = vmatpush1.xpose.msra.mxu0 0.0
      %3167 = vmatprep.subr.mxu0 0.0
      %3168 = vmatpush1.xpose.msra.mxu0 0.0
      %3169 = vmatprep.subr.mxu0 0.0
      %3170 = vmatpush1.xpose.msra.mxu0 0.0
      %3171 = vmatprep.subr.mxu0 0.0
      %3172 = vmatpush1.xpose.msra.mxu0 0.0
      %3173 = vmatprep.subr.mxu0 0.0
      %3174 = vmatpush1.xpose.msra.mxu0 0.0
      %3175 = vmatprep.subr.mxu0 0.0
      %3176 = vmatpush1.xpose.msra.mxu0 0.0
      %3177 = vmatprep.subr.mxu0 0.0
      %3178 = vmatpush1.xpose.msra.mxu0 0.0
      %3179 = vmatprep.subr.mxu0 0.0
      %3180 = vmatpush1.xpose.msra.mxu0 0.0
      %3181 = vmatprep.subr.mxu0 0.0
      %3182 = vmatpush1.xpose.msra.mxu0 0.0
      %3183 = vmatprep.mubr.f32.mxu0 0.0
      %3184 = vmatmul.mubr.f32.gmra.mrb[0].mxu0 %v3107
      %v3185 = vpop.f32.mrb[0].mxu0
      %v3186 = vadd.f32 0.0, %v3185
      %v3187 = vpop.f32.mrb[0].mxu0
      %3188 = vmatprep.mubr.f32.mxu0 0.0
      %3189 = vmatmul.mubr.f32.gmra.mrb[0].mxu0 %v3109
      %v3190 = vpop.f32.mrb[0].mxu0
      %v3191 = vadd.f32 0.0, %v3190
      %v3192 = vpop.f32.mrb[0].mxu0
      %3193 = vmatprep.mubr.f32.mxu0 0.0
      %3194 = vmatmul.mubr.f32.gmra.mrb[0].mxu0 %v3111
      %v3195 = vpop.f32.mrb[0].mxu0
      %v3196 = vadd.f32 0.0, %v3195
      %v3197 = vpop.f32.mrb[0].mxu0
      %3198 = vdwg.mxu0
      %v3199 = vmul.f32 %v3186, 0.35355338
      %v3200 = vmul.f32 %v3191, 0.35355338
      %v3201 = vmul.f32 %v3196, 0.35355338
      %v3202 = vadd.f32 %v3199, %v810
      %v3203 = vadd.f32 %v3200, %v811
      %v3204 = vadd.f32 %v3201, %v812
      %v3205 = vsel %vm1001, %v3202, -inf
      %3206 = vmax.xlane.f32.xlu0 %v3205
      %v3207 = vpop.xlane.xlu0 %3206
      %v3208 = vsel %vm1001, %v3203, -inf
      %3209 = vmax.xlane.f32.xlu0 %v3208
      %v3210 = vpop.xlane.xlu0 %3209
      %v3211 = vsel %vm1008, %v3204, -inf
      %3212 = vmax.xlane.f32.xlu0 %v3211
      %v3213 = vpop.xlane.xlu0 %3212
      %v3214 = vsub.f32 %v3202, %v3207
      %v3215 = vsub.f32 %v3203, %v3210
      %v3216 = vsub.f32 %v3204, %v3213
      %v3217 = vmul.f32 %v3214, 1.442695
      %v3218 = vpow.pop %v3217
      %v3219 = vmul.f32 %v3215, 1.442695
      %v3220 = vpow.pop %v3219
      %v3221 = vmul.f32 %v3216, 1.442695
      %v3222 = vpow.pop %v3221
      %v3223 = vsel %vm1001, %v3218, 0.0
      %3224 = vadd.xlane.f32.xlu0 %v3223
      %v3225 = vpop.xlane.xlu0 %3224
      %v3226 = vsel %vm1001, %v3220, 0.0
      %3227 = vadd.xlane.f32.xlu0 %v3226
      %v3228 = vpop.xlane.xlu0 %3227
      %v3229 = vsel %vm1008, %v3222, 0.0
      %3230 = vadd.xlane.f32.xlu0 %v3229
      %v3231 = vpop.xlane.xlu0 %3230
      %v3232 = vrcp.pop %v3225
      %v3233 = vrcp.pop %v3228
      %v3234 = vrcp.pop %v3231
      %v3235 = vmul.f32 %v3218, %v3232
      %v3236 = vmul.f32 %v3220, %v3233
      %v3237 = vmul.f32 %v3222, %v3234
      %3238 = vrot.lane.b32.xlu0 %v2359, 40
      %v3239 = vpop.permute.xlu0 %3238
      %3240 = vrot.lane.b32.xlu0 %v2362, 40
      %v3241 = vpop.permute.xlu0 %3240
      %3242 = vrot.lane.b32.xlu0 %v2367, 40
      %v3243 = vpop.permute.xlu0 %3242
      %v3247 = vsel %vm1001, %v3235, 0
      %v3250 = vsel %vm1001, %v3236, 0
      %v3253 = vsel %vm1001, %v3237, 0
      %v3255 = vsel %vm1053, %v3243, 0
      %3257 = vmatprep.subr.mxu0 0.0
      %3258 = vmatpush1.msra.mxu0 %v3239
      %3259 = vmatprep.subr.mxu0 0.0
      %3260 = vmatpush1.msra.mxu0 %v3241
      %3261 = vmatprep.subr.mxu0 0.0
      %3262 = vmatpush1.msra.mxu0 %v3255
      %3263 = vmatprep.subr.mxu0 0.0
      %3264 = vmatpush1.msra.mxu0 0.0
      %3265 = vmatprep.subr.mxu0 0.0
      %3266 = vmatpush1.msra.mxu0 0.0
      %3267 = vmatprep.subr.mxu0 0.0
      %3268 = vmatpush1.msra.mxu0 0.0
      %3269 = vmatprep.subr.mxu0 0.0
      %3270 = vmatpush1.msra.mxu0 0.0
      %3271 = vmatprep.subr.mxu0 0.0
      %3272 = vmatpush1.msra.mxu0 0.0
      %3273 = vmatprep.subr.mxu0 0.0
      %3274 = vmatpush1.msra.mxu0 0.0
      %3275 = vmatprep.subr.mxu0 0.0
      %3276 = vmatpush1.msra.mxu0 0.0
      %3277 = vmatprep.subr.mxu0 0.0
      %3278 = vmatpush1.msra.mxu0 0.0
      %3279 = vmatprep.subr.mxu0 0.0
      %3280 = vmatpush1.msra.mxu0 0.0
      %3281 = vmatprep.subr.mxu0 0.0
      %3282 = vmatpush1.msra.mxu0 0.0
      %3283 = vmatprep.subr.mxu0 0.0
      %3284 = vmatpush1.msra.mxu0 0.0
      %3285 = vmatprep.subr.mxu0 0.0
      %3286 = vmatpush1.msra.mxu0 0.0
      %3287 = vmatprep.subr.mxu0 0.0
      %3288 = vmatpush1.msra.mxu0 0.0
      %3289 = vmatprep.subr.mxu0 0.0
      %3290 = vmatpush1.msra.mxu0 0.0
      %3291 = vmatprep.subr.mxu0 0.0
      %3292 = vmatpush1.msra.mxu0 0.0
      %3293 = vmatprep.subr.mxu0 0.0
      %3294 = vmatpush1.msra.mxu0 0.0
      %3295 = vmatprep.subr.mxu0 0.0
      %3296 = vmatpush1.msra.mxu0 0.0
      %3297 = vmatprep.subr.mxu0 0.0
      %3298 = vmatpush1.msra.mxu0 0.0
      %3299 = vmatprep.subr.mxu0 0.0
      %3300 = vmatpush1.msra.mxu0 0.0
      %3301 = vmatprep.subr.mxu0 0.0
      %3302 = vmatpush1.msra.mxu0 0.0
      %3303 = vmatprep.subr.mxu0 0.0
      %3304 = vmatpush1.msra.mxu0 0.0
      %3305 = vmatprep.subr.mxu0 0.0
      %3306 = vmatpush1.msra.mxu0 0.0
      %3307 = vmatprep.subr.mxu0 0.0
      %3308 = vmatpush1.msra.mxu0 0.0
      %3309 = vmatprep.subr.mxu0 0.0
      %3310 = vmatpush1.msra.mxu0 0.0
      %3311 = vmatprep.subr.mxu0 0.0
      %3312 = vmatpush1.msra.mxu0 0.0
      %3313 = vmatprep.subr.mxu0 0.0
      %3314 = vmatpush1.msra.mxu0 0.0
      %3315 = vmatprep.subr.mxu0 0.0
      %3316 = vmatpush1.msra.mxu0 0.0
      %3317 = vmatprep.subr.mxu0 0.0
      %3318 = vmatpush1.msra.mxu0 0.0
      %3319 = vmatprep.subr.mxu0 0.0
      %3320 = vmatpush1.msra.mxu0 0.0
      %3321 = vmatprep.mubr.f32.mxu0 0.0
      %3322 = vmatmul.mubr.f32.gmra.mrb[0].mxu0 %v3247
      %v3323 = vpop.f32.mrb[0].mxu0
      %v3324 = vadd.f32 0.0, %v3323
      %v3325 = vpop.f32.mrb[0].mxu0
      %3326 = vmatprep.mubr.f32.mxu0 0.0
      %3327 = vmatmul.mubr.f32.gmra.mrb[0].mxu0 %v3250
      %v3328 = vpop.f32.mrb[0].mxu0
      %v3329 = vadd.f32 0.0, %v3328
      %v3330 = vpop.f32.mrb[0].mxu0
      %3331 = vmatprep.mubr.f32.mxu0 0.0
      %3332 = vmatmul.mubr.f32.gmra.mrb[0].mxu0 %v3253
      %v3333 = vpop.f32.mrb[0].mxu0
      %v3334 = vadd.f32 0.0, %v3333
      %v3335 = vpop.f32.mrb[0].mxu0
      %3336 = vdwg.mxu0
      %3340 = vrot.lane.b32.xlu0 %v2840, 8
      %v3341 = vpop.permute.xlu0 %3340
      %3342 = vrot.lane.b32.xlu0 %v2845, 8
      %v3343 = vpop.permute.xlu0 %3342
      %3344 = vrot.lane.b32.xlu0 %v2850, 8
      %v3345 = vpop.permute.xlu0 %3344
      %3352 = vrot.lane.b32.xlu0 %v3082, 16
      %v3353 = vpop.permute.xlu0 %3352
      %3354 = vrot.lane.b32.xlu0 %v3087, 16
      %v3355 = vpop.permute.xlu0 %3354
      %3356 = vrot.lane.b32.xlu0 %v3092, 16
      %v3357 = vpop.permute.xlu0 %3356
      %3364 = vrot.lane.b32.xlu0 %v3324, 24
      %v3365 = vpop.permute.xlu0 %3364
      %3366 = vrot.lane.b32.xlu0 %v3329, 24
      %v3367 = vpop.permute.xlu0 %3366
      %3368 = vrot.lane.b32.xlu0 %v3334, 24
      %v3369 = vpop.permute.xlu0 %3368
      %v3373 = vsel %vm902, %v2598, %v3341
      %v3374 = vsel %vm902, %v2603, %v3343
      %v3375 = vsel %vm902, %v2608, %v3345
      %v3376 = vsel %vm1901, %v3373, %v3353
      %v3377 = vsel %vm1901, %v3374, %v3355
      %v3378 = vsel %vm1901, %v3375, %v3357
      %v3379 = vsel %vm1905, %v3376, %v3365
      %v3380 = vsel %vm1905, %v3377, %v3367
      %v3381 = vsel %vm1905, %v3378, %v3369
      %v3382 = vpack.c.bf16 %v3380, %v3379
      %v3383 = vpack.c.bf16 %v3381, %v3381
      %s3384 = scalar_lea.vmem %s8, 16
      %v3385 = vld [vmem:[%s3384] sm:$0xf]
      %v3386 = vld [vmem:[%s3384 + $0x4] sm:$0xf]
      %v3387 = vld [vmem:[%s3384 + $0x8] sm:$0xf]
      %v3388 = vld [vmem:[%s3384 + $0xc] sm:$0xf]
      %s3389 = scalar_lea.vmem %s9, 1
      %v3390 = vld [vmem:[%s3389] sm:$0x1]
      %v3392 = vlaneseq
      %v3393 = vshrl.u32 %v3392, 7
      %v3394 = vsub.s32 0, %v3393
      %v3395 = vrot.slane %v3390, %v3394
      %v3401 = vunpack.c.l.b16 %v3385
      %v3402 = vunpack.c.l.b16 %v3386
      %v3403 = vunpack.c.l.b16 %v3387
      %v3404 = vunpack.c.l.b16 %v3388
      %v3405 = vpack.c.b16 %v3402, %v3401
      %v3406 = vpack.c.b16 %v3404, %v3403
      %v3410 = vsel %vm838, %v3382, 0
      %v3413 = vsel %vm838, %v3383, 0
      %3415 = vmatprep.subr.bf16.mxu0 0
      %3416 = vmatpush1.bf16.msra.mxu0 %v3405
      %3417 = vmatprep.subr.bf16.mxu0 0
      %3418 = vmatpush1.bf16.msra.mxu0 %v3406
      %3419 = vmatprep.subr.bf16.mxu0 0
      %3420 = vmatpush1.bf16.msra.mxu0 0
      %3421 = vmatprep.subr.bf16.mxu0 0
      %3422 = vmatpush1.bf16.msra.mxu0 0
      %3423 = vmatprep.subr.bf16.mxu0 0
      %3424 = vmatpush1.bf16.msra.mxu0 0
      %3425 = vmatprep.subr.bf16.mxu0 0
      %3426 = vmatpush1.bf16.msra.mxu0 0
      %3427 = vmatprep.subr.bf16.mxu0 0
      %3428 = vmatpush1.bf16.msra.mxu0 0
      %3429 = vmatprep.subr.bf16.mxu0 0
      %3430 = vmatpush1.bf16.msra.mxu0 0
      %3431 = vmatprep.subr.bf16.mxu0 0
      %3432 = vmatpush1.bf16.msra.mxu0 0
      %3433 = vmatprep.subr.bf16.mxu0 0
      %3434 = vmatpush1.bf16.msra.mxu0 0
      %3435 = vmatprep.subr.bf16.mxu0 0
      %3436 = vmatpush1.bf16.msra.mxu0 0
      %3437 = vmatprep.subr.bf16.mxu0 0
      %3438 = vmatpush1.bf16.msra.mxu0 0
      %3439 = vmatprep.subr.bf16.mxu0 0
      %3440 = vmatpush1.bf16.msra.mxu0 0
      %3441 = vmatprep.subr.bf16.mxu0 0
      %3442 = vmatpush1.bf16.msra.mxu0 0
      %3443 = vmatprep.subr.bf16.mxu0 0
      %3444 = vmatpush1.bf16.msra.mxu0 0
      %3445 = vmatprep.subr.bf16.mxu0 0
      %3446 = vmatpush1.bf16.msra.mxu0 0
      %3447 = vmatprep.mubr.bf16.mxu0 0
      %3448 = vmatmul.mubr.bf16.gmra.mrb[0].mxu0 %v3410
      %v3449 = vpop.f32.mrb[0].mxu0
      %v3450 = vadd.f32 %v3395, %v3449
      %v3451 = vpop.f32.mrb[0].mxu0
      %v3452 = vpop.f32.mrb[0].mxu0
      %v3453 = vadd.f32 %v3395, %v3452
      %v3454 = vpop.f32.mrb[0].mxu0
      %3455 = vmatprep.mubr.bf16.mxu0 0
      %3456 = vmatmul.mubr.bf16.gmra.mrb[0].mxu0 %v3413
      %v3457 = vpop.f32.mrb[0].mxu0
      %v3458 = vadd.f32 %v3395, %v3457
      %v3459 = vpop.f32.mrb[0].mxu0
      %v3460 = vpop.f32.mrb[0].mxu0
      %v3461 = vpop.f32.mrb[0].mxu0
      %3462 = vdwg.mxu0
      %v3463 = vadd.f32 %v2288, %v3450
      %v3464 = vadd.f32 %v2289, %v3453
      %v3465 = vadd.f32 %v2290, %v3458
      %s3466 = scalar_lea.vmem %s14, 1
      %v3467 = vld [vmem:[%s3466] sm:$0x1]
      %s3468 = scalar_lea.vmem %s15, 1
      %v3469 = vld [vmem:[%s3468] sm:$0x1]
      %v3470 = vsel %vm838, %v3463, 0.0
      %3471 = vadd.xlane.f32.xlu0 %v3470
      %v3472 = vpop.xlane.xlu0 %3471
      %v3473 = vsel %vm838, %v3464, 0.0
      %3474 = vadd.xlane.f32.xlu0 %v3473
      %v3475 = vpop.xlane.xlu0 %3474
      %v3476 = vsel %vm1999, %v3465, 0.0
      %3477 = vadd.xlane.f32.xlu0 %v3476
      %v3478 = vpop.xlane.xlu0 %3477
      %v3479 = vmul.f32 %v3472, %v2003
      %v3480 = vmul.f32 %v3475, %v2003
      %v3481 = vmul.f32 %v3478, %v2003
      %v3482 = vsub.f32 %v3463, %v3479
      %v3483 = vsub.f32 %v3464, %v3480
      %v3484 = vsub.f32 %v3465, %v3481
      %v3485 = vmul.f32 %v3482, %v3482
      %v3486 = vmul.f32 %v3483, %v3483
      %v3487 = vmul.f32 %v3484, %v3484
      %v3488 = vsel %vm838, %v3485, 0.0
      %3489 = vadd.xlane.f32.xlu0 %v3488
      %v3490 = vpop.xlane.xlu0 %3489
      %v3491 = vsel %vm838, %v3486, 0.0
      %3492 = vadd.xlane.f32.xlu0 %v3491
      %v3493 = vpop.xlane.xlu0 %3492
      %v3494 = vsel %vm1999, %v3487, 0.0
      %3495 = vadd.xlane.f32.xlu0 %v3494
      %v3496 = vpop.xlane.xlu0 %3495
      %v3497 = vmul.f32 %v3490, %v2003
      %v3498 = vmul.f32 %v3493, %v2003
      %v3499 = vmul.f32 %v3496, %v2003
      %v3500 = vadd.f32 %v3497, 1e-05
      %v3501 = vadd.f32 %v3498, 1e-05
      %v3502 = vadd.f32 %v3499, 1e-05
      %v3503 = vrsqrt.pop %v3500
      %v3504 = vrsqrt.pop %v3501
      %v3505 = vrsqrt.pop %v3502
      %v3506 = vmul.f32 %v3482, %v3503
      %v3507 = vmul.f32 %v3483, %v3504
      %v3508 = vmul.f32 %v3484, %v3505
      %v3510 = vlaneseq
      %v3511 = vshrl.u32 %v3510, 7
      %v3512 = vsub.s32 0, %v3511
      %v3513 = vrot.slane %v3467, %v3512
      %v3515 = vmul.f32 %v3506, %v3513
      %v3516 = vmul.f32 %v3507, %v3513
      %v3517 = vmul.f32 %v3508, %v3513
      %v3519 = vlaneseq
      %v3520 = vshrl.u32 %v3519, 7
      %v3521 = vsub.s32 0, %v3520
      %v3522 = vrot.slane %v3469, %v3521
      %v3524 = vadd.f32 %v3515, %v3522
      %v3525 = vadd.f32 %v3516, %v3522
      %v3526 = vadd.f32 %v3517, %v3522
      %v3527 = vpack.c.bf16 %v3525, %v3524
      %v3528 = vpack.c.bf16 %v3526, %v3526
      %s3529 = scalar_lea.vmem %s10, 16
      %v3530 = vld [vmem:[%s3529] sm:$0xf]
      %v3531 = vld [vmem:[%s3529 + $0x4] sm:$0xf]
      %v3532 = vld [vmem:[%s3529 + $0x8] sm:$0xf]
      %v3533 = vld [vmem:[%s3529 + $0xc] sm:$0xf]
      %s3534 = scalar_lea.vmem %s11, 1
      %v3535 = vld [vmem:[%s3534] sm:$0x1]
      %v3537 = vlaneseq
      %v3538 = vshrl.u32 %v3537, 7
      %v3539 = vsub.s32 0, %v3538
      %v3540 = vrot.slane %v3535, %v3539
      %v3546 = vunpack.c.l.b16 %v3530
      %v3547 = vunpack.c.l.b16 %v3531
      %v3548 = vunpack.c.l.b16 %v3532
      %v3549 = vunpack.c.l.b16 %v3533
      %v3550 = vpack.c.b16 %v3547, %v3546
      %v3551 = vpack.c.b16 %v3549, %v3548
      %v3555 = vsel %vm838, %v3527, 0
      %v3558 = vsel %vm838, %v3528, 0
      %3560 = vmatprep.subr.bf16.mxu0 0
      %3561 = vmatpush1.bf16.msra.mxu0 %v3550
      %3562 = vmatprep.subr.bf16.mxu0 0
      %3563 = vmatpush1.bf16.msra.mxu0 %v3551
      %3564 = vmatprep.subr.bf16.mxu0 0
      %3565 = vmatpush1.bf16.msra.mxu0 0
      %3566 = vmatprep.subr.bf16.mxu0 0
      %3567 = vmatpush1.bf16.msra.mxu0 0
      %3568 = vmatprep.subr.bf16.mxu0 0
      %3569 = vmatpush1.bf16.msra.mxu0 0
      %3570 = vmatprep.subr.bf16.mxu0 0
      %3571 = vmatpush1.bf16.msra.mxu0 0
      %3572 = vmatprep.subr.bf16.mxu0 0
      %3573 = vmatpush1.bf16.msra.mxu0 0
      %3574 = vmatprep.subr.bf16.mxu0 0
      %3575 = vmatpush1.bf16.msra.mxu0 0
      %3576 = vmatprep.subr.bf16.mxu0 0
      %3577 = vmatpush1.bf16.msra.mxu0 0
      %3578 = vmatprep.subr.bf16.mxu0 0
      %3579 = vmatpush1.bf16.msra.mxu0 0
      %3580 = vmatprep.subr.bf16.mxu0 0
      %3581 = vmatpush1.bf16.msra.mxu0 0
      %3582 = vmatprep.subr.bf16.mxu0 0
      %3583 = vmatpush1.bf16.msra.mxu0 0
      %3584 = vmatprep.subr.bf16.mxu0 0
      %3585 = vmatpush1.bf16.msra.mxu0 0
      %3586 = vmatprep.subr.bf16.mxu0 0
      %3587 = vmatpush1.bf16.msra.mxu0 0
      %3588 = vmatprep.subr.bf16.mxu0 0
      %3589 = vmatpush1.bf16.msra.mxu0 0
      %3590 = vmatprep.subr.bf16.mxu0 0
      %3591 = vmatpush1.bf16.msra.mxu0 0
      %3592 = vmatprep.mubr.bf16.mxu0 0
      %3593 = vmatmul.mubr.bf16.gmra.mrb[0].mxu0 %v3555
      %v3594 = vpop.f32.mrb[0].mxu0
      %v3595 = vadd.f32 %v3540, %v3594
      %v3596 = vpop.f32.mrb[0].mxu0
      %v3597 = vpop.f32.mrb[0].mxu0
      %v3598 = vadd.f32 %v3540, %v3597
      %v3599 = vpop.f32.mrb[0].mxu0
      %3600 = vmatprep.mubr.bf16.mxu0 0
      %3601 = vmatmul.mubr.bf16.gmra.mrb[0].mxu0 %v3558
      %v3602 = vpop.f32.mrb[0].mxu0
      %v3603 = vadd.f32 %v3540, %v3602
      %v3604 = vpop.f32.mrb[0].mxu0
      %v3605 = vpop.f32.mrb[0].mxu0
      %v3606 = vpop.f32.mrb[0].mxu0
      %3607 = vdwg.mxu0
      %v3608 = vmax.f32 %v3595, 0.0
      %v3609 = vmax.f32 %v3598, 0.0
      %v3610 = vmax.f32 %v3603, 0.0
      %v3611 = vpack.c.bf16 %v3609, %v3608
      %v3612 = vpack.c.bf16 %v3610, %v3610
      %s3613 = scalar_lea.vmem %s12, 32
      %v3614 = vld [vmem:[%s3613] sm:$0xf]
      %v3615 = vld [vmem:[%s3613 + $0x4] sm:$0xf]
      %v3616 = vld [vmem:[%s3613 + $0x8] sm:$0xf]
      %v3617 = vld [vmem:[%s3613 + $0xc] sm:$0xf]
      %v3618 = vld [vmem:[%s3613 + $0x10] sm:$0xf]
      %v3619 = vld [vmem:[%s3613 + $0x14] sm:$0xf]
      %v3620 = vld [vmem:[%s3613 + $0x18] sm:$0xf]
      %v3621 = vld [vmem:[%s3613 + $0x1c] sm:$0xf]
      %s3622 = scalar_lea.vmem %s13, 1
      %v3623 = vld [vmem:[%s3622] sm:$0x1]
      %v3625 = vlaneseq
      %v3626 = vshrl.u32 %v3625, 7
      %v3627 = vsub.s32 0, %v3626
      %v3628 = vrot.slane %v3623, %v3627
      %v3638 = vunpack.c.l.b16 %v3614
      %v3639 = vunpack.c.l.b16 %v3615
      %v3640 = vunpack.c.l.b16 %v3616
      %v3641 = vunpack.c.l.b16 %v3617
      %v3642 = vunpack.c.l.b16 %v3618
      %v3643 = vunpack.c.l.b16 %v3619
      %v3644 = vunpack.c.l.b16 %v3620
      %v3645 = vunpack.c.l.b16 %v3621
      %v3646 = vpack.c.b16 %v3639, %v3638
      %v3647 = vpack.c.b16 %v3641, %v3640
      %v3648 = vpack.c.b16 %v3643, %v3642
      %v3649 = vpack.c.b16 %v3645, %v3644
      %v3655 = vsel %vm749, %v3611, 0
      %v3658 = vsel %vm749, %v3612, 0
      %3660 = vmatprep.subr.bf16.mxu0 0
      %3661 = vmatpush1.bf16.msra.mxu0 %v3646
      %3662 = vmatprep.subr.bf16.mxu0 0
      %3663 = vmatpush1.bf16.msra.mxu0 %v3647
      %3664 = vmatprep.subr.bf16.mxu0 0
      %3665 = vmatpush1.bf16.msra.mxu0 %v3648
      %3666 = vmatprep.subr.bf16.mxu0 0
      %3667 = vmatpush1.bf16.msra.mxu0 %v3649
      %3668 = vmatprep.subr.bf16.mxu0 0
      %3669 = vmatpush1.bf16.msra.mxu0 0
      %3670 = vmatprep.subr.bf16.mxu0 0
      %3671 = vmatpush1.bf16.msra.mxu0 0
      %3672 = vmatprep.subr.bf16.mxu0 0
      %3673 = vmatpush1.bf16.msra.mxu0 0
      %3674 = vmatprep.subr.bf16.mxu0 0
      %3675 = vmatpush1.bf16.msra.mxu0 0
      %3676 = vmatprep.subr.bf16.mxu0 0
      %3677 = vmatpush1.bf16.msra.mxu0 0
      %3678 = vmatprep.subr.bf16.mxu0 0
      %3679 = vmatpush1.bf16.msra.mxu0 0
      %3680 = vmatprep.subr.bf16.mxu0 0
      %3681 = vmatpush1.bf16.msra.mxu0 0
      %3682 = vmatprep.subr.bf16.mxu0 0
      %3683 = vmatpush1.bf16.msra.mxu0 0
      %3684 = vmatprep.subr.bf16.mxu0 0
      %3685 = vmatpush1.bf16.msra.mxu0 0
      %3686 = vmatprep.subr.bf16.mxu0 0
      %3687 = vmatpush1.bf16.msra.mxu0 0
      %3688 = vmatprep.subr.bf16.mxu0 0
      %3689 = vmatpush1.bf16.msra.mxu0 0
      %3690 = vmatprep.subr.bf16.mxu0 0
      %3691 = vmatpush1.bf16.msra.mxu0 0
      %3692 = vmatprep.mubr.bf16.mxu0 0
      %3693 = vmatmul.mubr.bf16.gmra.mrb[0].mxu0 %v3655
      %v3694 = vpop.f32.mrb[0].mxu0
      %v3695 = vadd.f32 %v3628, %v3694
      %v3696 = vpop.f32.mrb[0].mxu0
      %v3697 = vpop.f32.mrb[0].mxu0
      %v3698 = vadd.f32 %v3628, %v3697
      %v3699 = vpop.f32.mrb[0].mxu0
      %3700 = vmatprep.mubr.bf16.mxu0 0
      %3701 = vmatmul.mubr.bf16.gmra.mrb[0].mxu0 %v3658
      %v3702 = vpop.f32.mrb[0].mxu0
      %v3703 = vadd.f32 %v3628, %v3702
      %v3704 = vpop.f32.mrb[0].mxu0
      %v3705 = vpop.f32.mrb[0].mxu0
      %v3706 = vpop.f32.mrb[0].mxu0
      %3707 = vdwg.mxu0
      %v3708 = vadd.f32 %v3524, %v3695
      %v3709 = vadd.f32 %v3525, %v3698
      %v3710 = vadd.f32 %v3526, %v3703
      %s3711 = scalar_lea.vmem %s16, 1
      %v3712 = vld [vmem:[%s3711] sm:$0x1]
      %s3713 = scalar_lea.vmem %s17, 1
      %v3714 = vld [vmem:[%s3713] sm:$0x1]
      %v3715 = vsel %vm838, %v3708, 0.0
      %3716 = vadd.xlane.f32.xlu0 %v3715
      %v3717 = vpop.xlane.xlu0 %3716
      %v3718 = vsel %vm838, %v3709, 0.0
      %3719 = vadd.xlane.f32.xlu0 %v3718
      %v3720 = vpop.xlane.xlu0 %3719
      %v3721 = vsel %vm1999, %v3710, 0.0
      %3722 = vadd.xlane.f32.xlu0 %v3721
      %v3723 = vpop.xlane.xlu0 %3722
      %v3724 = vmul.f32 %v3717, %v2003
      %v3725 = vmul.f32 %v3720, %v2003
      %v3726 = vmul.f32 %v3723, %v2003
      %v3727 = vsub.f32 %v3708, %v3724
      %v3728 = vsub.f32 %v3709, %v3725
      %v3729 = vsub.f32 %v3710, %v3726
      %v3730 = vmul.f32 %v3727, %v3727
      %v3731 = vmul.f32 %v3728, %v3728
      %v3732 = vmul.f32 %v3729, %v3729
      %v3733 = vsel %vm838, %v3730, 0.0
      %3734 = vadd.xlane.f32.xlu0 %v3733
      %v3735 = vpop.xlane.xlu0 %3734
      %v3736 = vsel %vm838, %v3731, 0.0
      %3737 = vadd.xlane.f32.xlu0 %v3736
      %v3738 = vpop.xlane.xlu0 %3737
      %v3739 = vsel %vm1999, %v3732, 0.0
      %3740 = vadd.xlane.f32.xlu0 %v3739
      %v3741 = vpop.xlane.xlu0 %3740
      %v3742 = vmul.f32 %v3735, %v2003
      %v3743 = vmul.f32 %v3738, %v2003
      %v3744 = vmul.f32 %v3741, %v2003
      %v3745 = vadd.f32 %v3742, 1e-05
      %v3746 = vadd.f32 %v3743, 1e-05
      %v3747 = vadd.f32 %v3744, 1e-05
      %v3748 = vrsqrt.pop %v3745
      %v3749 = vrsqrt.pop %v3746
      %v3750 = vrsqrt.pop %v3747
      %v3751 = vmul.f32 %v3727, %v3748
      %v3752 = vmul.f32 %v3728, %v3749
      %v3753 = vmul.f32 %v3729, %v3750
      %v3755 = vlaneseq
      %v3756 = vshrl.u32 %v3755, 7
      %v3757 = vsub.s32 0, %v3756
      %v3758 = vrot.slane %v3712, %v3757
      %v3760 = vmul.f32 %v3751, %v3758
      %v3761 = vmul.f32 %v3752, %v3758
      %v3762 = vmul.f32 %v3753, %v3758
      %v3764 = vlaneseq
      %v3765 = vshrl.u32 %v3764, 7
      %v3766 = vsub.s32 0, %v3765
      %v3767 = vrot.slane %v3714, %v3766
      %v3769 = vadd.f32 %v3760, %v3767
      %v3770 = vadd.f32 %v3761, %v3767
      %v3771 = vadd.f32 %v3762, %v3767
      %v3772 = vpack.c.bf16 %v3770, %v3769
      %v3773 = vpack.c.bf16 %v3771, %v3771
      %v3774 = vld [vmem:[%s18] sm:$0xf]
      %v3775 = vld [vmem:[%s18 + $0x4] sm:$0xf]
      %v3776 = vld [vmem:[%s18 + $0x8] sm:$0xf]
      %v3777 = vld [vmem:[%s18 + $0xc] sm:$0xf]
      %v3778 = vld [vmem:[%s19] sm:$0x1]
      %v3780 = vlaneseq
      %v3781 = vshrl.u32 %v3780, 7
      %v3782 = vsub.s32 0, %v3781
      %v3783 = vrot.slane %v3778, %v3782
      %v3789 = vunpack.c.l.b16 %v3774
      %v3790 = vunpack.c.l.b16 %v3775
      %v3791 = vunpack.c.l.b16 %v3776
      %v3792 = vunpack.c.l.b16 %v3777
      %v3793 = vpack.c.b16 %v3790, %v3789
      %v3794 = vpack.c.b16 %v3792, %v3791
      %v3798 = vsel %vm838, %v3772, 0
      %v3801 = vsel %vm838, %v3773, 0
      %3803 = vmatprep.subr.bf16.mxu0 0
      %3804 = vmatpush1.bf16.msra.mxu0 %v3793
      %3805 = vmatprep.subr.bf16.mxu0 0
      %3806 = vmatpush1.bf16.msra.mxu0 %v3794
      %3807 = vmatprep.subr.bf16.mxu0 0
      %3808 = vmatpush1.bf16.msra.mxu0 0
      %3809 = vmatprep.subr.bf16.mxu0 0
      %3810 = vmatpush1.bf16.msra.mxu0 0
      %3811 = vmatprep.subr.bf16.mxu0 0
      %3812 = vmatpush1.bf16.msra.mxu0 0
      %3813 = vmatprep.subr.bf16.mxu0 0
      %3814 = vmatpush1.bf16.msra.mxu0 0
      %3815 = vmatprep.subr.bf16.mxu0 0
      %3816 = vmatpush1.bf16.msra.mxu0 0
      %3817 = vmatprep.subr.bf16.mxu0 0
      %3818 = vmatpush1.bf16.msra.mxu0 0
      %3819 = vmatprep.subr.bf16.mxu0 0
      %3820 = vmatpush1.bf16.msra.mxu0 0
      %3821 = vmatprep.subr.bf16.mxu0 0
      %3822 = vmatpush1.bf16.msra.mxu0 0
      %3823 = vmatprep.subr.bf16.mxu0 0
      %3824 = vmatpush1.bf16.msra.mxu0 0
      %3825 = vmatprep.subr.bf16.mxu0 0
      %3826 = vmatpush1.bf16.msra.mxu0 0
      %3827 = vmatprep.subr.bf16.mxu0 0
      %3828 = vmatpush1.bf16.msra.mxu0 0
      %3829 = vmatprep.subr.bf16.mxu0 0
      %3830 = vmatpush1.bf16.msra.mxu0 0
      %3831 = vmatprep.subr.bf16.mxu0 0
      %3832 = vmatpush1.bf16.msra.mxu0 0
      %3833 = vmatprep.subr.bf16.mxu0 0
      %3834 = vmatpush1.bf16.msra.mxu0 0
      %3835 = vmatprep.mubr.bf16.mxu0 0
      %3836 = vmatmul.mubr.bf16.gmra.mrb[0].mxu0 %v3798
      %v3837 = vpop.f32.mrb[0].mxu0
      %v3838 = vadd.f32 %v3783, %v3837
      %v3839 = vpop.f32.mrb[0].mxu0
      %v3840 = vpop.f32.mrb[0].mxu0
      %v3841 = vadd.f32 %v3783, %v3840
      %v3842 = vpop.f32.mrb[0].mxu0
      %3843 = vmatprep.mubr.bf16.mxu0 0
      %3844 = vmatmul.mubr.bf16.gmra.mrb[0].mxu0 %v3801
      %v3845 = vpop.f32.mrb[0].mxu0
      %v3846 = vadd.f32 %v3783, %v3845
      %v3847 = vpop.f32.mrb[0].mxu0
      %v3848 = vpop.f32.mrb[0].mxu0
      %v3849 = vpop.f32.mrb[0].mxu0
      %3850 = vdwg.mxu0
      %v3851 = vsub.f32 0.0, %v3838
      %v3852 = vsub.f32 0.0, %v3841
      %v3853 = vsub.f32 0.0, %v3846
      %v3854 = vmul.f32 %v3851, 1.442695
      %v3855 = vpow.pop %v3854
      %v3856 = vmul.f32 %v3852, 1.442695
      %v3857 = vpow.pop %v3856
      %v3858 = vmul.f32 %v3853, 1.442695
      %v3859 = vpow.pop %v3858
      %v3860 = vadd.f32 %v3855, 1.0
      %v3861 = vadd.f32 %v3857, 1.0
      %v3862 = vadd.f32 %v3859, 1.0
      %v3863 = vrcp.pop %v3860
      %v3864 = vrcp.pop %v3861
      %v3865 = vrcp.pop %v3862
      %v3866 = vmul.f32 %v3769, %v3863
      %v3867 = vmul.f32 %v3770, %v3864
      %v3868 = vmul.f32 %v3771, %v3865
      %v3869 = vld [vmem:[%s3] sm:$0xff]
      %v3870 = vld [vmem:[%s3 + $0x8] sm:$0x3]
      %v3872 = vsel %vm1001, %v3869, 0
      %v3875 = vsel %vm1001, %v3870, 0
      %v3878 = vsel %vm1053, %v3868, 0
      %3880 = vmatprep.subr.mxu0 0.0
      %3881 = vmatpush1.msra.mxu0 %v3866
      %3882 = vmatprep.subr.mxu0 0.0
      %3883 = vmatpush1.msra.mxu0 %v3867
      %3884 = vmatprep.subr.mxu0 0.0
      %3885 = vmatpush1.msra.mxu0 %v3878
      %3886 = vmatprep.subr.mxu0 0.0
      %3887 = vmatpush1.msra.mxu0 0.0
      %3888 = vmatprep.subr.mxu0 0.0
      %3889 = vmatpush1.msra.mxu0 0.0
      %3890 = vmatprep.subr.mxu0 0.0
      %3891 = vmatpush1.msra.mxu0 0.0
      %3892 = vmatprep.subr.mxu0 0.0
      %3893 = vmatpush1.msra.mxu0 0.0
      %3894 = vmatprep.subr.mxu0 0.0
      %3895 = vmatpush1.msra.mxu0 0.0
      %3896 = vmatprep.subr.mxu0 0.0
      %3897 = vmatpush1.msra.mxu0 0.0
      %3898 = vmatprep.subr.mxu0 0.0
      %3899 = vmatpush1.msra.mxu0 0.0
      %3900 = vmatprep.subr.mxu0 0.0
      %3901 = vmatpush1.msra.mxu0 0.0
      %3902 = vmatprep.subr.mxu0 0.0
      %3903 = vmatpush1.msra.mxu0 0.0
      %3904 = vmatprep.subr.mxu0 0.0
      %3905 = vmatpush1.msra.mxu0 0.0
      %3906 = vmatprep.subr.mxu0 0.0
      %3907 = vmatpush1.msra.mxu0 0.0
      %3908 = vmatprep.subr.mxu0 0.0
      %3909 = vmatpush1.msra.mxu0 0.0
      %3910 = vmatprep.subr.mxu0 0.0
      %3911 = vmatpush1.msra.mxu0 0.0
      %3912 = vmatprep.subr.mxu0 0.0
      %3913 = vmatpush1.msra.mxu0 0.0
      %3914 = vmatprep.subr.mxu0 0.0
      %3915 = vmatpush1.msra.mxu0 0.0
      %3916 = vmatprep.subr.mxu0 0.0
      %3917 = vmatpush1.msra.mxu0 0.0
      %3918 = vmatprep.subr.mxu0 0.0
      %3919 = vmatpush1.msra.mxu0 0.0
      %3920 = vmatprep.subr.mxu0 0.0
      %3921 = vmatpush1.msra.mxu0 0.0
      %3922 = vmatprep.subr.mxu0 0.0
      %3923 = vmatpush1.msra.mxu0 0.0
      %3924 = vmatprep.subr.mxu0 0.0
      %3925 = vmatpush1.msra.mxu0 0.0
      %3926 = vmatprep.subr.mxu0 0.0
      %3927 = vmatpush1.msra.mxu0 0.0
      %3928 = vmatprep.subr.mxu0 0.0
      %3929 = vmatpush1.msra.mxu0 0.0
      %3930 = vmatprep.subr.mxu0 0.0
      %3931 = vmatpush1.msra.mxu0 0.0
      %3932 = vmatprep.subr.mxu0 0.0
      %3933 = vmatpush1.msra.mxu0 0.0
      %3934 = vmatprep.subr.mxu0 0.0
      %3935 = vmatpush1.msra.mxu0 0.0
      %3936 = vmatprep.subr.mxu0 0.0
      %3937 = vmatpush1.msra.mxu0 0.0
      %3938 = vmatprep.subr.mxu0 0.0
      %3939 = vmatpush1.msra.mxu0 0.0
      %3940 = vmatprep.subr.mxu0 0.0
      %3941 = vmatpush1.msra.mxu0 0.0
      %3942 = vmatprep.subr.mxu0 0.0
      %3943 = vmatpush1.msra.mxu0 0.0
      %3944 = vmatprep.mubr.f32.mxu0 0.0
      %3945 = vmatmul.mubr.f32.gmra.mrb[0].mxu0 %v3872
      %v3946 = vpop.f32.mrb[0].mxu0
      %v3947 = vadd.f32 0.0, %v3946
      %v3948 = vpop.f32.mrb[0].mxu0
      %3949 = vmatprep.mubr.f32.mxu0 0.0
      %3950 = vmatmul.mubr.f32.gmra.mrb[0].mxu0 %v3875
      %v3951 = vpop.f32.mrb[0].mxu0
      %v3952 = vadd.f32 0.0, %v3951
      %v3953 = vpop.f32.mrb[0].mxu0
      %3954 = vdwg.mxu0
      %v3955 = vpack.c.bf16 %v3952, %v3947
      %v3956 = vld [vmem:[%s20] sm:$0xf]
      %v3957 = vld [vmem:[%s20 + $0x4] sm:$0xf]
      %v3958 = vld [vmem:[%s20 + $0x8] sm:$0xf]
      %v3959 = vld [vmem:[%s20 + $0xc] sm:$0xf]
      %v3960 = vld [vmem:[%s21] sm:$0x1]
      %v3962 = vlaneseq
      %v3963 = vshrl.u32 %v3962, 7
      %v3964 = vsub.s32 0, %v3963
      %v3965 = vrot.slane %v3960, %v3964
      %v3971 = vunpack.c.l.b16 %v3956
      %v3972 = vunpack.c.l.b16 %v3957
      %v3973 = vunpack.c.l.b16 %v3958
      %v3974 = vunpack.c.l.b16 %v3959
      %v3975 = vpack.c.b16 %v3972, %v3971
      %v3976 = vpack.c.b16 %v3974, %v3973
      %v3980 = vsel %vm838, %v3955, 0
      %3982 = vmatprep.subr.bf16.mxu0 0
      %3983 = vmatpush1.bf16.msra.mxu0 %v3975
      %3984 = vmatprep.subr.bf16.mxu0 0
      %3985 = vmatpush1.bf16.msra.mxu0 %v3976
      %3986 = vmatprep.subr.bf16.mxu0 0
      %3987 = vmatpush1.bf16.msra.mxu0 0
      %3988 = vmatprep.subr.bf16.mxu0 0
      %3989 = vmatpush1.bf16.msra.mxu0 0
      %3990 = vmatprep.subr.bf16.mxu0 0
      %3991 = vmatpush1.bf16.msra.mxu0 0
      %3992 = vmatprep.subr.bf16.mxu0 0
      %3993 = vmatpush1.bf16.msra.mxu0 0
      %3994 = vmatprep.subr.bf16.mxu0 0
      %3995 = vmatpush1.bf16.msra.mxu0 0
      %3996 = vmatprep.subr.bf16.mxu0 0
      %3997 = vmatpush1.bf16.msra.mxu0 0
      %3998 = vmatprep.subr.bf16.mxu0 0
      %3999 = vmatpush1.bf16.msra.mxu0 0
      %4000 = vmatprep.subr.bf16.mxu0 0
      %4001 = vmatpush1.bf16.msra.mxu0 0
      %4002 = vmatprep.subr.bf16.mxu0 0
      %4003 = vmatpush1.bf16.msra.mxu0 0
      %4004 = vmatprep.subr.bf16.mxu0 0
      %4005 = vmatpush1.bf16.msra.mxu0 0
      %4006 = vmatprep.subr.bf16.mxu0 0
      %4007 = vmatpush1.bf16.msra.mxu0 0
      %4008 = vmatprep.subr.bf16.mxu0 0
      %4009 = vmatpush1.bf16.msra.mxu0 0
      %4010 = vmatprep.subr.bf16.mxu0 0
      %4011 = vmatpush1.bf16.msra.mxu0 0
      %4012 = vmatprep.subr.bf16.mxu0 0
      %4013 = vmatpush1.bf16.msra.mxu0 0
      %4014 = vmatprep.mubr.bf16.mxu0 0
      %4015 = vmatmul.mubr.bf16.gmra.mrb[0].mxu0 %v3980
      %v4016 = vpop.f32.mrb[0].mxu0
      %v4017 = vadd.f32 %v3965, %v4016
      %v4018 = vpop.f32.mrb[0].mxu0
      %v4019 = vpop.f32.mrb[0].mxu0
      %v4020 = vadd.f32 %v3965, %v4019
      %v4021 = vpop.f32.mrb[0].mxu0
      %4022 = vdwg.mxu0
      %v4023 = vsub.f32 0.0, %v4017
      %v4024 = vsub.f32 0.0, %v4020
      %v4025 = vmul.f32 %v4023, 1.442695
      %v4026 = vpow.pop %v4025
      %v4027 = vmul.f32 %v4024, 1.442695
      %v4028 = vpow.pop %v4027
      %v4029 = vadd.f32 %v4026, 1.0
      %v4030 = vadd.f32 %v4028, 1.0
      %v4031 = vrcp.pop %v4029
      %v4032 = vmul.f32 1.0, %v4031
      %v4033 = vrcp.pop %v4030
      %v4034 = vmul.f32 1.0, %v4033
      %vm4035 = vcmask 31744
      %4036 = vst.msk [vmem:[%s703] sm:$0xff] %vm4035, %v4032
      %vm4037 = vcmask 25600
      %4038 = vst.msk [vmem:[%s703 + $0x8] sm:$0x3] %vm4037, %v4034
      %p4039 = scmp.lt.s32.totalorder %s33, 1
      %s4040 = scalar_select %p4039, %s33, 1
      %s4041 = smul.addr %s4040, 2
      %s4042 = smul.addr %s4041, 8
      %s4043 = scalar_lea.vmem %s22, %s4042
      // Predicated region
      $region109: #{audio_diarization_forward.5} parent=107 // pred_check
        %p4044 = pneg %p523
      $region110: #{audio_diarization_forward.5} parent=107 // pred_check_branch
        %4046 = sbr.rel (%p4044) target = $region112
      $region111: #{audio_diarization_forward.5} parent=107 // pred_region
        _
      $region112: #{audio_diarization_forward.5} parent=107 // pred_fallthru
        _
    $region108: #{audio_diarization_forward.5} parent=5 // pred_fallthru
      _
    %p4047 = scmp.le.s32.totalorder 2, %s28
    // Predicated region
    $region113: #{audio_diarization_forward.5} parent=5 // pred_check
      %p4048 = pneg %p4047
    $region114: #{audio_diarization_forward.5} parent=5 // pred_check_branch
      %4050 = sbr.rel (%p4048) target = $region116
    $region115: #{audio_diarization_forward.5} parent=5 // pred_region
      %s4051 = ssub.s32 %s28, 2
      // Predicated region
      $region117: #{audio_diarization_forward.5} parent=115 // pred_check
        %p4052 = pneg %p529
      $region118: #{audio_diarization_forward.5} parent=115 // pred_check_branch
        %4054 = sbr.rel (%p4052) target = $region120
      $region119: #{audio_diarization_forward.5} parent=115 // pred_region
        %p4055 = scmp.lt.s32.totalorder %s34, 1
        %s4056 = scalar_select %p4055, %s34, 1
        %s4057 = smul.addr %s4056, 2
        %s4058 = smul.addr %s4057, 8
        %s4059 = scalar_lea.vmem %s22, %s4058
      $region120: #{audio_diarization_forward.5} parent=115 // pred_fallthru
        _
    $region116: #{audio_diarization_forward.5} parent=5 // pred_fallthru
      _
  $region6: #{audio_diarization_forward.5} parent=0 // loop_footer
    %s32 = sadd.s32 1, %s28
  $region7: #{audio_diarization_forward.5} parent=0 // loop_footer_branch
    %27 = sbr.rel target = $region3
  $region8: #{audio_diarization_forward.5} parent=0 // loop_exit
    _

</llo_original>
